<compile_context>
chip_gen: v7x
topology: tpu7x:2x2x1
jax: 0.10.0
libtpu: 0.0.40
codegen_flags: <defaults>
</compile_context>

<pallas_src>
import numpy as np
import jax
import jax.numpy as jnp
from jax.experimental import pallas as pl
from jax.experimental.pallas import tpu as pltpu

# ----------------------------- model config -----------------------------
IMG = 32          # img_size
PS = 4            # patch_size
IN_CH = 3
NUM_CLASSES = 10
EMBED = 16
DEPTHS = (1, 1)
HEADS = (2, 4)
WS = 4            # window_size
MLP_RATIO = 4.0
EPS = 1e-5
HEAD_DIM = 8      # EMBED // HEADS[0] == 2*EMBED // HEADS[1]

GRID0 = IMG // PS            # 8   (stage-0 token grid)
L0 = GRID0 * GRID0           # 64  tokens / image, stage 0
C0 = EMBED                   # 16
GRID1 = GRID0 // 2           # 4   (stage-1 token grid)
L1 = GRID1 * GRID1           # 16  tokens / image, stage 1
C1 = 2 * EMBED               # 32
PATCH_DIM = IN_CH * PS * PS  # 48
NEG = -1e9                   # off-window attention "mask"
INV_SQRT2 = float(1.0 / np.sqrt(2.0))

# Order in which the (batch-invariant) parameter/constant arrays are passed to
# the fused kernel.  Everything here is precomputed in init_params (review:
# hoist weight re-layouts out of the forward).
BCAST_ARG_NAMES = [
    'patch_w', 'patch_b',
    'qkv_w0', 'qkv_b0', 'attn_bias0', 'proj_w0', 'proj_b0',
    'n1_g0', 'n1_b0', 'mlp_w1_0', 'mlp_b1_0', 'mlp_w2_0', 'mlp_b2_0',
    'n2_g0', 'n2_b0', 'perm_a0', 'perm_b0',
    'merge_sel', 'merge_g', 'merge_b', 'merge_w',
    'qkv_w1', 'qkv_b1', 'attn_bias1', 'proj_w1', 'proj_b1',
    'n1_g1', 'n1_b1', 'mlp_w1_1', 'mlp_b1_1', 'mlp_w2_1', 'mlp_b2_1',
    'n2_g1', 'n2_b1', 'perm_a1', 'perm_b1',
    'final_g', 'final_b', 'head_w', 'head_b',
]


# ----------------------------- in-kernel math helpers -----------------------------
def _layernorm(x, g, b):
    mu = jnp.mean(x, axis=-1, keepdims=True)
    xc = x - mu
    var = jnp.mean(xc * xc, axis=-1, keepdims=True)
    return xc * jax.lax.rsqrt(var + EPS) * g + b


def _erf(x):
    # Abramowitz & Stegun 7.1.26 polynomial (|err| < 1.5e-7).  Uses only
    # mul/add/div/exp/select so it lowers in Mosaic on every TPU generation.
    a1, a2, a3, a4, a5 = 0.254829592, -0.284496736, 1.421413741, -1.453152027, 1.061405429
    pp = 0.3275911
    ax = jnp.abs(x)
    t = 1.0 / (1.0 + pp * ax)
    poly = t * (a1 + t * (a2 + t * (a3 + t * (a4 + t * a5))))
    y = 1.0 - poly * jnp.exp(-ax * ax)
    return jnp.where(x >= 0, y, -y)


def _gelu(x):
    # matches nn.GELU() (erf-based) up to ~1e-7
    return 0.5 * x * (1.0 + _erf(x * INV_SQRT2))


def _attention(x, qkv_w, qkv_b, bias_ref, proj_w, proj_b, nh, hd):
    """Windowed MHA over all tokens of one image in one shot.

    x: [M, C].  bias_ref: [nh, M, M] with the relative-position bias on
    in-window entries and -1e9 elsewhere, so a single M-wide matmul + softmax
    per head reproduces per-window attention (reference mask=None path).
    qkv projection is fused into one matmul (review item)."""
    M, C = x.shape
    scale = float(hd) ** -0.5
    qkv = jnp.dot(x, qkv_w, preferred_element_type=jnp.float32) + qkv_b       # [M, 3C]
    acc = jnp.zeros((M, C), jnp.float32)
    for h in range(nh):                                     # static unroll (<= 4)
        q = qkv[:, h * hd:(h + 1) * hd] * scale
        k = qkv[:, C + h * hd:C + (h + 1) * hd]
        v = qkv[:, 2 * C + h * hd:2 * C + (h + 1) * hd]
        s = jnp.einsum('nd,md->nm', q, k, preferred_element_type=jnp.float32)  # [M, M]
        s = s + bias_ref[h]
        s = s - jnp.max(s, axis=-1, keepdims=True)
        p = jnp.exp(s)
        p = p / jnp.sum(p, axis=-1, keepdims=True)          # exact divide (review note)
        o = jnp.dot(p, v, preferred_element_type=jnp.float32)                 # [M, hd]
        acc = acc + jnp.dot(o, proj_w[h * hd:(h + 1) * hd, :],
                            preferred_element_type=jnp.float32)
    return acc + proj_b


def _reperm(x, rowscat_ref, colsel_ref, nterms):
    """out = sum_i rowscat[i] @ (x.T @ colsel[i]).

    rowscat/colsel are precomputed 0/1 matrices, so this realizes an exact
    element permutation of x (the raw NCHW .view reinterpretations and their
    inverses) using only MXU matmuls and one 2-D transpose -- no lane-splitting
    reshapes or gathers inside the kernel."""
    xt = x.T
    out = None
    for i in range(nterms):                                 # static unroll (<= 4)
        term = jnp.dot(rowscat_ref[i],
                       jnp.dot(xt, colsel_ref[i], preferred_element_type=jnp.float32),
                       preferred_element_type=jnp.float32)
        out = term if out is None else out + term
    return out


def _mlp_half(x, g1, b1, w1, bb1, w2, bb2, g2, b2):
    """norm1 -> Linear + GELU -> Linear -> norm2 (no residuals, per reference)."""
    x = _layernorm(x, g1, b1)
    h = jnp.dot(x, w1, preferred_element_type=jnp.float32) + bb1
    h = _gelu(h)
    y = jnp.dot(h, w2, preferred_element_type=jnp.float32) + bb2
    return _layernorm(y, g2, b2)


def _patch_merge(x, msel_ref, g, b, w):
    """PatchMerging: 2x2 neighborhood gather (0/1 row-select matmuls) ->
    LayerNorm(4C) -> Linear(4C -> 2C, no bias), without materializing the
    concatenated tensor (LN stats combined across the four parts)."""
    C = x.shape[-1]
    parts = [jnp.dot(msel_ref[k], x, preferred_element_type=jnp.float32) for k in range(4)]
    s = None
    sq = None
    for pk in parts:
        ps = jnp.sum(pk, axis=-1, keepdims=True)
        pq = jnp.sum(pk * pk, axis=-1, keepdims=True)
        s = ps if s is None else s + ps
        sq = pq if sq is None else sq + pq
    inv_n = 1.0 / (4.0 * C)
    mu = s * inv_n
    var = sq * inv_n - mu * mu
    rs = jax.lax.rsqrt(var + EPS)
    out = None
    for k in range(4):
        gk = g[:, k * C:(k + 1) * C]
        bk = b[:, k * C:(k + 1) * C]
        xn = (parts[k] - mu) * rs * gk + bk
        term = jnp.dot(xn, w[k * C:(k + 1) * C, :], preferred_element_type=jnp.float32)
        out = term if out is None else out + term
    return out


# ----------------------------- the single fused kernel -----------------------------
def _swin_fused_kernel(*refs):
    """Whole SwinTransformer forward for ONE image (one grid step).

    Grid axis = batch (marked "parallel" so v7x can shard it over both
    TensorCores).  All intermediates stay in VMEM; only the [1,1,NUM_CLASSES]
    logits block is written back to HBM."""
    xp_ref = refs[0]
    o_ref = refs[-1]
    r = dict(zip(BCAST_ARG_NAMES, refs[1:-1]))

    # --- patch embedding (Conv2d k=stride=PS as an im2col matmul) ---
    x = jnp.dot(xp_ref[...], r['patch_w'][...],
                preferred_element_type=jnp.float32) + r['patch_b'][...]        # [L0, C0]
    # pos_drop(p=0.0) is identity.

    # TODO(synk): reference BasicLayer passes [B,L,C] into blocks expecting
    # [B,C,H,W] (ill-typed as written); bridged via the canonical NCHW<->token
    # map, which is what the spatially-ordered token rows here represent.
    # TODO(synk): no window padding path is needed for IMG=32 / WS=4; the fused
    # kernel bakes the unpadded geometry into its precomputed bias/permutation
    # constants (reference would leave padded tokens unmasked, mask=None path).

    # --- stage 0: windowed attention + raw-view MLP half ---
    att = _attention(x, r['qkv_w0'][...], r['qkv_b0'][...], r['attn_bias0'],
                     r['proj_w0'][...], r['proj_b0'][...], HEADS[0], HEAD_DIM)  # [L0, C0]
    rvt = _reperm(att, r['perm_b0'], r['perm_a0'], 4)       # raw .view(B,-1,C) of NCHW
    y = _mlp_half(rvt, r['n1_g0'][...], r['n1_b0'][...],
                  r['mlp_w1_0'][...], r['mlp_b1_0'][...],
                  r['mlp_w2_0'][...], r['mlp_b2_0'][...],
                  r['n2_g0'][...], r['n2_b0'][...])
    spt = _reperm(y, r['perm_a0'], r['perm_b0'], 4)         # raw .view(B,C,H,W) back

    # --- patch merging ---
    x1 = _patch_merge(spt, r['merge_sel'], r['merge_g'][...], r['merge_b'][...],
                      r['merge_w'][...])                                        # [L1, C1]

    # --- stage 1: single-window attention + raw-view MLP half ---
    att1 = _attention(x1, r['qkv_w1'][...], r['qkv_b1'][...], r['attn_bias1'],
                      r['proj_w1'][...], r['proj_b1'][...], HEADS[1], HEAD_DIM) # [L1, C1]
    rvt1 = _reperm(att1, r['perm_b1'], r['perm_a1'], 2)
    y1 = _mlp_half(rvt1, r['n1_g1'][...], r['n1_b1'][...],
                   r['mlp_w1_1'][...], r['mlp_b1_1'][...],
                   r['mlp_w2_1'][...], r['mlp_b2_1'][...],
                   r['n2_g1'][...], r['n2_b1'][...])
    spt1 = _reperm(y1, r['perm_a1'], r['perm_b1'], 2)                           # [L1, C1]

    # --- final LayerNorm -> token mean-pool -> classifier head ---
    xn = _layernorm(spt1, r['final_g'][...], r['final_b'][...])
    pooled = jnp.dot(jnp.full((1, L1), 1.0 / L1, jnp.float32), xn,
                     preferred_element_type=jnp.float32)                        # [1, C1]
    logits = jnp.dot(pooled, r['head_w'][...],
                     preferred_element_type=jnp.float32) + r['head_b'][...]     # [1, NUM_CLASSES]
    o_ref[...] = logits.reshape(1, 1, NUM_CLASSES)


# ----------------------------- precomputed constants -----------------------------
def _relative_position_index(ws):
    coords = np.stack(np.meshgrid(np.arange(ws), np.arange(ws), indexing='ij'))
    cf = coords.reshape(2, -1)
    rel = cf[:, :, None] - cf[:, None, :]
    rel = rel.transpose(1, 2, 0).astype(np.int64)
    rel[:, :, 0] += ws - 1
    rel[:, :, 1] += ws - 1
    rel[:, :, 0] *= 2 * ws - 1
    return rel.sum(-1)                      # [N, N]


def _stage0_bias(relbias):
    """Embed the per-window relative-position bias into [nh, L0, L0] over
    spatially-ordered tokens; -1e9 off-window => full-width softmax is exactly
    per-window softmax (and window partition/reverse vanish)."""
    nh = relbias.shape[0]
    full = np.full((nh, L0, L0), NEG, np.float32)
    for s in range(L0):
        h, w = s // GRID0, s % GRID0
        win = (h // WS) * (GRID0 // WS) + (w // WS)
        t = (h % WS) * WS + (w % WS)
        for s2 in range(L0):
            h2, w2 = s2 // GRID0, s2 % GRID0
            if (h2 // WS) * (GRID0 // WS) + (w2 // WS) == win:
                t2 = (h2 % WS) * WS + (w2 % WS)
                full[:, s, s2] = relbias[:, t, t2]
    return full


def _stage0_perms():
    # Raw view stage 0: RVT[c*4 + q, j] = SPT[q*16 + j, c]   (q=s//16, j=s%16)
    nq = L0 // C0                                    # 4
    a = np.zeros((nq, L0, C0), np.float32)           # a[q, q*16+j, j] = 1
    b = np.zeros((nq, L0, C0), np.float32)           # b[q, c*4+q, c] = 1
    for q in range(nq):
        for j in range(C0):
            a[q, q * C0 + j, j] = 1.0
        for c in range(C0):
            b[q, c * nq + q, c] = 1.0
    return a, b


def _stage1_perms():
    # Raw view stage 1 (C1=32 > L1=16): RVT[r, p*16+s] = SPT[s, 2r+p]
    a = np.zeros((2, L1, C1), np.float32)            # a[p, s, p*16+s] = 1
    b = np.zeros((2, L1, C1), np.float32)            # b[p, r, 2r+p]   = 1
    for p in range(2):
        for s in range(L1):
            a[p, s, p * L1 + s] = 1.0
        for rr in range(L1):
            b[p, rr, 2 * rr + p] = 1.0
    return a, b


def _merge_select():
    msel = np.zeros((4, L1, L0), np.float32)
    offs = [(0, 0), (1, 0), (0, 1), (1, 1)]          # x0, x1, x2, x3 order
    for k, (di, dj) in enumerate(offs):
        for i in range(GRID1):
            for j in range(GRID1):
                msel[k, i * GRID1 + j, (2 * i + di) * GRID0 + (2 * j + dj)] = 1.0
    return msel


# ----------------------------- parameter setup -----------------------------
def init_params(key):
    keys = iter(jax.random.split(key, 64))

    def nrm(shape, std=0.02):
        return jax.random.normal(next(keys), shape, jnp.float32) * std

    idx = _relative_position_index(WS)
    N = WS * WS

    p = {}
    # PatchEmbedding: Conv2d(k=stride=PS) pre-laid-out as an im2col matmul weight.
    w = nrm((EMBED, IN_CH, PS, PS), std=0.05)
    p['patch_w'] = jnp.reshape(w, (EMBED, PATCH_DIM)).T                # [48, 16]
    p['patch_b'] = nrm((1, EMBED))

    a0, b0 = _stage0_perms()
    a1, b1 = _stage1_perms()
    p['perm_a0'] = jnp.asarray(a0)
    p['perm_b0'] = jnp.asarray(b0)
    p['perm_a1'] = jnp.asarray(a1)
    p['perm_b1'] = jnp.asarray(b1)
    p['merge_sel'] = jnp.asarray(_merge_select())

    for si, (dim, heads) in enumerate(zip((C0, C1), HEADS)):
        sfx = str(si)
        hidden = int(dim * MLP_RATIO)
        table = np.asarray(nrm(((2 * WS - 1) ** 2, heads)))            # trunc_normal(std=.02)
        relbias = table[idx.reshape(-1)].reshape(N, N, heads).transpose(2, 0, 1)
        relbias = relbias.astype(np.float32)
        if si == 0:
            bias = _stage0_bias(relbias)                               # [2, 64, 64]
        else:
            bias = relbias                                             # [4, 16, 16] (one window)
        p['attn_bias' + sfx] = jnp.asarray(bias)
        p['qkv_w' + sfx] = nrm((dim, 3 * dim), std=0.05)               # fused qkv
        p['qkv_b' + sfx] = nrm((1, 3 * dim))
        p['proj_w' + sfx] = nrm((dim, dim), std=0.05)
        p['proj_b' + sfx] = nrm((1, dim))
        p['n1_g' + sfx] = jnp.ones((1, dim), jnp.float32)
        p['n1_b' + sfx] = jnp.zeros((1, dim), jnp.float32)
        p['n2_g' + sfx] = jnp.ones((1, dim), jnp.float32)
        p['n2_b' + sfx] = jnp.zeros((1, dim), jnp.float32)
        p['mlp_w1_' + sfx] = nrm((dim, hidden), std=0.05)
        p['mlp_b1_' + sfx] = nrm((1, hidden))
        p['mlp_w2_' + sfx] = nrm((hidden, dim), std=0.05)
        p['mlp_b2_' + sfx] = nrm((1, dim))

    p['merge_g'] = jnp.ones((1, 4 * C0), jnp.float32)
    p['merge_b'] = jnp.zeros((1, 4 * C0), jnp.float32)
    p['merge_w'] = nrm((4 * C0, 2 * C0), std=0.05)                     # Linear(4C->2C, no bias)

    p['final_g'] = jnp.ones((1, C1), jnp.float32)
    p['final_b'] = jnp.zeros((1, C1), jnp.float32)
    p['head_w'] = nrm((C1, NUM_CLASSES), std=0.05)
    p['head_b'] = nrm((1, NUM_CLASSES))
    return p


# ----------------------------- forward pass (one pallas_call) -----------------------------
def _zero_map(nd):
    return lambda b: (0,) * nd


def swin_forward(params, x):
    """x: [B, IN_CH, IMG, IMG] (NCHW) -> logits [B, NUM_CLASSES].  ONE kernel launch."""
    B = x.shape[0]
    # im2col for the patch-embed conv: the only XLA glue left in the forward.
    xp = x.reshape(B, IN_CH, GRID0, PS, GRID0, PS)
    xp = jnp.transpose(xp, (0, 2, 4, 1, 3, 5)).reshape(B * L0, PATCH_DIM)

    bargs = [params[k] for k in BCAST_ARG_NAMES]

    in_specs = [pl.BlockSpec((L0, PATCH_DIM), lambda b: (b, 0))]
    in_specs += [pl.BlockSpec(a.shape, _zero_map(a.ndim)) for a in bargs]

    out = pl.pallas_call(
        _swin_fused_kernel,
        out_shape=jax.ShapeDtypeStruct((B, 1, NUM_CLASSES), jnp.float32),
        grid=(B,),
        in_specs=in_specs,
        out_specs=pl.BlockSpec((1, 1, NUM_CLASSES), lambda b: (b, 0, 0)),
        compiler_params=pltpu.CompilerParams(
            dimension_semantics=("parallel",)),   # batch axis -> both TCs on v7x
    )(xp, *bargs)
    return out.reshape(B, NUM_CLASSES)


# ----------------------------- main -----------------------------
if __name__ == "__main__":
    key = jax.random.PRNGKey(0)
    pkey, xkey = jax.random.split(key)
    params = init_params(pkey)
    x = jax.random.normal(xkey, (2, IN_CH, IMG, IMG), jnp.float32)

    out = jax.jit(swin_forward)(params, x)
    out = jax.block_until_ready(out)

    assert out.shape == (2, NUM_CLASSES), out.shape
    assert np.all(np.isfinite(np.asarray(out)))
    print("KERNEL_OK")
</pallas_src>

<mosaic_0001>
module attributes {stable_mosaic.version = 11 : i64} {
  func.func @_swin_fused_kernel(%arg0: i32, %arg1: memref<64x48xf32, #tpu.memory_space<vmem>>, %arg2: memref<48x16xf32, #tpu.memory_space<vmem>>, %arg3: memref<1x16xf32, #tpu.memory_space<vmem>>, %arg4: memref<16x48xf32, #tpu.memory_space<vmem>>, %arg5: memref<1x48xf32, #tpu.memory_space<vmem>>, %arg6: memref<2x64x64xf32, #tpu.memory_space<vmem>>, %arg7: memref<16x16xf32, #tpu.memory_space<vmem>>, %arg8: memref<1x16xf32, #tpu.memory_space<vmem>>, %arg9: memref<1x16xf32, #tpu.memory_space<vmem>>, %arg10: memref<1x16xf32, #tpu.memory_space<vmem>>, %arg11: memref<16x64xf32, #tpu.memory_space<vmem>>, %arg12: memref<1x64xf32, #tpu.memory_space<vmem>>, %arg13: memref<64x16xf32, #tpu.memory_space<vmem>>, %arg14: memref<1x16xf32, #tpu.memory_space<vmem>>, %arg15: memref<1x16xf32, #tpu.memory_space<vmem>>, %arg16: memref<1x16xf32, #tpu.memory_space<vmem>>, %arg17: memref<4x64x16xf32, #tpu.memory_space<vmem>>, %arg18: memref<4x64x16xf32, #tpu.memory_space<vmem>>, %arg19: memref<4x16x64xf32, #tpu.memory_space<vmem>>, %arg20: memref<1x64xf32, #tpu.memory_space<vmem>>, %arg21: memref<1x64xf32, #tpu.memory_space<vmem>>, %arg22: memref<64x32xf32, #tpu.memory_space<vmem>>, %arg23: memref<32x96xf32, #tpu.memory_space<vmem>>, %arg24: memref<1x96xf32, #tpu.memory_space<vmem>>, %arg25: memref<4x16x16xf32, #tpu.memory_space<vmem>>, %arg26: memref<32x32xf32, #tpu.memory_space<vmem>>, %arg27: memref<1x32xf32, #tpu.memory_space<vmem>>, %arg28: memref<1x32xf32, #tpu.memory_space<vmem>>, %arg29: memref<1x32xf32, #tpu.memory_space<vmem>>, %arg30: memref<32x128xf32, #tpu.memory_space<vmem>>, %arg31: memref<1x128xf32, #tpu.memory_space<vmem>>, %arg32: memref<128x32xf32, #tpu.memory_space<vmem>>, %arg33: memref<1x32xf32, #tpu.memory_space<vmem>>, %arg34: memref<1x32xf32, #tpu.memory_space<vmem>>, %arg35: memref<1x32xf32, #tpu.memory_space<vmem>>, %arg36: memref<2x16x32xf32, #tpu.memory_space<vmem>>, %arg37: memref<2x16x32xf32, #tpu.memory_space<vmem>>, %arg38: memref<1x32xf32, #tpu.memory_space<vmem>>, %arg39: memref<1x32xf32, #tpu.memory_space<vmem>>, %arg40: memref<32x10xf32, #tpu.memory_space<vmem>>, %arg41: memref<1x10xf32, #tpu.memory_space<vmem>>, %arg42: memref<1x1x10xf32, #tpu.memory_space<vmem>>) attributes {dimension_semantics = [#tpu.dimension_semantics<parallel>], iteration_bounds = array<i64: 2>, scalar_prefetch = 0 : i64, scratch_operands = 0 : i64, tpu.core_type = #tpu.core_type<tc>, window_params = [{transform_indices = @transform_0, window_bounds = array<i64: 64, 48>}, {pipeline_mode = #tpu.pipeline_mode<synchronous>, transform_indices = @transform_1, window_bounds = array<i64: 48, 16>}, {pipeline_mode = #tpu.pipeline_mode<synchronous>, transform_indices = @transform_2, window_bounds = array<i64: 1, 16>}, {pipeline_mode = #tpu.pipeline_mode<synchronous>, transform_indices = @transform_3, window_bounds = array<i64: 16, 48>}, {pipeline_mode = #tpu.pipeline_mode<synchronous>, transform_indices = @transform_4, window_bounds = array<i64: 1, 48>}, {pipeline_mode = #tpu.pipeline_mode<synchronous>, transform_indices = @transform_5, window_bounds = array<i64: 2, 64, 64>}, {pipeline_mode = #tpu.pipeline_mode<synchronous>, transform_indices = @transform_6, window_bounds = array<i64: 16, 16>}, {pipeline_mode = #tpu.pipeline_mode<synchronous>, transform_indices = @transform_7, window_bounds = array<i64: 1, 16>}, {pipeline_mode = #tpu.pipeline_mode<synchronous>, transform_indices = @transform_8, window_bounds = array<i64: 1, 16>}, {pipeline_mode = #tpu.pipeline_mode<synchronous>, transform_indices = @transform_9, window_bounds = array<i64: 1, 16>}, {pipeline_mode = #tpu.pipeline_mode<synchronous>, transform_indices = @transform_10, window_bounds = array<i64: 16, 64>}, {pipeline_mode = #tpu.pipeline_mode<synchronous>, transform_indices = @transform_11, window_bounds = array<i64: 1, 64>}, {pipeline_mode = #tpu.pipeline_mode<synchronous>, transform_indices = @transform_12, window_bounds = array<i64: 64, 16>}, {pipeline_mode = #tpu.pipeline_mode<synchronous>, transform_indices = @transform_13, window_bounds = array<i64: 1, 16>}, {pipeline_mode = #tpu.pipeline_mode<synchronous>, transform_indices = @transform_14, window_bounds = array<i64: 1, 16>}, {pipeline_mode = #tpu.pipeline_mode<synchronous>, transform_indices = @transform_15, window_bounds = array<i64: 1, 16>}, {pipeline_mode = #tpu.pipeline_mode<synchronous>, transform_indices = @transform_16, window_bounds = array<i64: 4, 64, 16>}, {pipeline_mode = #tpu.pipeline_mode<synchronous>, transform_indices = @transform_17, window_bounds = array<i64: 4, 64, 16>}, {pipeline_mode = #tpu.pipeline_mode<synchronous>, transform_indices = @transform_18, window_bounds = array<i64: 4, 16, 64>}, {pipeline_mode = #tpu.pipeline_mode<synchronous>, transform_indices = @transform_19, window_bounds = array<i64: 1, 64>}, {pipeline_mode = #tpu.pipeline_mode<synchronous>, transform_indices = @transform_20, window_bounds = array<i64: 1, 64>}, {pipeline_mode = #tpu.pipeline_mode<synchronous>, transform_indices = @transform_21, window_bounds = array<i64: 64, 32>}, {pipeline_mode = #tpu.pipeline_mode<synchronous>, transform_indices = @transform_22, window_bounds = array<i64: 32, 96>}, {pipeline_mode = #tpu.pipeline_mode<synchronous>, transform_indices = @transform_23, window_bounds = array<i64: 1, 96>}, {pipeline_mode = #tpu.pipeline_mode<synchronous>, transform_indices = @transform_24, window_bounds = array<i64: 4, 16, 16>}, {pipeline_mode = #tpu.pipeline_mode<synchronous>, transform_indices = @transform_25, window_bounds = array<i64: 32, 32>}, {pipeline_mode = #tpu.pipeline_mode<synchronous>, transform_indices = @transform_26, window_bounds = array<i64: 1, 32>}, {pipeline_mode = #tpu.pipeline_mode<synchronous>, transform_indices = @transform_27, window_bounds = array<i64: 1, 32>}, {pipeline_mode = #tpu.pipeline_mode<synchronous>, transform_indices = @transform_28, window_bounds = array<i64: 1, 32>}, {pipeline_mode = #tpu.pipeline_mode<synchronous>, transform_indices = @transform_29, window_bounds = array<i64: 32, 128>}, {pipeline_mode = #tpu.pipeline_mode<synchronous>, transform_indices = @transform_30, window_bounds = array<i64: 1, 128>}, {pipeline_mode = #tpu.pipeline_mode<synchronous>, transform_indices = @transform_31, window_bounds = array<i64: 128, 32>}, {pipeline_mode = #tpu.pipeline_mode<synchronous>, transform_indices = @transform_32, window_bounds = array<i64: 1, 32>}, {pipeline_mode = #tpu.pipeline_mode<synchronous>, transform_indices = @transform_33, window_bounds = array<i64: 1, 32>}, {pipeline_mode = #tpu.pipeline_mode<synchronous>, transform_indices = @transform_34, window_bounds = array<i64: 1, 32>}, {pipeline_mode = #tpu.pipeline_mode<synchronous>, transform_indices = @transform_35, window_bounds = array<i64: 2, 16, 32>}, {pipeline_mode = #tpu.pipeline_mode<synchronous>, transform_indices = @transform_36, window_bounds = array<i64: 2, 16, 32>}, {pipeline_mode = #tpu.pipeline_mode<synchronous>, transform_indices = @transform_37, window_bounds = array<i64: 1, 32>}, {pipeline_mode = #tpu.pipeline_mode<synchronous>, transform_indices = @transform_38, window_bounds = array<i64: 1, 32>}, {pipeline_mode = #tpu.pipeline_mode<synchronous>, transform_indices = @transform_39, window_bounds = array<i64: 32, 10>}, {pipeline_mode = #tpu.pipeline_mode<synchronous>, transform_indices = @transform_40, window_bounds = array<i64: 1, 10>}, {transform_indices = @transform_41, window_bounds = array<i64: 1, 1, 10>}]} {
    %c0 = arith.constant 0 : index
    %c0_0 = arith.constant 0 : index
    %0 = vector.load %arg1[%c0, %c0_0] : memref<64x48xf32, #tpu.memory_space<vmem>>, vector<64x48xf32>
    %c0_1 = arith.constant 0 : index
    %c0_2 = arith.constant 0 : index
    %1 = vector.load %arg2[%c0_1, %c0_2] : memref<48x16xf32, #tpu.memory_space<vmem>>, vector<48x16xf32>
    %cst = arith.constant dense<0.000000e+00> : vector<64x16xf32>
    %2 = tpu.matmul %0, %1, %cst {dimension_numbers = #tpu.dot_dimension_numbers<[1], [0], [0], [1], [0, 0, 1, 1], [], []>} : vector<64x48xf32>, vector<48x16xf32>, vector<64x16xf32> -> vector<64x16xf32>
    %c0_3 = arith.constant 0 : index
    %c0_4 = arith.constant 0 : index
    %3 = vector.load %arg3[%c0_3, %c0_4] : memref<1x16xf32, #tpu.memory_space<vmem>>, vector<1x16xf32>
    %4 = vector.broadcast %3 : vector<1x16xf32> to vector<64x16xf32>
    %5 = arith.addf %2, %4 : vector<64x16xf32>
    %c0_5 = arith.constant 0 : index
    %c0_6 = arith.constant 0 : index
    %6 = vector.load %arg4[%c0_5, %c0_6] : memref<16x48xf32, #tpu.memory_space<vmem>>, vector<16x48xf32>
    %c0_7 = arith.constant 0 : index
    %c0_8 = arith.constant 0 : index
    %7 = vector.load %arg5[%c0_7, %c0_8] : memref<1x48xf32, #tpu.memory_space<vmem>>, vector<1x48xf32>
    %c0_9 = arith.constant 0 : index
    %c0_10 = arith.constant 0 : index
    %8 = vector.load %arg7[%c0_9, %c0_10] : memref<16x16xf32, #tpu.memory_space<vmem>>, vector<16x16xf32>
    %c0_11 = arith.constant 0 : index
    %c0_12 = arith.constant 0 : index
    %9 = vector.load %arg8[%c0_11, %c0_12] : memref<1x16xf32, #tpu.memory_space<vmem>>, vector<1x16xf32>
    %cst_13 = arith.constant dense<0.000000e+00> : vector<64x48xf32>
    %10 = tpu.matmul %5, %6, %cst_13 {dimension_numbers = #tpu.dot_dimension_numbers<[1], [0], [0], [1], [0, 0, 1, 1], [], []>} : vector<64x16xf32>, vector<16x48xf32>, vector<64x48xf32> -> vector<64x48xf32>
    %11 = vector.broadcast %7 : vector<1x48xf32> to vector<64x48xf32>
    %12 = arith.addf %10, %11 : vector<64x48xf32>
    %cst_14 = arith.constant 0.000000e+00 : f32
    %13 = vector.broadcast %cst_14 : f32 to vector<64x16xf32>
    %14 = vector.extract_strided_slice %12 {offsets = [0, 0], sizes = [64, 8], strides = [1, 1]} : vector<64x48xf32> to vector<64x8xf32>
    %cst_15 = arith.constant 0.353553385 : f32
    %15 = vector.broadcast %cst_15 : f32 to vector<64x8xf32>
    %16 = arith.mulf %14, %15 : vector<64x8xf32>
    %17 = vector.extract_strided_slice %12 {offsets = [0, 16], sizes = [64, 8], strides = [1, 1]} : vector<64x48xf32> to vector<64x8xf32>
    %18 = vector.extract_strided_slice %12 {offsets = [0, 32], sizes = [64, 8], strides = [1, 1]} : vector<64x48xf32> to vector<64x8xf32>
    "tpu.trace_start"() <{level = 10 : i32, message = "nd,md->nm"}> : () -> ()
    %cst_16 = arith.constant dense<0.000000e+00> : vector<64x64xf32>
    %19 = tpu.matmul %16, %17, %cst_16 {dimension_numbers = #tpu.dot_dimension_numbers<[1], [1], [0], [0], [0, 0, 1, 0], [], []>} : vector<64x8xf32>, vector<64x8xf32>, vector<64x64xf32> -> vector<64x64xf32>
    "tpu.trace_stop"() : () -> ()
    %c0_17 = arith.constant 0 : index
    %c0_18 = arith.constant 0 : index
    %c0_19 = arith.constant 0 : index
    %20 = vector.load %arg6[%c0_17, %c0_18, %c0_19] : memref<2x64x64xf32, #tpu.memory_space<vmem>>, vector<1x64x64xf32>
    %21 = vector.shape_cast %20 : vector<1x64x64xf32> to vector<64x64xf32>
    %22 = arith.addf %19, %21 : vector<64x64xf32>
    %cst_20 = arith.constant dense<0xFF800000> : vector<64xf32>
    %23 = vector.multi_reduction <maximumf>, %22, %cst_20 [1] : vector<64x64xf32> to vector<64xf32>
    %24 = vector.shape_cast %23 : vector<64xf32> to vector<64x1xf32>
    %25 = vector.broadcast %24 : vector<64x1xf32> to vector<64x64xf32>
    %26 = arith.subf %22, %25 : vector<64x64xf32>
    %27 = math.exp %26 : vector<64x64xf32>
    %cst_21 = arith.constant dense<0.000000e+00> : vector<64xf32>
    %28 = vector.multi_reduction <add>, %27, %cst_21 [1] : vector<64x64xf32> to vector<64xf32>
    %29 = vector.shape_cast %28 : vector<64xf32> to vector<64x1xf32>
    %30 = vector.broadcast %29 : vector<64x1xf32> to vector<64x64xf32>
    %31 = arith.divf %27, %30 : vector<64x64xf32>
    %cst_22 = arith.constant dense<0.000000e+00> : vector<64x8xf32>
    %32 = tpu.matmul %31, %18, %cst_22 {dimension_numbers = #tpu.dot_dimension_numbers<[1], [0], [0], [1], [0, 0, 1, 1], [], []>} : vector<64x64xf32>, vector<64x8xf32>, vector<64x8xf32> -> vector<64x8xf32>
    %33 = vector.extract_strided_slice %8 {offsets = [0, 0], sizes = [8, 16], strides = [1, 1]} : vector<16x16xf32> to vector<8x16xf32>
    %cst_23 = arith.constant dense<0.000000e+00> : vector<64x16xf32>
    %34 = tpu.matmul %32, %33, %cst_23 {dimension_numbers = #tpu.dot_dimension_numbers<[1], [0], [0], [1], [0, 0, 1, 1], [], []>} : vector<64x8xf32>, vector<8x16xf32>, vector<64x16xf32> -> vector<64x16xf32>
    %35 = arith.addf %13, %34 : vector<64x16xf32>
    %36 = vector.extract_strided_slice %12 {offsets = [0, 8], sizes = [64, 8], strides = [1, 1]} : vector<64x48xf32> to vector<64x8xf32>
    %cst_24 = arith.constant 0.353553385 : f32
    %37 = vector.broadcast %cst_24 : f32 to vector<64x8xf32>
    %38 = arith.mulf %36, %37 : vector<64x8xf32>
    %39 = vector.extract_strided_slice %12 {offsets = [0, 24], sizes = [64, 8], strides = [1, 1]} : vector<64x48xf32> to vector<64x8xf32>
    %40 = vector.extract_strided_slice %12 {offsets = [0, 40], sizes = [64, 8], strides = [1, 1]} : vector<64x48xf32> to vector<64x8xf32>
    "tpu.trace_start"() <{level = 10 : i32, message = "nd,md->nm"}> : () -> ()
    %cst_25 = arith.constant dense<0.000000e+00> : vector<64x64xf32>
    %41 = tpu.matmul %38, %39, %cst_25 {dimension_numbers = #tpu.dot_dimension_numbers<[1], [1], [0], [0], [0, 0, 1, 0], [], []>} : vector<64x8xf32>, vector<64x8xf32>, vector<64x64xf32> -> vector<64x64xf32>
    "tpu.trace_stop"() : () -> ()
    %c1 = arith.constant 1 : index
    %c0_26 = arith.constant 0 : index
    %c0_27 = arith.constant 0 : index
    %42 = vector.load %arg6[%c1, %c0_26, %c0_27] : memref<2x64x64xf32, #tpu.memory_space<vmem>>, vector<1x64x64xf32>
    %43 = vector.shape_cast %42 : vector<1x64x64xf32> to vector<64x64xf32>
    %44 = arith.addf %41, %43 : vector<64x64xf32>
    %cst_28 = arith.constant dense<0xFF800000> : vector<64xf32>
    %45 = vector.multi_reduction <maximumf>, %44, %cst_28 [1] : vector<64x64xf32> to vector<64xf32>
    %46 = vector.shape_cast %45 : vector<64xf32> to vector<64x1xf32>
    %47 = vector.broadcast %46 : vector<64x1xf32> to vector<64x64xf32>
    %48 = arith.subf %44, %47 : vector<64x64xf32>
    %49 = math.exp %48 : vector<64x64xf32>
    %cst_29 = arith.constant dense<0.000000e+00> : vector<64xf32>
    %50 = vector.multi_reduction <add>, %49, %cst_29 [1] : vector<64x64xf32> to vector<64xf32>
    %51 = vector.shape_cast %50 : vector<64xf32> to vector<64x1xf32>
    %52 = vector.broadcast %51 : vector<64x1xf32> to vector<64x64xf32>
    %53 = arith.divf %49, %52 : vector<64x64xf32>
    %cst_30 = arith.constant dense<0.000000e+00> : vector<64x8xf32>
    %54 = tpu.matmul %53, %40, %cst_30 {dimension_numbers = #tpu.dot_dimension_numbers<[1], [0], [0], [1], [0, 0, 1, 1], [], []>} : vector<64x64xf32>, vector<64x8xf32>, vector<64x8xf32> -> vector<64x8xf32>
    %55 = vector.extract_strided_slice %8 {offsets = [8, 0], sizes = [8, 16], strides = [1, 1]} : vector<16x16xf32> to vector<8x16xf32>
    %cst_31 = arith.constant dense<0.000000e+00> : vector<64x16xf32>
    %56 = tpu.matmul %54, %55, %cst_31 {dimension_numbers = #tpu.dot_dimension_numbers<[1], [0], [0], [1], [0, 0, 1, 1], [], []>} : vector<64x8xf32>, vector<8x16xf32>, vector<64x16xf32> -> vector<64x16xf32>
    %57 = arith.addf %35, %56 : vector<64x16xf32>
    %58 = vector.broadcast %9 : vector<1x16xf32> to vector<64x16xf32>
    %59 = arith.addf %57, %58 : vector<64x16xf32>
    %60 = tpu.transpose %59, [1, 0] : vector<64x16xf32> -> vector<16x64xf32>
    %c0_32 = arith.constant 0 : index
    %c0_33 = arith.constant 0 : index
    %c0_34 = arith.constant 0 : index
    %61 = vector.load %arg18[%c0_32, %c0_33, %c0_34] : memref<4x64x16xf32, #tpu.memory_space<vmem>>, vector<1x64x16xf32>
    %62 = vector.shape_cast %61 : vector<1x64x16xf32> to vector<64x16xf32>
    %c0_35 = arith.constant 0 : index
    %c0_36 = arith.constant 0 : index
    %c0_37 = arith.constant 0 : index
    %63 = vector.load %arg17[%c0_35, %c0_36, %c0_37] : memref<4x64x16xf32, #tpu.memory_space<vmem>>, vector<1x64x16xf32>
    %64 = vector.shape_cast %63 : vector<1x64x16xf32> to vector<64x16xf32>
    %cst_38 = arith.constant dense<0.000000e+00> : vector<16x16xf32>
    %65 = tpu.matmul %60, %64, %cst_38 {dimension_numbers = #tpu.dot_dimension_numbers<[1], [0], [0], [1], [0, 0, 1, 1], [], []>} : vector<16x64xf32>, vector<64x16xf32>, vector<16x16xf32> -> vector<16x16xf32>
    %cst_39 = arith.constant dense<0.000000e+00> : vector<64x16xf32>
    %66 = tpu.matmul %62, %65, %cst_39 {dimension_numbers = #tpu.dot_dimension_numbers<[1], [0], [0], [1], [0, 0, 1, 1], [], []>} : vector<64x16xf32>, vector<16x16xf32>, vector<64x16xf32> -> vector<64x16xf32>
    %c1_40 = arith.constant 1 : index
    %c0_41 = arith.constant 0 : index
    %c0_42 = arith.constant 0 : index
    %67 = vector.load %arg18[%c1_40, %c0_41, %c0_42] : memref<4x64x16xf32, #tpu.memory_space<vmem>>, vector<1x64x16xf32>
    %68 = vector.shape_cast %67 : vector<1x64x16xf32> to vector<64x16xf32>
    %c1_43 = arith.constant 1 : index
    %c0_44 = arith.constant 0 : index
    %c0_45 = arith.constant 0 : index
    %69 = vector.load %arg17[%c1_43, %c0_44, %c0_45] : memref<4x64x16xf32, #tpu.memory_space<vmem>>, vector<1x64x16xf32>
    %70 = vector.shape_cast %69 : vector<1x64x16xf32> to vector<64x16xf32>
    %cst_46 = arith.constant dense<0.000000e+00> : vector<16x16xf32>
    %71 = tpu.matmul %60, %70, %cst_46 {dimension_numbers = #tpu.dot_dimension_numbers<[1], [0], [0], [1], [0, 0, 1, 1], [], []>} : vector<16x64xf32>, vector<64x16xf32>, vector<16x16xf32> -> vector<16x16xf32>
    %cst_47 = arith.constant dense<0.000000e+00> : vector<64x16xf32>
    %72 = tpu.matmul %68, %71, %cst_47 {dimension_numbers = #tpu.dot_dimension_numbers<[1], [0], [0], [1], [0, 0, 1, 1], [], []>} : vector<64x16xf32>, vector<16x16xf32>, vector<64x16xf32> -> vector<64x16xf32>
    %73 = arith.addf %66, %72 : vector<64x16xf32>
    %c2 = arith.constant 2 : index
    %c0_48 = arith.constant 0 : index
    %c0_49 = arith.constant 0 : index
    %74 = vector.load %arg18[%c2, %c0_48, %c0_49] : memref<4x64x16xf32, #tpu.memory_space<vmem>>, vector<1x64x16xf32>
    %75 = vector.shape_cast %74 : vector<1x64x16xf32> to vector<64x16xf32>
    %c2_50 = arith.constant 2 : index
    %c0_51 = arith.constant 0 : index
    %c0_52 = arith.constant 0 : index
    %76 = vector.load %arg17[%c2_50, %c0_51, %c0_52] : memref<4x64x16xf32, #tpu.memory_space<vmem>>, vector<1x64x16xf32>
    %77 = vector.shape_cast %76 : vector<1x64x16xf32> to vector<64x16xf32>
    %cst_53 = arith.constant dense<0.000000e+00> : vector<16x16xf32>
    %78 = tpu.matmul %60, %77, %cst_53 {dimension_numbers = #tpu.dot_dimension_numbers<[1], [0], [0], [1], [0, 0, 1, 1], [], []>} : vector<16x64xf32>, vector<64x16xf32>, vector<16x16xf32> -> vector<16x16xf32>
    %cst_54 = arith.constant dense<0.000000e+00> : vector<64x16xf32>
    %79 = tpu.matmul %75, %78, %cst_54 {dimension_numbers = #tpu.dot_dimension_numbers<[1], [0], [0], [1], [0, 0, 1, 1], [], []>} : vector<64x16xf32>, vector<16x16xf32>, vector<64x16xf32> -> vector<64x16xf32>
    %80 = arith.addf %73, %79 : vector<64x16xf32>
    %c3 = arith.constant 3 : index
    %c0_55 = arith.constant 0 : index
    %c0_56 = arith.constant 0 : index
    %81 = vector.load %arg18[%c3, %c0_55, %c0_56] : memref<4x64x16xf32, #tpu.memory_space<vmem>>, vector<1x64x16xf32>
    %82 = vector.shape_cast %81 : vector<1x64x16xf32> to vector<64x16xf32>
    %c3_57 = arith.constant 3 : index
    %c0_58 = arith.constant 0 : index
    %c0_59 = arith.constant 0 : index
    %83 = vector.load %arg17[%c3_57, %c0_58, %c0_59] : memref<4x64x16xf32, #tpu.memory_space<vmem>>, vector<1x64x16xf32>
    %84 = vector.shape_cast %83 : vector<1x64x16xf32> to vector<64x16xf32>
    %cst_60 = arith.constant dense<0.000000e+00> : vector<16x16xf32>
    %85 = tpu.matmul %60, %84, %cst_60 {dimension_numbers = #tpu.dot_dimension_numbers<[1], [0], [0], [1], [0, 0, 1, 1], [], []>} : vector<16x64xf32>, vector<64x16xf32>, vector<16x16xf32> -> vector<16x16xf32>
    %cst_61 = arith.constant dense<0.000000e+00> : vector<64x16xf32>
    %86 = tpu.matmul %82, %85, %cst_61 {dimension_numbers = #tpu.dot_dimension_numbers<[1], [0], [0], [1], [0, 0, 1, 1], [], []>} : vector<64x16xf32>, vector<16x16xf32>, vector<64x16xf32> -> vector<64x16xf32>
    %87 = arith.addf %80, %86 : vector<64x16xf32>
    %c0_62 = arith.constant 0 : index
    %c0_63 = arith.constant 0 : index
    %88 = vector.load %arg9[%c0_62, %c0_63] : memref<1x16xf32, #tpu.memory_space<vmem>>, vector<1x16xf32>
    %c0_64 = arith.constant 0 : index
    %c0_65 = arith.constant 0 : index
    %89 = vector.load %arg10[%c0_64, %c0_65] : memref<1x16xf32, #tpu.memory_space<vmem>>, vector<1x16xf32>
    %c0_66 = arith.constant 0 : index
    %c0_67 = arith.constant 0 : index
    %90 = vector.load %arg11[%c0_66, %c0_67] : memref<16x64xf32, #tpu.memory_space<vmem>>, vector<16x64xf32>
    %c0_68 = arith.constant 0 : index
    %c0_69 = arith.constant 0 : index
    %91 = vector.load %arg12[%c0_68, %c0_69] : memref<1x64xf32, #tpu.memory_space<vmem>>, vector<1x64xf32>
    %c0_70 = arith.constant 0 : index
    %c0_71 = arith.constant 0 : index
    %92 = vector.load %arg13[%c0_70, %c0_71] : memref<64x16xf32, #tpu.memory_space<vmem>>, vector<64x16xf32>
    %c0_72 = arith.constant 0 : index
    %c0_73 = arith.constant 0 : index
    %93 = vector.load %arg14[%c0_72, %c0_73] : memref<1x16xf32, #tpu.memory_space<vmem>>, vector<1x16xf32>
    %c0_74 = arith.constant 0 : index
    %c0_75 = arith.constant 0 : index
    %94 = vector.load %arg15[%c0_74, %c0_75] : memref<1x16xf32, #tpu.memory_space<vmem>>, vector<1x16xf32>
    %c0_76 = arith.constant 0 : index
    %c0_77 = arith.constant 0 : index
    %95 = vector.load %arg16[%c0_76, %c0_77] : memref<1x16xf32, #tpu.memory_space<vmem>>, vector<1x16xf32>
    %cst_78 = arith.constant dense<0.000000e+00> : vector<64xf32>
    %96 = vector.multi_reduction <add>, %87, %cst_78 [1] : vector<64x16xf32> to vector<64xf32>
    %97 = vector.shape_cast %96 : vector<64xf32> to vector<64x1xf32>
    %cst_79 = arith.constant 1.600000e+01 : f32
    %98 = vector.broadcast %cst_79 : f32 to vector<64x1xf32>
    %99 = arith.divf %97, %98 : vector<64x1xf32>
    %100 = vector.broadcast %99 : vector<64x1xf32> to vector<64x16xf32>
    %101 = arith.subf %87, %100 : vector<64x16xf32>
    %102 = arith.mulf %101, %101 : vector<64x16xf32>
    %cst_80 = arith.constant dense<0.000000e+00> : vector<64xf32>
    %103 = vector.multi_reduction <add>, %102, %cst_80 [1] : vector<64x16xf32> to vector<64xf32>
    %104 = vector.shape_cast %103 : vector<64xf32> to vector<64x1xf32>
    %cst_81 = arith.constant 1.600000e+01 : f32
    %105 = vector.broadcast %cst_81 : f32 to vector<64x1xf32>
    %106 = arith.divf %104, %105 : vector<64x1xf32>
    %cst_82 = arith.constant 9.99999974E-6 : f32
    %107 = vector.broadcast %cst_82 : f32 to vector<64x1xf32>
    %108 = arith.addf %106, %107 : vector<64x1xf32>
    %109 = math.rsqrt %108 : vector<64x1xf32>
    %110 = vector.broadcast %109 : vector<64x1xf32> to vector<64x16xf32>
    %111 = arith.mulf %101, %110 : vector<64x16xf32>
    %112 = vector.broadcast %88 : vector<1x16xf32> to vector<64x16xf32>
    %113 = arith.mulf %111, %112 : vector<64x16xf32>
    %114 = vector.broadcast %89 : vector<1x16xf32> to vector<64x16xf32>
    %115 = arith.addf %113, %114 : vector<64x16xf32>
    %cst_83 = arith.constant dense<0.000000e+00> : vector<64x64xf32>
    %116 = tpu.matmul %115, %90, %cst_83 {dimension_numbers = #tpu.dot_dimension_numbers<[1], [0], [0], [1], [0, 0, 1, 1], [], []>} : vector<64x16xf32>, vector<16x64xf32>, vector<64x64xf32> -> vector<64x64xf32>
    %117 = vector.broadcast %91 : vector<1x64xf32> to vector<64x64xf32>
    %118 = arith.addf %116, %117 : vector<64x64xf32>
    %cst_84 = arith.constant 5.000000e-01 : f32
    %119 = vector.broadcast %cst_84 : f32 to vector<64x64xf32>
    %120 = arith.mulf %119, %118 : vector<64x64xf32>
    %cst_85 = arith.constant 0.707106769 : f32
    %121 = vector.broadcast %cst_85 : f32 to vector<64x64xf32>
    %122 = arith.mulf %118, %121 : vector<64x64xf32>
    %123 = math.absf %122 : vector<64x64xf32>
    %cst_86 = arith.constant 0.327591091 : f32
    %124 = vector.broadcast %cst_86 : f32 to vector<64x64xf32>
    %125 = arith.mulf %124, %123 : vector<64x64xf32>
    %cst_87 = arith.constant 1.000000e+00 : f32
    %126 = vector.broadcast %cst_87 : f32 to vector<64x64xf32>
    %127 = arith.addf %126, %125 : vector<64x64xf32>
    %cst_88 = arith.constant 1.000000e+00 : f32
    %128 = vector.broadcast %cst_88 : f32 to vector<64x64xf32>
    %129 = arith.divf %128, %127 : vector<64x64xf32>
    %cst_89 = arith.constant 1.06140542 : f32
    %130 = vector.broadcast %cst_89 : f32 to vector<64x64xf32>
    %131 = arith.mulf %129, %130 : vector<64x64xf32>
    %cst_90 = arith.constant -1.45315206 : f32
    %132 = vector.broadcast %cst_90 : f32 to vector<64x64xf32>
    %133 = arith.addf %132, %131 : vector<64x64xf32>
    %134 = arith.mulf %129, %133 : vector<64x64xf32>
    %cst_91 = arith.constant 1.42141378 : f32
    %135 = vector.broadcast %cst_91 : f32 to vector<64x64xf32>
    %136 = arith.addf %135, %134 : vector<64x64xf32>
    %137 = arith.mulf %129, %136 : vector<64x64xf32>
    %cst_92 = arith.constant -0.284496725 : f32
    %138 = vector.broadcast %cst_92 : f32 to vector<64x64xf32>
    %139 = arith.addf %138, %137 : vector<64x64xf32>
    %140 = arith.mulf %129, %139 : vector<64x64xf32>
    %cst_93 = arith.constant 0.254829586 : f32
    %141 = vector.broadcast %cst_93 : f32 to vector<64x64xf32>
    %142 = arith.addf %141, %140 : vector<64x64xf32>
    %143 = arith.mulf %129, %142 : vector<64x64xf32>
    %cst_94 = arith.constant 0.000000e+00 : f32
    %144 = vector.broadcast %cst_94 : f32 to vector<64x64xf32>
    %145 = arith.subf %144, %123 : vector<64x64xf32>
    %146 = arith.mulf %145, %123 : vector<64x64xf32>
    %147 = math.exp %146 : vector<64x64xf32>
    %148 = arith.mulf %143, %147 : vector<64x64xf32>
    %cst_95 = arith.constant 1.000000e+00 : f32
    %149 = vector.broadcast %cst_95 : f32 to vector<64x64xf32>
    %150 = arith.subf %149, %148 : vector<64x64xf32>
    %cst_96 = arith.constant 0.000000e+00 : f32
    %151 = vector.broadcast %cst_96 : f32 to vector<64x64xf32>
    %152 = arith.cmpf oge, %122, %151 : vector<64x64xf32>
    %cst_97 = arith.constant 0.000000e+00 : f32
    %153 = vector.broadcast %cst_97 : f32 to vector<64x64xf32>
    %154 = arith.subf %153, %150 : vector<64x64xf32>
    %155 = arith.select %152, %150, %154 : vector<64x64xi1>, vector<64x64xf32>
    %cst_98 = arith.constant 1.000000e+00 : f32
    %156 = vector.broadcast %cst_98 : f32 to vector<64x64xf32>
    %157 = arith.addf %156, %155 : vector<64x64xf32>
    %158 = arith.mulf %120, %157 : vector<64x64xf32>
    %cst_99 = arith.constant dense<0.000000e+00> : vector<64x16xf32>
    %159 = tpu.matmul %158, %92, %cst_99 {dimension_numbers = #tpu.dot_dimension_numbers<[1], [0], [0], [1], [0, 0, 1, 1], [], []>} : vector<64x64xf32>, vector<64x16xf32>, vector<64x16xf32> -> vector<64x16xf32>
    %160 = vector.broadcast %93 : vector<1x16xf32> to vector<64x16xf32>
    %161 = arith.addf %159, %160 : vector<64x16xf32>
    %cst_100 = arith.constant dense<0.000000e+00> : vector<64xf32>
    %162 = vector.multi_reduction <add>, %161, %cst_100 [1] : vector<64x16xf32> to vector<64xf32>
    %163 = vector.shape_cast %162 : vector<64xf32> to vector<64x1xf32>
    %cst_101 = arith.constant 1.600000e+01 : f32
    %164 = vector.broadcast %cst_101 : f32 to vector<64x1xf32>
    %165 = arith.divf %163, %164 : vector<64x1xf32>
    %166 = vector.broadcast %165 : vector<64x1xf32> to vector<64x16xf32>
    %167 = arith.subf %161, %166 : vector<64x16xf32>
    %168 = arith.mulf %167, %167 : vector<64x16xf32>
    %cst_102 = arith.constant dense<0.000000e+00> : vector<64xf32>
    %169 = vector.multi_reduction <add>, %168, %cst_102 [1] : vector<64x16xf32> to vector<64xf32>
    %170 = vector.shape_cast %169 : vector<64xf32> to vector<64x1xf32>
    %cst_103 = arith.constant 1.600000e+01 : f32
    %171 = vector.broadcast %cst_103 : f32 to vector<64x1xf32>
    %172 = arith.divf %170, %171 : vector<64x1xf32>
    %cst_104 = arith.constant 9.99999974E-6 : f32
    %173 = vector.broadcast %cst_104 : f32 to vector<64x1xf32>
    %174 = arith.addf %172, %173 : vector<64x1xf32>
    %175 = math.rsqrt %174 : vector<64x1xf32>
    %176 = vector.broadcast %175 : vector<64x1xf32> to vector<64x16xf32>
    %177 = arith.mulf %167, %176 : vector<64x16xf32>
    %178 = vector.broadcast %94 : vector<1x16xf32> to vector<64x16xf32>
    %179 = arith.mulf %177, %178 : vector<64x16xf32>
    %180 = vector.broadcast %95 : vector<1x16xf32> to vector<64x16xf32>
    %181 = arith.addf %179, %180 : vector<64x16xf32>
    %182 = tpu.transpose %181, [1, 0] : vector<64x16xf32> -> vector<16x64xf32>
    %c0_105 = arith.constant 0 : index
    %c0_106 = arith.constant 0 : index
    %c0_107 = arith.constant 0 : index
    %183 = vector.load %arg17[%c0_105, %c0_106, %c0_107] : memref<4x64x16xf32, #tpu.memory_space<vmem>>, vector<1x64x16xf32>
    %184 = vector.shape_cast %183 : vector<1x64x16xf32> to vector<64x16xf32>
    %c0_108 = arith.constant 0 : index
    %c0_109 = arith.constant 0 : index
    %c0_110 = arith.constant 0 : index
    %185 = vector.load %arg18[%c0_108, %c0_109, %c0_110] : memref<4x64x16xf32, #tpu.memory_space<vmem>>, vector<1x64x16xf32>
    %186 = vector.shape_cast %185 : vector<1x64x16xf32> to vector<64x16xf32>
    %cst_111 = arith.constant dense<0.000000e+00> : vector<16x16xf32>
    %187 = tpu.matmul %182, %186, %cst_111 {dimension_numbers = #tpu.dot_dimension_numbers<[1], [0], [0], [1], [0, 0, 1, 1], [], []>} : vector<16x64xf32>, vector<64x16xf32>, vector<16x16xf32> -> vector<16x16xf32>
    %cst_112 = arith.constant dense<0.000000e+00> : vector<64x16xf32>
    %188 = tpu.matmul %184, %187, %cst_112 {dimension_numbers = #tpu.dot_dimension_numbers<[1], [0], [0], [1], [0, 0, 1, 1], [], []>} : vector<64x16xf32>, vector<16x16xf32>, vector<64x16xf32> -> vector<64x16xf32>
    %c1_113 = arith.constant 1 : index
    %c0_114 = arith.constant 0 : index
    %c0_115 = arith.constant 0 : index
    %189 = vector.load %arg17[%c1_113, %c0_114, %c0_115] : memref<4x64x16xf32, #tpu.memory_space<vmem>>, vector<1x64x16xf32>
    %190 = vector.shape_cast %189 : vector<1x64x16xf32> to vector<64x16xf32>
    %c1_116 = arith.constant 1 : index
    %c0_117 = arith.constant 0 : index
    %c0_118 = arith.constant 0 : index
    %191 = vector.load %arg18[%c1_116, %c0_117, %c0_118] : memref<4x64x16xf32, #tpu.memory_space<vmem>>, vector<1x64x16xf32>
    %192 = vector.shape_cast %191 : vector<1x64x16xf32> to vector<64x16xf32>
    %cst_119 = arith.constant dense<0.000000e+00> : vector<16x16xf32>
    %193 = tpu.matmul %182, %192, %cst_119 {dimension_numbers = #tpu.dot_dimension_numbers<[1], [0], [0], [1], [0, 0, 1, 1], [], []>} : vector<16x64xf32>, vector<64x16xf32>, vector<16x16xf32> -> vector<16x16xf32>
    %cst_120 = arith.constant dense<0.000000e+00> : vector<64x16xf32>
    %194 = tpu.matmul %190, %193, %cst_120 {dimension_numbers = #tpu.dot_dimension_numbers<[1], [0], [0], [1], [0, 0, 1, 1], [], []>} : vector<64x16xf32>, vector<16x16xf32>, vector<64x16xf32> -> vector<64x16xf32>
    %195 = arith.addf %188, %194 : vector<64x16xf32>
    %c2_121 = arith.constant 2 : index
    %c0_122 = arith.constant 0 : index
    %c0_123 = arith.constant 0 : index
    %196 = vector.load %arg17[%c2_121, %c0_122, %c0_123] : memref<4x64x16xf32, #tpu.memory_space<vmem>>, vector<1x64x16xf32>
    %197 = vector.shape_cast %196 : vector<1x64x16xf32> to vector<64x16xf32>
    %c2_124 = arith.constant 2 : index
    %c0_125 = arith.constant 0 : index
    %c0_126 = arith.constant 0 : index
    %198 = vector.load %arg18[%c2_124, %c0_125, %c0_126] : memref<4x64x16xf32, #tpu.memory_space<vmem>>, vector<1x64x16xf32>
    %199 = vector.shape_cast %198 : vector<1x64x16xf32> to vector<64x16xf32>
    %cst_127 = arith.constant dense<0.000000e+00> : vector<16x16xf32>
    %200 = tpu.matmul %182, %199, %cst_127 {dimension_numbers = #tpu.dot_dimension_numbers<[1], [0], [0], [1], [0, 0, 1, 1], [], []>} : vector<16x64xf32>, vector<64x16xf32>, vector<16x16xf32> -> vector<16x16xf32>
    %cst_128 = arith.constant dense<0.000000e+00> : vector<64x16xf32>
    %201 = tpu.matmul %197, %200, %cst_128 {dimension_numbers = #tpu.dot_dimension_numbers<[1], [0], [0], [1], [0, 0, 1, 1], [], []>} : vector<64x16xf32>, vector<16x16xf32>, vector<64x16xf32> -> vector<64x16xf32>
    %202 = arith.addf %195, %201 : vector<64x16xf32>
    %c3_129 = arith.constant 3 : index
    %c0_130 = arith.constant 0 : index
    %c0_131 = arith.constant 0 : index
    %203 = vector.load %arg17[%c3_129, %c0_130, %c0_131] : memref<4x64x16xf32, #tpu.memory_space<vmem>>, vector<1x64x16xf32>
    %204 = vector.shape_cast %203 : vector<1x64x16xf32> to vector<64x16xf32>
    %c3_132 = arith.constant 3 : index
    %c0_133 = arith.constant 0 : index
    %c0_134 = arith.constant 0 : index
    %205 = vector.load %arg18[%c3_132, %c0_133, %c0_134] : memref<4x64x16xf32, #tpu.memory_space<vmem>>, vector<1x64x16xf32>
    %206 = vector.shape_cast %205 : vector<1x64x16xf32> to vector<64x16xf32>
    %cst_135 = arith.constant dense<0.000000e+00> : vector<16x16xf32>
    %207 = tpu.matmul %182, %206, %cst_135 {dimension_numbers = #tpu.dot_dimension_numbers<[1], [0], [0], [1], [0, 0, 1, 1], [], []>} : vector<16x64xf32>, vector<64x16xf32>, vector<16x16xf32> -> vector<16x16xf32>
    %cst_136 = arith.constant dense<0.000000e+00> : vector<64x16xf32>
    %208 = tpu.matmul %204, %207, %cst_136 {dimension_numbers = #tpu.dot_dimension_numbers<[1], [0], [0], [1], [0, 0, 1, 1], [], []>} : vector<64x16xf32>, vector<16x16xf32>, vector<64x16xf32> -> vector<64x16xf32>
    %209 = arith.addf %202, %208 : vector<64x16xf32>
    %c0_137 = arith.constant 0 : index
    %c0_138 = arith.constant 0 : index
    %210 = vector.load %arg20[%c0_137, %c0_138] : memref<1x64xf32, #tpu.memory_space<vmem>>, vector<1x64xf32>
    %c0_139 = arith.constant 0 : index
    %c0_140 = arith.constant 0 : index
    %211 = vector.load %arg21[%c0_139, %c0_140] : memref<1x64xf32, #tpu.memory_space<vmem>>, vector<1x64xf32>
    %c0_141 = arith.constant 0 : index
    %c0_142 = arith.constant 0 : index
    %212 = vector.load %arg22[%c0_141, %c0_142] : memref<64x32xf32, #tpu.memory_space<vmem>>, vector<64x32xf32>
    %c0_143 = arith.constant 0 : index
    %c0_144 = arith.constant 0 : index
    %c0_145 = arith.constant 0 : index
    %213 = vector.load %arg19[%c0_143, %c0_144, %c0_145] : memref<4x16x64xf32, #tpu.memory_space<vmem>>, vector<1x16x64xf32>
    %214 = vector.shape_cast %213 : vector<1x16x64xf32> to vector<16x64xf32>
    %cst_146 = arith.constant dense<0.000000e+00> : vector<16x16xf32>
    %215 = tpu.matmul %214, %209, %cst_146 {dimension_numbers = #tpu.dot_dimension_numbers<[1], [0], [0], [1], [0, 0, 1, 1], [], []>} : vector<16x64xf32>, vector<64x16xf32>, vector<16x16xf32> -> vector<16x16xf32>
    %c1_147 = arith.constant 1 : index
    %c0_148 = arith.constant 0 : index
    %c0_149 = arith.constant 0 : index
    %216 = vector.load %arg19[%c1_147, %c0_148, %c0_149] : memref<4x16x64xf32, #tpu.memory_space<vmem>>, vector<1x16x64xf32>
    %217 = vector.shape_cast %216 : vector<1x16x64xf32> to vector<16x64xf32>
    %cst_150 = arith.constant dense<0.000000e+00> : vector<16x16xf32>
    %218 = tpu.matmul %217, %209, %cst_150 {dimension_numbers = #tpu.dot_dimension_numbers<[1], [0], [0], [1], [0, 0, 1, 1], [], []>} : vector<16x64xf32>, vector<64x16xf32>, vector<16x16xf32> -> vector<16x16xf32>
    %c2_151 = arith.constant 2 : index
    %c0_152 = arith.constant 0 : index
    %c0_153 = arith.constant 0 : index
    %219 = vector.load %arg19[%c2_151, %c0_152, %c0_153] : memref<4x16x64xf32, #tpu.memory_space<vmem>>, vector<1x16x64xf32>
    %220 = vector.shape_cast %219 : vector<1x16x64xf32> to vector<16x64xf32>
    %cst_154 = arith.constant dense<0.000000e+00> : vector<16x16xf32>
    %221 = tpu.matmul %220, %209, %cst_154 {dimension_numbers = #tpu.dot_dimension_numbers<[1], [0], [0], [1], [0, 0, 1, 1], [], []>} : vector<16x64xf32>, vector<64x16xf32>, vector<16x16xf32> -> vector<16x16xf32>
    %c3_155 = arith.constant 3 : index
    %c0_156 = arith.constant 0 : index
    %c0_157 = arith.constant 0 : index
    %222 = vector.load %arg19[%c3_155, %c0_156, %c0_157] : memref<4x16x64xf32, #tpu.memory_space<vmem>>, vector<1x16x64xf32>
    %223 = vector.shape_cast %222 : vector<1x16x64xf32> to vector<16x64xf32>
    %cst_158 = arith.constant dense<0.000000e+00> : vector<16x16xf32>
    %224 = tpu.matmul %223, %209, %cst_158 {dimension_numbers = #tpu.dot_dimension_numbers<[1], [0], [0], [1], [0, 0, 1, 1], [], []>} : vector<16x64xf32>, vector<64x16xf32>, vector<16x16xf32> -> vector<16x16xf32>
    %cst_159 = arith.constant dense<0.000000e+00> : vector<16xf32>
    %225 = vector.multi_reduction <add>, %215, %cst_159 [1] : vector<16x16xf32> to vector<16xf32>
    %226 = vector.shape_cast %225 : vector<16xf32> to vector<16x1xf32>
    %227 = arith.mulf %215, %215 : vector<16x16xf32>
    %cst_160 = arith.constant dense<0.000000e+00> : vector<16xf32>
    %228 = vector.multi_reduction <add>, %227, %cst_160 [1] : vector<16x16xf32> to vector<16xf32>
    %229 = vector.shape_cast %228 : vector<16xf32> to vector<16x1xf32>
    %cst_161 = arith.constant dense<0.000000e+00> : vector<16xf32>
    %230 = vector.multi_reduction <add>, %218, %cst_161 [1] : vector<16x16xf32> to vector<16xf32>
    %231 = vector.shape_cast %230 : vector<16xf32> to vector<16x1xf32>
    %232 = arith.mulf %218, %218 : vector<16x16xf32>
    %cst_162 = arith.constant dense<0.000000e+00> : vector<16xf32>
    %233 = vector.multi_reduction <add>, %232, %cst_162 [1] : vector<16x16xf32> to vector<16xf32>
    %234 = vector.shape_cast %233 : vector<16xf32> to vector<16x1xf32>
    %235 = arith.addf %226, %231 : vector<16x1xf32>
    %236 = arith.addf %229, %234 : vector<16x1xf32>
    %cst_163 = arith.constant dense<0.000000e+00> : vector<16xf32>
    %237 = vector.multi_reduction <add>, %221, %cst_163 [1] : vector<16x16xf32> to vector<16xf32>
    %238 = vector.shape_cast %237 : vector<16xf32> to vector<16x1xf32>
    %239 = arith.mulf %221, %221 : vector<16x16xf32>
    %cst_164 = arith.constant dense<0.000000e+00> : vector<16xf32>
    %240 = vector.multi_reduction <add>, %239, %cst_164 [1] : vector<16x16xf32> to vector<16xf32>
    %241 = vector.shape_cast %240 : vector<16xf32> to vector<16x1xf32>
    %242 = arith.addf %235, %238 : vector<16x1xf32>
    %243 = arith.addf %236, %241 : vector<16x1xf32>
    %cst_165 = arith.constant dense<0.000000e+00> : vector<16xf32>
    %244 = vector.multi_reduction <add>, %224, %cst_165 [1] : vector<16x16xf32> to vector<16xf32>
    %245 = vector.shape_cast %244 : vector<16xf32> to vector<16x1xf32>
    %246 = arith.mulf %224, %224 : vector<16x16xf32>
    %cst_166 = arith.constant dense<0.000000e+00> : vector<16xf32>
    %247 = vector.multi_reduction <add>, %246, %cst_166 [1] : vector<16x16xf32> to vector<16xf32>
    %248 = vector.shape_cast %247 : vector<16xf32> to vector<16x1xf32>
    %249 = arith.addf %242, %245 : vector<16x1xf32>
    %250 = arith.addf %243, %248 : vector<16x1xf32>
    %cst_167 = arith.constant 1.562500e-02 : f32
    %251 = vector.broadcast %cst_167 : f32 to vector<16x1xf32>
    %252 = arith.mulf %249, %251 : vector<16x1xf32>
    %cst_168 = arith.constant 1.562500e-02 : f32
    %253 = vector.broadcast %cst_168 : f32 to vector<16x1xf32>
    %254 = arith.mulf %250, %253 : vector<16x1xf32>
    %255 = arith.mulf %252, %252 : vector<16x1xf32>
    %256 = arith.subf %254, %255 : vector<16x1xf32>
    %cst_169 = arith.constant 9.99999974E-6 : f32
    %257 = vector.broadcast %cst_169 : f32 to vector<16x1xf32>
    %258 = arith.addf %256, %257 : vector<16x1xf32>
    %259 = math.rsqrt %258 : vector<16x1xf32>
    %260 = vector.extract_strided_slice %210 {offsets = [0, 0], sizes = [1, 16], strides = [1, 1]} : vector<1x64xf32> to vector<1x16xf32>
    %261 = vector.extract_strided_slice %211 {offsets = [0, 0], sizes = [1, 16], strides = [1, 1]} : vector<1x64xf32> to vector<1x16xf32>
    %262 = vector.broadcast %252 : vector<16x1xf32> to vector<16x16xf32>
    %263 = arith.subf %215, %262 : vector<16x16xf32>
    %264 = vector.broadcast %259 : vector<16x1xf32> to vector<16x16xf32>
    %265 = arith.mulf %263, %264 : vector<16x16xf32>
    %266 = vector.broadcast %260 : vector<1x16xf32> to vector<16x16xf32>
    %267 = arith.mulf %265, %266 : vector<16x16xf32>
    %268 = vector.broadcast %261 : vector<1x16xf32> to vector<16x16xf32>
    %269 = arith.addf %267, %268 : vector<16x16xf32>
    %270 = vector.extract_strided_slice %212 {offsets = [0, 0], sizes = [16, 32], strides = [1, 1]} : vector<64x32xf32> to vector<16x32xf32>
    %cst_170 = arith.constant dense<0.000000e+00> : vector<16x32xf32>
    %271 = tpu.matmul %269, %270, %cst_170 {dimension_numbers = #tpu.dot_dimension_numbers<[1], [0], [0], [1], [0, 0, 1, 1], [], []>} : vector<16x16xf32>, vector<16x32xf32>, vector<16x32xf32> -> vector<16x32xf32>
    %272 = vector.extract_strided_slice %210 {offsets = [0, 16], sizes = [1, 16], strides = [1, 1]} : vector<1x64xf32> to vector<1x16xf32>
    %273 = vector.extract_strided_slice %211 {offsets = [0, 16], sizes = [1, 16], strides = [1, 1]} : vector<1x64xf32> to vector<1x16xf32>
    %274 = vector.broadcast %252 : vector<16x1xf32> to vector<16x16xf32>
    %275 = arith.subf %218, %274 : vector<16x16xf32>
    %276 = vector.broadcast %259 : vector<16x1xf32> to vector<16x16xf32>
    %277 = arith.mulf %275, %276 : vector<16x16xf32>
    %278 = vector.broadcast %272 : vector<1x16xf32> to vector<16x16xf32>
    %279 = arith.mulf %277, %278 : vector<16x16xf32>
    %280 = vector.broadcast %273 : vector<1x16xf32> to vector<16x16xf32>
    %281 = arith.addf %279, %280 : vector<16x16xf32>
    %282 = vector.extract_strided_slice %212 {offsets = [16, 0], sizes = [16, 32], strides = [1, 1]} : vector<64x32xf32> to vector<16x32xf32>
    %cst_171 = arith.constant dense<0.000000e+00> : vector<16x32xf32>
    %283 = tpu.matmul %281, %282, %cst_171 {dimension_numbers = #tpu.dot_dimension_numbers<[1], [0], [0], [1], [0, 0, 1, 1], [], []>} : vector<16x16xf32>, vector<16x32xf32>, vector<16x32xf32> -> vector<16x32xf32>
    %284 = arith.addf %271, %283 : vector<16x32xf32>
    %285 = vector.extract_strided_slice %210 {offsets = [0, 32], sizes = [1, 16], strides = [1, 1]} : vector<1x64xf32> to vector<1x16xf32>
    %286 = vector.extract_strided_slice %211 {offsets = [0, 32], sizes = [1, 16], strides = [1, 1]} : vector<1x64xf32> to vector<1x16xf32>
    %287 = vector.broadcast %252 : vector<16x1xf32> to vector<16x16xf32>
    %288 = arith.subf %221, %287 : vector<16x16xf32>
    %289 = vector.broadcast %259 : vector<16x1xf32> to vector<16x16xf32>
    %290 = arith.mulf %288, %289 : vector<16x16xf32>
    %291 = vector.broadcast %285 : vector<1x16xf32> to vector<16x16xf32>
    %292 = arith.mulf %290, %291 : vector<16x16xf32>
    %293 = vector.broadcast %286 : vector<1x16xf32> to vector<16x16xf32>
    %294 = arith.addf %292, %293 : vector<16x16xf32>
    %295 = vector.extract_strided_slice %212 {offsets = [32, 0], sizes = [16, 32], strides = [1, 1]} : vector<64x32xf32> to vector<16x32xf32>
    %cst_172 = arith.constant dense<0.000000e+00> : vector<16x32xf32>
    %296 = tpu.matmul %294, %295, %cst_172 {dimension_numbers = #tpu.dot_dimension_numbers<[1], [0], [0], [1], [0, 0, 1, 1], [], []>} : vector<16x16xf32>, vector<16x32xf32>, vector<16x32xf32> -> vector<16x32xf32>
    %297 = arith.addf %284, %296 : vector<16x32xf32>
    %298 = vector.extract_strided_slice %210 {offsets = [0, 48], sizes = [1, 16], strides = [1, 1]} : vector<1x64xf32> to vector<1x16xf32>
    %299 = vector.extract_strided_slice %211 {offsets = [0, 48], sizes = [1, 16], strides = [1, 1]} : vector<1x64xf32> to vector<1x16xf32>
    %300 = vector.broadcast %252 : vector<16x1xf32> to vector<16x16xf32>
    %301 = arith.subf %224, %300 : vector<16x16xf32>
    %302 = vector.broadcast %259 : vector<16x1xf32> to vector<16x16xf32>
    %303 = arith.mulf %301, %302 : vector<16x16xf32>
    %304 = vector.broadcast %298 : vector<1x16xf32> to vector<16x16xf32>
    %305 = arith.mulf %303, %304 : vector<16x16xf32>
    %306 = vector.broadcast %299 : vector<1x16xf32> to vector<16x16xf32>
    %307 = arith.addf %305, %306 : vector<16x16xf32>
    %308 = vector.extract_strided_slice %212 {offsets = [48, 0], sizes = [16, 32], strides = [1, 1]} : vector<64x32xf32> to vector<16x32xf32>
    %cst_173 = arith.constant dense<0.000000e+00> : vector<16x32xf32>
    %309 = tpu.matmul %307, %308, %cst_173 {dimension_numbers = #tpu.dot_dimension_numbers<[1], [0], [0], [1], [0, 0, 1, 1], [], []>} : vector<16x16xf32>, vector<16x32xf32>, vector<16x32xf32> -> vector<16x32xf32>
    %310 = arith.addf %297, %309 : vector<16x32xf32>
    %c0_174 = arith.constant 0 : index
    %c0_175 = arith.constant 0 : index
    %311 = vector.load %arg23[%c0_174, %c0_175] : memref<32x96xf32, #tpu.memory_space<vmem>>, vector<32x96xf32>
    %c0_176 = arith.constant 0 : index
    %c0_177 = arith.constant 0 : index
    %312 = vector.load %arg24[%c0_176, %c0_177] : memref<1x96xf32, #tpu.memory_space<vmem>>, vector<1x96xf32>
    %c0_178 = arith.constant 0 : index
    %c0_179 = arith.constant 0 : index
    %313 = vector.load %arg26[%c0_178, %c0_179] : memref<32x32xf32, #tpu.memory_space<vmem>>, vector<32x32xf32>
    %c0_180 = arith.constant 0 : index
    %c0_181 = arith.constant 0 : index
    %314 = vector.load %arg27[%c0_180, %c0_181] : memref<1x32xf32, #tpu.memory_space<vmem>>, vector<1x32xf32>
    %cst_182 = arith.constant dense<0.000000e+00> : vector<16x96xf32>
    %315 = tpu.matmul %310, %311, %cst_182 {dimension_numbers = #tpu.dot_dimension_numbers<[1], [0], [0], [1], [0, 0, 1, 1], [], []>} : vector<16x32xf32>, vector<32x96xf32>, vector<16x96xf32> -> vector<16x96xf32>
    %316 = vector.broadcast %312 : vector<1x96xf32> to vector<16x96xf32>
    %317 = arith.addf %315, %316 : vector<16x96xf32>
    %cst_183 = arith.constant 0.000000e+00 : f32
    %318 = vector.broadcast %cst_183 : f32 to vector<16x32xf32>
    %319 = vector.extract_strided_slice %317 {offsets = [0, 0], sizes = [16, 8], strides = [1, 1]} : vector<16x96xf32> to vector<16x8xf32>
    %cst_184 = arith.constant 0.353553385 : f32
    %320 = vector.broadcast %cst_184 : f32 to vector<16x8xf32>
    %321 = arith.mulf %319, %320 : vector<16x8xf32>
    %322 = vector.extract_strided_slice %317 {offsets = [0, 32], sizes = [16, 8], strides = [1, 1]} : vector<16x96xf32> to vector<16x8xf32>
    %323 = vector.extract_strided_slice %317 {offsets = [0, 64], sizes = [16, 8], strides = [1, 1]} : vector<16x96xf32> to vector<16x8xf32>
    "tpu.trace_start"() <{level = 10 : i32, message = "nd,md->nm"}> : () -> ()
    %cst_185 = arith.constant dense<0.000000e+00> : vector<16x16xf32>
    %324 = tpu.matmul %321, %322, %cst_185 {dimension_numbers = #tpu.dot_dimension_numbers<[1], [1], [0], [0], [0, 0, 1, 0], [], []>} : vector<16x8xf32>, vector<16x8xf32>, vector<16x16xf32> -> vector<16x16xf32>
    "tpu.trace_stop"() : () -> ()
    %c0_186 = arith.constant 0 : index
    %c0_187 = arith.constant 0 : index
    %c0_188 = arith.constant 0 : index
    %325 = vector.load %arg25[%c0_186, %c0_187, %c0_188] : memref<4x16x16xf32, #tpu.memory_space<vmem>>, vector<1x16x16xf32>
    %326 = vector.shape_cast %325 : vector<1x16x16xf32> to vector<16x16xf32>
    %327 = arith.addf %324, %326 : vector<16x16xf32>
    %cst_189 = arith.constant dense<0xFF800000> : vector<16xf32>
    %328 = vector.multi_reduction <maximumf>, %327, %cst_189 [1] : vector<16x16xf32> to vector<16xf32>
    %329 = vector.shape_cast %328 : vector<16xf32> to vector<16x1xf32>
    %330 = vector.broadcast %329 : vector<16x1xf32> to vector<16x16xf32>
    %331 = arith.subf %327, %330 : vector<16x16xf32>
    %332 = math.exp %331 : vector<16x16xf32>
    %cst_190 = arith.constant dense<0.000000e+00> : vector<16xf32>
    %333 = vector.multi_reduction <add>, %332, %cst_190 [1] : vector<16x16xf32> to vector<16xf32>
    %334 = vector.shape_cast %333 : vector<16xf32> to vector<16x1xf32>
    %335 = vector.broadcast %334 : vector<16x1xf32> to vector<16x16xf32>
    %336 = arith.divf %332, %335 : vector<16x16xf32>
    %cst_191 = arith.constant dense<0.000000e+00> : vector<16x8xf32>
    %337 = tpu.matmul %336, %323, %cst_191 {dimension_numbers = #tpu.dot_dimension_numbers<[1], [0], [0], [1], [0, 0, 1, 1], [], []>} : vector<16x16xf32>, vector<16x8xf32>, vector<16x8xf32> -> vector<16x8xf32>
    %338 = vector.extract_strided_slice %313 {offsets = [0, 0], sizes = [8, 32], strides = [1, 1]} : vector<32x32xf32> to vector<8x32xf32>
    %cst_192 = arith.constant dense<0.000000e+00> : vector<16x32xf32>
    %339 = tpu.matmul %337, %338, %cst_192 {dimension_numbers = #tpu.dot_dimension_numbers<[1], [0], [0], [1], [0, 0, 1, 1], [], []>} : vector<16x8xf32>, vector<8x32xf32>, vector<16x32xf32> -> vector<16x32xf32>
    %340 = arith.addf %318, %339 : vector<16x32xf32>
    %341 = vector.extract_strided_slice %317 {offsets = [0, 8], sizes = [16, 8], strides = [1, 1]} : vector<16x96xf32> to vector<16x8xf32>
    %cst_193 = arith.constant 0.353553385 : f32
    %342 = vector.broadcast %cst_193 : f32 to vector<16x8xf32>
    %343 = arith.mulf %341, %342 : vector<16x8xf32>
    %344 = vector.extract_strided_slice %317 {offsets = [0, 40], sizes = [16, 8], strides = [1, 1]} : vector<16x96xf32> to vector<16x8xf32>
    %345 = vector.extract_strided_slice %317 {offsets = [0, 72], sizes = [16, 8], strides = [1, 1]} : vector<16x96xf32> to vector<16x8xf32>
    "tpu.trace_start"() <{level = 10 : i32, message = "nd,md->nm"}> : () -> ()
    %cst_194 = arith.constant dense<0.000000e+00> : vector<16x16xf32>
    %346 = tpu.matmul %343, %344, %cst_194 {dimension_numbers = #tpu.dot_dimension_numbers<[1], [1], [0], [0], [0, 0, 1, 0], [], []>} : vector<16x8xf32>, vector<16x8xf32>, vector<16x16xf32> -> vector<16x16xf32>
    "tpu.trace_stop"() : () -> ()
    %c1_195 = arith.constant 1 : index
    %c0_196 = arith.constant 0 : index
    %c0_197 = arith.constant 0 : index
    %347 = vector.load %arg25[%c1_195, %c0_196, %c0_197] : memref<4x16x16xf32, #tpu.memory_space<vmem>>, vector<1x16x16xf32>
    %348 = vector.shape_cast %347 : vector<1x16x16xf32> to vector<16x16xf32>
    %349 = arith.addf %346, %348 : vector<16x16xf32>
    %cst_198 = arith.constant dense<0xFF800000> : vector<16xf32>
    %350 = vector.multi_reduction <maximumf>, %349, %cst_198 [1] : vector<16x16xf32> to vector<16xf32>
    %351 = vector.shape_cast %350 : vector<16xf32> to vector<16x1xf32>
    %352 = vector.broadcast %351 : vector<16x1xf32> to vector<16x16xf32>
    %353 = arith.subf %349, %352 : vector<16x16xf32>
    %354 = math.exp %353 : vector<16x16xf32>
    %cst_199 = arith.constant dense<0.000000e+00> : vector<16xf32>
    %355 = vector.multi_reduction <add>, %354, %cst_199 [1] : vector<16x16xf32> to vector<16xf32>
    %356 = vector.shape_cast %355 : vector<16xf32> to vector<16x1xf32>
    %357 = vector.broadcast %356 : vector<16x1xf32> to vector<16x16xf32>
    %358 = arith.divf %354, %357 : vector<16x16xf32>
    %cst_200 = arith.constant dense<0.000000e+00> : vector<16x8xf32>
    %359 = tpu.matmul %358, %345, %cst_200 {dimension_numbers = #tpu.dot_dimension_numbers<[1], [0], [0], [1], [0, 0, 1, 1], [], []>} : vector<16x16xf32>, vector<16x8xf32>, vector<16x8xf32> -> vector<16x8xf32>
    %360 = vector.extract_strided_slice %313 {offsets = [8, 0], sizes = [8, 32], strides = [1, 1]} : vector<32x32xf32> to vector<8x32xf32>
    %cst_201 = arith.constant dense<0.000000e+00> : vector<16x32xf32>
    %361 = tpu.matmul %359, %360, %cst_201 {dimension_numbers = #tpu.dot_dimension_numbers<[1], [0], [0], [1], [0, 0, 1, 1], [], []>} : vector<16x8xf32>, vector<8x32xf32>, vector<16x32xf32> -> vector<16x32xf32>
    %362 = arith.addf %340, %361 : vector<16x32xf32>
    %363 = vector.extract_strided_slice %317 {offsets = [0, 16], sizes = [16, 8], strides = [1, 1]} : vector<16x96xf32> to vector<16x8xf32>
    %cst_202 = arith.constant 0.353553385 : f32
    %364 = vector.broadcast %cst_202 : f32 to vector<16x8xf32>
    %365 = arith.mulf %363, %364 : vector<16x8xf32>
    %366 = vector.extract_strided_slice %317 {offsets = [0, 48], sizes = [16, 8], strides = [1, 1]} : vector<16x96xf32> to vector<16x8xf32>
    %367 = vector.extract_strided_slice %317 {offsets = [0, 80], sizes = [16, 8], strides = [1, 1]} : vector<16x96xf32> to vector<16x8xf32>
    "tpu.trace_start"() <{level = 10 : i32, message = "nd,md->nm"}> : () -> ()
    %cst_203 = arith.constant dense<0.000000e+00> : vector<16x16xf32>
    %368 = tpu.matmul %365, %366, %cst_203 {dimension_numbers = #tpu.dot_dimension_numbers<[1], [1], [0], [0], [0, 0, 1, 0], [], []>} : vector<16x8xf32>, vector<16x8xf32>, vector<16x16xf32> -> vector<16x16xf32>
    "tpu.trace_stop"() : () -> ()
    %c2_204 = arith.constant 2 : index
    %c0_205 = arith.constant 0 : index
    %c0_206 = arith.constant 0 : index
    %369 = vector.load %arg25[%c2_204, %c0_205, %c0_206] : memref<4x16x16xf32, #tpu.memory_space<vmem>>, vector<1x16x16xf32>
    %370 = vector.shape_cast %369 : vector<1x16x16xf32> to vector<16x16xf32>
    %371 = arith.addf %368, %370 : vector<16x16xf32>
    %cst_207 = arith.constant dense<0xFF800000> : vector<16xf32>
    %372 = vector.multi_reduction <maximumf>, %371, %cst_207 [1] : vector<16x16xf32> to vector<16xf32>
    %373 = vector.shape_cast %372 : vector<16xf32> to vector<16x1xf32>
    %374 = vector.broadcast %373 : vector<16x1xf32> to vector<16x16xf32>
    %375 = arith.subf %371, %374 : vector<16x16xf32>
    %376 = math.exp %375 : vector<16x16xf32>
    %cst_208 = arith.constant dense<0.000000e+00> : vector<16xf32>
    %377 = vector.multi_reduction <add>, %376, %cst_208 [1] : vector<16x16xf32> to vector<16xf32>
    %378 = vector.shape_cast %377 : vector<16xf32> to vector<16x1xf32>
    %379 = vector.broadcast %378 : vector<16x1xf32> to vector<16x16xf32>
    %380 = arith.divf %376, %379 : vector<16x16xf32>
    %cst_209 = arith.constant dense<0.000000e+00> : vector<16x8xf32>
    %381 = tpu.matmul %380, %367, %cst_209 {dimension_numbers = #tpu.dot_dimension_numbers<[1], [0], [0], [1], [0, 0, 1, 1], [], []>} : vector<16x16xf32>, vector<16x8xf32>, vector<16x8xf32> -> vector<16x8xf32>
    %382 = vector.extract_strided_slice %313 {offsets = [16, 0], sizes = [8, 32], strides = [1, 1]} : vector<32x32xf32> to vector<8x32xf32>
    %cst_210 = arith.constant dense<0.000000e+00> : vector<16x32xf32>
    %383 = tpu.matmul %381, %382, %cst_210 {dimension_numbers = #tpu.dot_dimension_numbers<[1], [0], [0], [1], [0, 0, 1, 1], [], []>} : vector<16x8xf32>, vector<8x32xf32>, vector<16x32xf32> -> vector<16x32xf32>
    %384 = arith.addf %362, %383 : vector<16x32xf32>
    %385 = vector.extract_strided_slice %317 {offsets = [0, 24], sizes = [16, 8], strides = [1, 1]} : vector<16x96xf32> to vector<16x8xf32>
    %cst_211 = arith.constant 0.353553385 : f32
    %386 = vector.broadcast %cst_211 : f32 to vector<16x8xf32>
    %387 = arith.mulf %385, %386 : vector<16x8xf32>
    %388 = vector.extract_strided_slice %317 {offsets = [0, 56], sizes = [16, 8], strides = [1, 1]} : vector<16x96xf32> to vector<16x8xf32>
    %389 = vector.extract_strided_slice %317 {offsets = [0, 88], sizes = [16, 8], strides = [1, 1]} : vector<16x96xf32> to vector<16x8xf32>
    "tpu.trace_start"() <{level = 10 : i32, message = "nd,md->nm"}> : () -> ()
    %cst_212 = arith.constant dense<0.000000e+00> : vector<16x16xf32>
    %390 = tpu.matmul %387, %388, %cst_212 {dimension_numbers = #tpu.dot_dimension_numbers<[1], [1], [0], [0], [0, 0, 1, 0], [], []>} : vector<16x8xf32>, vector<16x8xf32>, vector<16x16xf32> -> vector<16x16xf32>
    "tpu.trace_stop"() : () -> ()
    %c3_213 = arith.constant 3 : index
    %c0_214 = arith.constant 0 : index
    %c0_215 = arith.constant 0 : index
    %391 = vector.load %arg25[%c3_213, %c0_214, %c0_215] : memref<4x16x16xf32, #tpu.memory_space<vmem>>, vector<1x16x16xf32>
    %392 = vector.shape_cast %391 : vector<1x16x16xf32> to vector<16x16xf32>
    %393 = arith.addf %390, %392 : vector<16x16xf32>
    %cst_216 = arith.constant dense<0xFF800000> : vector<16xf32>
    %394 = vector.multi_reduction <maximumf>, %393, %cst_216 [1] : vector<16x16xf32> to vector<16xf32>
    %395 = vector.shape_cast %394 : vector<16xf32> to vector<16x1xf32>
    %396 = vector.broadcast %395 : vector<16x1xf32> to vector<16x16xf32>
    %397 = arith.subf %393, %396 : vector<16x16xf32>
    %398 = math.exp %397 : vector<16x16xf32>
    %cst_217 = arith.constant dense<0.000000e+00> : vector<16xf32>
    %399 = vector.multi_reduction <add>, %398, %cst_217 [1] : vector<16x16xf32> to vector<16xf32>
    %400 = vector.shape_cast %399 : vector<16xf32> to vector<16x1xf32>
    %401 = vector.broadcast %400 : vector<16x1xf32> to vector<16x16xf32>
    %402 = arith.divf %398, %401 : vector<16x16xf32>
    %cst_218 = arith.constant dense<0.000000e+00> : vector<16x8xf32>
    %403 = tpu.matmul %402, %389, %cst_218 {dimension_numbers = #tpu.dot_dimension_numbers<[1], [0], [0], [1], [0, 0, 1, 1], [], []>} : vector<16x16xf32>, vector<16x8xf32>, vector<16x8xf32> -> vector<16x8xf32>
    %404 = vector.extract_strided_slice %313 {offsets = [24, 0], sizes = [8, 32], strides = [1, 1]} : vector<32x32xf32> to vector<8x32xf32>
    %cst_219 = arith.constant dense<0.000000e+00> : vector<16x32xf32>
    %405 = tpu.matmul %403, %404, %cst_219 {dimension_numbers = #tpu.dot_dimension_numbers<[1], [0], [0], [1], [0, 0, 1, 1], [], []>} : vector<16x8xf32>, vector<8x32xf32>, vector<16x32xf32> -> vector<16x32xf32>
    %406 = arith.addf %384, %405 : vector<16x32xf32>
    %407 = vector.broadcast %314 : vector<1x32xf32> to vector<16x32xf32>
    %408 = arith.addf %406, %407 : vector<16x32xf32>
    %409 = tpu.transpose %408, [1, 0] : vector<16x32xf32> -> vector<32x16xf32>
    %c0_220 = arith.constant 0 : index
    %c0_221 = arith.constant 0 : index
    %c0_222 = arith.constant 0 : index
    %410 = vector.load %arg37[%c0_220, %c0_221, %c0_222] : memref<2x16x32xf32, #tpu.memory_space<vmem>>, vector<1x16x32xf32>
    %411 = vector.shape_cast %410 : vector<1x16x32xf32> to vector<16x32xf32>
    %c0_223 = arith.constant 0 : index
    %c0_224 = arith.constant 0 : index
    %c0_225 = arith.constant 0 : index
    %412 = vector.load %arg36[%c0_223, %c0_224, %c0_225] : memref<2x16x32xf32, #tpu.memory_space<vmem>>, vector<1x16x32xf32>
    %413 = vector.shape_cast %412 : vector<1x16x32xf32> to vector<16x32xf32>
    %cst_226 = arith.constant dense<0.000000e+00> : vector<32x32xf32>
    %414 = tpu.matmul %409, %413, %cst_226 {dimension_numbers = #tpu.dot_dimension_numbers<[1], [0], [0], [1], [0, 0, 1, 1], [], []>} : vector<32x16xf32>, vector<16x32xf32>, vector<32x32xf32> -> vector<32x32xf32>
    %cst_227 = arith.constant dense<0.000000e+00> : vector<16x32xf32>
    %415 = tpu.matmul %411, %414, %cst_227 {dimension_numbers = #tpu.dot_dimension_numbers<[1], [0], [0], [1], [0, 0, 1, 1], [], []>} : vector<16x32xf32>, vector<32x32xf32>, vector<16x32xf32> -> vector<16x32xf32>
    %c1_228 = arith.constant 1 : index
    %c0_229 = arith.constant 0 : index
    %c0_230 = arith.constant 0 : index
    %416 = vector.load %arg37[%c1_228, %c0_229, %c0_230] : memref<2x16x32xf32, #tpu.memory_space<vmem>>, vector<1x16x32xf32>
    %417 = vector.shape_cast %416 : vector<1x16x32xf32> to vector<16x32xf32>
    %c1_231 = arith.constant 1 : index
    %c0_232 = arith.constant 0 : index
    %c0_233 = arith.constant 0 : index
    %418 = vector.load %arg36[%c1_231, %c0_232, %c0_233] : memref<2x16x32xf32, #tpu.memory_space<vmem>>, vector<1x16x32xf32>
    %419 = vector.shape_cast %418 : vector<1x16x32xf32> to vector<16x32xf32>
    %cst_234 = arith.constant dense<0.000000e+00> : vector<32x32xf32>
    %420 = tpu.matmul %409, %419, %cst_234 {dimension_numbers = #tpu.dot_dimension_numbers<[1], [0], [0], [1], [0, 0, 1, 1], [], []>} : vector<32x16xf32>, vector<16x32xf32>, vector<32x32xf32> -> vector<32x32xf32>
    %cst_235 = arith.constant dense<0.000000e+00> : vector<16x32xf32>
    %421 = tpu.matmul %417, %420, %cst_235 {dimension_numbers = #tpu.dot_dimension_numbers<[1], [0], [0], [1], [0, 0, 1, 1], [], []>} : vector<16x32xf32>, vector<32x32xf32>, vector<16x32xf32> -> vector<16x32xf32>
    %422 = arith.addf %415, %421 : vector<16x32xf32>
    %c0_236 = arith.constant 0 : index
    %c0_237 = arith.constant 0 : index
    %423 = vector.load %arg28[%c0_236, %c0_237] : memref<1x32xf32, #tpu.memory_space<vmem>>, vector<1x32xf32>
    %c0_238 = arith.constant 0 : index
    %c0_239 = arith.constant 0 : index
    %424 = vector.load %arg29[%c0_238, %c0_239] : memref<1x32xf32, #tpu.memory_space<vmem>>, vector<1x32xf32>
    %c0_240 = arith.constant 0 : index
    %c0_241 = arith.constant 0 : index
    %425 = vector.load %arg30[%c0_240, %c0_241] : memref<32x128xf32, #tpu.memory_space<vmem>>, vector<32x128xf32>
    %c0_242 = arith.constant 0 : index
    %c0_243 = arith.constant 0 : index
    %426 = vector.load %arg31[%c0_242, %c0_243] : memref<1x128xf32, #tpu.memory_space<vmem>>, vector<1x128xf32>
    %c0_244 = arith.constant 0 : index
    %c0_245 = arith.constant 0 : index
    %427 = vector.load %arg32[%c0_244, %c0_245] : memref<128x32xf32, #tpu.memory_space<vmem>>, vector<128x32xf32>
    %c0_246 = arith.constant 0 : index
    %c0_247 = arith.constant 0 : index
    %428 = vector.load %arg33[%c0_246, %c0_247] : memref<1x32xf32, #tpu.memory_space<vmem>>, vector<1x32xf32>
    %c0_248 = arith.constant 0 : index
    %c0_249 = arith.constant 0 : index
    %429 = vector.load %arg34[%c0_248, %c0_249] : memref<1x32xf32, #tpu.memory_space<vmem>>, vector<1x32xf32>
    %c0_250 = arith.constant 0 : index
    %c0_251 = arith.constant 0 : index
    %430 = vector.load %arg35[%c0_250, %c0_251] : memref<1x32xf32, #tpu.memory_space<vmem>>, vector<1x32xf32>
    %cst_252 = arith.constant dense<0.000000e+00> : vector<16xf32>
    %431 = vector.multi_reduction <add>, %422, %cst_252 [1] : vector<16x32xf32> to vector<16xf32>
    %432 = vector.shape_cast %431 : vector<16xf32> to vector<16x1xf32>
    %cst_253 = arith.constant 3.200000e+01 : f32
    %433 = vector.broadcast %cst_253 : f32 to vector<16x1xf32>
    %434 = arith.divf %432, %433 : vector<16x1xf32>
    %435 = vector.broadcast %434 : vector<16x1xf32> to vector<16x32xf32>
    %436 = arith.subf %422, %435 : vector<16x32xf32>
    %437 = arith.mulf %436, %436 : vector<16x32xf32>
    %cst_254 = arith.constant dense<0.000000e+00> : vector<16xf32>
    %438 = vector.multi_reduction <add>, %437, %cst_254 [1] : vector<16x32xf32> to vector<16xf32>
    %439 = vector.shape_cast %438 : vector<16xf32> to vector<16x1xf32>
    %cst_255 = arith.constant 3.200000e+01 : f32
    %440 = vector.broadcast %cst_255 : f32 to vector<16x1xf32>
    %441 = arith.divf %439, %440 : vector<16x1xf32>
    %cst_256 = arith.constant 9.99999974E-6 : f32
    %442 = vector.broadcast %cst_256 : f32 to vector<16x1xf32>
    %443 = arith.addf %441, %442 : vector<16x1xf32>
    %444 = math.rsqrt %443 : vector<16x1xf32>
    %445 = vector.broadcast %444 : vector<16x1xf32> to vector<16x32xf32>
    %446 = arith.mulf %436, %445 : vector<16x32xf32>
    %447 = vector.broadcast %423 : vector<1x32xf32> to vector<16x32xf32>
    %448 = arith.mulf %446, %447 : vector<16x32xf32>
    %449 = vector.broadcast %424 : vector<1x32xf32> to vector<16x32xf32>
    %450 = arith.addf %448, %449 : vector<16x32xf32>
    %cst_257 = arith.constant dense<0.000000e+00> : vector<16x128xf32>
    %451 = tpu.matmul %450, %425, %cst_257 {dimension_numbers = #tpu.dot_dimension_numbers<[1], [0], [0], [1], [0, 0, 1, 1], [], []>} : vector<16x32xf32>, vector<32x128xf32>, vector<16x128xf32> -> vector<16x128xf32>
    %452 = vector.broadcast %426 : vector<1x128xf32> to vector<16x128xf32>
    %453 = arith.addf %451, %452 : vector<16x128xf32>
    %cst_258 = arith.constant 5.000000e-01 : f32
    %454 = vector.broadcast %cst_258 : f32 to vector<16x128xf32>
    %455 = arith.mulf %454, %453 : vector<16x128xf32>
    %cst_259 = arith.constant 0.707106769 : f32
    %456 = vector.broadcast %cst_259 : f32 to vector<16x128xf32>
    %457 = arith.mulf %453, %456 : vector<16x128xf32>
    %458 = math.absf %457 : vector<16x128xf32>
    %cst_260 = arith.constant 0.327591091 : f32
    %459 = vector.broadcast %cst_260 : f32 to vector<16x128xf32>
    %460 = arith.mulf %459, %458 : vector<16x128xf32>
    %cst_261 = arith.constant 1.000000e+00 : f32
    %461 = vector.broadcast %cst_261 : f32 to vector<16x128xf32>
    %462 = arith.addf %461, %460 : vector<16x128xf32>
    %cst_262 = arith.constant 1.000000e+00 : f32
    %463 = vector.broadcast %cst_262 : f32 to vector<16x128xf32>
    %464 = arith.divf %463, %462 : vector<16x128xf32>
    %cst_263 = arith.constant 1.06140542 : f32
    %465 = vector.broadcast %cst_263 : f32 to vector<16x128xf32>
    %466 = arith.mulf %464, %465 : vector<16x128xf32>
    %cst_264 = arith.constant -1.45315206 : f32
    %467 = vector.broadcast %cst_264 : f32 to vector<16x128xf32>
    %468 = arith.addf %467, %466 : vector<16x128xf32>
    %469 = arith.mulf %464, %468 : vector<16x128xf32>
    %cst_265 = arith.constant 1.42141378 : f32
    %470 = vector.broadcast %cst_265 : f32 to vector<16x128xf32>
    %471 = arith.addf %470, %469 : vector<16x128xf32>
    %472 = arith.mulf %464, %471 : vector<16x128xf32>
    %cst_266 = arith.constant -0.284496725 : f32
    %473 = vector.broadcast %cst_266 : f32 to vector<16x128xf32>
    %474 = arith.addf %473, %472 : vector<16x128xf32>
    %475 = arith.mulf %464, %474 : vector<16x128xf32>
    %cst_267 = arith.constant 0.254829586 : f32
    %476 = vector.broadcast %cst_267 : f32 to vector<16x128xf32>
    %477 = arith.addf %476, %475 : vector<16x128xf32>
    %478 = arith.mulf %464, %477 : vector<16x128xf32>
    %cst_268 = arith.constant 0.000000e+00 : f32
    %479 = vector.broadcast %cst_268 : f32 to vector<16x128xf32>
    %480 = arith.subf %479, %458 : vector<16x128xf32>
    %481 = arith.mulf %480, %458 : vector<16x128xf32>
    %482 = math.exp %481 : vector<16x128xf32>
    %483 = arith.mulf %478, %482 : vector<16x128xf32>
    %cst_269 = arith.constant 1.000000e+00 : f32
    %484 = vector.broadcast %cst_269 : f32 to vector<16x128xf32>
    %485 = arith.subf %484, %483 : vector<16x128xf32>
    %cst_270 = arith.constant 0.000000e+00 : f32
    %486 = vector.broadcast %cst_270 : f32 to vector<16x128xf32>
    %487 = arith.cmpf oge, %457, %486 : vector<16x128xf32>
    %cst_271 = arith.constant 0.000000e+00 : f32
    %488 = vector.broadcast %cst_271 : f32 to vector<16x128xf32>
    %489 = arith.subf %488, %485 : vector<16x128xf32>
    %490 = arith.select %487, %485, %489 : vector<16x128xi1>, vector<16x128xf32>
    %cst_272 = arith.constant 1.000000e+00 : f32
    %491 = vector.broadcast %cst_272 : f32 to vector<16x128xf32>
    %492 = arith.addf %491, %490 : vector<16x128xf32>
    %493 = arith.mulf %455, %492 : vector<16x128xf32>
    %cst_273 = arith.constant dense<0.000000e+00> : vector<16x32xf32>
    %494 = tpu.matmul %493, %427, %cst_273 {dimension_numbers = #tpu.dot_dimension_numbers<[1], [0], [0], [1], [0, 0, 1, 1], [], []>} : vector<16x128xf32>, vector<128x32xf32>, vector<16x32xf32> -> vector<16x32xf32>
    %495 = vector.broadcast %428 : vector<1x32xf32> to vector<16x32xf32>
    %496 = arith.addf %494, %495 : vector<16x32xf32>
    %cst_274 = arith.constant dense<0.000000e+00> : vector<16xf32>
    %497 = vector.multi_reduction <add>, %496, %cst_274 [1] : vector<16x32xf32> to vector<16xf32>
    %498 = vector.shape_cast %497 : vector<16xf32> to vector<16x1xf32>
    %cst_275 = arith.constant 3.200000e+01 : f32
    %499 = vector.broadcast %cst_275 : f32 to vector<16x1xf32>
    %500 = arith.divf %498, %499 : vector<16x1xf32>
    %501 = vector.broadcast %500 : vector<16x1xf32> to vector<16x32xf32>
    %502 = arith.subf %496, %501 : vector<16x32xf32>
    %503 = arith.mulf %502, %502 : vector<16x32xf32>
    %cst_276 = arith.constant dense<0.000000e+00> : vector<16xf32>
    %504 = vector.multi_reduction <add>, %503, %cst_276 [1] : vector<16x32xf32> to vector<16xf32>
    %505 = vector.shape_cast %504 : vector<16xf32> to vector<16x1xf32>
    %cst_277 = arith.constant 3.200000e+01 : f32
    %506 = vector.broadcast %cst_277 : f32 to vector<16x1xf32>
    %507 = arith.divf %505, %506 : vector<16x1xf32>
    %cst_278 = arith.constant 9.99999974E-6 : f32
    %508 = vector.broadcast %cst_278 : f32 to vector<16x1xf32>
    %509 = arith.addf %507, %508 : vector<16x1xf32>
    %510 = math.rsqrt %509 : vector<16x1xf32>
    %511 = vector.broadcast %510 : vector<16x1xf32> to vector<16x32xf32>
    %512 = arith.mulf %502, %511 : vector<16x32xf32>
    %513 = vector.broadcast %429 : vector<1x32xf32> to vector<16x32xf32>
    %514 = arith.mulf %512, %513 : vector<16x32xf32>
    %515 = vector.broadcast %430 : vector<1x32xf32> to vector<16x32xf32>
    %516 = arith.addf %514, %515 : vector<16x32xf32>
    %517 = tpu.transpose %516, [1, 0] : vector<16x32xf32> -> vector<32x16xf32>
    %c0_279 = arith.constant 0 : index
    %c0_280 = arith.constant 0 : index
    %c0_281 = arith.constant 0 : index
    %518 = vector.load %arg36[%c0_279, %c0_280, %c0_281] : memref<2x16x32xf32, #tpu.memory_space<vmem>>, vector<1x16x32xf32>
    %519 = vector.shape_cast %518 : vector<1x16x32xf32> to vector<16x32xf32>
    %c0_282 = arith.constant 0 : index
    %c0_283 = arith.constant 0 : index
    %c0_284 = arith.constant 0 : index
    %520 = vector.load %arg37[%c0_282, %c0_283, %c0_284] : memref<2x16x32xf32, #tpu.memory_space<vmem>>, vector<1x16x32xf32>
    %521 = vector.shape_cast %520 : vector<1x16x32xf32> to vector<16x32xf32>
    %cst_285 = arith.constant dense<0.000000e+00> : vector<32x32xf32>
    %522 = tpu.matmul %517, %521, %cst_285 {dimension_numbers = #tpu.dot_dimension_numbers<[1], [0], [0], [1], [0, 0, 1, 1], [], []>} : vector<32x16xf32>, vector<16x32xf32>, vector<32x32xf32> -> vector<32x32xf32>
    %cst_286 = arith.constant dense<0.000000e+00> : vector<16x32xf32>
    %523 = tpu.matmul %519, %522, %cst_286 {dimension_numbers = #tpu.dot_dimension_numbers<[1], [0], [0], [1], [0, 0, 1, 1], [], []>} : vector<16x32xf32>, vector<32x32xf32>, vector<16x32xf32> -> vector<16x32xf32>
    %c1_287 = arith.constant 1 : index
    %c0_288 = arith.constant 0 : index
    %c0_289 = arith.constant 0 : index
    %524 = vector.load %arg36[%c1_287, %c0_288, %c0_289] : memref<2x16x32xf32, #tpu.memory_space<vmem>>, vector<1x16x32xf32>
    %525 = vector.shape_cast %524 : vector<1x16x32xf32> to vector<16x32xf32>
    %c1_290 = arith.constant 1 : index
    %c0_291 = arith.constant 0 : index
    %c0_292 = arith.constant 0 : index
    %526 = vector.load %arg37[%c1_290, %c0_291, %c0_292] : memref<2x16x32xf32, #tpu.memory_space<vmem>>, vector<1x16x32xf32>
    %527 = vector.shape_cast %526 : vector<1x16x32xf32> to vector<16x32xf32>
    %cst_293 = arith.constant dense<0.000000e+00> : vector<32x32xf32>
    %528 = tpu.matmul %517, %527, %cst_293 {dimension_numbers = #tpu.dot_dimension_numbers<[1], [0], [0], [1], [0, 0, 1, 1], [], []>} : vector<32x16xf32>, vector<16x32xf32>, vector<32x32xf32> -> vector<32x32xf32>
    %cst_294 = arith.constant dense<0.000000e+00> : vector<16x32xf32>
    %529 = tpu.matmul %525, %528, %cst_294 {dimension_numbers = #tpu.dot_dimension_numbers<[1], [0], [0], [1], [0, 0, 1, 1], [], []>} : vector<16x32xf32>, vector<32x32xf32>, vector<16x32xf32> -> vector<16x32xf32>
    %530 = arith.addf %523, %529 : vector<16x32xf32>
    %c0_295 = arith.constant 0 : index
    %c0_296 = arith.constant 0 : index
    %531 = vector.load %arg38[%c0_295, %c0_296] : memref<1x32xf32, #tpu.memory_space<vmem>>, vector<1x32xf32>
    %c0_297 = arith.constant 0 : index
    %c0_298 = arith.constant 0 : index
    %532 = vector.load %arg39[%c0_297, %c0_298] : memref<1x32xf32, #tpu.memory_space<vmem>>, vector<1x32xf32>
    %cst_299 = arith.constant dense<0.000000e+00> : vector<16xf32>
    %533 = vector.multi_reduction <add>, %530, %cst_299 [1] : vector<16x32xf32> to vector<16xf32>
    %534 = vector.shape_cast %533 : vector<16xf32> to vector<16x1xf32>
    %cst_300 = arith.constant 3.200000e+01 : f32
    %535 = vector.broadcast %cst_300 : f32 to vector<16x1xf32>
    %536 = arith.divf %534, %535 : vector<16x1xf32>
    %537 = vector.broadcast %536 : vector<16x1xf32> to vector<16x32xf32>
    %538 = arith.subf %530, %537 : vector<16x32xf32>
    %539 = arith.mulf %538, %538 : vector<16x32xf32>
    %cst_301 = arith.constant dense<0.000000e+00> : vector<16xf32>
    %540 = vector.multi_reduction <add>, %539, %cst_301 [1] : vector<16x32xf32> to vector<16xf32>
    %541 = vector.shape_cast %540 : vector<16xf32> to vector<16x1xf32>
    %cst_302 = arith.constant 3.200000e+01 : f32
    %542 = vector.broadcast %cst_302 : f32 to vector<16x1xf32>
    %543 = arith.divf %541, %542 : vector<16x1xf32>
    %cst_303 = arith.constant 9.99999974E-6 : f32
    %544 = vector.broadcast %cst_303 : f32 to vector<16x1xf32>
    %545 = arith.addf %543, %544 : vector<16x1xf32>
    %546 = math.rsqrt %545 : vector<16x1xf32>
    %547 = vector.broadcast %546 : vector<16x1xf32> to vector<16x32xf32>
    %548 = arith.mulf %538, %547 : vector<16x32xf32>
    %549 = vector.broadcast %531 : vector<1x32xf32> to vector<16x32xf32>
    %550 = arith.mulf %548, %549 : vector<16x32xf32>
    %551 = vector.broadcast %532 : vector<1x32xf32> to vector<16x32xf32>
    %552 = arith.addf %550, %551 : vector<16x32xf32>
    %cst_304 = arith.constant 6.250000e-02 : f32
    %553 = vector.broadcast %cst_304 : f32 to vector<1x16xf32>
    %cst_305 = arith.constant dense<0.000000e+00> : vector<1x32xf32>
    %554 = tpu.matmul %553, %552, %cst_305 {dimension_numbers = #tpu.dot_dimension_numbers<[1], [0], [0], [1], [0, 0, 1, 1], [], []>} : vector<1x16xf32>, vector<16x32xf32>, vector<1x32xf32> -> vector<1x32xf32>
    %c0_306 = arith.constant 0 : index
    %c0_307 = arith.constant 0 : index
    %555 = vector.load %arg40[%c0_306, %c0_307] : memref<32x10xf32, #tpu.memory_space<vmem>>, vector<32x10xf32>
    %cst_308 = arith.constant dense<0.000000e+00> : vector<1x10xf32>
    %556 = tpu.matmul %554, %555, %cst_308 {dimension_numbers = #tpu.dot_dimension_numbers<[1], [0], [0], [1], [0, 0, 1, 1], [], []>} : vector<1x32xf32>, vector<32x10xf32>, vector<1x10xf32> -> vector<1x10xf32>
    %c0_309 = arith.constant 0 : index
    %c0_310 = arith.constant 0 : index
    %557 = vector.load %arg41[%c0_309, %c0_310] : memref<1x10xf32, #tpu.memory_space<vmem>>, vector<1x10xf32>
    %558 = arith.addf %556, %557 : vector<1x10xf32>
    %559 = vector.shape_cast %558 : vector<1x10xf32> to vector<1x1x10xf32>
    %c0_311 = arith.constant 0 : index
    %c0_312 = arith.constant 0 : index
    %c0_313 = arith.constant 0 : index
    %560 = vector.load %arg42[%c0_311, %c0_312, %c0_313] : memref<1x1x10xf32, #tpu.memory_space<vmem>>, vector<1x1x10xf32>
    tpu.vector_store %arg42[%c0_311, %c0_312, %c0_313], %559 {strides = array<i32>} : memref<1x1x10xf32, #tpu.memory_space<vmem>>, vector<1x1x10xf32>,
    return
  }
  func.func @transform_0(%arg0: i32) -> (i32, i32) {
    %c0_i32 = arith.constant 0 : i32
    %c0_i32_0 = arith.constant 0 : i32
    return %arg0, %c0_i32 : i32, i32
  }
  func.func @transform_1(%arg0: i32) -> (i32, i32) {
    %c0_i32 = arith.constant 0 : i32
    %c0_i32_0 = arith.constant 0 : i32
    %c0_i32_1 = arith.constant 0 : i32
    return %c0_i32, %c0_i32_0 : i32, i32
  }
  func.func @transform_2(%arg0: i32) -> (i32, i32) {
    %c0_i32 = arith.constant 0 : i32
    %c0_i32_0 = arith.constant 0 : i32
    %c0_i32_1 = arith.constant 0 : i32
    return %c0_i32, %c0_i32_0 : i32, i32
  }
  func.func @transform_3(%arg0: i32) -> (i32, i32) {
    %c0_i32 = arith.constant 0 : i32
    %c0_i32_0 = arith.constant 0 : i32
    %c0_i32_1 = arith.constant 0 : i32
    return %c0_i32, %c0_i32_0 : i32, i32
  }
  func.func @transform_4(%arg0: i32) -> (i32, i32) {
    %c0_i32 = arith.constant 0 : i32
    %c0_i32_0 = arith.constant 0 : i32
    %c0_i32_1 = arith.constant 0 : i32
    return %c0_i32, %c0_i32_0 : i32, i32
  }
  func.func @transform_5(%arg0: i32) -> (i32, i32, i32) {
    %c0_i32 = arith.constant 0 : i32
    %c0_i32_0 = arith.constant 0 : i32
    %c0_i32_1 = arith.constant 0 : i32
    %c0_i32_2 = arith.constant 0 : i32
    return %c0_i32, %c0_i32_0, %c0_i32_1 : i32, i32, i32
  }
  func.func @transform_6(%arg0: i32) -> (i32, i32) {
    %c0_i32 = arith.constant 0 : i32
    %c0_i32_0 = arith.constant 0 : i32
    %c0_i32_1 = arith.constant 0 : i32
    return %c0_i32, %c0_i32_0 : i32, i32
  }
  func.func @transform_7(%arg0: i32) -> (i32, i32) {
    %c0_i32 = arith.constant 0 : i32
    %c0_i32_0 = arith.constant 0 : i32
    %c0_i32_1 = arith.constant 0 : i32
    return %c0_i32, %c0_i32_0 : i32, i32
  }
  func.func @transform_8(%arg0: i32) -> (i32, i32) {
    %c0_i32 = arith.constant 0 : i32
    %c0_i32_0 = arith.constant 0 : i32
    %c0_i32_1 = arith.constant 0 : i32
    return %c0_i32, %c0_i32_0 : i32, i32
  }
  func.func @transform_9(%arg0: i32) -> (i32, i32) {
    %c0_i32 = arith.constant 0 : i32
    %c0_i32_0 = arith.constant 0 : i32
    %c0_i32_1 = arith.constant 0 : i32
    return %c0_i32, %c0_i32_0 : i32, i32
  }
  func.func @transform_10(%arg0: i32) -> (i32, i32) {
    %c0_i32 = arith.constant 0 : i32
    %c0_i32_0 = arith.constant 0 : i32
    %c0_i32_1 = arith.constant 0 : i32
    return %c0_i32, %c0_i32_0 : i32, i32
  }
  func.func @transform_11(%arg0: i32) -> (i32, i32) {
    %c0_i32 = arith.constant 0 : i32
    %c0_i32_0 = arith.constant 0 : i32
    %c0_i32_1 = arith.constant 0 : i32
    return %c0_i32, %c0_i32_0 : i32, i32
  }
  func.func @transform_12(%arg0: i32) -> (i32, i32) {
    %c0_i32 = arith.constant 0 : i32
    %c0_i32_0 = arith.constant 0 : i32
    %c0_i32_1 = arith.constant 0 : i32
    return %c0_i32, %c0_i32_0 : i32, i32
  }
  func.func @transform_13(%arg0: i32) -> (i32, i32) {
    %c0_i32 = arith.constant 0 : i32
    %c0_i32_0 = arith.constant 0 : i32
    %c0_i32_1 = arith.constant 0 : i32
    return %c0_i32, %c0_i32_0 : i32, i32
  }
  func.func @transform_14(%arg0: i32) -> (i32, i32) {
    %c0_i32 = arith.constant 0 : i32
    %c0_i32_0 = arith.constant 0 : i32
    %c0_i32_1 = arith.constant 0 : i32
    return %c0_i32, %c0_i32_0 : i32, i32
  }
  func.func @transform_15(%arg0: i32) -> (i32, i32) {
    %c0_i32 = arith.constant 0 : i32
    %c0_i32_0 = arith.constant 0 : i32
    %c0_i32_1 = arith.constant 0 : i32
    return %c0_i32, %c0_i32_0 : i32, i32
  }
  func.func @transform_16(%arg0: i32) -> (i32, i32, i32) {
    %c0_i32 = arith.constant 0 : i32
    %c0_i32_0 = arith.constant 0 : i32
    %c0_i32_1 = arith.constant 0 : i32
    %c0_i32_2 = arith.constant 0 : i32
    return %c0_i32, %c0_i32_0, %c0_i32_1 : i32, i32, i32
  }
  func.func @transform_17(%arg0: i32) -> (i32, i32, i32) {
    %c0_i32 = arith.constant 0 : i32
    %c0_i32_0 = arith.constant 0 : i32
    %c0_i32_1 = arith.constant 0 : i32
    %c0_i32_2 = arith.constant 0 : i32
    return %c0_i32, %c0_i32_0, %c0_i32_1 : i32, i32, i32
  }
  func.func @transform_18(%arg0: i32) -> (i32, i32, i32) {
    %c0_i32 = arith.constant 0 : i32
    %c0_i32_0 = arith.constant 0 : i32
    %c0_i32_1 = arith.constant 0 : i32
    %c0_i32_2 = arith.constant 0 : i32
    return %c0_i32, %c0_i32_0, %c0_i32_1 : i32, i32, i32
  }
  func.func @transform_19(%arg0: i32) -> (i32, i32) {
    %c0_i32 = arith.constant 0 : i32
    %c0_i32_0 = arith.constant 0 : i32
    %c0_i32_1 = arith.constant 0 : i32
    return %c0_i32, %c0_i32_0 : i32, i32
  }
  func.func @transform_20(%arg0: i32) -> (i32, i32) {
    %c0_i32 = arith.constant 0 : i32
    %c0_i32_0 = arith.constant 0 : i32
    %c0_i32_1 = arith.constant 0 : i32
    return %c0_i32, %c0_i32_0 : i32, i32
  }
  func.func @transform_21(%arg0: i32) -> (i32, i32) {
    %c0_i32 = arith.constant 0 : i32
    %c0_i32_0 = arith.constant 0 : i32
    %c0_i32_1 = arith.constant 0 : i32
    return %c0_i32, %c0_i32_0 : i32, i32
  }
  func.func @transform_22(%arg0: i32) -> (i32, i32) {
    %c0_i32 = arith.constant 0 : i32
    %c0_i32_0 = arith.constant 0 : i32
    %c0_i32_1 = arith.constant 0 : i32
    return %c0_i32, %c0_i32_0 : i32, i32
  }
  func.func @transform_23(%arg0: i32) -> (i32, i32) {
    %c0_i32 = arith.constant 0 : i32
    %c0_i32_0 = arith.constant 0 : i32
    %c0_i32_1 = arith.constant 0 : i32
    return %c0_i32, %c0_i32_0 : i32, i32
  }
  func.func @transform_24(%arg0: i32) -> (i32, i32, i32) {
    %c0_i32 = arith.constant 0 : i32
    %c0_i32_0 = arith.constant 0 : i32
    %c0_i32_1 = arith.constant 0 : i32
    %c0_i32_2 = arith.constant 0 : i32
    return %c0_i32, %c0_i32_0, %c0_i32_1 : i32, i32, i32
  }
  func.func @transform_25(%arg0: i32) -> (i32, i32) {
    %c0_i32 = arith.constant 0 : i32
    %c0_i32_0 = arith.constant 0 : i32
    %c0_i32_1 = arith.constant 0 : i32
    return %c0_i32, %c0_i32_0 : i32, i32
  }
  func.func @transform_26(%arg0: i32) -> (i32, i32) {
    %c0_i32 = arith.constant 0 : i32
    %c0_i32_0 = arith.constant 0 : i32
    %c0_i32_1 = arith.constant 0 : i32
    return %c0_i32, %c0_i32_0 : i32, i32
  }
  func.func @transform_27(%arg0: i32) -> (i32, i32) {
    %c0_i32 = arith.constant 0 : i32
    %c0_i32_0 = arith.constant 0 : i32
    %c0_i32_1 = arith.constant 0 : i32
    return %c0_i32, %c0_i32_0 : i32, i32
  }
  func.func @transform_28(%arg0: i32) -> (i32, i32) {
    %c0_i32 = arith.constant 0 : i32
    %c0_i32_0 = arith.constant 0 : i32
    %c0_i32_1 = arith.constant 0 : i32
    return %c0_i32, %c0_i32_0 : i32, i32
  }
  func.func @transform_29(%arg0: i32) -> (i32, i32) {
    %c0_i32 = arith.constant 0 : i32
    %c0_i32_0 = arith.constant 0 : i32
    %c0_i32_1 = arith.constant 0 : i32
    return %c0_i32, %c0_i32_0 : i32, i32
  }
  func.func @transform_30(%arg0: i32) -> (i32, i32) {
    %c0_i32 = arith.constant 0 : i32
    %c0_i32_0 = arith.constant 0 : i32
    %c0_i32_1 = arith.constant 0 : i32
    return %c0_i32, %c0_i32_0 : i32, i32
  }
  func.func @transform_31(%arg0: i32) -> (i32, i32) {
    %c0_i32 = arith.constant 0 : i32
    %c0_i32_0 = arith.constant 0 : i32
    %c0_i32_1 = arith.constant 0 : i32
    return %c0_i32, %c0_i32_0 : i32, i32
  }
  func.func @transform_32(%arg0: i32) -> (i32, i32) {
    %c0_i32 = arith.constant 0 : i32
    %c0_i32_0 = arith.constant 0 : i32
    %c0_i32_1 = arith.constant 0 : i32
    return %c0_i32, %c0_i32_0 : i32, i32
  }
  func.func @transform_33(%arg0: i32) -> (i32, i32) {
    %c0_i32 = arith.constant 0 : i32
    %c0_i32_0 = arith.constant 0 : i32
    %c0_i32_1 = arith.constant 0 : i32
    return %c0_i32, %c0_i32_0 : i32, i32
  }
  func.func @transform_34(%arg0: i32) -> (i32, i32) {
    %c0_i32 = arith.constant 0 : i32
    %c0_i32_0 = arith.constant 0 : i32
    %c0_i32_1 = arith.constant 0 : i32
    return %c0_i32, %c0_i32_0 : i32, i32
  }
  func.func @transform_35(%arg0: i32) -> (i32, i32, i32) {
    %c0_i32 = arith.constant 0 : i32
    %c0_i32_0 = arith.constant 0 : i32
    %c0_i32_1 = arith.constant 0 : i32
    %c0_i32_2 = arith.constant 0 : i32
    return %c0_i32, %c0_i32_0, %c0_i32_1 : i32, i32, i32
  }
  func.func @transform_36(%arg0: i32) -> (i32, i32, i32) {
    %c0_i32 = arith.constant 0 : i32
    %c0_i32_0 = arith.constant 0 : i32
    %c0_i32_1 = arith.constant 0 : i32
    %c0_i32_2 = arith.constant 0 : i32
    return %c0_i32, %c0_i32_0, %c0_i32_1 : i32, i32, i32
  }
  func.func @transform_37(%arg0: i32) -> (i32, i32) {
    %c0_i32 = arith.constant 0 : i32
    %c0_i32_0 = arith.constant 0 : i32
    %c0_i32_1 = arith.constant 0 : i32
    return %c0_i32, %c0_i32_0 : i32, i32
  }
  func.func @transform_38(%arg0: i32) -> (i32, i32) {
    %c0_i32 = arith.constant 0 : i32
    %c0_i32_0 = arith.constant 0 : i32
    %c0_i32_1 = arith.constant 0 : i32
    return %c0_i32, %c0_i32_0 : i32, i32
  }
  func.func @transform_39(%arg0: i32) -> (i32, i32) {
    %c0_i32 = arith.constant 0 : i32
    %c0_i32_0 = arith.constant 0 : i32
    %c0_i32_1 = arith.constant 0 : i32
    return %c0_i32, %c0_i32_0 : i32, i32
  }
  func.func @transform_40(%arg0: i32) -> (i32, i32) {
    %c0_i32 = arith.constant 0 : i32
    %c0_i32_0 = arith.constant 0 : i32
    %c0_i32_1 = arith.constant 0 : i32
    return %c0_i32, %c0_i32_0 : i32, i32
  }
  func.func @transform_41(%arg0: i32) -> (i32, i32, i32) {
    %c0_i32 = arith.constant 0 : i32
    %c0_i32_0 = arith.constant 0 : i32
    %c0_i32_1 = arith.constant 0 : i32
    return %arg0, %c0_i32, %c0_i32_0 : i32, i32, i32
  }
}

</mosaic_0001>

<llo_original>
// kernel: swin_forward.1
$region0: #{swin_forward.1}
  #allocation0 [shape = 'u32[]', space=smem, size = 0x4, offset = 0x4, fixed_abs, tag = 'smem constant byte address 0x4 - core index']
  #allocation1 [shape = 'u32[144,128]{1,0:T(1,128)}', space=vmem, size = 0x12000, scoped, tag = 'internal scratch']
  %s0 = inlined_call_operand.smem [shape: u32[42], index: -1, kind: input, shape index: {}]
  %s1 = sld [smem:[%s0]]
  %s2 = scalar_lea.smem %s0, 1
  %s3 = sld [smem:[%s2]]
  %s4 = scalar_lea.smem %s0, 2
  %s5 = sld [smem:[%s4]]
  %s6 = scalar_lea.smem %s0, 3
  %s7 = sld [smem:[%s6]]
  %s8 = scalar_lea.smem %s0, 4
  %s9 = sld [smem:[%s8]]
  %s10 = scalar_lea.smem %s0, 5
  %s11 = sld [smem:[%s10]]
  %s12 = scalar_lea.smem %s0, 6
  %s13 = sld [smem:[%s12]]
  %s14 = scalar_lea.smem %s0, 7
  %s15 = sld [smem:[%s14]]
  %s16 = scalar_lea.smem %s0, 8
  %s17 = sld [smem:[%s16]]
  %s18 = scalar_lea.smem %s0, 9
  %s19 = sld [smem:[%s18]]
  %s20 = scalar_lea.smem %s0, 10
  %s21 = sld [smem:[%s20]]
  %s22 = scalar_lea.smem %s0, 11
  %s23 = sld [smem:[%s22]]
  %s24 = scalar_lea.smem %s0, 12
  %s25 = sld [smem:[%s24]]
  %s26 = scalar_lea.smem %s0, 13
  %s27 = sld [smem:[%s26]]
  %s28 = scalar_lea.smem %s0, 14
  %s29 = sld [smem:[%s28]]
  %s30 = scalar_lea.smem %s0, 15
  %s31 = sld [smem:[%s30]]
  %s32 = scalar_lea.smem %s0, 16
  %s33 = sld [smem:[%s32]]
  %s34 = scalar_lea.smem %s0, 17
  %s35 = sld [smem:[%s34]]
  %s36 = scalar_lea.smem %s0, 18
  %s37 = sld [smem:[%s36]]
  %s38 = scalar_lea.smem %s0, 19
  %s39 = sld [smem:[%s38]]
  %s40 = scalar_lea.smem %s0, 20
  %s41 = sld [smem:[%s40]]
  %s42 = scalar_lea.smem %s0, 21
  %s43 = sld [smem:[%s42]]
  %s44 = scalar_lea.smem %s0, 22
  %s45 = sld [smem:[%s44]]
  %s46 = scalar_lea.smem %s0, 23
  %s47 = sld [smem:[%s46]]
  %s48 = scalar_lea.smem %s0, 24
  %s49 = sld [smem:[%s48]]
  %s50 = scalar_lea.smem %s0, 25
  %s51 = sld [smem:[%s50]]
  %s52 = scalar_lea.smem %s0, 26
  %s53 = sld [smem:[%s52]]
  %s54 = scalar_lea.smem %s0, 27
  %s55 = sld [smem:[%s54]]
  %s56 = scalar_lea.smem %s0, 28
  %s57 = sld [smem:[%s56]]
  %s58 = scalar_lea.smem %s0, 29
  %s59 = sld [smem:[%s58]]
  %s60 = scalar_lea.smem %s0, 30
  %s61 = sld [smem:[%s60]]
  %s62 = scalar_lea.smem %s0, 31
  %s63 = sld [smem:[%s62]]
  %s64 = scalar_lea.smem %s0, 32
  %s65 = sld [smem:[%s64]]
  %s66 = scalar_lea.smem %s0, 33
  %s67 = sld [smem:[%s66]]
  %s68 = scalar_lea.smem %s0, 34
  %s69 = sld [smem:[%s68]]
  %s70 = scalar_lea.smem %s0, 35
  %s71 = sld [smem:[%s70]]
  %s72 = scalar_lea.smem %s0, 36
  %s73 = sld [smem:[%s72]]
  %s74 = scalar_lea.smem %s0, 37
  %s75 = sld [smem:[%s74]]
  %s76 = scalar_lea.smem %s0, 38
  %s77 = sld [smem:[%s76]]
  %s78 = scalar_lea.smem %s0, 39
  %s79 = sld [smem:[%s78]]
  %s80 = scalar_lea.smem %s0, 40
  %s81 = sld [smem:[%s80]]
  %s82 = scalar_lea.smem %s0, 41
  %s83 = sld [smem:[%s82]]
  %s84 = sld [smem:[#allocation0]]
  $region197: #{swin_forward.1} parent=0
    _
  %s86 = ssub.s32 1, %s84
  %s87 = scalar_select 0, %s86, %s84
  $region1: #{swin_forward.1} parent=0
    #allocation2 [shape = 'u8[1024]{0}', space=vmem, size = 0x400, scoped, tag = 'output window, operand 0']
    #allocation3 [shape = 's32[2]{0}', space=sflag, size = 0x8, scoped, tag = 'scoped memory for swin_forward.1']
    %88 = vsyncpa [#allocation3], 0
    %s89 = scalar_lea.sflag [#allocation3], 1
    %90 = vsyncpa %s89, 0
    loop: start=0, step=1, limit=4
    $region2: #{swin_forward.1} parent=1 // loop_pre_header
      _
    $region3: #{swin_forward.1} parent=1 // loop_header
      %s92 = sphi 0, %s96
      %p93 = scmp.ge.s32.totalorder %s92, 4
      %s102 = sphi 0, %s104
      %s105 = sphi 0, %s102
      %s106 = sphi 0, %s105
      %s122 = sphi 0, %s106
      %s126 = sphi 0, %s126
      %s128 = sphi 0, %s126
      %s129 = sphi 0, %s128
      %s143 = sphi 0, %s129
      %s147 = sphi 0, %s147
      %s149 = sphi 0, %s147
      %s150 = sphi 0, %s149
      %s164 = sphi 0, %s150
      %s168 = sphi 0, %s168
      %s170 = sphi 0, %s168
      %s171 = sphi 0, %s170
      %s185 = sphi 0, %s171
      %s189 = sphi 0, %s189
      %s191 = sphi 0, %s189
      %s192 = sphi 0, %s191
      %s206 = sphi 0, %s192
      %s210 = sphi 0, %s210
      %s212 = sphi 0, %s210
      %s213 = sphi 0, %s212
      %s227 = sphi 0, %s213
      %s231 = sphi 0, %s231
      %s233 = sphi 0, %s231
      %s234 = sphi 0, %s233
      %s248 = sphi 0, %s234
      %s252 = sphi 0, %s252
      %s254 = sphi 0, %s252
      %s255 = sphi 0, %s254
      %s269 = sphi 0, %s255
      %s273 = sphi 0, %s273
      %s275 = sphi 0, %s273
      %s276 = sphi 0, %s275
      %s290 = sphi 0, %s276
      %s294 = sphi 0, %s294
      %s296 = sphi 0, %s294
      %s297 = sphi 0, %s296
      %s311 = sphi 0, %s297
      %s315 = sphi 0, %s315
      %s317 = sphi 0, %s315
      %s318 = sphi 0, %s317
      %s332 = sphi 0, %s318
      %s336 = sphi 0, %s336
      %s338 = sphi 0, %s336
      %s339 = sphi 0, %s338
      %s353 = sphi 0, %s339
      %s357 = sphi 0, %s357
      %s359 = sphi 0, %s357
      %s360 = sphi 0, %s359
      %s374 = sphi 0, %s360
      %s378 = sphi 0, %s378
      %s380 = sphi 0, %s378
      %s381 = sphi 0, %s380
      %s395 = sphi 0, %s381
      %s399 = sphi 0, %s399
      %s401 = sphi 0, %s399
      %s402 = sphi 0, %s401
      %s416 = sphi 0, %s402
      %s420 = sphi 0, %s420
      %s422 = sphi 0, %s420
      %s423 = sphi 0, %s422
      %s437 = sphi 0, %s423
      %s441 = sphi 0, %s441
      %s443 = sphi 0, %s441
      %s444 = sphi 0, %s443
      %s458 = sphi 0, %s444
      %s462 = sphi 0, %s462
      %s464 = sphi 0, %s462
      %s465 = sphi 0, %s464
      %s479 = sphi 0, %s465
      %s483 = sphi 0, %s483
      %s485 = sphi 0, %s483
      %s486 = sphi 0, %s485
      %s500 = sphi 0, %s486
      %s504 = sphi 0, %s504
      %s506 = sphi 0, %s504
      %s507 = sphi 0, %s506
      %s521 = sphi 0, %s507
      %s525 = sphi 0, %s525
      %s527 = sphi 0, %s525
      %s528 = sphi 0, %s527
      %s542 = sphi 0, %s528
      %s546 = sphi 0, %s546
      %s548 = sphi 0, %s546
      %s549 = sphi 0, %s548
      %s563 = sphi 0, %s549
      %s567 = sphi 0, %s567
      %s569 = sphi 0, %s567
      %s570 = sphi 0, %s569
      %s584 = sphi 0, %s570
      %s588 = sphi 0, %s588
      %s590 = sphi 0, %s588
      %s591 = sphi 0, %s590
      %s605 = sphi 0, %s591
      %s609 = sphi 0, %s609
      %s611 = sphi 0, %s609
      %s612 = sphi 0, %s611
      %s626 = sphi 0, %s612
      %s630 = sphi 0, %s630
      %s632 = sphi 0, %s630
      %s633 = sphi 0, %s632
      %s647 = sphi 0, %s633
      %s651 = sphi 0, %s651
      %s653 = sphi 0, %s651
      %s654 = sphi 0, %s653
      %s668 = sphi 0, %s654
      %s672 = sphi 0, %s672
      %s674 = sphi 0, %s672
      %s675 = sphi 0, %s674
      %s689 = sphi 0, %s675
      %s693 = sphi 0, %s693
      %s695 = sphi 0, %s693
      %s696 = sphi 0, %s695
      %s710 = sphi 0, %s696
      %s714 = sphi 0, %s714
      %s716 = sphi 0, %s714
      %s717 = sphi 0, %s716
      %s731 = sphi 0, %s717
      %s735 = sphi 0, %s735
      %s737 = sphi 0, %s735
      %s738 = sphi 0, %s737
      %s752 = sphi 0, %s738
      %s756 = sphi 0, %s756
      %s758 = sphi 0, %s756
      %s759 = sphi 0, %s758
      %s773 = sphi 0, %s759
      %s777 = sphi 0, %s777
      %s779 = sphi 0, %s777
      %s780 = sphi 0, %s779
      %s794 = sphi 0, %s780
      %s798 = sphi 0, %s798
      %s800 = sphi 0, %s798
      %s801 = sphi 0, %s800
      %s815 = sphi 0, %s801
      %s819 = sphi 0, %s819
      %s821 = sphi 0, %s819
      %s822 = sphi 0, %s821
      %s836 = sphi 0, %s822
      %s840 = sphi 0, %s840
      %s842 = sphi 0, %s840
      %s843 = sphi 0, %s842
      %s857 = sphi 0, %s843
      %s861 = sphi 0, %s861
      %s863 = sphi 0, %s861
      %s864 = sphi 0, %s863
      %s878 = sphi 0, %s864
      %s882 = sphi 0, %s882
      %s884 = sphi 0, %s882
      %s885 = sphi 0, %s884
      %s899 = sphi 0, %s885
      %s903 = sphi 0, %s903
      %s905 = sphi 0, %s903
      %s906 = sphi 0, %s905
      %s920 = sphi 0, %s906
      %s924 = sphi 0, %s924
      %s926 = sphi 0, %s924
      %s927 = sphi 0, %s926
      %s941 = sphi 0, %s927
      %s945 = sphi 0, %s945
      %s947 = sphi 0, %s945
      %s948 = sphi 0, %s947
      %s962 = sphi 0, %s948
      %s968 = sphi 0, %s970
      %s971 = sphi 0, %s968
      %s972 = sphi 0, %s971
      %s988 = sphi 0, %s972
    $region4: #{swin_forward.1} parent=1 // loop_header_branch
      %95 = sbr.rel (%p93) target = $region8
    $region5: #{swin_forward.1} parent=1 // loop_body
      %s97 = ssub.s32 %s92, 1
      %s98 = ssub.s32 %s92, 2
      %s99 = sadd.s32 %s92, 1
      %s100 = ssub.s32 %s92, %s99
      %p101 = scmp.eq.s32.totalorder %s100, 0
      %s103 = sadd.s32 %s102, 1
      %s104 = scalar_select %p101, %s102, %s103
      %p107 = pneg %p101
      %p108 = scmp.eq.s32.totalorder %s92, 1
      %p109 = por %p107, %p108
      %p110 = scmp.ne.s32.totalorder %s102, %s105
      %p111 = scmp.eq.s32.totalorder %s92, 0
      %p112 = por %p110, %p111
      %p113 = scmp.ne.s32.totalorder %s102, %s105
      %p114 = scmp.eq.s32.totalorder %s97, 1
      %p115 = por %p113, %p114
      %p116 = scmp.ne.s32.totalorder %s105, %s106
      %p117 = scmp.eq.s32.totalorder %s97, 0
      %p118 = por %p116, %p117
      %p119 = scmp.ne.s32.totalorder %s105, %s106
      %p120 = scmp.eq.s32.totalorder %s98, 1
      %p121 = por %p119, %p120
      %p123 = scmp.ne.s32.totalorder %s106, %s122
      %p124 = scmp.eq.s32.totalorder %s98, 0
      %p125 = por %p123, %p124
      %s127 = sadd.s32 %s126, 1
      %p130 = scmp.eq.s32.totalorder %s92, 1
      %p131 = scmp.ne.s32.totalorder %s126, %s128
      %p132 = scmp.eq.s32.totalorder %s92, 0
      %p133 = por %p131, %p132
      %p134 = scmp.ne.s32.totalorder %s126, %s128
      %p135 = scmp.eq.s32.totalorder %s97, 1
      %p136 = por %p134, %p135
      %p137 = scmp.ne.s32.totalorder %s128, %s129
      %p138 = scmp.eq.s32.totalorder %s97, 0
      %p139 = por %p137, %p138
      %p140 = scmp.ne.s32.totalorder %s128, %s129
      %p141 = scmp.eq.s32.totalorder %s98, 1
      %p142 = por %p140, %p141
      %p144 = scmp.ne.s32.totalorder %s129, %s143
      %p145 = scmp.eq.s32.totalorder %s98, 0
      %p146 = por %p144, %p145
      %s148 = sadd.s32 %s147, 1
      %p151 = scmp.eq.s32.totalorder %s92, 1
      %p152 = scmp.ne.s32.totalorder %s147, %s149
      %p153 = scmp.eq.s32.totalorder %s92, 0
      %p154 = por %p152, %p153
      %p155 = scmp.ne.s32.totalorder %s147, %s149
      %p156 = scmp.eq.s32.totalorder %s97, 1
      %p157 = por %p155, %p156
      %p158 = scmp.ne.s32.totalorder %s149, %s150
      %p159 = scmp.eq.s32.totalorder %s97, 0
      %p160 = por %p158, %p159
      %p161 = scmp.ne.s32.totalorder %s149, %s150
      %p162 = scmp.eq.s32.totalorder %s98, 1
      %p163 = por %p161, %p162
      %p165 = scmp.ne.s32.totalorder %s150, %s164
      %p166 = scmp.eq.s32.totalorder %s98, 0
      %p167 = por %p165, %p166
      %s169 = sadd.s32 %s168, 1
      %p172 = scmp.eq.s32.totalorder %s92, 1
      %p173 = scmp.ne.s32.totalorder %s168, %s170
      %p174 = scmp.eq.s32.totalorder %s92, 0
      %p175 = por %p173, %p174
      %p176 = scmp.ne.s32.totalorder %s168, %s170
      %p177 = scmp.eq.s32.totalorder %s97, 1
      %p178 = por %p176, %p177
      %p179 = scmp.ne.s32.totalorder %s170, %s171
      %p180 = scmp.eq.s32.totalorder %s97, 0
      %p181 = por %p179, %p180
      %p182 = scmp.ne.s32.totalorder %s170, %s171
      %p183 = scmp.eq.s32.totalorder %s98, 1
      %p184 = por %p182, %p183
      %p186 = scmp.ne.s32.totalorder %s171, %s185
      %p187 = scmp.eq.s32.totalorder %s98, 0
      %p188 = por %p186, %p187
      %s190 = sadd.s32 %s189, 1
      %p193 = scmp.eq.s32.totalorder %s92, 1
      %p194 = scmp.ne.s32.totalorder %s189, %s191
      %p195 = scmp.eq.s32.totalorder %s92, 0
      %p196 = por %p194, %p195
      %p197 = scmp.ne.s32.totalorder %s189, %s191
      %p198 = scmp.eq.s32.totalorder %s97, 1
      %p199 = por %p197, %p198
      %p200 = scmp.ne.s32.totalorder %s191, %s192
      %p201 = scmp.eq.s32.totalorder %s97, 0
      %p202 = por %p200, %p201
      %p203 = scmp.ne.s32.totalorder %s191, %s192
      %p204 = scmp.eq.s32.totalorder %s98, 1
      %p205 = por %p203, %p204
      %p207 = scmp.ne.s32.totalorder %s192, %s206
      %p208 = scmp.eq.s32.totalorder %s98, 0
      %p209 = por %p207, %p208
      %s211 = sadd.s32 %s210, 1
      %p214 = scmp.eq.s32.totalorder %s92, 1
      %p215 = scmp.ne.s32.totalorder %s210, %s212
      %p216 = scmp.eq.s32.totalorder %s92, 0
      %p217 = por %p215, %p216
      %p218 = scmp.ne.s32.totalorder %s210, %s212
      %p219 = scmp.eq.s32.totalorder %s97, 1
      %p220 = por %p218, %p219
      %p221 = scmp.ne.s32.totalorder %s212, %s213
      %p222 = scmp.eq.s32.totalorder %s97, 0
      %p223 = por %p221, %p222
      %p224 = scmp.ne.s32.totalorder %s212, %s213
      %p225 = scmp.eq.s32.totalorder %s98, 1
      %p226 = por %p224, %p225
      %p228 = scmp.ne.s32.totalorder %s213, %s227
      %p229 = scmp.eq.s32.totalorder %s98, 0
      %p230 = por %p228, %p229
      %s232 = sadd.s32 %s231, 1
      %p235 = scmp.eq.s32.totalorder %s92, 1
      %p236 = scmp.ne.s32.totalorder %s231, %s233
      %p237 = scmp.eq.s32.totalorder %s92, 0
      %p238 = por %p236, %p237
      %p239 = scmp.ne.s32.totalorder %s231, %s233
      %p240 = scmp.eq.s32.totalorder %s97, 1
      %p241 = por %p239, %p240
      %p242 = scmp.ne.s32.totalorder %s233, %s234
      %p243 = scmp.eq.s32.totalorder %s97, 0
      %p244 = por %p242, %p243
      %p245 = scmp.ne.s32.totalorder %s233, %s234
      %p246 = scmp.eq.s32.totalorder %s98, 1
      %p247 = por %p245, %p246
      %p249 = scmp.ne.s32.totalorder %s234, %s248
      %p250 = scmp.eq.s32.totalorder %s98, 0
      %p251 = por %p249, %p250
      %s253 = sadd.s32 %s252, 1
      %p256 = scmp.eq.s32.totalorder %s92, 1
      %p257 = scmp.ne.s32.totalorder %s252, %s254
      %p258 = scmp.eq.s32.totalorder %s92, 0
      %p259 = por %p257, %p258
      %p260 = scmp.ne.s32.totalorder %s252, %s254
      %p261 = scmp.eq.s32.totalorder %s97, 1
      %p262 = por %p260, %p261
      %p263 = scmp.ne.s32.totalorder %s254, %s255
      %p264 = scmp.eq.s32.totalorder %s97, 0
      %p265 = por %p263, %p264
      %p266 = scmp.ne.s32.totalorder %s254, %s255
      %p267 = scmp.eq.s32.totalorder %s98, 1
      %p268 = por %p266, %p267
      %p270 = scmp.ne.s32.totalorder %s255, %s269
      %p271 = scmp.eq.s32.totalorder %s98, 0
      %p272 = por %p270, %p271
      %s274 = sadd.s32 %s273, 1
      %p277 = scmp.eq.s32.totalorder %s92, 1
      %p278 = scmp.ne.s32.totalorder %s273, %s275
      %p279 = scmp.eq.s32.totalorder %s92, 0
      %p280 = por %p278, %p279
      %p281 = scmp.ne.s32.totalorder %s273, %s275
      %p282 = scmp.eq.s32.totalorder %s97, 1
      %p283 = por %p281, %p282
      %p284 = scmp.ne.s32.totalorder %s275, %s276
      %p285 = scmp.eq.s32.totalorder %s97, 0
      %p286 = por %p284, %p285
      %p287 = scmp.ne.s32.totalorder %s275, %s276
      %p288 = scmp.eq.s32.totalorder %s98, 1
      %p289 = por %p287, %p288
      %p291 = scmp.ne.s32.totalorder %s276, %s290
      %p292 = scmp.eq.s32.totalorder %s98, 0
      %p293 = por %p291, %p292
      %s295 = sadd.s32 %s294, 1
      %p298 = scmp.eq.s32.totalorder %s92, 1
      %p299 = scmp.ne.s32.totalorder %s294, %s296
      %p300 = scmp.eq.s32.totalorder %s92, 0
      %p301 = por %p299, %p300
      %p302 = scmp.ne.s32.totalorder %s294, %s296
      %p303 = scmp.eq.s32.totalorder %s97, 1
      %p304 = por %p302, %p303
      %p305 = scmp.ne.s32.totalorder %s296, %s297
      %p306 = scmp.eq.s32.totalorder %s97, 0
      %p307 = por %p305, %p306
      %p308 = scmp.ne.s32.totalorder %s296, %s297
      %p309 = scmp.eq.s32.totalorder %s98, 1
      %p310 = por %p308, %p309
      %p312 = scmp.ne.s32.totalorder %s297, %s311
      %p313 = scmp.eq.s32.totalorder %s98, 0
      %p314 = por %p312, %p313
      %s316 = sadd.s32 %s315, 1
      %p319 = scmp.eq.s32.totalorder %s92, 1
      %p320 = scmp.ne.s32.totalorder %s315, %s317
      %p321 = scmp.eq.s32.totalorder %s92, 0
      %p322 = por %p320, %p321
      %p323 = scmp.ne.s32.totalorder %s315, %s317
      %p324 = scmp.eq.s32.totalorder %s97, 1
      %p325 = por %p323, %p324
      %p326 = scmp.ne.s32.totalorder %s317, %s318
      %p327 = scmp.eq.s32.totalorder %s97, 0
      %p328 = por %p326, %p327
      %p329 = scmp.ne.s32.totalorder %s317, %s318
      %p330 = scmp.eq.s32.totalorder %s98, 1
      %p331 = por %p329, %p330
      %p333 = scmp.ne.s32.totalorder %s318, %s332
      %p334 = scmp.eq.s32.totalorder %s98, 0
      %p335 = por %p333, %p334
      %s337 = sadd.s32 %s336, 1
      %p340 = scmp.eq.s32.totalorder %s92, 1
      %p341 = scmp.ne.s32.totalorder %s336, %s338
      %p342 = scmp.eq.s32.totalorder %s92, 0
      %p343 = por %p341, %p342
      %p344 = scmp.ne.s32.totalorder %s336, %s338
      %p345 = scmp.eq.s32.totalorder %s97, 1
      %p346 = por %p344, %p345
      %p347 = scmp.ne.s32.totalorder %s338, %s339
      %p348 = scmp.eq.s32.totalorder %s97, 0
      %p349 = por %p347, %p348
      %p350 = scmp.ne.s32.totalorder %s338, %s339
      %p351 = scmp.eq.s32.totalorder %s98, 1
      %p352 = por %p350, %p351
      %p354 = scmp.ne.s32.totalorder %s339, %s353
      %p355 = scmp.eq.s32.totalorder %s98, 0
      %p356 = por %p354, %p355
      %s358 = sadd.s32 %s357, 1
      %p361 = scmp.eq.s32.totalorder %s92, 1
      %p362 = scmp.ne.s32.totalorder %s357, %s359
      %p363 = scmp.eq.s32.totalorder %s92, 0
      %p364 = por %p362, %p363
      %p365 = scmp.ne.s32.totalorder %s357, %s359
      %p366 = scmp.eq.s32.totalorder %s97, 1
      %p367 = por %p365, %p366
      %p368 = scmp.ne.s32.totalorder %s359, %s360
      %p369 = scmp.eq.s32.totalorder %s97, 0
      %p370 = por %p368, %p369
      %p371 = scmp.ne.s32.totalorder %s359, %s360
      %p372 = scmp.eq.s32.totalorder %s98, 1
      %p373 = por %p371, %p372
      %p375 = scmp.ne.s32.totalorder %s360, %s374
      %p376 = scmp.eq.s32.totalorder %s98, 0
      %p377 = por %p375, %p376
      %s379 = sadd.s32 %s378, 1
      %p382 = scmp.eq.s32.totalorder %s92, 1
      %p383 = scmp.ne.s32.totalorder %s378, %s380
      %p384 = scmp.eq.s32.totalorder %s92, 0
      %p385 = por %p383, %p384
      %p386 = scmp.ne.s32.totalorder %s378, %s380
      %p387 = scmp.eq.s32.totalorder %s97, 1
      %p388 = por %p386, %p387
      %p389 = scmp.ne.s32.totalorder %s380, %s381
      %p390 = scmp.eq.s32.totalorder %s97, 0
      %p391 = por %p389, %p390
      %p392 = scmp.ne.s32.totalorder %s380, %s381
      %p393 = scmp.eq.s32.totalorder %s98, 1
      %p394 = por %p392, %p393
      %p396 = scmp.ne.s32.totalorder %s381, %s395
      %p397 = scmp.eq.s32.totalorder %s98, 0
      %p398 = por %p396, %p397
      %s400 = sadd.s32 %s399, 1
      %p403 = scmp.eq.s32.totalorder %s92, 1
      %p404 = scmp.ne.s32.totalorder %s399, %s401
      %p405 = scmp.eq.s32.totalorder %s92, 0
      %p406 = por %p404, %p405
      %p407 = scmp.ne.s32.totalorder %s399, %s401
      %p408 = scmp.eq.s32.totalorder %s97, 1
      %p409 = por %p407, %p408
      %p410 = scmp.ne.s32.totalorder %s401, %s402
      %p411 = scmp.eq.s32.totalorder %s97, 0
      %p412 = por %p410, %p411
      %p413 = scmp.ne.s32.totalorder %s401, %s402
      %p414 = scmp.eq.s32.totalorder %s98, 1
      %p415 = por %p413, %p414
      %p417 = scmp.ne.s32.totalorder %s402, %s416
      %p418 = scmp.eq.s32.totalorder %s98, 0
      %p419 = por %p417, %p418
      %s421 = sadd.s32 %s420, 1
      %p424 = scmp.eq.s32.totalorder %s92, 1
      %p425 = scmp.ne.s32.totalorder %s420, %s422
      %p426 = scmp.eq.s32.totalorder %s92, 0
      %p427 = por %p425, %p426
      %p428 = scmp.ne.s32.totalorder %s420, %s422
      %p429 = scmp.eq.s32.totalorder %s97, 1
      %p430 = por %p428, %p429
      %p431 = scmp.ne.s32.totalorder %s422, %s423
      %p432 = scmp.eq.s32.totalorder %s97, 0
      %p433 = por %p431, %p432
      %p434 = scmp.ne.s32.totalorder %s422, %s423
      %p435 = scmp.eq.s32.totalorder %s98, 1
      %p436 = por %p434, %p435
      %p438 = scmp.ne.s32.totalorder %s423, %s437
      %p439 = scmp.eq.s32.totalorder %s98, 0
      %p440 = por %p438, %p439
      %s442 = sadd.s32 %s441, 1
      %p445 = scmp.eq.s32.totalorder %s92, 1
      %p446 = scmp.ne.s32.totalorder %s441, %s443
      %p447 = scmp.eq.s32.totalorder %s92, 0
      %p448 = por %p446, %p447
      %p449 = scmp.ne.s32.totalorder %s441, %s443
      %p450 = scmp.eq.s32.totalorder %s97, 1
      %p451 = por %p449, %p450
      %p452 = scmp.ne.s32.totalorder %s443, %s444
      %p453 = scmp.eq.s32.totalorder %s97, 0
      %p454 = por %p452, %p453
      %p455 = scmp.ne.s32.totalorder %s443, %s444
      %p456 = scmp.eq.s32.totalorder %s98, 1
      %p457 = por %p455, %p456
      %p459 = scmp.ne.s32.totalorder %s444, %s458
      %p460 = scmp.eq.s32.totalorder %s98, 0
      %p461 = por %p459, %p460
      %s463 = sadd.s32 %s462, 1
      %p466 = scmp.eq.s32.totalorder %s92, 1
      %p467 = scmp.ne.s32.totalorder %s462, %s464
      %p468 = scmp.eq.s32.totalorder %s92, 0
      %p469 = por %p467, %p468
      %p470 = scmp.ne.s32.totalorder %s462, %s464
      %p471 = scmp.eq.s32.totalorder %s97, 1
      %p472 = por %p470, %p471
      %p473 = scmp.ne.s32.totalorder %s464, %s465
      %p474 = scmp.eq.s32.totalorder %s97, 0
      %p475 = por %p473, %p474
      %p476 = scmp.ne.s32.totalorder %s464, %s465
      %p477 = scmp.eq.s32.totalorder %s98, 1
      %p478 = por %p476, %p477
      %p480 = scmp.ne.s32.totalorder %s465, %s479
      %p481 = scmp.eq.s32.totalorder %s98, 0
      %p482 = por %p480, %p481
      %s484 = sadd.s32 %s483, 1
      %p487 = scmp.eq.s32.totalorder %s92, 1
      %p488 = scmp.ne.s32.totalorder %s483, %s485
      %p489 = scmp.eq.s32.totalorder %s92, 0
      %p490 = por %p488, %p489
      %p491 = scmp.ne.s32.totalorder %s483, %s485
      %p492 = scmp.eq.s32.totalorder %s97, 1
      %p493 = por %p491, %p492
      %p494 = scmp.ne.s32.totalorder %s485, %s486
      %p495 = scmp.eq.s32.totalorder %s97, 0
      %p496 = por %p494, %p495
      %p497 = scmp.ne.s32.totalorder %s485, %s486
      %p498 = scmp.eq.s32.totalorder %s98, 1
      %p499 = por %p497, %p498
      %p501 = scmp.ne.s32.totalorder %s486, %s500
      %p502 = scmp.eq.s32.totalorder %s98, 0
      %p503 = por %p501, %p502
      %s505 = sadd.s32 %s504, 1
      %p508 = scmp.eq.s32.totalorder %s92, 1
      %p509 = scmp.ne.s32.totalorder %s504, %s506
      %p510 = scmp.eq.s32.totalorder %s92, 0
      %p511 = por %p509, %p510
      %p512 = scmp.ne.s32.totalorder %s504, %s506
      %p513 = scmp.eq.s32.totalorder %s97, 1
      %p514 = por %p512, %p513
      %p515 = scmp.ne.s32.totalorder %s506, %s507
      %p516 = scmp.eq.s32.totalorder %s97, 0
      %p517 = por %p515, %p516
      %p518 = scmp.ne.s32.totalorder %s506, %s507
      %p519 = scmp.eq.s32.totalorder %s98, 1
      %p520 = por %p518, %p519
      %p522 = scmp.ne.s32.totalorder %s507, %s521
      %p523 = scmp.eq.s32.totalorder %s98, 0
      %p524 = por %p522, %p523
      %s526 = sadd.s32 %s525, 1
      %p529 = scmp.eq.s32.totalorder %s92, 1
      %p530 = scmp.ne.s32.totalorder %s525, %s527
      %p531 = scmp.eq.s32.totalorder %s92, 0
      %p532 = por %p530, %p531
      %p533 = scmp.ne.s32.totalorder %s525, %s527
      %p534 = scmp.eq.s32.totalorder %s97, 1
      %p535 = por %p533, %p534
      %p536 = scmp.ne.s32.totalorder %s527, %s528
      %p537 = scmp.eq.s32.totalorder %s97, 0
      %p538 = por %p536, %p537
      %p539 = scmp.ne.s32.totalorder %s527, %s528
      %p540 = scmp.eq.s32.totalorder %s98, 1
      %p541 = por %p539, %p540
      %p543 = scmp.ne.s32.totalorder %s528, %s542
      %p544 = scmp.eq.s32.totalorder %s98, 0
      %p545 = por %p543, %p544
      %s547 = sadd.s32 %s546, 1
      %p550 = scmp.eq.s32.totalorder %s92, 1
      %p551 = scmp.ne.s32.totalorder %s546, %s548
      %p552 = scmp.eq.s32.totalorder %s92, 0
      %p553 = por %p551, %p552
      %p554 = scmp.ne.s32.totalorder %s546, %s548
      %p555 = scmp.eq.s32.totalorder %s97, 1
      %p556 = por %p554, %p555
      %p557 = scmp.ne.s32.totalorder %s548, %s549
      %p558 = scmp.eq.s32.totalorder %s97, 0
      %p559 = por %p557, %p558
      %p560 = scmp.ne.s32.totalorder %s548, %s549
      %p561 = scmp.eq.s32.totalorder %s98, 1
      %p562 = por %p560, %p561
      %p564 = scmp.ne.s32.totalorder %s549, %s563
      %p565 = scmp.eq.s32.totalorder %s98, 0
      %p566 = por %p564, %p565
      %s568 = sadd.s32 %s567, 1
      %p571 = scmp.eq.s32.totalorder %s92, 1
      %p572 = scmp.ne.s32.totalorder %s567, %s569
      %p573 = scmp.eq.s32.totalorder %s92, 0
      %p574 = por %p572, %p573
      %p575 = scmp.ne.s32.totalorder %s567, %s569
      %p576 = scmp.eq.s32.totalorder %s97, 1
      %p577 = por %p575, %p576
      %p578 = scmp.ne.s32.totalorder %s569, %s570
      %p579 = scmp.eq.s32.totalorder %s97, 0
      %p580 = por %p578, %p579
      %p581 = scmp.ne.s32.totalorder %s569, %s570
      %p582 = scmp.eq.s32.totalorder %s98, 1
      %p583 = por %p581, %p582
      %p585 = scmp.ne.s32.totalorder %s570, %s584
      %p586 = scmp.eq.s32.totalorder %s98, 0
      %p587 = por %p585, %p586
      %s589 = sadd.s32 %s588, 1
      %p592 = scmp.eq.s32.totalorder %s92, 1
      %p593 = scmp.ne.s32.totalorder %s588, %s590
      %p594 = scmp.eq.s32.totalorder %s92, 0
      %p595 = por %p593, %p594
      %p596 = scmp.ne.s32.totalorder %s588, %s590
      %p597 = scmp.eq.s32.totalorder %s97, 1
      %p598 = por %p596, %p597
      %p599 = scmp.ne.s32.totalorder %s590, %s591
      %p600 = scmp.eq.s32.totalorder %s97, 0
      %p601 = por %p599, %p600
      %p602 = scmp.ne.s32.totalorder %s590, %s591
      %p603 = scmp.eq.s32.totalorder %s98, 1
      %p604 = por %p602, %p603
      %p606 = scmp.ne.s32.totalorder %s591, %s605
      %p607 = scmp.eq.s32.totalorder %s98, 0
      %p608 = por %p606, %p607
      %s610 = sadd.s32 %s609, 1
      %p613 = scmp.eq.s32.totalorder %s92, 1
      %p614 = scmp.ne.s32.totalorder %s609, %s611
      %p615 = scmp.eq.s32.totalorder %s92, 0
      %p616 = por %p614, %p615
      %p617 = scmp.ne.s32.totalorder %s609, %s611
      %p618 = scmp.eq.s32.totalorder %s97, 1
      %p619 = por %p617, %p618
      %p620 = scmp.ne.s32.totalorder %s611, %s612
      %p621 = scmp.eq.s32.totalorder %s97, 0
      %p622 = por %p620, %p621
      %p623 = scmp.ne.s32.totalorder %s611, %s612
      %p624 = scmp.eq.s32.totalorder %s98, 1
      %p625 = por %p623, %p624
      %p627 = scmp.ne.s32.totalorder %s612, %s626
      %p628 = scmp.eq.s32.totalorder %s98, 0
      %p629 = por %p627, %p628
      %s631 = sadd.s32 %s630, 1
      %p634 = scmp.eq.s32.totalorder %s92, 1
      %p635 = scmp.ne.s32.totalorder %s630, %s632
      %p636 = scmp.eq.s32.totalorder %s92, 0
      %p637 = por %p635, %p636
      %p638 = scmp.ne.s32.totalorder %s630, %s632
      %p639 = scmp.eq.s32.totalorder %s97, 1
      %p640 = por %p638, %p639
      %p641 = scmp.ne.s32.totalorder %s632, %s633
      %p642 = scmp.eq.s32.totalorder %s97, 0
      %p643 = por %p641, %p642
      %p644 = scmp.ne.s32.totalorder %s632, %s633
      %p645 = scmp.eq.s32.totalorder %s98, 1
      %p646 = por %p644, %p645
      %p648 = scmp.ne.s32.totalorder %s633, %s647
      %p649 = scmp.eq.s32.totalorder %s98, 0
      %p650 = por %p648, %p649
      %s652 = sadd.s32 %s651, 1
      %p655 = scmp.eq.s32.totalorder %s92, 1
      %p656 = scmp.ne.s32.totalorder %s651, %s653
      %p657 = scmp.eq.s32.totalorder %s92, 0
      %p658 = por %p656, %p657
      %p659 = scmp.ne.s32.totalorder %s651, %s653
      %p660 = scmp.eq.s32.totalorder %s97, 1
      %p661 = por %p659, %p660
      %p662 = scmp.ne.s32.totalorder %s653, %s654
      %p663 = scmp.eq.s32.totalorder %s97, 0
      %p664 = por %p662, %p663
      %p665 = scmp.ne.s32.totalorder %s653, %s654
      %p666 = scmp.eq.s32.totalorder %s98, 1
      %p667 = por %p665, %p666
      %p669 = scmp.ne.s32.totalorder %s654, %s668
      %p670 = scmp.eq.s32.totalorder %s98, 0
      %p671 = por %p669, %p670
      %s673 = sadd.s32 %s672, 1
      %p676 = scmp.eq.s32.totalorder %s92, 1
      %p677 = scmp.ne.s32.totalorder %s672, %s674
      %p678 = scmp.eq.s32.totalorder %s92, 0
      %p679 = por %p677, %p678
      %p680 = scmp.ne.s32.totalorder %s672, %s674
      %p681 = scmp.eq.s32.totalorder %s97, 1
      %p682 = por %p680, %p681
      %p683 = scmp.ne.s32.totalorder %s674, %s675
      %p684 = scmp.eq.s32.totalorder %s97, 0
      %p685 = por %p683, %p684
      %p686 = scmp.ne.s32.totalorder %s674, %s675
      %p687 = scmp.eq.s32.totalorder %s98, 1
      %p688 = por %p686, %p687
      %p690 = scmp.ne.s32.totalorder %s675, %s689
      %p691 = scmp.eq.s32.totalorder %s98, 0
      %p692 = por %p690, %p691
      %s694 = sadd.s32 %s693, 1
      %p697 = scmp.eq.s32.totalorder %s92, 1
      %p698 = scmp.ne.s32.totalorder %s693, %s695
      %p699 = scmp.eq.s32.totalorder %s92, 0
      %p700 = por %p698, %p699
      %p701 = scmp.ne.s32.totalorder %s693, %s695
      %p702 = scmp.eq.s32.totalorder %s97, 1
      %p703 = por %p701, %p702
      %p704 = scmp.ne.s32.totalorder %s695, %s696
      %p705 = scmp.eq.s32.totalorder %s97, 0
      %p706 = por %p704, %p705
      %p707 = scmp.ne.s32.totalorder %s695, %s696
      %p708 = scmp.eq.s32.totalorder %s98, 1
      %p709 = por %p707, %p708
      %p711 = scmp.ne.s32.totalorder %s696, %s710
      %p712 = scmp.eq.s32.totalorder %s98, 0
      %p713 = por %p711, %p712
      %s715 = sadd.s32 %s714, 1
      %p718 = scmp.eq.s32.totalorder %s92, 1
      %p719 = scmp.ne.s32.totalorder %s714, %s716
      %p720 = scmp.eq.s32.totalorder %s92, 0
      %p721 = por %p719, %p720
      %p722 = scmp.ne.s32.totalorder %s714, %s716
      %p723 = scmp.eq.s32.totalorder %s97, 1
      %p724 = por %p722, %p723
      %p725 = scmp.ne.s32.totalorder %s716, %s717
      %p726 = scmp.eq.s32.totalorder %s97, 0
      %p727 = por %p725, %p726
      %p728 = scmp.ne.s32.totalorder %s716, %s717
      %p729 = scmp.eq.s32.totalorder %s98, 1
      %p730 = por %p728, %p729
      %p732 = scmp.ne.s32.totalorder %s717, %s731
      %p733 = scmp.eq.s32.totalorder %s98, 0
      %p734 = por %p732, %p733
      %s736 = sadd.s32 %s735, 1
      %p739 = scmp.eq.s32.totalorder %s92, 1
      %p740 = scmp.ne.s32.totalorder %s735, %s737
      %p741 = scmp.eq.s32.totalorder %s92, 0
      %p742 = por %p740, %p741
      %p743 = scmp.ne.s32.totalorder %s735, %s737
      %p744 = scmp.eq.s32.totalorder %s97, 1
      %p745 = por %p743, %p744
      %p746 = scmp.ne.s32.totalorder %s737, %s738
      %p747 = scmp.eq.s32.totalorder %s97, 0
      %p748 = por %p746, %p747
      %p749 = scmp.ne.s32.totalorder %s737, %s738
      %p750 = scmp.eq.s32.totalorder %s98, 1
      %p751 = por %p749, %p750
      %p753 = scmp.ne.s32.totalorder %s738, %s752
      %p754 = scmp.eq.s32.totalorder %s98, 0
      %p755 = por %p753, %p754
      %s757 = sadd.s32 %s756, 1
      %p760 = scmp.eq.s32.totalorder %s92, 1
      %p761 = scmp.ne.s32.totalorder %s756, %s758
      %p762 = scmp.eq.s32.totalorder %s92, 0
      %p763 = por %p761, %p762
      %p764 = scmp.ne.s32.totalorder %s756, %s758
      %p765 = scmp.eq.s32.totalorder %s97, 1
      %p766 = por %p764, %p765
      %p767 = scmp.ne.s32.totalorder %s758, %s759
      %p768 = scmp.eq.s32.totalorder %s97, 0
      %p769 = por %p767, %p768
      %p770 = scmp.ne.s32.totalorder %s758, %s759
      %p771 = scmp.eq.s32.totalorder %s98, 1
      %p772 = por %p770, %p771
      %p774 = scmp.ne.s32.totalorder %s759, %s773
      %p775 = scmp.eq.s32.totalorder %s98, 0
      %p776 = por %p774, %p775
      %s778 = sadd.s32 %s777, 1
      %p781 = scmp.eq.s32.totalorder %s92, 1
      %p782 = scmp.ne.s32.totalorder %s777, %s779
      %p783 = scmp.eq.s32.totalorder %s92, 0
      %p784 = por %p782, %p783
      %p785 = scmp.ne.s32.totalorder %s777, %s779
      %p786 = scmp.eq.s32.totalorder %s97, 1
      %p787 = por %p785, %p786
      %p788 = scmp.ne.s32.totalorder %s779, %s780
      %p789 = scmp.eq.s32.totalorder %s97, 0
      %p790 = por %p788, %p789
      %p791 = scmp.ne.s32.totalorder %s779, %s780
      %p792 = scmp.eq.s32.totalorder %s98, 1
      %p793 = por %p791, %p792
      %p795 = scmp.ne.s32.totalorder %s780, %s794
      %p796 = scmp.eq.s32.totalorder %s98, 0
      %p797 = por %p795, %p796
      %s799 = sadd.s32 %s798, 1
      %p802 = scmp.eq.s32.totalorder %s92, 1
      %p803 = scmp.ne.s32.totalorder %s798, %s800
      %p804 = scmp.eq.s32.totalorder %s92, 0
      %p805 = por %p803, %p804
      %p806 = scmp.ne.s32.totalorder %s798, %s800
      %p807 = scmp.eq.s32.totalorder %s97, 1
      %p808 = por %p806, %p807
      %p809 = scmp.ne.s32.totalorder %s800, %s801
      %p810 = scmp.eq.s32.totalorder %s97, 0
      %p811 = por %p809, %p810
      %p812 = scmp.ne.s32.totalorder %s800, %s801
      %p813 = scmp.eq.s32.totalorder %s98, 1
      %p814 = por %p812, %p813
      %p816 = scmp.ne.s32.totalorder %s801, %s815
      %p817 = scmp.eq.s32.totalorder %s98, 0
      %p818 = por %p816, %p817
      %s820 = sadd.s32 %s819, 1
      %p823 = scmp.eq.s32.totalorder %s92, 1
      %p824 = scmp.ne.s32.totalorder %s819, %s821
      %p825 = scmp.eq.s32.totalorder %s92, 0
      %p826 = por %p824, %p825
      %p827 = scmp.ne.s32.totalorder %s819, %s821
      %p828 = scmp.eq.s32.totalorder %s97, 1
      %p829 = por %p827, %p828
      %p830 = scmp.ne.s32.totalorder %s821, %s822
      %p831 = scmp.eq.s32.totalorder %s97, 0
      %p832 = por %p830, %p831
      %p833 = scmp.ne.s32.totalorder %s821, %s822
      %p834 = scmp.eq.s32.totalorder %s98, 1
      %p835 = por %p833, %p834
      %p837 = scmp.ne.s32.totalorder %s822, %s836
      %p838 = scmp.eq.s32.totalorder %s98, 0
      %p839 = por %p837, %p838
      %s841 = sadd.s32 %s840, 1
      %p844 = scmp.eq.s32.totalorder %s92, 1
      %p845 = scmp.ne.s32.totalorder %s840, %s842
      %p846 = scmp.eq.s32.totalorder %s92, 0
      %p847 = por %p845, %p846
      %p848 = scmp.ne.s32.totalorder %s840, %s842
      %p849 = scmp.eq.s32.totalorder %s97, 1
      %p850 = por %p848, %p849
      %p851 = scmp.ne.s32.totalorder %s842, %s843
      %p852 = scmp.eq.s32.totalorder %s97, 0
      %p853 = por %p851, %p852
      %p854 = scmp.ne.s32.totalorder %s842, %s843
      %p855 = scmp.eq.s32.totalorder %s98, 1
      %p856 = por %p854, %p855
      %p858 = scmp.ne.s32.totalorder %s843, %s857
      %p859 = scmp.eq.s32.totalorder %s98, 0
      %p860 = por %p858, %p859
      %s862 = sadd.s32 %s861, 1
      %p865 = scmp.eq.s32.totalorder %s92, 1
      %p866 = scmp.ne.s32.totalorder %s861, %s863
      %p867 = scmp.eq.s32.totalorder %s92, 0
      %p868 = por %p866, %p867
      %p869 = scmp.ne.s32.totalorder %s861, %s863
      %p870 = scmp.eq.s32.totalorder %s97, 1
      %p871 = por %p869, %p870
      %p872 = scmp.ne.s32.totalorder %s863, %s864
      %p873 = scmp.eq.s32.totalorder %s97, 0
      %p874 = por %p872, %p873
      %p875 = scmp.ne.s32.totalorder %s863, %s864
      %p876 = scmp.eq.s32.totalorder %s98, 1
      %p877 = por %p875, %p876
      %p879 = scmp.ne.s32.totalorder %s864, %s878
      %p880 = scmp.eq.s32.totalorder %s98, 0
      %p881 = por %p879, %p880
      %s883 = sadd.s32 %s882, 1
      %p886 = scmp.eq.s32.totalorder %s92, 1
      %p887 = scmp.ne.s32.totalorder %s882, %s884
      %p888 = scmp.eq.s32.totalorder %s92, 0
      %p889 = por %p887, %p888
      %p890 = scmp.ne.s32.totalorder %s882, %s884
      %p891 = scmp.eq.s32.totalorder %s97, 1
      %p892 = por %p890, %p891
      %p893 = scmp.ne.s32.totalorder %s884, %s885
      %p894 = scmp.eq.s32.totalorder %s97, 0
      %p895 = por %p893, %p894
      %p896 = scmp.ne.s32.totalorder %s884, %s885
      %p897 = scmp.eq.s32.totalorder %s98, 1
      %p898 = por %p896, %p897
      %p900 = scmp.ne.s32.totalorder %s885, %s899
      %p901 = scmp.eq.s32.totalorder %s98, 0
      %p902 = por %p900, %p901
      %s904 = sadd.s32 %s903, 1
      %p907 = scmp.eq.s32.totalorder %s92, 1
      %p908 = scmp.ne.s32.totalorder %s903, %s905
      %p909 = scmp.eq.s32.totalorder %s92, 0
      %p910 = por %p908, %p909
      %p911 = scmp.ne.s32.totalorder %s903, %s905
      %p912 = scmp.eq.s32.totalorder %s97, 1
      %p913 = por %p911, %p912
      %p914 = scmp.ne.s32.totalorder %s905, %s906
      %p915 = scmp.eq.s32.totalorder %s97, 0
      %p916 = por %p914, %p915
      %p917 = scmp.ne.s32.totalorder %s905, %s906
      %p918 = scmp.eq.s32.totalorder %s98, 1
      %p919 = por %p917, %p918
      %p921 = scmp.ne.s32.totalorder %s906, %s920
      %p922 = scmp.eq.s32.totalorder %s98, 0
      %p923 = por %p921, %p922
      %s925 = sadd.s32 %s924, 1
      %p928 = scmp.eq.s32.totalorder %s92, 1
      %p929 = scmp.ne.s32.totalorder %s924, %s926
      %p930 = scmp.eq.s32.totalorder %s92, 0
      %p931 = por %p929, %p930
      %p932 = scmp.ne.s32.totalorder %s924, %s926
      %p933 = scmp.eq.s32.totalorder %s97, 1
      %p934 = por %p932, %p933
      %p935 = scmp.ne.s32.totalorder %s926, %s927
      %p936 = scmp.eq.s32.totalorder %s97, 0
      %p937 = por %p935, %p936
      %p938 = scmp.ne.s32.totalorder %s926, %s927
      %p939 = scmp.eq.s32.totalorder %s98, 1
      %p940 = por %p938, %p939
      %p942 = scmp.ne.s32.totalorder %s927, %s941
      %p943 = scmp.eq.s32.totalorder %s98, 0
      %p944 = por %p942, %p943
      %s946 = sadd.s32 %s945, 1
      %p949 = scmp.eq.s32.totalorder %s92, 1
      %p950 = scmp.ne.s32.totalorder %s945, %s947
      %p951 = scmp.eq.s32.totalorder %s92, 0
      %p952 = por %p950, %p951
      %p953 = scmp.ne.s32.totalorder %s945, %s947
      %p954 = scmp.eq.s32.totalorder %s97, 1
      %p955 = por %p953, %p954
      %p956 = scmp.ne.s32.totalorder %s947, %s948
      %p957 = scmp.eq.s32.totalorder %s97, 0
      %p958 = por %p956, %p957
      %p959 = scmp.ne.s32.totalorder %s947, %s948
      %p960 = scmp.eq.s32.totalorder %s98, 1
      %p961 = por %p959, %p960
      %p963 = scmp.ne.s32.totalorder %s948, %s962
      %p964 = scmp.eq.s32.totalorder %s98, 0
      %p965 = por %p963, %p964
      %s966 = ssub.s32 %s92, %s99
      %p967 = scmp.eq.s32.totalorder %s966, 0
      %s969 = sadd.s32 %s968, 1
      %s970 = scalar_select %p967, %s968, %s969
      %p973 = pneg %p967
      %p974 = scmp.eq.s32.totalorder %s92, 1
      %p975 = por %p973, %p974
      %p976 = scmp.ne.s32.totalorder %s968, %s971
      %p977 = scmp.eq.s32.totalorder %s92, 0
      %p978 = por %p976, %p977
      %p979 = scmp.ne.s32.totalorder %s968, %s971
      %p980 = scmp.eq.s32.totalorder %s97, 1
      %p981 = por %p979, %p980
      %p982 = scmp.ne.s32.totalorder %s971, %s972
      %p983 = scmp.eq.s32.totalorder %s97, 0
      %p984 = por %p982, %p983
      %p985 = scmp.ne.s32.totalorder %s971, %s972
      %p986 = scmp.eq.s32.totalorder %s98, 1
      %p987 = por %p985, %p986
      %p989 = scmp.ne.s32.totalorder %s972, %s988
      %p990 = scmp.eq.s32.totalorder %s98, 0
      %p991 = por %p989, %p990
      %p992 = scmp.le.s32.totalorder 1, %s92
      %p993 = scmp.lt.s32.totalorder %s92, 3
      %p994 = pnand %p992, %p993
      %p995 = pneg %p994
      // Predicated region
      $region9: #{swin_forward.1} parent=5 // pred_check
        _
      $region10: #{swin_forward.1} parent=5 // pred_check_branch
        %997 = sbr.rel (%p994) target = $region12
      $region11: #{swin_forward.1} parent=5 // pred_region
        %s998 = ssub.s32 %s92, 1
        // Predicated region
        $region13: #{swin_forward.1} parent=11 // pred_check
          %p999 = pneg %p139
        $region14: #{swin_forward.1} parent=11 // pred_check_branch
          %1001 = sbr.rel (%p999) target = $region16
        $region15: #{swin_forward.1} parent=11 // pred_region
          _
        $region16: #{swin_forward.1} parent=11 // pred_fallthru
          _
        // Predicated region
        $region17: #{swin_forward.1} parent=11 // pred_check
          %p1002 = pneg %p160
        $region18: #{swin_forward.1} parent=11 // pred_check_branch
          %1004 = sbr.rel (%p1002) target = $region20
        $region19: #{swin_forward.1} parent=11 // pred_region
          _
        $region20: #{swin_forward.1} parent=11 // pred_fallthru
          _
        // Predicated region
        $region21: #{swin_forward.1} parent=11 // pred_check
          %p1005 = pneg %p181
        $region22: #{swin_forward.1} parent=11 // pred_check_branch
          %1007 = sbr.rel (%p1005) target = $region24
        $region23: #{swin_forward.1} parent=11 // pred_region
          _
        $region24: #{swin_forward.1} parent=11 // pred_fallthru
          _
        // Predicated region
        $region25: #{swin_forward.1} parent=11 // pred_check
          %p1008 = pneg %p202
        $region26: #{swin_forward.1} parent=11 // pred_check_branch
          %1010 = sbr.rel (%p1008) target = $region28
        $region27: #{swin_forward.1} parent=11 // pred_region
          _
        $region28: #{swin_forward.1} parent=11 // pred_fallthru
          _
        // Predicated region
        $region29: #{swin_forward.1} parent=11 // pred_check
          %p1011 = pneg %p223
        $region30: #{swin_forward.1} parent=11 // pred_check_branch
          %1013 = sbr.rel (%p1011) target = $region32
        $region31: #{swin_forward.1} parent=11 // pred_region
          _
        $region32: #{swin_forward.1} parent=11 // pred_fallthru
          _
        // Predicated region
        $region33: #{swin_forward.1} parent=11 // pred_check
          %p1014 = pneg %p244
        $region34: #{swin_forward.1} parent=11 // pred_check_branch
          %1016 = sbr.rel (%p1014) target = $region36
        $region35: #{swin_forward.1} parent=11 // pred_region
          _
        $region36: #{swin_forward.1} parent=11 // pred_fallthru
          _
        // Predicated region
        $region37: #{swin_forward.1} parent=11 // pred_check
          %p1017 = pneg %p265
        $region38: #{swin_forward.1} parent=11 // pred_check_branch
          %1019 = sbr.rel (%p1017) target = $region40
        $region39: #{swin_forward.1} parent=11 // pred_region
          _
        $region40: #{swin_forward.1} parent=11 // pred_fallthru
          _
        // Predicated region
        $region41: #{swin_forward.1} parent=11 // pred_check
          %p1020 = pneg %p286
        $region42: #{swin_forward.1} parent=11 // pred_check_branch
          %1022 = sbr.rel (%p1020) target = $region44
        $region43: #{swin_forward.1} parent=11 // pred_region
          _
        $region44: #{swin_forward.1} parent=11 // pred_fallthru
          _
        // Predicated region
        $region45: #{swin_forward.1} parent=11 // pred_check
          %p1023 = pneg %p307
        $region46: #{swin_forward.1} parent=11 // pred_check_branch
          %1025 = sbr.rel (%p1023) target = $region48
        $region47: #{swin_forward.1} parent=11 // pred_region
          _
        $region48: #{swin_forward.1} parent=11 // pred_fallthru
          _
        // Predicated region
        $region49: #{swin_forward.1} parent=11 // pred_check
          %p1026 = pneg %p328
        $region50: #{swin_forward.1} parent=11 // pred_check_branch
          %1028 = sbr.rel (%p1026) target = $region52
        $region51: #{swin_forward.1} parent=11 // pred_region
          _
        $region52: #{swin_forward.1} parent=11 // pred_fallthru
          _
        // Predicated region
        $region53: #{swin_forward.1} parent=11 // pred_check
          %p1029 = pneg %p349
        $region54: #{swin_forward.1} parent=11 // pred_check_branch
          %1031 = sbr.rel (%p1029) target = $region56
        $region55: #{swin_forward.1} parent=11 // pred_region
          _
        $region56: #{swin_forward.1} parent=11 // pred_fallthru
          _
        // Predicated region
        $region57: #{swin_forward.1} parent=11 // pred_check
          %p1032 = pneg %p370
        $region58: #{swin_forward.1} parent=11 // pred_check_branch
          %1034 = sbr.rel (%p1032) target = $region60
        $region59: #{swin_forward.1} parent=11 // pred_region
          _
        $region60: #{swin_forward.1} parent=11 // pred_fallthru
          _
        // Predicated region
        $region61: #{swin_forward.1} parent=11 // pred_check
          %p1035 = pneg %p391
        $region62: #{swin_forward.1} parent=11 // pred_check_branch
          %1037 = sbr.rel (%p1035) target = $region64
        $region63: #{swin_forward.1} parent=11 // pred_region
          _
        $region64: #{swin_forward.1} parent=11 // pred_fallthru
          _
        // Predicated region
        $region65: #{swin_forward.1} parent=11 // pred_check
          %p1038 = pneg %p412
        $region66: #{swin_forward.1} parent=11 // pred_check_branch
          %1040 = sbr.rel (%p1038) target = $region68
        $region67: #{swin_forward.1} parent=11 // pred_region
          _
        $region68: #{swin_forward.1} parent=11 // pred_fallthru
          _
        // Predicated region
        $region69: #{swin_forward.1} parent=11 // pred_check
          %p1041 = pneg %p433
        $region70: #{swin_forward.1} parent=11 // pred_check_branch
          %1043 = sbr.rel (%p1041) target = $region72
        $region71: #{swin_forward.1} parent=11 // pred_region
          _
        $region72: #{swin_forward.1} parent=11 // pred_fallthru
          _
        // Predicated region
        $region73: #{swin_forward.1} parent=11 // pred_check
          %p1044 = pneg %p454
        $region74: #{swin_forward.1} parent=11 // pred_check_branch
          %1046 = sbr.rel (%p1044) target = $region76
        $region75: #{swin_forward.1} parent=11 // pred_region
          _
        $region76: #{swin_forward.1} parent=11 // pred_fallthru
          _
        // Predicated region
        $region77: #{swin_forward.1} parent=11 // pred_check
          %p1047 = pneg %p475
        $region78: #{swin_forward.1} parent=11 // pred_check_branch
          %1049 = sbr.rel (%p1047) target = $region80
        $region79: #{swin_forward.1} parent=11 // pred_region
          _
        $region80: #{swin_forward.1} parent=11 // pred_fallthru
          _
        // Predicated region
        $region81: #{swin_forward.1} parent=11 // pred_check
          %p1050 = pneg %p496
        $region82: #{swin_forward.1} parent=11 // pred_check_branch
          %1052 = sbr.rel (%p1050) target = $region84
        $region83: #{swin_forward.1} parent=11 // pred_region
          _
        $region84: #{swin_forward.1} parent=11 // pred_fallthru
          _
        // Predicated region
        $region85: #{swin_forward.1} parent=11 // pred_check
          %p1053 = pneg %p517
        $region86: #{swin_forward.1} parent=11 // pred_check_branch
          %1055 = sbr.rel (%p1053) target = $region88
        $region87: #{swin_forward.1} parent=11 // pred_region
          _
        $region88: #{swin_forward.1} parent=11 // pred_fallthru
          _
        // Predicated region
        $region89: #{swin_forward.1} parent=11 // pred_check
          %p1056 = pneg %p538
        $region90: #{swin_forward.1} parent=11 // pred_check_branch
          %1058 = sbr.rel (%p1056) target = $region92
        $region91: #{swin_forward.1} parent=11 // pred_region
          _
        $region92: #{swin_forward.1} parent=11 // pred_fallthru
          _
        // Predicated region
        $region93: #{swin_forward.1} parent=11 // pred_check
          %p1059 = pneg %p559
        $region94: #{swin_forward.1} parent=11 // pred_check_branch
          %1061 = sbr.rel (%p1059) target = $region96
        $region95: #{swin_forward.1} parent=11 // pred_region
          _
        $region96: #{swin_forward.1} parent=11 // pred_fallthru
          _
        // Predicated region
        $region97: #{swin_forward.1} parent=11 // pred_check
          %p1062 = pneg %p580
        $region98: #{swin_forward.1} parent=11 // pred_check_branch
          %1064 = sbr.rel (%p1062) target = $region100
        $region99: #{swin_forward.1} parent=11 // pred_region
          _
        $region100: #{swin_forward.1} parent=11 // pred_fallthru
          _
        // Predicated region
        $region101: #{swin_forward.1} parent=11 // pred_check
          %p1065 = pneg %p601
        $region102: #{swin_forward.1} parent=11 // pred_check_branch
          %1067 = sbr.rel (%p1065) target = $region104
        $region103: #{swin_forward.1} parent=11 // pred_region
          _
        $region104: #{swin_forward.1} parent=11 // pred_fallthru
          _
        // Predicated region
        $region105: #{swin_forward.1} parent=11 // pred_check
          %p1068 = pneg %p622
        $region106: #{swin_forward.1} parent=11 // pred_check_branch
          %1070 = sbr.rel (%p1068) target = $region108
        $region107: #{swin_forward.1} parent=11 // pred_region
          _
        $region108: #{swin_forward.1} parent=11 // pred_fallthru
          _
        // Predicated region
        $region109: #{swin_forward.1} parent=11 // pred_check
          %p1071 = pneg %p643
        $region110: #{swin_forward.1} parent=11 // pred_check_branch
          %1073 = sbr.rel (%p1071) target = $region112
        $region111: #{swin_forward.1} parent=11 // pred_region
          _
        $region112: #{swin_forward.1} parent=11 // pred_fallthru
          _
        // Predicated region
        $region113: #{swin_forward.1} parent=11 // pred_check
          %p1074 = pneg %p664
        $region114: #{swin_forward.1} parent=11 // pred_check_branch
          %1076 = sbr.rel (%p1074) target = $region116
        $region115: #{swin_forward.1} parent=11 // pred_region
          _
        $region116: #{swin_forward.1} parent=11 // pred_fallthru
          _
        // Predicated region
        $region117: #{swin_forward.1} parent=11 // pred_check
          %p1077 = pneg %p685
        $region118: #{swin_forward.1} parent=11 // pred_check_branch
          %1079 = sbr.rel (%p1077) target = $region120
        $region119: #{swin_forward.1} parent=11 // pred_region
          _
        $region120: #{swin_forward.1} parent=11 // pred_fallthru
          _
        // Predicated region
        $region121: #{swin_forward.1} parent=11 // pred_check
          %p1080 = pneg %p706
        $region122: #{swin_forward.1} parent=11 // pred_check_branch
          %1082 = sbr.rel (%p1080) target = $region124
        $region123: #{swin_forward.1} parent=11 // pred_region
          _
        $region124: #{swin_forward.1} parent=11 // pred_fallthru
          _
        // Predicated region
        $region125: #{swin_forward.1} parent=11 // pred_check
          %p1083 = pneg %p727
        $region126: #{swin_forward.1} parent=11 // pred_check_branch
          %1085 = sbr.rel (%p1083) target = $region128
        $region127: #{swin_forward.1} parent=11 // pred_region
          _
        $region128: #{swin_forward.1} parent=11 // pred_fallthru
          _
        // Predicated region
        $region129: #{swin_forward.1} parent=11 // pred_check
          %p1086 = pneg %p748
        $region130: #{swin_forward.1} parent=11 // pred_check_branch
          %1088 = sbr.rel (%p1086) target = $region132
        $region131: #{swin_forward.1} parent=11 // pred_region
          _
        $region132: #{swin_forward.1} parent=11 // pred_fallthru
          _
        // Predicated region
        $region133: #{swin_forward.1} parent=11 // pred_check
          %p1089 = pneg %p769
        $region134: #{swin_forward.1} parent=11 // pred_check_branch
          %1091 = sbr.rel (%p1089) target = $region136
        $region135: #{swin_forward.1} parent=11 // pred_region
          _
        $region136: #{swin_forward.1} parent=11 // pred_fallthru
          _
        // Predicated region
        $region137: #{swin_forward.1} parent=11 // pred_check
          %p1092 = pneg %p790
        $region138: #{swin_forward.1} parent=11 // pred_check_branch
          %1094 = sbr.rel (%p1092) target = $region140
        $region139: #{swin_forward.1} parent=11 // pred_region
          _
        $region140: #{swin_forward.1} parent=11 // pred_fallthru
          _
        // Predicated region
        $region141: #{swin_forward.1} parent=11 // pred_check
          %p1095 = pneg %p811
        $region142: #{swin_forward.1} parent=11 // pred_check_branch
          %1097 = sbr.rel (%p1095) target = $region144
        $region143: #{swin_forward.1} parent=11 // pred_region
          _
        $region144: #{swin_forward.1} parent=11 // pred_fallthru
          _
        // Predicated region
        $region145: #{swin_forward.1} parent=11 // pred_check
          %p1098 = pneg %p832
        $region146: #{swin_forward.1} parent=11 // pred_check_branch
          %1100 = sbr.rel (%p1098) target = $region148
        $region147: #{swin_forward.1} parent=11 // pred_region
          _
        $region148: #{swin_forward.1} parent=11 // pred_fallthru
          _
        // Predicated region
        $region149: #{swin_forward.1} parent=11 // pred_check
          %p1101 = pneg %p853
        $region150: #{swin_forward.1} parent=11 // pred_check_branch
          %1103 = sbr.rel (%p1101) target = $region152
        $region151: #{swin_forward.1} parent=11 // pred_region
          _
        $region152: #{swin_forward.1} parent=11 // pred_fallthru
          _
        // Predicated region
        $region153: #{swin_forward.1} parent=11 // pred_check
          %p1104 = pneg %p874
        $region154: #{swin_forward.1} parent=11 // pred_check_branch
          %1106 = sbr.rel (%p1104) target = $region156
        $region155: #{swin_forward.1} parent=11 // pred_region
          _
        $region156: #{swin_forward.1} parent=11 // pred_fallthru
          _
        // Predicated region
        $region157: #{swin_forward.1} parent=11 // pred_check
          %p1107 = pneg %p895
        $region158: #{swin_forward.1} parent=11 // pred_check_branch
          %1109 = sbr.rel (%p1107) target = $region160
        $region159: #{swin_forward.1} parent=11 // pred_region
          _
        $region160: #{swin_forward.1} parent=11 // pred_fallthru
          _
        // Predicated region
        $region161: #{swin_forward.1} parent=11 // pred_check
          %p1110 = pneg %p916
        $region162: #{swin_forward.1} parent=11 // pred_check_branch
          %1112 = sbr.rel (%p1110) target = $region164
        $region163: #{swin_forward.1} parent=11 // pred_region
          _
        $region164: #{swin_forward.1} parent=11 // pred_fallthru
          _
        // Predicated region
        $region165: #{swin_forward.1} parent=11 // pred_check
          %p1113 = pneg %p937
        $region166: #{swin_forward.1} parent=11 // pred_check_branch
          %1115 = sbr.rel (%p1113) target = $region168
        $region167: #{swin_forward.1} parent=11 // pred_region
          _
        $region168: #{swin_forward.1} parent=11 // pred_fallthru
          _
        // Predicated region
        $region169: #{swin_forward.1} parent=11 // pred_check
          %p1116 = pneg %p958
        $region170: #{swin_forward.1} parent=11 // pred_check_branch
          %1118 = sbr.rel (%p1116) target = $region172
        $region171: #{swin_forward.1} parent=11 // pred_region
          _
        $region172: #{swin_forward.1} parent=11 // pred_fallthru
          _
      $region12: #{swin_forward.1} parent=5 // pred_fallthru
        _
      %p1119 = scmp.lt.s32.totalorder %s92, 2
      // Predicated region
      $region173: #{swin_forward.1} parent=5 // pred_check
        %p1120 = pneg %p1119
      $region174: #{swin_forward.1} parent=5 // pred_check_branch
        %1122 = sbr.rel (%p1120) target = $region176
      $region175: #{swin_forward.1} parent=5 // pred_region
        // Predicated region
        $region177: #{swin_forward.1} parent=175 // pred_check
          %p1123 = pneg %p112
        $region178: #{swin_forward.1} parent=175 // pred_check_branch
          %1125 = sbr.rel (%p1123) target = $region180
        $region179: #{swin_forward.1} parent=175 // pred_region
          %s1126 = smul.u32 8, %s92
          %p1127 = scmp.lt.s32.totalorder %s1126, 15
          %s1128 = scalar_select %p1127, %s1126, 15
          %s1129 = smul.addr %s1128, 8
          %s1130 = scalar_lea.vmem %s1, %s1129
          %s1131 = smul.u32 8, %s92
        $region180: #{swin_forward.1} parent=175 // pred_fallthru
          _
      $region176: #{swin_forward.1} parent=5 // pred_fallthru
        _
      %p1132 = scmp.le.s32.totalorder 1, %s92
      %p1133 = scmp.lt.s32.totalorder %s92, 3
      %p1134 = pnand %p1132, %p1133
      %p1135 = pneg %p1134
      // Predicated region
      $region181: #{swin_forward.1} parent=5 // pred_check
        _
      $region182: #{swin_forward.1} parent=5 // pred_check_branch
        %1137 = sbr.rel (%p1134) target = $region184
      $region183: #{swin_forward.1} parent=5 // pred_region
        %s1138 = ssub.s32 %s92, 1
        %s1139 = smul.u32 8, %s97
        %p1140 = scmp.lt.s32.totalorder %s1139, 15
        %s1141 = scalar_select %p1140, %s1139, 15
        %s1142 = smul.addr %s1141, 8
        %s1143 = scalar_lea.vmem %s1, %s1142
        %p1144 = pneg %p118
        %p1145 = pneg %p115
        %p1146 = pneg %p139
        %p1147 = pneg %p136
        %p1148 = pneg %p160
        %p1149 = pneg %p157
        %p1150 = pneg %p181
        %p1151 = pneg %p178
        %p1152 = pneg %p202
        %p1153 = pneg %p199
        %p1154 = pneg %p223
        %p1155 = pneg %p220
        %p1156 = pneg %p244
        %p1157 = pneg %p241
        %p1158 = pneg %p265
        %p1159 = pneg %p262
        %p1160 = pneg %p286
        %p1161 = pneg %p283
        %p1162 = pneg %p307
        %p1163 = pneg %p304
        %p1164 = pneg %p328
        %p1165 = pneg %p325
        %p1166 = pneg %p349
        %p1167 = pneg %p346
        %p1168 = pneg %p370
        %p1169 = pneg %p367
        %p1170 = pneg %p391
        %p1171 = pneg %p388
        %p1172 = pneg %p412
        %p1173 = pneg %p409
        %p1174 = pneg %p433
        %p1175 = pneg %p430
        %p1176 = pneg %p454
        %p1177 = pneg %p451
        %p1178 = pneg %p475
        %p1179 = pneg %p472
        %p1180 = pneg %p496
        %p1181 = pneg %p493
        %p1182 = pneg %p517
        %p1183 = pneg %p514
        %p1184 = pneg %p538
        %p1185 = pneg %p535
        %p1186 = pneg %p559
        %p1187 = pneg %p556
        %p1188 = pneg %p580
        %p1189 = pneg %p577
        %p1190 = pneg %p601
        %p1191 = pneg %p598
        %p1192 = pneg %p622
        %p1193 = pneg %p619
        %p1194 = pneg %p643
        %p1195 = pneg %p640
        %p1196 = pneg %p664
        %p1197 = pneg %p661
        %p1198 = pneg %p685
        %p1199 = pneg %p682
        %p1200 = pneg %p706
        %p1201 = pneg %p703
        %p1202 = pneg %p727
        %p1203 = pneg %p724
        %p1204 = pneg %p748
        %p1205 = pneg %p745
        %p1206 = pneg %p769
        %p1207 = pneg %p766
        %p1208 = pneg %p790
        %p1209 = pneg %p787
        %p1210 = pneg %p811
        %p1211 = pneg %p808
        %p1212 = pneg %p832
        %p1213 = pneg %p829
        %p1214 = pneg %p853
        %p1215 = pneg %p850
        %p1216 = pneg %p874
        %p1217 = pneg %p871
        %p1218 = pneg %p895
        %p1219 = pneg %p892
        %p1220 = pneg %p916
        %p1221 = pneg %p913
        %p1222 = pneg %p937
        %p1223 = pneg %p934
        %p1224 = pneg %p958
        %p1225 = pneg %p955
        %p1226 = pneg %p984
        %p1227 = pneg %p981
        %s1228 = sand.u32 %s971, 1
        %s1229 = scalar_lea.sflag [#allocation3], %s1228
        %s1230 = sand.u32 %s971, 1
        %s1231 = scalar_lea.vmem [#allocation2], %s1230
        %s1232 = smul.u32 8, %s97
        %p1233 = scmp.lt.s32.totalorder %s1232, 15
        %s1234 = scalar_select %p1233, %s1232, 15
        %s1235 = smul.addr %s1234, 8
        %s1236 = scalar_lea.vmem %s1, %s1235
        %s1237 = smul.u32 8, %s97
        %v1238 = vld [vmem:[%s1236] sm:$0xff]
        %v1239 = vld [vmem:[%s1236 + $0x8] sm:$0xff]
        %v1240 = vld [vmem:[%s1236 + $0x10] sm:$0xff]
        %v1241 = vld [vmem:[%s1236 + $0x18] sm:$0xff]
        %v1242 = vld [vmem:[%s1236 + $0x20] sm:$0xff]
        %v1243 = vld [vmem:[%s1236 + $0x28] sm:$0xff]
        %v1244 = vld [vmem:[%s1236 + $0x30] sm:$0xff]
        %v1245 = vld [vmem:[%s1236 + $0x38] sm:$0xff]
        %v1246 = vld [vmem:[%s3] sm:$0xff]
        %v1247 = vld [vmem:[%s3 + $0x8] sm:$0xff]
        %v1248 = vld [vmem:[%s3 + $0x10] sm:$0xff]
        %v1249 = vld [vmem:[%s3 + $0x18] sm:$0xff]
        %v1250 = vld [vmem:[%s3 + $0x20] sm:$0xff]
        %v1251 = vld [vmem:[%s3 + $0x28] sm:$0xff]
        %v1252 = vld [vmem:[%s5] sm:$0x1]
        %v1254 = vlaneseq
        %v1255 = vshrl.u32 %v1254, 7
        %v1256 = vsub.s32 0, %v1255
        %v1257 = vrot.slane %v1252, %v1256
        %vm1259 = vcmask 392192
        %v1261 = vsel %vm1259, %v1238, 0
        %v1264 = vsel %vm1259, %v1239, 0
        %v1267 = vsel %vm1259, %v1240, 0
        %v1270 = vsel %vm1259, %v1241, 0
        %v1273 = vsel %vm1259, %v1242, 0
        %v1276 = vsel %vm1259, %v1243, 0
        %v1279 = vsel %vm1259, %v1244, 0
        %v1282 = vsel %vm1259, %v1245, 0
        %1284 = vmatprep.subr.mxu0 0.0
        %1285 = vmatpush1.msra.mxu0 %v1246
        %1286 = vmatprep.subr.mxu0 0.0
        %1287 = vmatpush1.msra.mxu0 %v1247
        %1288 = vmatprep.subr.mxu0 0.0
        %1289 = vmatpush1.msra.mxu0 %v1248
        %1290 = vmatprep.subr.mxu0 0.0
        %1291 = vmatpush1.msra.mxu0 %v1249
        %1292 = vmatprep.subr.mxu0 0.0
        %1293 = vmatpush1.msra.mxu0 %v1250
        %1294 = vmatprep.subr.mxu0 0.0
        %1295 = vmatpush1.msra.mxu0 %v1251
        %1296 = vmatprep.subr.mxu0 0.0
        %1297 = vmatpush1.msra.mxu0 0.0
        %1298 = vmatprep.subr.mxu0 0.0
        %1299 = vmatpush1.msra.mxu0 0.0
        %1300 = vmatprep.subr.mxu0 0.0
        %1301 = vmatpush1.msra.mxu0 0.0
        %1302 = vmatprep.subr.mxu0 0.0
        %1303 = vmatpush1.msra.mxu0 0.0
        %1304 = vmatprep.subr.mxu0 0.0
        %1305 = vmatpush1.msra.mxu0 0.0
        %1306 = vmatprep.subr.mxu0 0.0
        %1307 = vmatpush1.msra.mxu0 0.0
        %1308 = vmatprep.subr.mxu0 0.0
        %1309 = vmatpush1.msra.mxu0 0.0
        %1310 = vmatprep.subr.mxu0 0.0
        %1311 = vmatpush1.msra.mxu0 0.0
        %1312 = vmatprep.subr.mxu0 0.0
        %1313 = vmatpush1.msra.mxu0 0.0
        %1314 = vmatprep.subr.mxu0 0.0
        %1315 = vmatpush1.msra.mxu0 0.0
        %1316 = vmatprep.subr.mxu0 0.0
        %1317 = vmatpush1.msra.mxu0 0.0
        %1318 = vmatprep.subr.mxu0 0.0
        %1319 = vmatpush1.msra.mxu0 0.0
        %1320 = vmatprep.subr.mxu0 0.0
        %1321 = vmatpush1.msra.mxu0 0.0
        %1322 = vmatprep.subr.mxu0 0.0
        %1323 = vmatpush1.msra.mxu0 0.0
        %1324 = vmatprep.subr.mxu0 0.0
        %1325 = vmatpush1.msra.mxu0 0.0
        %1326 = vmatprep.subr.mxu0 0.0
        %1327 = vmatpush1.msra.mxu0 0.0
        %1328 = vmatprep.subr.mxu0 0.0
        %1329 = vmatpush1.msra.mxu0 0.0
        %1330 = vmatprep.subr.mxu0 0.0
        %1331 = vmatpush1.msra.mxu0 0.0
        %1332 = vmatprep.subr.mxu0 0.0
        %1333 = vmatpush1.msra.mxu0 0.0
        %1334 = vmatprep.subr.mxu0 0.0
        %1335 = vmatpush1.msra.mxu0 0.0
        %1336 = vmatprep.subr.mxu0 0.0
        %1337 = vmatpush1.msra.mxu0 0.0
        %1338 = vmatprep.subr.mxu0 0.0
        %1339 = vmatpush1.msra.mxu0 0.0
        %1340 = vmatprep.subr.mxu0 0.0
        %1341 = vmatpush1.msra.mxu0 0.0
        %1342 = vmatprep.subr.mxu0 0.0
        %1343 = vmatpush1.msra.mxu0 0.0
        %1344 = vmatprep.subr.mxu0 0.0
        %1345 = vmatpush1.msra.mxu0 0.0
        %1346 = vmatprep.subr.mxu0 0.0
        %1347 = vmatpush1.msra.mxu0 0.0
        %1348 = vmatprep.mubr.f32.mxu0 0.0
        %1349 = vmatmul.mubr.f32.gmra.mrb[0].mxu0 %v1261
        %v1350 = vpop.f32.mrb[0].mxu0
        %v1351 = vadd.f32 %v1257, %v1350
        %v1352 = vpop.f32.mrb[0].mxu0
        %1353 = vmatprep.mubr.f32.mxu0 0.0
        %1354 = vmatmul.mubr.f32.gmra.mrb[0].mxu0 %v1264
        %v1355 = vpop.f32.mrb[0].mxu0
        %v1356 = vadd.f32 %v1257, %v1355
        %v1357 = vpop.f32.mrb[0].mxu0
        %1358 = vmatprep.mubr.f32.mxu0 0.0
        %1359 = vmatmul.mubr.f32.gmra.mrb[0].mxu0 %v1267
        %v1360 = vpop.f32.mrb[0].mxu0
        %v1361 = vadd.f32 %v1257, %v1360
        %v1362 = vpop.f32.mrb[0].mxu0
        %1363 = vmatprep.mubr.f32.mxu0 0.0
        %1364 = vmatmul.mubr.f32.gmra.mrb[0].mxu0 %v1270
        %v1365 = vpop.f32.mrb[0].mxu0
        %v1366 = vadd.f32 %v1257, %v1365
        %v1367 = vpop.f32.mrb[0].mxu0
        %1368 = vmatprep.mubr.f32.mxu0 0.0
        %1369 = vmatmul.mubr.f32.gmra.mrb[0].mxu0 %v1273
        %v1370 = vpop.f32.mrb[0].mxu0
        %v1371 = vadd.f32 %v1257, %v1370
        %v1372 = vpop.f32.mrb[0].mxu0
        %1373 = vmatprep.mubr.f32.mxu0 0.0
        %1374 = vmatmul.mubr.f32.gmra.mrb[0].mxu0 %v1276
        %v1375 = vpop.f32.mrb[0].mxu0
        %v1376 = vadd.f32 %v1257, %v1375
        %v1377 = vpop.f32.mrb[0].mxu0
        %1378 = vmatprep.mubr.f32.mxu0 0.0
        %1379 = vmatmul.mubr.f32.gmra.mrb[0].mxu0 %v1279
        %v1380 = vpop.f32.mrb[0].mxu0
        %v1381 = vadd.f32 %v1257, %v1380
        %v1382 = vpop.f32.mrb[0].mxu0
        %1383 = vmatprep.mubr.f32.mxu0 0.0
        %1384 = vmatmul.mubr.f32.gmra.mrb[0].mxu0 %v1282
        %v1385 = vpop.f32.mrb[0].mxu0
        %v1386 = vadd.f32 %v1257, %v1385
        %v1387 = vpop.f32.mrb[0].mxu0
        %1388 = vdwg.mxu0
        %v1389 = vld [vmem:[%s7] sm:$0xff]
        %v1390 = vld [vmem:[%s7 + $0x8] sm:$0xff]
        %v1391 = vld [vmem:[%s9] sm:$0x1]
        %v1392 = vld [vmem:[%s13] sm:$0xff]
        %v1393 = vld [vmem:[%s13 + $0x8] sm:$0xff]
        %v1394 = vld [vmem:[%s15] sm:$0x1]
        %v1396 = vlaneseq
        %v1397 = vshrl.u32 %v1396, 7
        %v1398 = vsub.s32 0, %v1397
        %v1399 = vrot.slane %v1391, %v1398
        %vm1401 = vcmask 130048
        %v1403 = vsel %vm1401, %v1351, 0
        %v1406 = vsel %vm1401, %v1356, 0
        %v1409 = vsel %vm1401, %v1361, 0
        %v1412 = vsel %vm1401, %v1366, 0
        %v1415 = vsel %vm1401, %v1371, 0
        %v1418 = vsel %vm1401, %v1376, 0
        %v1421 = vsel %vm1401, %v1381, 0
        %v1424 = vsel %vm1401, %v1386, 0
        %1426 = vmatprep.subr.mxu0 0.0
        %1427 = vmatpush1.msra.mxu0 %v1389
        %1428 = vmatprep.subr.mxu0 0.0
        %1429 = vmatpush1.msra.mxu0 %v1390
        %1430 = vmatprep.subr.mxu0 0.0
        %1431 = vmatpush1.msra.mxu0 0.0
        %1432 = vmatprep.subr.mxu0 0.0
        %1433 = vmatpush1.msra.mxu0 0.0
        %1434 = vmatprep.subr.mxu0 0.0
        %1435 = vmatpush1.msra.mxu0 0.0
        %1436 = vmatprep.subr.mxu0 0.0
        %1437 = vmatpush1.msra.mxu0 0.0
        %1438 = vmatprep.subr.mxu0 0.0
        %1439 = vmatpush1.msra.mxu0 0.0
        %1440 = vmatprep.subr.mxu0 0.0
        %1441 = vmatpush1.msra.mxu0 0.0
        %1442 = vmatprep.subr.mxu0 0.0
        %1443 = vmatpush1.msra.mxu0 0.0
        %1444 = vmatprep.subr.mxu0 0.0
        %1445 = vmatpush1.msra.mxu0 0.0
        %1446 = vmatprep.subr.mxu0 0.0
        %1447 = vmatpush1.msra.mxu0 0.0
        %1448 = vmatprep.subr.mxu0 0.0
        %1449 = vmatpush1.msra.mxu0 0.0
        %1450 = vmatprep.subr.mxu0 0.0
        %1451 = vmatpush1.msra.mxu0 0.0
        %1452 = vmatprep.subr.mxu0 0.0
        %1453 = vmatpush1.msra.mxu0 0.0
        %1454 = vmatprep.subr.mxu0 0.0
        %1455 = vmatpush1.msra.mxu0 0.0
        %1456 = vmatprep.subr.mxu0 0.0
        %1457 = vmatpush1.msra.mxu0 0.0
        %1458 = vmatprep.subr.mxu0 0.0
        %1459 = vmatpush1.msra.mxu0 0.0
        %1460 = vmatprep.subr.mxu0 0.0
        %1461 = vmatpush1.msra.mxu0 0.0
        %1462 = vmatprep.subr.mxu0 0.0
        %1463 = vmatpush1.msra.mxu0 0.0
        %1464 = vmatprep.subr.mxu0 0.0
        %1465 = vmatpush1.msra.mxu0 0.0
        %1466 = vmatprep.subr.mxu0 0.0
        %1467 = vmatpush1.msra.mxu0 0.0
        %1468 = vmatprep.subr.mxu0 0.0
        %1469 = vmatpush1.msra.mxu0 0.0
        %1470 = vmatprep.subr.mxu0 0.0
        %1471 = vmatpush1.msra.mxu0 0.0
        %1472 = vmatprep.subr.mxu0 0.0
        %1473 = vmatpush1.msra.mxu0 0.0
        %1474 = vmatprep.subr.mxu0 0.0
        %1475 = vmatpush1.msra.mxu0 0.0
        %1476 = vmatprep.subr.mxu0 0.0
        %1477 = vmatpush1.msra.mxu0 0.0
        %1478 = vmatprep.subr.mxu0 0.0
        %1479 = vmatpush1.msra.mxu0 0.0
        %1480 = vmatprep.subr.mxu0 0.0
        %1481 = vmatpush1.msra.mxu0 0.0
        %1482 = vmatprep.subr.mxu0 0.0
        %1483 = vmatpush1.msra.mxu0 0.0
        %1484 = vmatprep.subr.mxu0 0.0
        %1485 = vmatpush1.msra.mxu0 0.0
        %1486 = vmatprep.subr.mxu0 0.0
        %1487 = vmatpush1.msra.mxu0 0.0
        %1488 = vmatprep.subr.mxu0 0.0
        %1489 = vmatpush1.msra.mxu0 0.0
        %1490 = vmatprep.mubr.f32.mxu0 0.0
        %1491 = vmatmul.mubr.f32.gmra.mrb[0].mxu0 %v1403
        %v1492 = vpop.f32.mrb[0].mxu0
        %v1493 = vadd.f32 %v1399, %v1492
        %v1494 = vpop.f32.mrb[0].mxu0
        %1495 = vmatprep.mubr.f32.mxu0 0.0
        %1496 = vmatmul.mubr.f32.gmra.mrb[0].mxu0 %v1406
        %v1497 = vpop.f32.mrb[0].mxu0
        %v1498 = vadd.f32 %v1399, %v1497
        %v1499 = vpop.f32.mrb[0].mxu0
        %1500 = vmatprep.mubr.f32.mxu0 0.0
        %1501 = vmatmul.mubr.f32.gmra.mrb[0].mxu0 %v1409
        %v1502 = vpop.f32.mrb[0].mxu0
        %v1503 = vadd.f32 %v1399, %v1502
        %v1504 = vpop.f32.mrb[0].mxu0
        %1505 = vmatprep.mubr.f32.mxu0 0.0
        %1506 = vmatmul.mubr.f32.gmra.mrb[0].mxu0 %v1412
        %v1507 = vpop.f32.mrb[0].mxu0
        %v1508 = vadd.f32 %v1399, %v1507
        %v1509 = vpop.f32.mrb[0].mxu0
        %1510 = vmatprep.mubr.f32.mxu0 0.0
        %1511 = vmatmul.mubr.f32.gmra.mrb[0].mxu0 %v1415
        %v1512 = vpop.f32.mrb[0].mxu0
        %v1513 = vadd.f32 %v1399, %v1512
        %v1514 = vpop.f32.mrb[0].mxu0
        %1515 = vmatprep.mubr.f32.mxu0 0.0
        %1516 = vmatmul.mubr.f32.gmra.mrb[0].mxu0 %v1418
        %v1517 = vpop.f32.mrb[0].mxu0
        %v1518 = vadd.f32 %v1399, %v1517
        %v1519 = vpop.f32.mrb[0].mxu0
        %1520 = vmatprep.mubr.f32.mxu0 0.0
        %1521 = vmatmul.mubr.f32.gmra.mrb[0].mxu0 %v1421
        %v1522 = vpop.f32.mrb[0].mxu0
        %v1523 = vadd.f32 %v1399, %v1522
        %v1524 = vpop.f32.mrb[0].mxu0
        %1525 = vmatprep.mubr.f32.mxu0 0.0
        %1526 = vmatmul.mubr.f32.gmra.mrb[0].mxu0 %v1424
        %v1527 = vpop.f32.mrb[0].mxu0
        %v1528 = vadd.f32 %v1399, %v1527
        %v1529 = vpop.f32.mrb[0].mxu0
        %1530 = vdwg.mxu0
        %v1531 = vmul.f32 %v1493, 0.35355338
        %v1532 = vmul.f32 %v1498, 0.35355338
        %v1533 = vmul.f32 %v1503, 0.35355338
        %v1534 = vmul.f32 %v1508, 0.35355338
        %v1535 = vmul.f32 %v1513, 0.35355338
        %v1536 = vmul.f32 %v1518, 0.35355338
        %v1537 = vmul.f32 %v1523, 0.35355338
        %v1538 = vmul.f32 %v1528, 0.35355338
        %v1539 = vld [vmem:[%s11] sm:$0xff]
        %v1540 = vld [vmem:[%s11 + $0x8] sm:$0xff]
        %v1541 = vld [vmem:[%s11 + $0x10] sm:$0xff]
        %v1542 = vld [vmem:[%s11 + $0x18] sm:$0xff]
        %v1543 = vld [vmem:[%s11 + $0x20] sm:$0xff]
        %v1544 = vld [vmem:[%s11 + $0x28] sm:$0xff]
        %v1545 = vld [vmem:[%s11 + $0x30] sm:$0xff]
        %v1546 = vld [vmem:[%s11 + $0x38] sm:$0xff]
        %1555 = vrot.lane.b32.xlu0 %v1493, 112
        %v1556 = vpop.permute.xlu0 %1555
        %1557 = vrot.lane.b32.xlu0 %v1498, 112
        %v1558 = vpop.permute.xlu0 %1557
        %1559 = vrot.lane.b32.xlu0 %v1503, 112
        %v1560 = vpop.permute.xlu0 %1559
        %1561 = vrot.lane.b32.xlu0 %v1508, 112
        %v1562 = vpop.permute.xlu0 %1561
        %1563 = vrot.lane.b32.xlu0 %v1513, 112
        %v1564 = vpop.permute.xlu0 %1563
        %1565 = vrot.lane.b32.xlu0 %v1518, 112
        %v1566 = vpop.permute.xlu0 %1565
        %1567 = vrot.lane.b32.xlu0 %v1523, 112
        %v1568 = vpop.permute.xlu0 %1567
        %1569 = vrot.lane.b32.xlu0 %v1528, 112
        %v1570 = vpop.permute.xlu0 %1569
        %vm1571 = vcmask 64512
        %v1573 = vsel %vm1571, %v1531, 0
        %v1576 = vsel %vm1571, %v1532, 0
        %v1579 = vsel %vm1571, %v1533, 0
        %v1582 = vsel %vm1571, %v1534, 0
        %v1585 = vsel %vm1571, %v1535, 0
        %v1588 = vsel %vm1571, %v1536, 0
        %v1591 = vsel %vm1571, %v1537, 0
        %v1594 = vsel %vm1571, %v1538, 0
        %v1596 = vsel %vm1571, %v1556, 0
        %v1598 = vsel %vm1571, %v1558, 0
        %v1600 = vsel %vm1571, %v1560, 0
        %v1602 = vsel %vm1571, %v1562, 0
        %v1604 = vsel %vm1571, %v1564, 0
        %v1606 = vsel %vm1571, %v1566, 0
        %v1608 = vsel %vm1571, %v1568, 0
        %v1610 = vsel %vm1571, %v1570, 0
        %1612 = vmatprep.subr.mxu0 0.0
        %1613 = vmatpush1.xpose.msra.mxu0 %v1596
        %1614 = vmatprep.subr.mxu0 0.0
        %1615 = vmatpush1.xpose.msra.mxu0 %v1598
        %1616 = vmatprep.subr.mxu0 0.0
        %1617 = vmatpush1.xpose.msra.mxu0 %v1600
        %1618 = vmatprep.subr.mxu0 0.0
        %1619 = vmatpush1.xpose.msra.mxu0 %v1602
        %1620 = vmatprep.subr.mxu0 0.0
        %1621 = vmatpush1.xpose.msra.mxu0 %v1604
        %1622 = vmatprep.subr.mxu0 0.0
        %1623 = vmatpush1.xpose.msra.mxu0 %v1606
        %1624 = vmatprep.subr.mxu0 0.0
        %1625 = vmatpush1.xpose.msra.mxu0 %v1608
        %1626 = vmatprep.subr.mxu0 0.0
        %1627 = vmatpush1.xpose.msra.mxu0 %v1610
        %1628 = vmatprep.subr.mxu0 0.0
        %1629 = vmatpush1.xpose.msra.mxu0 0.0
        %1630 = vmatprep.subr.mxu0 0.0
        %1631 = vmatpush1.xpose.msra.mxu0 0.0
        %1632 = vmatprep.subr.mxu0 0.0
        %1633 = vmatpush1.xpose.msra.mxu0 0.0
        %1634 = vmatprep.subr.mxu0 0.0
        %1635 = vmatpush1.xpose.msra.mxu0 0.0
        %1636 = vmatprep.subr.mxu0 0.0
        %1637 = vmatpush1.xpose.msra.mxu0 0.0
        %1638 = vmatprep.subr.mxu0 0.0
        %1639 = vmatpush1.xpose.msra.mxu0 0.0
        %1640 = vmatprep.subr.mxu0 0.0
        %1641 = vmatpush1.xpose.msra.mxu0 0.0
        %1642 = vmatprep.subr.mxu0 0.0
        %1643 = vmatpush1.xpose.msra.mxu0 0.0
        %1644 = vmatprep.subr.mxu0 0.0
        %1645 = vmatpush1.xpose.msra.mxu0 0.0
        %1646 = vmatprep.subr.mxu0 0.0
        %1647 = vmatpush1.xpose.msra.mxu0 0.0
        %1648 = vmatprep.subr.mxu0 0.0
        %1649 = vmatpush1.xpose.msra.mxu0 0.0
        %1650 = vmatprep.subr.mxu0 0.0
        %1651 = vmatpush1.xpose.msra.mxu0 0.0
        %1652 = vmatprep.subr.mxu0 0.0
        %1653 = vmatpush1.xpose.msra.mxu0 0.0
        %1654 = vmatprep.subr.mxu0 0.0
        %1655 = vmatpush1.xpose.msra.mxu0 0.0
        %1656 = vmatprep.subr.mxu0 0.0
        %1657 = vmatpush1.xpose.msra.mxu0 0.0
        %1658 = vmatprep.subr.mxu0 0.0
        %1659 = vmatpush1.xpose.msra.mxu0 0.0
        %1660 = vmatprep.subr.mxu0 0.0
        %1661 = vmatpush1.xpose.msra.mxu0 0.0
        %1662 = vmatprep.subr.mxu0 0.0
        %1663 = vmatpush1.xpose.msra.mxu0 0.0
        %1664 = vmatprep.subr.mxu0 0.0
        %1665 = vmatpush1.xpose.msra.mxu0 0.0
        %1666 = vmatprep.subr.mxu0 0.0
        %1667 = vmatpush1.xpose.msra.mxu0 0.0
        %1668 = vmatprep.subr.mxu0 0.0
        %1669 = vmatpush1.xpose.msra.mxu0 0.0
        %1670 = vmatprep.subr.mxu0 0.0
        %1671 = vmatpush1.xpose.msra.mxu0 0.0
        %1672 = vmatprep.subr.mxu0 0.0
        %1673 = vmatpush1.xpose.msra.mxu0 0.0
        %1674 = vmatprep.subr.mxu0 0.0
        %1675 = vmatpush1.xpose.msra.mxu0 0.0
        %1676 = vmatprep.mubr.f32.mxu0 0.0
        %1677 = vmatmul.mubr.f32.gmra.mrb[0].mxu0 %v1573
        %v1678 = vpop.f32.mrb[0].mxu0
        %v1679 = vadd.f32 %v1539, %v1678
        %v1680 = vpop.f32.mrb[0].mxu0
        %1681 = vmatprep.mubr.f32.mxu0 0.0
        %1682 = vmatmul.mubr.f32.gmra.mrb[0].mxu0 %v1576
        %v1683 = vpop.f32.mrb[0].mxu0
        %v1684 = vadd.f32 %v1540, %v1683
        %v1685 = vpop.f32.mrb[0].mxu0
        %1686 = vmatprep.mubr.f32.mxu0 0.0
        %1687 = vmatmul.mubr.f32.gmra.mrb[0].mxu0 %v1579
        %v1688 = vpop.f32.mrb[0].mxu0
        %v1689 = vadd.f32 %v1541, %v1688
        %v1690 = vpop.f32.mrb[0].mxu0
        %1691 = vmatprep.mubr.f32.mxu0 0.0
        %1692 = vmatmul.mubr.f32.gmra.mrb[0].mxu0 %v1582
        %v1693 = vpop.f32.mrb[0].mxu0
        %v1694 = vadd.f32 %v1542, %v1693
        %v1695 = vpop.f32.mrb[0].mxu0
        %1696 = vmatprep.mubr.f32.mxu0 0.0
        %1697 = vmatmul.mubr.f32.gmra.mrb[0].mxu0 %v1585
        %v1698 = vpop.f32.mrb[0].mxu0
        %v1699 = vadd.f32 %v1543, %v1698
        %v1700 = vpop.f32.mrb[0].mxu0
        %1701 = vmatprep.mubr.f32.mxu0 0.0
        %1702 = vmatmul.mubr.f32.gmra.mrb[0].mxu0 %v1588
        %v1703 = vpop.f32.mrb[0].mxu0
        %v1704 = vadd.f32 %v1544, %v1703
        %v1705 = vpop.f32.mrb[0].mxu0
        %1706 = vmatprep.mubr.f32.mxu0 0.0
        %1707 = vmatmul.mubr.f32.gmra.mrb[0].mxu0 %v1591
        %v1708 = vpop.f32.mrb[0].mxu0
        %v1709 = vadd.f32 %v1545, %v1708
        %v1710 = vpop.f32.mrb[0].mxu0
        %1711 = vmatprep.mubr.f32.mxu0 0.0
        %1712 = vmatmul.mubr.f32.gmra.mrb[0].mxu0 %v1594
        %v1713 = vpop.f32.mrb[0].mxu0
        %v1714 = vadd.f32 %v1546, %v1713
        %v1715 = vpop.f32.mrb[0].mxu0
        %1716 = vdwg.mxu0
        %vm1717 = vcmask 523264
        %v1718 = vsel %vm1717, %v1679, -inf
        %1719 = vmax.xlane.f32.xlu0 %v1718
        %v1720 = vpop.xlane.xlu0 %1719
        %v1721 = vsel %vm1717, %v1684, -inf
        %1722 = vmax.xlane.f32.xlu0 %v1721
        %v1723 = vpop.xlane.xlu0 %1722
        %v1724 = vsel %vm1717, %v1689, -inf
        %1725 = vmax.xlane.f32.xlu0 %v1724
        %v1726 = vpop.xlane.xlu0 %1725
        %v1727 = vsel %vm1717, %v1694, -inf
        %1728 = vmax.xlane.f32.xlu0 %v1727
        %v1729 = vpop.xlane.xlu0 %1728
        %v1730 = vsel %vm1717, %v1699, -inf
        %1731 = vmax.xlane.f32.xlu0 %v1730
        %v1732 = vpop.xlane.xlu0 %1731
        %v1733 = vsel %vm1717, %v1704, -inf
        %1734 = vmax.xlane.f32.xlu0 %v1733
        %v1735 = vpop.xlane.xlu0 %1734
        %v1736 = vsel %vm1717, %v1709, -inf
        %1737 = vmax.xlane.f32.xlu0 %v1736
        %v1738 = vpop.xlane.xlu0 %1737
        %v1739 = vsel %vm1717, %v1714, -inf
        %1740 = vmax.xlane.f32.xlu0 %v1739
        %v1741 = vpop.xlane.xlu0 %1740
        %v1742 = vsub.f32 %v1679, %v1720
        %v1743 = vsub.f32 %v1684, %v1723
        %v1744 = vsub.f32 %v1689, %v1726
        %v1745 = vsub.f32 %v1694, %v1729
        %v1746 = vsub.f32 %v1699, %v1732
        %v1747 = vsub.f32 %v1704, %v1735
        %v1748 = vsub.f32 %v1709, %v1738
        %v1749 = vsub.f32 %v1714, %v1741
        %v1750 = vmul.f32 %v1742, 1.442695
        %v1751 = vpow.pop %v1750
        %v1752 = vmul.f32 %v1743, 1.442695
        %v1753 = vpow.pop %v1752
        %v1754 = vmul.f32 %v1744, 1.442695
        %v1755 = vpow.pop %v1754
        %v1756 = vmul.f32 %v1745, 1.442695
        %v1757 = vpow.pop %v1756
        %v1758 = vmul.f32 %v1746, 1.442695
        %v1759 = vpow.pop %v1758
        %v1760 = vmul.f32 %v1747, 1.442695
        %v1761 = vpow.pop %v1760
        %v1762 = vmul.f32 %v1748, 1.442695
        %v1763 = vpow.pop %v1762
        %v1764 = vmul.f32 %v1749, 1.442695
        %v1765 = vpow.pop %v1764
        %v1766 = vsel %vm1717, %v1751, 0.0
        %1767 = vadd.xlane.f32.xlu0 %v1766
        %v1768 = vpop.xlane.xlu0 %1767
        %v1769 = vsel %vm1717, %v1753, 0.0
        %1770 = vadd.xlane.f32.xlu0 %v1769
        %v1771 = vpop.xlane.xlu0 %1770
        %v1772 = vsel %vm1717, %v1755, 0.0
        %1773 = vadd.xlane.f32.xlu0 %v1772
        %v1774 = vpop.xlane.xlu0 %1773
        %v1775 = vsel %vm1717, %v1757, 0.0
        %1776 = vadd.xlane.f32.xlu0 %v1775
        %v1777 = vpop.xlane.xlu0 %1776
        %v1778 = vsel %vm1717, %v1759, 0.0
        %1779 = vadd.xlane.f32.xlu0 %v1778
        %v1780 = vpop.xlane.xlu0 %1779
        %v1781 = vsel %vm1717, %v1761, 0.0
        %1782 = vadd.xlane.f32.xlu0 %v1781
        %v1783 = vpop.xlane.xlu0 %1782
        %v1784 = vsel %vm1717, %v1763, 0.0
        %1785 = vadd.xlane.f32.xlu0 %v1784
        %v1786 = vpop.xlane.xlu0 %1785
        %v1787 = vsel %vm1717, %v1765, 0.0
        %1788 = vadd.xlane.f32.xlu0 %v1787
        %v1789 = vpop.xlane.xlu0 %1788
        %v1790 = vrcp.pop %v1768
        %v1791 = vmul.f32 %v1751, %v1790
        %v1792 = vrcp.pop %v1771
        %v1793 = vmul.f32 %v1753, %v1792
        %v1794 = vrcp.pop %v1774
        %v1795 = vmul.f32 %v1755, %v1794
        %v1796 = vrcp.pop %v1777
        %v1797 = vmul.f32 %v1757, %v1796
        %v1798 = vrcp.pop %v1780
        %v1799 = vmul.f32 %v1759, %v1798
        %v1800 = vrcp.pop %v1783
        %v1801 = vmul.f32 %v1761, %v1800
        %v1802 = vrcp.pop %v1786
        %v1803 = vmul.f32 %v1763, %v1802
        %v1804 = vrcp.pop %v1789
        %v1805 = vmul.f32 %v1765, %v1804
        %1806 = vrot.lane.b32.xlu0 %v1493, 96
        %v1807 = vpop.permute.xlu0 %1806
        %1808 = vrot.lane.b32.xlu0 %v1498, 96
        %v1809 = vpop.permute.xlu0 %1808
        %1810 = vrot.lane.b32.xlu0 %v1503, 96
        %v1811 = vpop.permute.xlu0 %1810
        %1812 = vrot.lane.b32.xlu0 %v1508, 96
        %v1813 = vpop.permute.xlu0 %1812
        %1814 = vrot.lane.b32.xlu0 %v1513, 96
        %v1815 = vpop.permute.xlu0 %1814
        %1816 = vrot.lane.b32.xlu0 %v1518, 96
        %v1817 = vpop.permute.xlu0 %1816
        %1818 = vrot.lane.b32.xlu0 %v1523, 96
        %v1819 = vpop.permute.xlu0 %1818
        %1820 = vrot.lane.b32.xlu0 %v1528, 96
        %v1821 = vpop.permute.xlu0 %1820
        %v1831 = vsel %vm1717, %v1791, 0
        %v1834 = vsel %vm1717, %v1793, 0
        %v1837 = vsel %vm1717, %v1795, 0
        %v1840 = vsel %vm1717, %v1797, 0
        %v1843 = vsel %vm1717, %v1799, 0
        %v1846 = vsel %vm1717, %v1801, 0
        %v1849 = vsel %vm1717, %v1803, 0
        %v1852 = vsel %vm1717, %v1805, 0
        %1854 = vmatprep.subr.mxu0 0.0
        %1855 = vmatpush1.msra.mxu0 %v1807
        %1856 = vmatprep.subr.mxu0 0.0
        %1857 = vmatpush1.msra.mxu0 %v1809
        %1858 = vmatprep.subr.mxu0 0.0
        %1859 = vmatpush1.msra.mxu0 %v1811
        %1860 = vmatprep.subr.mxu0 0.0
        %1861 = vmatpush1.msra.mxu0 %v1813
        %1862 = vmatprep.subr.mxu0 0.0
        %1863 = vmatpush1.msra.mxu0 %v1815
        %1864 = vmatprep.subr.mxu0 0.0
        %1865 = vmatpush1.msra.mxu0 %v1817
        %1866 = vmatprep.subr.mxu0 0.0
        %1867 = vmatpush1.msra.mxu0 %v1819
        %1868 = vmatprep.subr.mxu0 0.0
        %1869 = vmatpush1.msra.mxu0 %v1821
        %1870 = vmatprep.subr.mxu0 0.0
        %1871 = vmatpush1.msra.mxu0 0.0
        %1872 = vmatprep.subr.mxu0 0.0
        %1873 = vmatpush1.msra.mxu0 0.0
        %1874 = vmatprep.subr.mxu0 0.0
        %1875 = vmatpush1.msra.mxu0 0.0
        %1876 = vmatprep.subr.mxu0 0.0
        %1877 = vmatpush1.msra.mxu0 0.0
        %1878 = vmatprep.subr.mxu0 0.0
        %1879 = vmatpush1.msra.mxu0 0.0
        %1880 = vmatprep.subr.mxu0 0.0
        %1881 = vmatpush1.msra.mxu0 0.0
        %1882 = vmatprep.subr.mxu0 0.0
        %1883 = vmatpush1.msra.mxu0 0.0
        %1884 = vmatprep.subr.mxu0 0.0
        %1885 = vmatpush1.msra.mxu0 0.0
        %1886 = vmatprep.subr.mxu0 0.0
        %1887 = vmatpush1.msra.mxu0 0.0
        %1888 = vmatprep.subr.mxu0 0.0
        %1889 = vmatpush1.msra.mxu0 0.0
        %1890 = vmatprep.subr.mxu0 0.0
        %1891 = vmatpush1.msra.mxu0 0.0
        %1892 = vmatprep.subr.mxu0 0.0
        %1893 = vmatpush1.msra.mxu0 0.0
        %1894 = vmatprep.subr.mxu0 0.0
        %1895 = vmatpush1.msra.mxu0 0.0
        %1896 = vmatprep.subr.mxu0 0.0
        %1897 = vmatpush1.msra.mxu0 0.0
        %1898 = vmatprep.subr.mxu0 0.0
        %1899 = vmatpush1.msra.mxu0 0.0
        %1900 = vmatprep.subr.mxu0 0.0
        %1901 = vmatpush1.msra.mxu0 0.0
        %1902 = vmatprep.subr.mxu0 0.0
        %1903 = vmatpush1.msra.mxu0 0.0
        %1904 = vmatprep.subr.mxu0 0.0
        %1905 = vmatpush1.msra.mxu0 0.0
        %1906 = vmatprep.subr.mxu0 0.0
        %1907 = vmatpush1.msra.mxu0 0.0
        %1908 = vmatprep.subr.mxu0 0.0
        %1909 = vmatpush1.msra.mxu0 0.0
        %1910 = vmatprep.subr.mxu0 0.0
        %1911 = vmatpush1.msra.mxu0 0.0
        %1912 = vmatprep.subr.mxu0 0.0
        %1913 = vmatpush1.msra.mxu0 0.0
        %1914 = vmatprep.subr.mxu0 0.0
        %1915 = vmatpush1.msra.mxu0 0.0
        %1916 = vmatprep.subr.mxu0 0.0
        %1917 = vmatpush1.msra.mxu0 0.0
        %1918 = vmatprep.mubr.f32.mxu0 0.0
        %1919 = vmatmul.mubr.f32.gmra.mrb[0].mxu0 %v1831
        %v1920 = vpop.f32.mrb[0].mxu0
        %v1921 = vadd.f32 0.0, %v1920
        %v1922 = vpop.f32.mrb[0].mxu0
        %1923 = vmatprep.mubr.f32.mxu0 0.0
        %1924 = vmatmul.mubr.f32.gmra.mrb[0].mxu0 %v1834
        %v1925 = vpop.f32.mrb[0].mxu0
        %v1926 = vadd.f32 0.0, %v1925
        %v1927 = vpop.f32.mrb[0].mxu0
        %1928 = vmatprep.mubr.f32.mxu0 0.0
        %1929 = vmatmul.mubr.f32.gmra.mrb[0].mxu0 %v1837
        %v1930 = vpop.f32.mrb[0].mxu0
        %v1931 = vadd.f32 0.0, %v1930
        %v1932 = vpop.f32.mrb[0].mxu0
        %1933 = vmatprep.mubr.f32.mxu0 0.0
        %1934 = vmatmul.mubr.f32.gmra.mrb[0].mxu0 %v1840
        %v1935 = vpop.f32.mrb[0].mxu0
        %v1936 = vadd.f32 0.0, %v1935
        %v1937 = vpop.f32.mrb[0].mxu0
        %1938 = vmatprep.mubr.f32.mxu0 0.0
        %1939 = vmatmul.mubr.f32.gmra.mrb[0].mxu0 %v1843
        %v1940 = vpop.f32.mrb[0].mxu0
        %v1941 = vadd.f32 0.0, %v1940
        %v1942 = vpop.f32.mrb[0].mxu0
        %1943 = vmatprep.mubr.f32.mxu0 0.0
        %1944 = vmatmul.mubr.f32.gmra.mrb[0].mxu0 %v1846
        %v1945 = vpop.f32.mrb[0].mxu0
        %v1946 = vadd.f32 0.0, %v1945
        %v1947 = vpop.f32.mrb[0].mxu0
        %1948 = vmatprep.mubr.f32.mxu0 0.0
        %1949 = vmatmul.mubr.f32.gmra.mrb[0].mxu0 %v1849
        %v1950 = vpop.f32.mrb[0].mxu0
        %v1951 = vadd.f32 0.0, %v1950
        %v1952 = vpop.f32.mrb[0].mxu0
        %1953 = vmatprep.mubr.f32.mxu0 0.0
        %1954 = vmatmul.mubr.f32.gmra.mrb[0].mxu0 %v1852
        %v1955 = vpop.f32.mrb[0].mxu0
        %v1956 = vadd.f32 0.0, %v1955
        %v1957 = vpop.f32.mrb[0].mxu0
        %1958 = vdwg.mxu0
        %s1959 = scalar_lea.vmem %s11, 64
        %v1960 = vld [vmem:[%s1959] sm:$0xff]
        %v1961 = vld [vmem:[%s1959 + $0x8] sm:$0xff]
        %v1962 = vld [vmem:[%s1959 + $0x10] sm:$0xff]
        %v1963 = vld [vmem:[%s1959 + $0x18] sm:$0xff]
        %v1964 = vld [vmem:[%s1959 + $0x20] sm:$0xff]
        %v1965 = vld [vmem:[%s1959 + $0x28] sm:$0xff]
        %v1966 = vld [vmem:[%s1959 + $0x30] sm:$0xff]
        %v1967 = vld [vmem:[%s1959 + $0x38] sm:$0xff]
        %1968 = vrot.lane.b32.xlu0 %v1531, 120
        %v1969 = vpop.permute.xlu0 %1968
        %1970 = vrot.lane.b32.xlu0 %v1532, 120
        %v1971 = vpop.permute.xlu0 %1970
        %1972 = vrot.lane.b32.xlu0 %v1533, 120
        %v1973 = vpop.permute.xlu0 %1972
        %1974 = vrot.lane.b32.xlu0 %v1534, 120
        %v1975 = vpop.permute.xlu0 %1974
        %1976 = vrot.lane.b32.xlu0 %v1535, 120
        %v1977 = vpop.permute.xlu0 %1976
        %1978 = vrot.lane.b32.xlu0 %v1536, 120
        %v1979 = vpop.permute.xlu0 %1978
        %1980 = vrot.lane.b32.xlu0 %v1537, 120
        %v1981 = vpop.permute.xlu0 %1980
        %1982 = vrot.lane.b32.xlu0 %v1538, 120
        %v1983 = vpop.permute.xlu0 %1982
        %1984 = vrot.lane.b32.xlu0 %v1493, 104
        %v1985 = vpop.permute.xlu0 %1984
        %1986 = vrot.lane.b32.xlu0 %v1498, 104
        %v1987 = vpop.permute.xlu0 %1986
        %1988 = vrot.lane.b32.xlu0 %v1503, 104
        %v1989 = vpop.permute.xlu0 %1988
        %1990 = vrot.lane.b32.xlu0 %v1508, 104
        %v1991 = vpop.permute.xlu0 %1990
        %1992 = vrot.lane.b32.xlu0 %v1513, 104
        %v1993 = vpop.permute.xlu0 %1992
        %1994 = vrot.lane.b32.xlu0 %v1518, 104
        %v1995 = vpop.permute.xlu0 %1994
        %1996 = vrot.lane.b32.xlu0 %v1523, 104
        %v1997 = vpop.permute.xlu0 %1996
        %1998 = vrot.lane.b32.xlu0 %v1528, 104
        %v1999 = vpop.permute.xlu0 %1998
        %v2000 = vsel %vm1571, %v1969, 0
        %v2002 = vsel %vm1571, %v1971, 0
        %v2004 = vsel %vm1571, %v1973, 0
        %v2006 = vsel %vm1571, %v1975, 0
        %v2008 = vsel %vm1571, %v1977, 0
        %v2010 = vsel %vm1571, %v1979, 0
        %v2012 = vsel %vm1571, %v1981, 0
        %v2014 = vsel %vm1571, %v1983, 0
        %v2016 = vsel %vm1571, %v1985, 0
        %v2018 = vsel %vm1571, %v1987, 0
        %v2020 = vsel %vm1571, %v1989, 0
        %v2022 = vsel %vm1571, %v1991, 0
        %v2024 = vsel %vm1571, %v1993, 0
        %v2026 = vsel %vm1571, %v1995, 0
        %v2028 = vsel %vm1571, %v1997, 0
        %v2030 = vsel %vm1571, %v1999, 0
        %2032 = vmatprep.subr.mxu0 0.0
        %2033 = vmatpush1.xpose.msra.mxu0 %v2016
        %2034 = vmatprep.subr.mxu0 0.0
        %2035 = vmatpush1.xpose.msra.mxu0 %v2018
        %2036 = vmatprep.subr.mxu0 0.0
        %2037 = vmatpush1.xpose.msra.mxu0 %v2020
        %2038 = vmatprep.subr.mxu0 0.0
        %2039 = vmatpush1.xpose.msra.mxu0 %v2022
        %2040 = vmatprep.subr.mxu0 0.0
        %2041 = vmatpush1.xpose.msra.mxu0 %v2024
        %2042 = vmatprep.subr.mxu0 0.0
        %2043 = vmatpush1.xpose.msra.mxu0 %v2026
        %2044 = vmatprep.subr.mxu0 0.0
        %2045 = vmatpush1.xpose.msra.mxu0 %v2028
        %2046 = vmatprep.subr.mxu0 0.0
        %2047 = vmatpush1.xpose.msra.mxu0 %v2030
        %2048 = vmatprep.subr.mxu0 0.0
        %2049 = vmatpush1.xpose.msra.mxu0 0.0
        %2050 = vmatprep.subr.mxu0 0.0
        %2051 = vmatpush1.xpose.msra.mxu0 0.0
        %2052 = vmatprep.subr.mxu0 0.0
        %2053 = vmatpush1.xpose.msra.mxu0 0.0
        %2054 = vmatprep.subr.mxu0 0.0
        %2055 = vmatpush1.xpose.msra.mxu0 0.0
        %2056 = vmatprep.subr.mxu0 0.0
        %2057 = vmatpush1.xpose.msra.mxu0 0.0
        %2058 = vmatprep.subr.mxu0 0.0
        %2059 = vmatpush1.xpose.msra.mxu0 0.0
        %2060 = vmatprep.subr.mxu0 0.0
        %2061 = vmatpush1.xpose.msra.mxu0 0.0
        %2062 = vmatprep.subr.mxu0 0.0
        %2063 = vmatpush1.xpose.msra.mxu0 0.0
        %2064 = vmatprep.subr.mxu0 0.0
        %2065 = vmatpush1.xpose.msra.mxu0 0.0
        %2066 = vmatprep.subr.mxu0 0.0
        %2067 = vmatpush1.xpose.msra.mxu0 0.0
        %2068 = vmatprep.subr.mxu0 0.0
        %2069 = vmatpush1.xpose.msra.mxu0 0.0
        %2070 = vmatprep.subr.mxu0 0.0
        %2071 = vmatpush1.xpose.msra.mxu0 0.0
        %2072 = vmatprep.subr.mxu0 0.0
        %2073 = vmatpush1.xpose.msra.mxu0 0.0
        %2074 = vmatprep.subr.mxu0 0.0
        %2075 = vmatpush1.xpose.msra.mxu0 0.0
        %2076 = vmatprep.subr.mxu0 0.0
        %2077 = vmatpush1.xpose.msra.mxu0 0.0
        %2078 = vmatprep.subr.mxu0 0.0
        %2079 = vmatpush1.xpose.msra.mxu0 0.0
        %2080 = vmatprep.subr.mxu0 0.0
        %2081 = vmatpush1.xpose.msra.mxu0 0.0
        %2082 = vmatprep.subr.mxu0 0.0
        %2083 = vmatpush1.xpose.msra.mxu0 0.0
        %2084 = vmatprep.subr.mxu0 0.0
        %2085 = vmatpush1.xpose.msra.mxu0 0.0
        %2086 = vmatprep.subr.mxu0 0.0
        %2087 = vmatpush1.xpose.msra.mxu0 0.0
        %2088 = vmatprep.subr.mxu0 0.0
        %2089 = vmatpush1.xpose.msra.mxu0 0.0
        %2090 = vmatprep.subr.mxu0 0.0
        %2091 = vmatpush1.xpose.msra.mxu0 0.0
        %2092 = vmatprep.subr.mxu0 0.0
        %2093 = vmatpush1.xpose.msra.mxu0 0.0
        %2094 = vmatprep.subr.mxu0 0.0
        %2095 = vmatpush1.xpose.msra.mxu0 0.0
        %2096 = vmatprep.mubr.f32.mxu0 0.0
        %2097 = vmatmul.mubr.f32.gmra.mrb[0].mxu0 %v2000
        %v2098 = vpop.f32.mrb[0].mxu0
        %v2099 = vadd.f32 %v1960, %v2098
        %v2100 = vpop.f32.mrb[0].mxu0
        %2101 = vmatprep.mubr.f32.mxu0 0.0
        %2102 = vmatmul.mubr.f32.gmra.mrb[0].mxu0 %v2002
        %v2103 = vpop.f32.mrb[0].mxu0
        %v2104 = vadd.f32 %v1961, %v2103
        %v2105 = vpop.f32.mrb[0].mxu0
        %2106 = vmatprep.mubr.f32.mxu0 0.0
        %2107 = vmatmul.mubr.f32.gmra.mrb[0].mxu0 %v2004
        %v2108 = vpop.f32.mrb[0].mxu0
        %v2109 = vadd.f32 %v1962, %v2108
        %v2110 = vpop.f32.mrb[0].mxu0
        %2111 = vmatprep.mubr.f32.mxu0 0.0
        %2112 = vmatmul.mubr.f32.gmra.mrb[0].mxu0 %v2006
        %v2113 = vpop.f32.mrb[0].mxu0
        %v2114 = vadd.f32 %v1963, %v2113
        %v2115 = vpop.f32.mrb[0].mxu0
        %2116 = vmatprep.mubr.f32.mxu0 0.0
        %2117 = vmatmul.mubr.f32.gmra.mrb[0].mxu0 %v2008
        %v2118 = vpop.f32.mrb[0].mxu0
        %v2119 = vadd.f32 %v1964, %v2118
        %v2120 = vpop.f32.mrb[0].mxu0
        %2121 = vmatprep.mubr.f32.mxu0 0.0
        %2122 = vmatmul.mubr.f32.gmra.mrb[0].mxu0 %v2010
        %v2123 = vpop.f32.mrb[0].mxu0
        %v2124 = vadd.f32 %v1965, %v2123
        %v2125 = vpop.f32.mrb[0].mxu0
        %2126 = vmatprep.mubr.f32.mxu0 0.0
        %2127 = vmatmul.mubr.f32.gmra.mrb[0].mxu0 %v2012
        %v2128 = vpop.f32.mrb[0].mxu0
        %v2129 = vadd.f32 %v1966, %v2128
        %v2130 = vpop.f32.mrb[0].mxu0
        %2131 = vmatprep.mubr.f32.mxu0 0.0
        %2132 = vmatmul.mubr.f32.gmra.mrb[0].mxu0 %v2014
        %v2133 = vpop.f32.mrb[0].mxu0
        %v2134 = vadd.f32 %v1967, %v2133
        %v2135 = vpop.f32.mrb[0].mxu0
        %2136 = vdwg.mxu0
        %v2137 = vsel %vm1717, %v2099, -inf
        %2138 = vmax.xlane.f32.xlu0 %v2137
        %v2139 = vpop.xlane.xlu0 %2138
        %v2140 = vsel %vm1717, %v2104, -inf
        %2141 = vmax.xlane.f32.xlu0 %v2140
        %v2142 = vpop.xlane.xlu0 %2141
        %v2143 = vsel %vm1717, %v2109, -inf
        %2144 = vmax.xlane.f32.xlu0 %v2143
        %v2145 = vpop.xlane.xlu0 %2144
        %v2146 = vsel %vm1717, %v2114, -inf
        %2147 = vmax.xlane.f32.xlu0 %v2146
        %v2148 = vpop.xlane.xlu0 %2147
        %v2149 = vsel %vm1717, %v2119, -inf
        %2150 = vmax.xlane.f32.xlu0 %v2149
        %v2151 = vpop.xlane.xlu0 %2150
        %v2152 = vsel %vm1717, %v2124, -inf
        %2153 = vmax.xlane.f32.xlu0 %v2152
        %v2154 = vpop.xlane.xlu0 %2153
        %v2155 = vsel %vm1717, %v2129, -inf
        %2156 = vmax.xlane.f32.xlu0 %v2155
        %v2157 = vpop.xlane.xlu0 %2156
        %v2158 = vsel %vm1717, %v2134, -inf
        %2159 = vmax.xlane.f32.xlu0 %v2158
        %v2160 = vpop.xlane.xlu0 %2159
        %v2161 = vsub.f32 %v2099, %v2139
        %v2162 = vsub.f32 %v2104, %v2142
        %v2163 = vsub.f32 %v2109, %v2145
        %v2164 = vsub.f32 %v2114, %v2148
        %v2165 = vsub.f32 %v2119, %v2151
        %v2166 = vsub.f32 %v2124, %v2154
        %v2167 = vsub.f32 %v2129, %v2157
        %v2168 = vsub.f32 %v2134, %v2160
        %v2169 = vmul.f32 %v2161, 1.442695
        %v2170 = vpow.pop %v2169
        %v2171 = vmul.f32 %v2162, 1.442695
        %v2172 = vpow.pop %v2171
        %v2173 = vmul.f32 %v2163, 1.442695
        %v2174 = vpow.pop %v2173
        %v2175 = vmul.f32 %v2164, 1.442695
        %v2176 = vpow.pop %v2175
        %v2177 = vmul.f32 %v2165, 1.442695
        %v2178 = vpow.pop %v2177
        %v2179 = vmul.f32 %v2166, 1.442695
        %v2180 = vpow.pop %v2179
        %v2181 = vmul.f32 %v2167, 1.442695
        %v2182 = vpow.pop %v2181
        %v2183 = vmul.f32 %v2168, 1.442695
        %v2184 = vpow.pop %v2183
        %v2185 = vsel %vm1717, %v2170, 0.0
        %2186 = vadd.xlane.f32.xlu0 %v2185
        %v2187 = vpop.xlane.xlu0 %2186
        %v2188 = vsel %vm1717, %v2172, 0.0
        %2189 = vadd.xlane.f32.xlu0 %v2188
        %v2190 = vpop.xlane.xlu0 %2189
        %v2191 = vsel %vm1717, %v2174, 0.0
        %2192 = vadd.xlane.f32.xlu0 %v2191
        %v2193 = vpop.xlane.xlu0 %2192
        %v2194 = vsel %vm1717, %v2176, 0.0
        %2195 = vadd.xlane.f32.xlu0 %v2194
        %v2196 = vpop.xlane.xlu0 %2195
        %v2197 = vsel %vm1717, %v2178, 0.0
        %2198 = vadd.xlane.f32.xlu0 %v2197
        %v2199 = vpop.xlane.xlu0 %2198
        %v2200 = vsel %vm1717, %v2180, 0.0
        %2201 = vadd.xlane.f32.xlu0 %v2200
        %v2202 = vpop.xlane.xlu0 %2201
        %v2203 = vsel %vm1717, %v2182, 0.0
        %2204 = vadd.xlane.f32.xlu0 %v2203
        %v2205 = vpop.xlane.xlu0 %2204
        %v2206 = vsel %vm1717, %v2184, 0.0
        %2207 = vadd.xlane.f32.xlu0 %v2206
        %v2208 = vpop.xlane.xlu0 %2207
        %v2209 = vrcp.pop %v2187
        %v2210 = vmul.f32 %v2170, %v2209
        %v2211 = vrcp.pop %v2190
        %v2212 = vmul.f32 %v2172, %v2211
        %v2213 = vrcp.pop %v2193
        %v2214 = vmul.f32 %v2174, %v2213
        %v2215 = vrcp.pop %v2196
        %v2216 = vmul.f32 %v2176, %v2215
        %v2217 = vrcp.pop %v2199
        %v2218 = vmul.f32 %v2178, %v2217
        %v2219 = vrcp.pop %v2202
        %v2220 = vmul.f32 %v2180, %v2219
        %v2221 = vrcp.pop %v2205
        %v2222 = vmul.f32 %v2182, %v2221
        %v2223 = vrcp.pop %v2208
        %v2224 = vmul.f32 %v2184, %v2223
        %2225 = vrot.lane.b32.xlu0 %v1493, 88
        %v2226 = vpop.permute.xlu0 %2225
        %2227 = vrot.lane.b32.xlu0 %v1498, 88
        %v2228 = vpop.permute.xlu0 %2227
        %2229 = vrot.lane.b32.xlu0 %v1503, 88
        %v2230 = vpop.permute.xlu0 %2229
        %2231 = vrot.lane.b32.xlu0 %v1508, 88
        %v2232 = vpop.permute.xlu0 %2231
        %2233 = vrot.lane.b32.xlu0 %v1513, 88
        %v2234 = vpop.permute.xlu0 %2233
        %2235 = vrot.lane.b32.xlu0 %v1518, 88
        %v2236 = vpop.permute.xlu0 %2235
        %2237 = vrot.lane.b32.xlu0 %v1523, 88
        %v2238 = vpop.permute.xlu0 %2237
        %2239 = vrot.lane.b32.xlu0 %v1528, 88
        %v2240 = vpop.permute.xlu0 %2239
        %v2250 = vsel %vm1717, %v2210, 0
        %v2253 = vsel %vm1717, %v2212, 0
        %v2256 = vsel %vm1717, %v2214, 0
        %v2259 = vsel %vm1717, %v2216, 0
        %v2262 = vsel %vm1717, %v2218, 0
        %v2265 = vsel %vm1717, %v2220, 0
        %v2268 = vsel %vm1717, %v2222, 0
        %v2271 = vsel %vm1717, %v2224, 0
        %2273 = vmatprep.subr.mxu0 0.0
        %2274 = vmatpush1.msra.mxu0 %v2226
        %2275 = vmatprep.subr.mxu0 0.0
        %2276 = vmatpush1.msra.mxu0 %v2228
        %2277 = vmatprep.subr.mxu0 0.0
        %2278 = vmatpush1.msra.mxu0 %v2230
        %2279 = vmatprep.subr.mxu0 0.0
        %2280 = vmatpush1.msra.mxu0 %v2232
        %2281 = vmatprep.subr.mxu0 0.0
        %2282 = vmatpush1.msra.mxu0 %v2234
        %2283 = vmatprep.subr.mxu0 0.0
        %2284 = vmatpush1.msra.mxu0 %v2236
        %2285 = vmatprep.subr.mxu0 0.0
        %2286 = vmatpush1.msra.mxu0 %v2238
        %2287 = vmatprep.subr.mxu0 0.0
        %2288 = vmatpush1.msra.mxu0 %v2240
        %2289 = vmatprep.subr.mxu0 0.0
        %2290 = vmatpush1.msra.mxu0 0.0
        %2291 = vmatprep.subr.mxu0 0.0
        %2292 = vmatpush1.msra.mxu0 0.0
        %2293 = vmatprep.subr.mxu0 0.0
        %2294 = vmatpush1.msra.mxu0 0.0
        %2295 = vmatprep.subr.mxu0 0.0
        %2296 = vmatpush1.msra.mxu0 0.0
        %2297 = vmatprep.subr.mxu0 0.0
        %2298 = vmatpush1.msra.mxu0 0.0
        %2299 = vmatprep.subr.mxu0 0.0
        %2300 = vmatpush1.msra.mxu0 0.0
        %2301 = vmatprep.subr.mxu0 0.0
        %2302 = vmatpush1.msra.mxu0 0.0
        %2303 = vmatprep.subr.mxu0 0.0
        %2304 = vmatpush1.msra.mxu0 0.0
        %2305 = vmatprep.subr.mxu0 0.0
        %2306 = vmatpush1.msra.mxu0 0.0
        %2307 = vmatprep.subr.mxu0 0.0
        %2308 = vmatpush1.msra.mxu0 0.0
        %2309 = vmatprep.subr.mxu0 0.0
        %2310 = vmatpush1.msra.mxu0 0.0
        %2311 = vmatprep.subr.mxu0 0.0
        %2312 = vmatpush1.msra.mxu0 0.0
        %2313 = vmatprep.subr.mxu0 0.0
        %2314 = vmatpush1.msra.mxu0 0.0
        %2315 = vmatprep.subr.mxu0 0.0
        %2316 = vmatpush1.msra.mxu0 0.0
        %2317 = vmatprep.subr.mxu0 0.0
        %2318 = vmatpush1.msra.mxu0 0.0
        %2319 = vmatprep.subr.mxu0 0.0
        %2320 = vmatpush1.msra.mxu0 0.0
        %2321 = vmatprep.subr.mxu0 0.0
        %2322 = vmatpush1.msra.mxu0 0.0
        %2323 = vmatprep.subr.mxu0 0.0
        %2324 = vmatpush1.msra.mxu0 0.0
        %2325 = vmatprep.subr.mxu0 0.0
        %2326 = vmatpush1.msra.mxu0 0.0
        %2327 = vmatprep.subr.mxu0 0.0
        %2328 = vmatpush1.msra.mxu0 0.0
        %2329 = vmatprep.subr.mxu0 0.0
        %2330 = vmatpush1.msra.mxu0 0.0
        %2331 = vmatprep.subr.mxu0 0.0
        %2332 = vmatpush1.msra.mxu0 0.0
        %2333 = vmatprep.subr.mxu0 0.0
        %2334 = vmatpush1.msra.mxu0 0.0
        %2335 = vmatprep.subr.mxu0 0.0
        %2336 = vmatpush1.msra.mxu0 0.0
        %2337 = vmatprep.mubr.f32.mxu0 0.0
        %2338 = vmatmul.mubr.f32.gmra.mrb[0].mxu0 %v2250
        %v2339 = vpop.f32.mrb[0].mxu0
        %v2340 = vadd.f32 0.0, %v2339
        %v2341 = vpop.f32.mrb[0].mxu0
        %2342 = vmatprep.mubr.f32.mxu0 0.0
        %2343 = vmatmul.mubr.f32.gmra.mrb[0].mxu0 %v2253
        %v2344 = vpop.f32.mrb[0].mxu0
        %v2345 = vadd.f32 0.0, %v2344
        %v2346 = vpop.f32.mrb[0].mxu0
        %2347 = vmatprep.mubr.f32.mxu0 0.0
        %2348 = vmatmul.mubr.f32.gmra.mrb[0].mxu0 %v2256
        %v2349 = vpop.f32.mrb[0].mxu0
        %v2350 = vadd.f32 0.0, %v2349
        %v2351 = vpop.f32.mrb[0].mxu0
        %2352 = vmatprep.mubr.f32.mxu0 0.0
        %2353 = vmatmul.mubr.f32.gmra.mrb[0].mxu0 %v2259
        %v2354 = vpop.f32.mrb[0].mxu0
        %v2355 = vadd.f32 0.0, %v2354
        %v2356 = vpop.f32.mrb[0].mxu0
        %2357 = vmatprep.mubr.f32.mxu0 0.0
        %2358 = vmatmul.mubr.f32.gmra.mrb[0].mxu0 %v2262
        %v2359 = vpop.f32.mrb[0].mxu0
        %v2360 = vadd.f32 0.0, %v2359
        %v2361 = vpop.f32.mrb[0].mxu0
        %2362 = vmatprep.mubr.f32.mxu0 0.0
        %2363 = vmatmul.mubr.f32.gmra.mrb[0].mxu0 %v2265
        %v2364 = vpop.f32.mrb[0].mxu0
        %v2365 = vadd.f32 0.0, %v2364
        %v2366 = vpop.f32.mrb[0].mxu0
        %2367 = vmatprep.mubr.f32.mxu0 0.0
        %2368 = vmatmul.mubr.f32.gmra.mrb[0].mxu0 %v2268
        %v2369 = vpop.f32.mrb[0].mxu0
        %v2370 = vadd.f32 0.0, %v2369
        %v2371 = vpop.f32.mrb[0].mxu0
        %2372 = vmatprep.mubr.f32.mxu0 0.0
        %2373 = vmatmul.mubr.f32.gmra.mrb[0].mxu0 %v2271
        %v2374 = vpop.f32.mrb[0].mxu0
        %v2375 = vadd.f32 0.0, %v2374
        %v2376 = vpop.f32.mrb[0].mxu0
        %2377 = vdwg.mxu0
        %v2379 = vsel %vm1571, %v2340, 0
        %v2382 = vsel %vm1571, %v2345, 0
        %v2385 = vsel %vm1571, %v2350, 0
        %v2388 = vsel %vm1571, %v2355, 0
        %v2391 = vsel %vm1571, %v2360, 0
        %v2394 = vsel %vm1571, %v2365, 0
        %v2397 = vsel %vm1571, %v2370, 0
        %v2400 = vsel %vm1571, %v2375, 0
        %2402 = vmatprep.subr.mxu0 0.0
        %2403 = vmatpush1.msra.mxu0 %v1393
        %2404 = vmatprep.subr.mxu0 0.0
        %2405 = vmatpush1.msra.mxu0 0.0
        %2406 = vmatprep.subr.mxu0 0.0
        %2407 = vmatpush1.msra.mxu0 0.0
        %2408 = vmatprep.subr.mxu0 0.0
        %2409 = vmatpush1.msra.mxu0 0.0
        %2410 = vmatprep.subr.mxu0 0.0
        %2411 = vmatpush1.msra.mxu0 0.0
        %2412 = vmatprep.subr.mxu0 0.0
        %2413 = vmatpush1.msra.mxu0 0.0
        %2414 = vmatprep.subr.mxu0 0.0
        %2415 = vmatpush1.msra.mxu0 0.0
        %2416 = vmatprep.subr.mxu0 0.0
        %2417 = vmatpush1.msra.mxu0 0.0
        %2418 = vmatprep.subr.mxu0 0.0
        %2419 = vmatpush1.msra.mxu0 0.0
        %2420 = vmatprep.subr.mxu0 0.0
        %2421 = vmatpush1.msra.mxu0 0.0
        %2422 = vmatprep.subr.mxu0 0.0
        %2423 = vmatpush1.msra.mxu0 0.0
        %2424 = vmatprep.subr.mxu0 0.0
        %2425 = vmatpush1.msra.mxu0 0.0
        %2426 = vmatprep.subr.mxu0 0.0
        %2427 = vmatpush1.msra.mxu0 0.0
        %2428 = vmatprep.subr.mxu0 0.0
        %2429 = vmatpush1.msra.mxu0 0.0
        %2430 = vmatprep.subr.mxu0 0.0
        %2431 = vmatpush1.msra.mxu0 0.0
        %2432 = vmatprep.subr.mxu0 0.0
        %2433 = vmatpush1.msra.mxu0 0.0
        %2434 = vmatprep.subr.mxu0 0.0
        %2435 = vmatpush1.msra.mxu0 0.0
        %2436 = vmatprep.subr.mxu0 0.0
        %2437 = vmatpush1.msra.mxu0 0.0
        %2438 = vmatprep.subr.mxu0 0.0
        %2439 = vmatpush1.msra.mxu0 0.0
        %2440 = vmatprep.subr.mxu0 0.0
        %2441 = vmatpush1.msra.mxu0 0.0
        %2442 = vmatprep.subr.mxu0 0.0
        %2443 = vmatpush1.msra.mxu0 0.0
        %2444 = vmatprep.subr.mxu0 0.0
        %2445 = vmatpush1.msra.mxu0 0.0
        %2446 = vmatprep.subr.mxu0 0.0
        %2447 = vmatpush1.msra.mxu0 0.0
        %2448 = vmatprep.subr.mxu0 0.0
        %2449 = vmatpush1.msra.mxu0 0.0
        %2450 = vmatprep.subr.mxu0 0.0
        %2451 = vmatpush1.msra.mxu0 0.0
        %2452 = vmatprep.subr.mxu0 0.0
        %2453 = vmatpush1.msra.mxu0 0.0
        %2454 = vmatprep.subr.mxu0 0.0
        %2455 = vmatpush1.msra.mxu0 0.0
        %2456 = vmatprep.subr.mxu0 0.0
        %2457 = vmatpush1.msra.mxu0 0.0
        %2458 = vmatprep.subr.mxu0 0.0
        %2459 = vmatpush1.msra.mxu0 0.0
        %2460 = vmatprep.subr.mxu0 0.0
        %2461 = vmatpush1.msra.mxu0 0.0
        %2462 = vmatprep.subr.mxu0 0.0
        %2463 = vmatpush1.msra.mxu0 0.0
        %2464 = vmatprep.subr.mxu0 0.0
        %2465 = vmatpush1.msra.mxu0 0.0
        %2466 = vmatprep.mubr.f32.mxu0 0.0
        %2467 = vmatmul.mubr.f32.gmra.mrb[0].mxu0 %v2379
        %v2468 = vpop.f32.mrb[0].mxu0
        %v2469 = vadd.f32 0.0, %v2468
        %v2470 = vpop.f32.mrb[0].mxu0
        %2471 = vmatprep.mubr.f32.mxu0 0.0
        %2472 = vmatmul.mubr.f32.gmra.mrb[0].mxu0 %v2382
        %v2473 = vpop.f32.mrb[0].mxu0
        %v2474 = vadd.f32 0.0, %v2473
        %v2475 = vpop.f32.mrb[0].mxu0
        %2476 = vmatprep.mubr.f32.mxu0 0.0
        %2477 = vmatmul.mubr.f32.gmra.mrb[0].mxu0 %v2385
        %v2478 = vpop.f32.mrb[0].mxu0
        %v2479 = vadd.f32 0.0, %v2478
        %v2480 = vpop.f32.mrb[0].mxu0
        %2481 = vmatprep.mubr.f32.mxu0 0.0
        %2482 = vmatmul.mubr.f32.gmra.mrb[0].mxu0 %v2388
        %v2483 = vpop.f32.mrb[0].mxu0
        %v2484 = vadd.f32 0.0, %v2483
        %v2485 = vpop.f32.mrb[0].mxu0
        %2486 = vmatprep.mubr.f32.mxu0 0.0
        %2487 = vmatmul.mubr.f32.gmra.mrb[0].mxu0 %v2391
        %v2488 = vpop.f32.mrb[0].mxu0
        %v2489 = vadd.f32 0.0, %v2488
        %v2490 = vpop.f32.mrb[0].mxu0
        %2491 = vmatprep.mubr.f32.mxu0 0.0
        %2492 = vmatmul.mubr.f32.gmra.mrb[0].mxu0 %v2394
        %v2493 = vpop.f32.mrb[0].mxu0
        %v2494 = vadd.f32 0.0, %v2493
        %v2495 = vpop.f32.mrb[0].mxu0
        %2496 = vmatprep.mubr.f32.mxu0 0.0
        %2497 = vmatmul.mubr.f32.gmra.mrb[0].mxu0 %v2397
        %v2498 = vpop.f32.mrb[0].mxu0
        %v2499 = vadd.f32 0.0, %v2498
        %v2500 = vpop.f32.mrb[0].mxu0
        %2501 = vmatprep.mubr.f32.mxu0 0.0
        %2502 = vmatmul.mubr.f32.gmra.mrb[0].mxu0 %v2400
        %v2503 = vpop.f32.mrb[0].mxu0
        %v2504 = vadd.f32 0.0, %v2503
        %v2505 = vpop.f32.mrb[0].mxu0
        %2506 = vdwg.mxu0
        %v2508 = vsel %vm1571, %v1921, 0
        %v2511 = vsel %vm1571, %v1926, 0
        %v2514 = vsel %vm1571, %v1931, 0
        %v2517 = vsel %vm1571, %v1936, 0
        %v2520 = vsel %vm1571, %v1941, 0
        %v2523 = vsel %vm1571, %v1946, 0
        %v2526 = vsel %vm1571, %v1951, 0
        %v2529 = vsel %vm1571, %v1956, 0
        %2531 = vmatprep.subr.mxu0 0.0
        %2532 = vmatpush1.msra.mxu0 %v1392
        %2533 = vmatprep.subr.mxu0 0.0
        %2534 = vmatpush1.msra.mxu0 0.0
        %2535 = vmatprep.subr.mxu0 0.0
        %2536 = vmatpush1.msra.mxu0 0.0
        %2537 = vmatprep.subr.mxu0 0.0
        %2538 = vmatpush1.msra.mxu0 0.0
        %2539 = vmatprep.subr.mxu0 0.0
        %2540 = vmatpush1.msra.mxu0 0.0
        %2541 = vmatprep.subr.mxu0 0.0
        %2542 = vmatpush1.msra.mxu0 0.0
        %2543 = vmatprep.subr.mxu0 0.0
        %2544 = vmatpush1.msra.mxu0 0.0
        %2545 = vmatprep.subr.mxu0 0.0
        %2546 = vmatpush1.msra.mxu0 0.0
        %2547 = vmatprep.subr.mxu0 0.0
        %2548 = vmatpush1.msra.mxu0 0.0
        %2549 = vmatprep.subr.mxu0 0.0
        %2550 = vmatpush1.msra.mxu0 0.0
        %2551 = vmatprep.subr.mxu0 0.0
        %2552 = vmatpush1.msra.mxu0 0.0
        %2553 = vmatprep.subr.mxu0 0.0
        %2554 = vmatpush1.msra.mxu0 0.0
        %2555 = vmatprep.subr.mxu0 0.0
        %2556 = vmatpush1.msra.mxu0 0.0
        %2557 = vmatprep.subr.mxu0 0.0
        %2558 = vmatpush1.msra.mxu0 0.0
        %2559 = vmatprep.subr.mxu0 0.0
        %2560 = vmatpush1.msra.mxu0 0.0
        %2561 = vmatprep.subr.mxu0 0.0
        %2562 = vmatpush1.msra.mxu0 0.0
        %2563 = vmatprep.subr.mxu0 0.0
        %2564 = vmatpush1.msra.mxu0 0.0
        %2565 = vmatprep.subr.mxu0 0.0
        %2566 = vmatpush1.msra.mxu0 0.0
        %2567 = vmatprep.subr.mxu0 0.0
        %2568 = vmatpush1.msra.mxu0 0.0
        %2569 = vmatprep.subr.mxu0 0.0
        %2570 = vmatpush1.msra.mxu0 0.0
        %2571 = vmatprep.subr.mxu0 0.0
        %2572 = vmatpush1.msra.mxu0 0.0
        %2573 = vmatprep.subr.mxu0 0.0
        %2574 = vmatpush1.msra.mxu0 0.0
        %2575 = vmatprep.subr.mxu0 0.0
        %2576 = vmatpush1.msra.mxu0 0.0
        %2577 = vmatprep.subr.mxu0 0.0
        %2578 = vmatpush1.msra.mxu0 0.0
        %2579 = vmatprep.subr.mxu0 0.0
        %2580 = vmatpush1.msra.mxu0 0.0
        %2581 = vmatprep.subr.mxu0 0.0
        %2582 = vmatpush1.msra.mxu0 0.0
        %2583 = vmatprep.subr.mxu0 0.0
        %2584 = vmatpush1.msra.mxu0 0.0
        %2585 = vmatprep.subr.mxu0 0.0
        %2586 = vmatpush1.msra.mxu0 0.0
        %2587 = vmatprep.subr.mxu0 0.0
        %2588 = vmatpush1.msra.mxu0 0.0
        %2589 = vmatprep.subr.mxu0 0.0
        %2590 = vmatpush1.msra.mxu0 0.0
        %2591 = vmatprep.subr.mxu0 0.0
        %2592 = vmatpush1.msra.mxu0 0.0
        %2593 = vmatprep.subr.mxu0 0.0
        %2594 = vmatpush1.msra.mxu0 0.0
        %2595 = vmatprep.mubr.f32.mxu0 0.0
        %2596 = vmatmul.mubr.f32.gmra.mrb[0].mxu0 %v2508
        %v2597 = vpop.f32.mrb[0].mxu0
        %v2598 = vadd.f32 %v2469, %v2597
        %v2599 = vpop.f32.mrb[0].mxu0
        %2600 = vmatprep.mubr.f32.mxu0 0.0
        %2601 = vmatmul.mubr.f32.gmra.mrb[0].mxu0 %v2511
        %v2602 = vpop.f32.mrb[0].mxu0
        %v2603 = vadd.f32 %v2474, %v2602
        %v2604 = vpop.f32.mrb[0].mxu0
        %2605 = vmatprep.mubr.f32.mxu0 0.0
        %2606 = vmatmul.mubr.f32.gmra.mrb[0].mxu0 %v2514
        %v2607 = vpop.f32.mrb[0].mxu0
        %v2608 = vadd.f32 %v2479, %v2607
        %v2609 = vpop.f32.mrb[0].mxu0
        %2610 = vmatprep.mubr.f32.mxu0 0.0
        %2611 = vmatmul.mubr.f32.gmra.mrb[0].mxu0 %v2517
        %v2612 = vpop.f32.mrb[0].mxu0
        %v2613 = vadd.f32 %v2484, %v2612
        %v2614 = vpop.f32.mrb[0].mxu0
        %2615 = vmatprep.mubr.f32.mxu0 0.0
        %2616 = vmatmul.mubr.f32.gmra.mrb[0].mxu0 %v2520
        %v2617 = vpop.f32.mrb[0].mxu0
        %v2618 = vadd.f32 %v2489, %v2617
        %v2619 = vpop.f32.mrb[0].mxu0
        %2620 = vmatprep.mubr.f32.mxu0 0.0
        %2621 = vmatmul.mubr.f32.gmra.mrb[0].mxu0 %v2523
        %v2622 = vpop.f32.mrb[0].mxu0
        %v2623 = vadd.f32 %v2494, %v2622
        %v2624 = vpop.f32.mrb[0].mxu0
        %2625 = vmatprep.mubr.f32.mxu0 0.0
        %2626 = vmatmul.mubr.f32.gmra.mrb[0].mxu0 %v2526
        %v2627 = vpop.f32.mrb[0].mxu0
        %v2628 = vadd.f32 %v2499, %v2627
        %v2629 = vpop.f32.mrb[0].mxu0
        %2630 = vmatprep.mubr.f32.mxu0 0.0
        %2631 = vmatmul.mubr.f32.gmra.mrb[0].mxu0 %v2529
        %v2632 = vpop.f32.mrb[0].mxu0
        %v2633 = vadd.f32 %v2504, %v2632
        %v2634 = vpop.f32.mrb[0].mxu0
        %2635 = vdwg.mxu0
        %v2637 = vlaneseq
        %v2638 = vshrl.u32 %v2637, 7
        %v2639 = vsub.s32 0, %v2638
        %v2640 = vrot.slane %v1394, %v2639
        %v2642 = vadd.f32 %v2598, %v2640
        %v2643 = vadd.f32 %v2603, %v2640
        %v2644 = vadd.f32 %v2608, %v2640
        %v2645 = vadd.f32 %v2613, %v2640
        %v2646 = vadd.f32 %v2618, %v2640
        %v2647 = vadd.f32 %v2623, %v2640
        %v2648 = vadd.f32 %v2628, %v2640
        %v2649 = vadd.f32 %v2633, %v2640
        %2650 = vxpose.xlu0.b32.start [1/16] %v2642, 128
        %2651 = vxpose.xlu0.b32.cont [2/16] %v2643, 128
        %2652 = vxpose.xlu0.b32.cont [3/16] %v2644, 128
        %2653 = vxpose.xlu0.b32.cont [4/16] %v2645, 128
        %2654 = vxpose.xlu0.b32.cont [5/16] %v2646, 128
        %2655 = vxpose.xlu0.b32.cont [6/16] %v2647, 128
        %2656 = vxpose.xlu0.b32.cont [7/16] %v2648, 128
        %2657 = vxpose.xlu0.b32.cont [8/16] %v2649, 128
        %2658 = vxpose.xlu0.b32.cont [9/16] 0.0, 128
        %2659 = vxpose.xlu0.b32.cont [10/16] 0.0, 128
        %2660 = vxpose.xlu0.b32.cont [11/16] 0.0, 128
        %2661 = vxpose.xlu0.b32.cont [12/16] 0.0, 128
        %2662 = vxpose.xlu0.b32.cont [13/16] 0.0, 128
        %2663 = vxpose.xlu0.b32.cont [14/16] 0.0, 128
        %2664 = vxpose.xlu0.b32.cont [15/16] 0.0, 128
        %2665 = vxpose.xlu0.b32.end [16/16] 0.0, 128
        %v2666 = vpop.trf.xlu0
        %v2667 = vpop.trf.xlu0
        %v2668 = vpop.trf.xlu0
        %v2669 = vpop.trf.xlu0
        %v2670 = vpop.trf.xlu0
        %v2671 = vpop.trf.xlu0
        %v2672 = vpop.trf.xlu0
        %v2673 = vpop.trf.xlu0
        %v2674 = vpop.trf.xlu0
        %v2675 = vpop.trf.xlu0
        %v2676 = vpop.trf.xlu0
        %v2677 = vpop.trf.xlu0
        %v2678 = vpop.trf.xlu0
        %v2679 = vpop.trf.xlu0
        %v2680 = vpop.trf.xlu0
        %v2681 = vpop.trf.xlu0
        %v2682 = vld [vmem:[%s35] sm:$0xff]
        %v2683 = vld [vmem:[%s35 + $0x8] sm:$0xff]
        %v2684 = vld [vmem:[%s35 + $0x10] sm:$0xff]
        %v2685 = vld [vmem:[%s35 + $0x18] sm:$0xff]
        %v2686 = vld [vmem:[%s35 + $0x20] sm:$0xff]
        %v2687 = vld [vmem:[%s35 + $0x28] sm:$0xff]
        %v2688 = vld [vmem:[%s35 + $0x30] sm:$0xff]
        %v2689 = vld [vmem:[%s35 + $0x38] sm:$0xff]
        %v2690 = vld [vmem:[%s33] sm:$0xff]
        %v2691 = vld [vmem:[%s33 + $0x8] sm:$0xff]
        %v2692 = vld [vmem:[%s33 + $0x10] sm:$0xff]
        %v2693 = vld [vmem:[%s33 + $0x18] sm:$0xff]
        %v2694 = vld [vmem:[%s33 + $0x20] sm:$0xff]
        %v2695 = vld [vmem:[%s33 + $0x28] sm:$0xff]
        %v2696 = vld [vmem:[%s33 + $0x30] sm:$0xff]
        %v2697 = vld [vmem:[%s33 + $0x38] sm:$0xff]
        %v2699 = vsel %vm1717, %v2666, 0
        %v2702 = vsel %vm1717, %v2667, 0
        %2704 = vmatprep.subr.mxu0 0.0
        %2705 = vmatpush1.msra.mxu0 %v2690
        %2706 = vmatprep.subr.mxu0 0.0
        %2707 = vmatpush1.msra.mxu0 %v2691
        %2708 = vmatprep.subr.mxu0 0.0
        %2709 = vmatpush1.msra.mxu0 %v2692
        %2710 = vmatprep.subr.mxu0 0.0
        %2711 = vmatpush1.msra.mxu0 %v2693
        %2712 = vmatprep.subr.mxu0 0.0
        %2713 = vmatpush1.msra.mxu0 %v2694
        %2714 = vmatprep.subr.mxu0 0.0
        %2715 = vmatpush1.msra.mxu0 %v2695
        %2716 = vmatprep.subr.mxu0 0.0
        %2717 = vmatpush1.msra.mxu0 %v2696
        %2718 = vmatprep.subr.mxu0 0.0
        %2719 = vmatpush1.msra.mxu0 %v2697
        %2720 = vmatprep.subr.mxu0 0.0
        %2721 = vmatpush1.msra.mxu0 0.0
        %2722 = vmatprep.subr.mxu0 0.0
        %2723 = vmatpush1.msra.mxu0 0.0
        %2724 = vmatprep.subr.mxu0 0.0
        %2725 = vmatpush1.msra.mxu0 0.0
        %2726 = vmatprep.subr.mxu0 0.0
        %2727 = vmatpush1.msra.mxu0 0.0
        %2728 = vmatprep.subr.mxu0 0.0
        %2729 = vmatpush1.msra.mxu0 0.0
        %2730 = vmatprep.subr.mxu0 0.0
        %2731 = vmatpush1.msra.mxu0 0.0
        %2732 = vmatprep.subr.mxu0 0.0
        %2733 = vmatpush1.msra.mxu0 0.0
        %2734 = vmatprep.subr.mxu0 0.0
        %2735 = vmatpush1.msra.mxu0 0.0
        %2736 = vmatprep.subr.mxu0 0.0
        %2737 = vmatpush1.msra.mxu0 0.0
        %2738 = vmatprep.subr.mxu0 0.0
        %2739 = vmatpush1.msra.mxu0 0.0
        %2740 = vmatprep.subr.mxu0 0.0
        %2741 = vmatpush1.msra.mxu0 0.0
        %2742 = vmatprep.subr.mxu0 0.0
        %2743 = vmatpush1.msra.mxu0 0.0
        %2744 = vmatprep.subr.mxu0 0.0
        %2745 = vmatpush1.msra.mxu0 0.0
        %2746 = vmatprep.subr.mxu0 0.0
        %2747 = vmatpush1.msra.mxu0 0.0
        %2748 = vmatprep.subr.mxu0 0.0
        %2749 = vmatpush1.msra.mxu0 0.0
        %2750 = vmatprep.subr.mxu0 0.0
        %2751 = vmatpush1.msra.mxu0 0.0
        %2752 = vmatprep.subr.mxu0 0.0
        %2753 = vmatpush1.msra.mxu0 0.0
        %2754 = vmatprep.subr.mxu0 0.0
        %2755 = vmatpush1.msra.mxu0 0.0
        %2756 = vmatprep.subr.mxu0 0.0
        %2757 = vmatpush1.msra.mxu0 0.0
        %2758 = vmatprep.subr.mxu0 0.0
        %2759 = vmatpush1.msra.mxu0 0.0
        %2760 = vmatprep.subr.mxu0 0.0
        %2761 = vmatpush1.msra.mxu0 0.0
        %2762 = vmatprep.subr.mxu0 0.0
        %2763 = vmatpush1.msra.mxu0 0.0
        %2764 = vmatprep.subr.mxu0 0.0
        %2765 = vmatpush1.msra.mxu0 0.0
        %2766 = vmatprep.subr.mxu0 0.0
        %2767 = vmatpush1.msra.mxu0 0.0
        %2768 = vmatprep.mubr.f32.mxu0 0.0
        %2769 = vmatmul.mubr.f32.gmra.mrb[0].mxu0 %v2699
        %v2770 = vpop.f32.mrb[0].mxu0
        %v2771 = vadd.f32 0.0, %v2770
        %v2772 = vpop.f32.mrb[0].mxu0
        %2773 = vmatprep.mubr.f32.mxu0 0.0
        %2774 = vmatmul.mubr.f32.gmra.mrb[0].mxu0 %v2702
        %v2775 = vpop.f32.mrb[0].mxu0
        %v2776 = vadd.f32 0.0, %v2775
        %v2777 = vpop.f32.mrb[0].mxu0
        %2778 = vdwg.mxu0
        %s2779 = scalar_lea.vmem %s35, 64
        %v2780 = vld [vmem:[%s2779] sm:$0xff]
        %v2781 = vld [vmem:[%s2779 + $0x8] sm:$0xff]
        %v2782 = vld [vmem:[%s2779 + $0x10] sm:$0xff]
        %v2783 = vld [vmem:[%s2779 + $0x18] sm:$0xff]
        %v2784 = vld [vmem:[%s2779 + $0x20] sm:$0xff]
        %v2785 = vld [vmem:[%s2779 + $0x28] sm:$0xff]
        %v2786 = vld [vmem:[%s2779 + $0x30] sm:$0xff]
        %v2787 = vld [vmem:[%s2779 + $0x38] sm:$0xff]
        %s2788 = scalar_lea.vmem %s33, 64
        %v2789 = vld [vmem:[%s2788] sm:$0xff]
        %v2790 = vld [vmem:[%s2788 + $0x8] sm:$0xff]
        %v2791 = vld [vmem:[%s2788 + $0x10] sm:$0xff]
        %v2792 = vld [vmem:[%s2788 + $0x18] sm:$0xff]
        %v2793 = vld [vmem:[%s2788 + $0x20] sm:$0xff]
        %v2794 = vld [vmem:[%s2788 + $0x28] sm:$0xff]
        %v2795 = vld [vmem:[%s2788 + $0x30] sm:$0xff]
        %v2796 = vld [vmem:[%s2788 + $0x38] sm:$0xff]
        %2797 = vmatprep.subr.mxu0 0.0
        %2798 = vmatpush1.msra.mxu0 %v2789
        %2799 = vmatprep.subr.mxu0 0.0
        %2800 = vmatpush1.msra.mxu0 %v2790
        %2801 = vmatprep.subr.mxu0 0.0
        %2802 = vmatpush1.msra.mxu0 %v2791
        %2803 = vmatprep.subr.mxu0 0.0
        %2804 = vmatpush1.msra.mxu0 %v2792
        %2805 = vmatprep.subr.mxu0 0.0
        %2806 = vmatpush1.msra.mxu0 %v2793
        %2807 = vmatprep.subr.mxu0 0.0
        %2808 = vmatpush1.msra.mxu0 %v2794
        %2809 = vmatprep.subr.mxu0 0.0
        %2810 = vmatpush1.msra.mxu0 %v2795
        %2811 = vmatprep.subr.mxu0 0.0
        %2812 = vmatpush1.msra.mxu0 %v2796
        %2813 = vmatprep.subr.mxu0 0.0
        %2814 = vmatpush1.msra.mxu0 0.0
        %2815 = vmatprep.subr.mxu0 0.0
        %2816 = vmatpush1.msra.mxu0 0.0
        %2817 = vmatprep.subr.mxu0 0.0
        %2818 = vmatpush1.msra.mxu0 0.0
        %2819 = vmatprep.subr.mxu0 0.0
        %2820 = vmatpush1.msra.mxu0 0.0
        %2821 = vmatprep.subr.mxu0 0.0
        %2822 = vmatpush1.msra.mxu0 0.0
        %2823 = vmatprep.subr.mxu0 0.0
        %2824 = vmatpush1.msra.mxu0 0.0
        %2825 = vmatprep.subr.mxu0 0.0
        %2826 = vmatpush1.msra.mxu0 0.0
        %2827 = vmatprep.subr.mxu0 0.0
        %2828 = vmatpush1.msra.mxu0 0.0
        %2829 = vmatprep.subr.mxu0 0.0
        %2830 = vmatpush1.msra.mxu0 0.0
        %2831 = vmatprep.subr.mxu0 0.0
        %2832 = vmatpush1.msra.mxu0 0.0
        %2833 = vmatprep.subr.mxu0 0.0
        %2834 = vmatpush1.msra.mxu0 0.0
        %2835 = vmatprep.subr.mxu0 0.0
        %2836 = vmatpush1.msra.mxu0 0.0
        %2837 = vmatprep.subr.mxu0 0.0
        %2838 = vmatpush1.msra.mxu0 0.0
        %2839 = vmatprep.subr.mxu0 0.0
        %2840 = vmatpush1.msra.mxu0 0.0
        %2841 = vmatprep.subr.mxu0 0.0
        %2842 = vmatpush1.msra.mxu0 0.0
        %2843 = vmatprep.subr.mxu0 0.0
        %2844 = vmatpush1.msra.mxu0 0.0
        %2845 = vmatprep.subr.mxu0 0.0
        %2846 = vmatpush1.msra.mxu0 0.0
        %2847 = vmatprep.subr.mxu0 0.0
        %2848 = vmatpush1.msra.mxu0 0.0
        %2849 = vmatprep.subr.mxu0 0.0
        %2850 = vmatpush1.msra.mxu0 0.0
        %2851 = vmatprep.subr.mxu0 0.0
        %2852 = vmatpush1.msra.mxu0 0.0
        %2853 = vmatprep.subr.mxu0 0.0
        %2854 = vmatpush1.msra.mxu0 0.0
        %2855 = vmatprep.subr.mxu0 0.0
        %2856 = vmatpush1.msra.mxu0 0.0
        %2857 = vmatprep.subr.mxu0 0.0
        %2858 = vmatpush1.msra.mxu0 0.0
        %2859 = vmatprep.subr.mxu0 0.0
        %2860 = vmatpush1.msra.mxu0 0.0
        %2861 = vmatprep.mubr.f32.mxu0 0.0
        %2862 = vmatmul.mubr.f32.gmra.mrb[0].mxu0 %v2699
        %v2863 = vpop.f32.mrb[0].mxu0
        %v2864 = vadd.f32 0.0, %v2863
        %v2865 = vpop.f32.mrb[0].mxu0
        %2866 = vmatprep.mubr.f32.mxu0 0.0
        %2867 = vmatmul.mubr.f32.gmra.mrb[0].mxu0 %v2702
        %v2868 = vpop.f32.mrb[0].mxu0
        %v2869 = vadd.f32 0.0, %v2868
        %v2870 = vpop.f32.mrb[0].mxu0
        %2871 = vdwg.mxu0
        %v2873 = vsel %vm1401, %v2780, 0
        %v2876 = vsel %vm1401, %v2781, 0
        %v2879 = vsel %vm1401, %v2782, 0
        %v2882 = vsel %vm1401, %v2783, 0
        %v2885 = vsel %vm1401, %v2784, 0
        %v2888 = vsel %vm1401, %v2785, 0
        %v2891 = vsel %vm1401, %v2786, 0
        %v2894 = vsel %vm1401, %v2787, 0
        %2896 = vmatprep.subr.mxu0 0.0
        %2897 = vmatpush1.msra.mxu0 %v2864
        %2898 = vmatprep.subr.mxu0 0.0
        %2899 = vmatpush1.msra.mxu0 %v2869
        %2900 = vmatprep.subr.mxu0 0.0
        %2901 = vmatpush1.msra.mxu0 0.0
        %2902 = vmatprep.subr.mxu0 0.0
        %2903 = vmatpush1.msra.mxu0 0.0
        %2904 = vmatprep.subr.mxu0 0.0
        %2905 = vmatpush1.msra.mxu0 0.0
        %2906 = vmatprep.subr.mxu0 0.0
        %2907 = vmatpush1.msra.mxu0 0.0
        %2908 = vmatprep.subr.mxu0 0.0
        %2909 = vmatpush1.msra.mxu0 0.0
        %2910 = vmatprep.subr.mxu0 0.0
        %2911 = vmatpush1.msra.mxu0 0.0
        %2912 = vmatprep.subr.mxu0 0.0
        %2913 = vmatpush1.msra.mxu0 0.0
        %2914 = vmatprep.subr.mxu0 0.0
        %2915 = vmatpush1.msra.mxu0 0.0
        %2916 = vmatprep.subr.mxu0 0.0
        %2917 = vmatpush1.msra.mxu0 0.0
        %2918 = vmatprep.subr.mxu0 0.0
        %2919 = vmatpush1.msra.mxu0 0.0
        %2920 = vmatprep.subr.mxu0 0.0
        %2921 = vmatpush1.msra.mxu0 0.0
        %2922 = vmatprep.subr.mxu0 0.0
        %2923 = vmatpush1.msra.mxu0 0.0
        %2924 = vmatprep.subr.mxu0 0.0
        %2925 = vmatpush1.msra.mxu0 0.0
        %2926 = vmatprep.subr.mxu0 0.0
        %2927 = vmatpush1.msra.mxu0 0.0
        %2928 = vmatprep.subr.mxu0 0.0
        %2929 = vmatpush1.msra.mxu0 0.0
        %2930 = vmatprep.subr.mxu0 0.0
        %2931 = vmatpush1.msra.mxu0 0.0
        %2932 = vmatprep.subr.mxu0 0.0
        %2933 = vmatpush1.msra.mxu0 0.0
        %2934 = vmatprep.subr.mxu0 0.0
        %2935 = vmatpush1.msra.mxu0 0.0
        %2936 = vmatprep.subr.mxu0 0.0
        %2937 = vmatpush1.msra.mxu0 0.0
        %2938 = vmatprep.subr.mxu0 0.0
        %2939 = vmatpush1.msra.mxu0 0.0
        %2940 = vmatprep.subr.mxu0 0.0
        %2941 = vmatpush1.msra.mxu0 0.0
        %2942 = vmatprep.subr.mxu0 0.0
        %2943 = vmatpush1.msra.mxu0 0.0
        %2944 = vmatprep.subr.mxu0 0.0
        %2945 = vmatpush1.msra.mxu0 0.0
        %2946 = vmatprep.subr.mxu0 0.0
        %2947 = vmatpush1.msra.mxu0 0.0
        %2948 = vmatprep.subr.mxu0 0.0
        %2949 = vmatpush1.msra.mxu0 0.0
        %2950 = vmatprep.subr.mxu0 0.0
        %2951 = vmatpush1.msra.mxu0 0.0
        %2952 = vmatprep.subr.mxu0 0.0
        %2953 = vmatpush1.msra.mxu0 0.0
        %2954 = vmatprep.subr.mxu0 0.0
        %2955 = vmatpush1.msra.mxu0 0.0
        %2956 = vmatprep.subr.mxu0 0.0
        %2957 = vmatpush1.msra.mxu0 0.0
        %2958 = vmatprep.subr.mxu0 0.0
        %2959 = vmatpush1.msra.mxu0 0.0
        %2960 = vmatprep.mubr.f32.mxu0 0.0
        %2961 = vmatmul.mubr.f32.gmra.mrb[0].mxu0 %v2873
        %v2962 = vpop.f32.mrb[0].mxu0
        %v2963 = vadd.f32 0.0, %v2962
        %v2964 = vpop.f32.mrb[0].mxu0
        %2965 = vmatprep.mubr.f32.mxu0 0.0
        %2966 = vmatmul.mubr.f32.gmra.mrb[0].mxu0 %v2876
        %v2967 = vpop.f32.mrb[0].mxu0
        %v2968 = vadd.f32 0.0, %v2967
        %v2969 = vpop.f32.mrb[0].mxu0
        %2970 = vmatprep.mubr.f32.mxu0 0.0
        %2971 = vmatmul.mubr.f32.gmra.mrb[0].mxu0 %v2879
        %v2972 = vpop.f32.mrb[0].mxu0
        %v2973 = vadd.f32 0.0, %v2972
        %v2974 = vpop.f32.mrb[0].mxu0
        %2975 = vmatprep.mubr.f32.mxu0 0.0
        %2976 = vmatmul.mubr.f32.gmra.mrb[0].mxu0 %v2882
        %v2977 = vpop.f32.mrb[0].mxu0
        %v2978 = vadd.f32 0.0, %v2977
        %v2979 = vpop.f32.mrb[0].mxu0
        %2980 = vmatprep.mubr.f32.mxu0 0.0
        %2981 = vmatmul.mubr.f32.gmra.mrb[0].mxu0 %v2885
        %v2982 = vpop.f32.mrb[0].mxu0
        %v2983 = vadd.f32 0.0, %v2982
        %v2984 = vpop.f32.mrb[0].mxu0
        %2985 = vmatprep.mubr.f32.mxu0 0.0
        %2986 = vmatmul.mubr.f32.gmra.mrb[0].mxu0 %v2888
        %v2987 = vpop.f32.mrb[0].mxu0
        %v2988 = vadd.f32 0.0, %v2987
        %v2989 = vpop.f32.mrb[0].mxu0
        %2990 = vmatprep.mubr.f32.mxu0 0.0
        %2991 = vmatmul.mubr.f32.gmra.mrb[0].mxu0 %v2891
        %v2992 = vpop.f32.mrb[0].mxu0
        %v2993 = vadd.f32 0.0, %v2992
        %v2994 = vpop.f32.mrb[0].mxu0
        %2995 = vmatprep.mubr.f32.mxu0 0.0
        %2996 = vmatmul.mubr.f32.gmra.mrb[0].mxu0 %v2894
        %v2997 = vpop.f32.mrb[0].mxu0
        %v2998 = vadd.f32 0.0, %v2997
        %v2999 = vpop.f32.mrb[0].mxu0
        %3000 = vdwg.mxu0
        %v3002 = vsel %vm1401, %v2682, 0
        %v3005 = vsel %vm1401, %v2683, 0
        %v3008 = vsel %vm1401, %v2684, 0
        %v3011 = vsel %vm1401, %v2685, 0
        %v3014 = vsel %vm1401, %v2686, 0
        %v3017 = vsel %vm1401, %v2687, 0
        %v3020 = vsel %vm1401, %v2688, 0
        %v3023 = vsel %vm1401, %v2689, 0
        %3025 = vmatprep.subr.mxu0 0.0
        %3026 = vmatpush1.msra.mxu0 %v2771
        %3027 = vmatprep.subr.mxu0 0.0
        %3028 = vmatpush1.msra.mxu0 %v2776
        %3029 = vmatprep.subr.mxu0 0.0
        %3030 = vmatpush1.msra.mxu0 0.0
        %3031 = vmatprep.subr.mxu0 0.0
        %3032 = vmatpush1.msra.mxu0 0.0
        %3033 = vmatprep.subr.mxu0 0.0
        %3034 = vmatpush1.msra.mxu0 0.0
        %3035 = vmatprep.subr.mxu0 0.0
        %3036 = vmatpush1.msra.mxu0 0.0
        %3037 = vmatprep.subr.mxu0 0.0
        %3038 = vmatpush1.msra.mxu0 0.0
        %3039 = vmatprep.subr.mxu0 0.0
        %3040 = vmatpush1.msra.mxu0 0.0
        %3041 = vmatprep.subr.mxu0 0.0
        %3042 = vmatpush1.msra.mxu0 0.0
        %3043 = vmatprep.subr.mxu0 0.0
        %3044 = vmatpush1.msra.mxu0 0.0
        %3045 = vmatprep.subr.mxu0 0.0
        %3046 = vmatpush1.msra.mxu0 0.0
        %3047 = vmatprep.subr.mxu0 0.0
        %3048 = vmatpush1.msra.mxu0 0.0
        %3049 = vmatprep.subr.mxu0 0.0
        %3050 = vmatpush1.msra.mxu0 0.0
        %3051 = vmatprep.subr.mxu0 0.0
        %3052 = vmatpush1.msra.mxu0 0.0
        %3053 = vmatprep.subr.mxu0 0.0
        %3054 = vmatpush1.msra.mxu0 0.0
        %3055 = vmatprep.subr.mxu0 0.0
        %3056 = vmatpush1.msra.mxu0 0.0
        %3057 = vmatprep.subr.mxu0 0.0
        %3058 = vmatpush1.msra.mxu0 0.0
        %3059 = vmatprep.subr.mxu0 0.0
        %3060 = vmatpush1.msra.mxu0 0.0
        %3061 = vmatprep.subr.mxu0 0.0
        %3062 = vmatpush1.msra.mxu0 0.0
        %3063 = vmatprep.subr.mxu0 0.0
        %3064 = vmatpush1.msra.mxu0 0.0
        %3065 = vmatprep.subr.mxu0 0.0
        %3066 = vmatpush1.msra.mxu0 0.0
        %3067 = vmatprep.subr.mxu0 0.0
        %3068 = vmatpush1.msra.mxu0 0.0
        %3069 = vmatprep.subr.mxu0 0.0
        %3070 = vmatpush1.msra.mxu0 0.0
        %3071 = vmatprep.subr.mxu0 0.0
        %3072 = vmatpush1.msra.mxu0 0.0
        %3073 = vmatprep.subr.mxu0 0.0
        %3074 = vmatpush1.msra.mxu0 0.0
        %3075 = vmatprep.subr.mxu0 0.0
        %3076 = vmatpush1.msra.mxu0 0.0
        %3077 = vmatprep.subr.mxu0 0.0
        %3078 = vmatpush1.msra.mxu0 0.0
        %3079 = vmatprep.subr.mxu0 0.0
        %3080 = vmatpush1.msra.mxu0 0.0
        %3081 = vmatprep.subr.mxu0 0.0
        %3082 = vmatpush1.msra.mxu0 0.0
        %3083 = vmatprep.subr.mxu0 0.0
        %3084 = vmatpush1.msra.mxu0 0.0
        %3085 = vmatprep.subr.mxu0 0.0
        %3086 = vmatpush1.msra.mxu0 0.0
        %3087 = vmatprep.subr.mxu0 0.0
        %3088 = vmatpush1.msra.mxu0 0.0
        %3089 = vmatprep.mubr.f32.mxu0 0.0
        %3090 = vmatmul.mubr.f32.gmra.mrb[0].mxu0 %v3002
        %v3091 = vpop.f32.mrb[0].mxu0
        %v3092 = vadd.f32 %v2963, %v3091
        %v3093 = vpop.f32.mrb[0].mxu0
        %3094 = vmatprep.mubr.f32.mxu0 0.0
        %3095 = vmatmul.mubr.f32.gmra.mrb[0].mxu0 %v3005
        %v3096 = vpop.f32.mrb[0].mxu0
        %v3097 = vadd.f32 %v2968, %v3096
        %v3098 = vpop.f32.mrb[0].mxu0
        %3099 = vmatprep.mubr.f32.mxu0 0.0
        %3100 = vmatmul.mubr.f32.gmra.mrb[0].mxu0 %v3008
        %v3101 = vpop.f32.mrb[0].mxu0
        %v3102 = vadd.f32 %v2973, %v3101
        %v3103 = vpop.f32.mrb[0].mxu0
        %3104 = vmatprep.mubr.f32.mxu0 0.0
        %3105 = vmatmul.mubr.f32.gmra.mrb[0].mxu0 %v3011
        %v3106 = vpop.f32.mrb[0].mxu0
        %v3107 = vadd.f32 %v2978, %v3106
        %v3108 = vpop.f32.mrb[0].mxu0
        %3109 = vmatprep.mubr.f32.mxu0 0.0
        %3110 = vmatmul.mubr.f32.gmra.mrb[0].mxu0 %v3014
        %v3111 = vpop.f32.mrb[0].mxu0
        %v3112 = vadd.f32 %v2983, %v3111
        %v3113 = vpop.f32.mrb[0].mxu0
        %3114 = vmatprep.mubr.f32.mxu0 0.0
        %3115 = vmatmul.mubr.f32.gmra.mrb[0].mxu0 %v3017
        %v3116 = vpop.f32.mrb[0].mxu0
        %v3117 = vadd.f32 %v2988, %v3116
        %v3118 = vpop.f32.mrb[0].mxu0
        %3119 = vmatprep.mubr.f32.mxu0 0.0
        %3120 = vmatmul.mubr.f32.gmra.mrb[0].mxu0 %v3020
        %v3121 = vpop.f32.mrb[0].mxu0
        %v3122 = vadd.f32 %v2993, %v3121
        %v3123 = vpop.f32.mrb[0].mxu0
        %3124 = vmatprep.mubr.f32.mxu0 0.0
        %3125 = vmatmul.mubr.f32.gmra.mrb[0].mxu0 %v3023
        %v3126 = vpop.f32.mrb[0].mxu0
        %v3127 = vadd.f32 %v2998, %v3126
        %v3128 = vpop.f32.mrb[0].mxu0
        %3129 = vdwg.mxu0
        %s3130 = scalar_lea.vmem %s35, 128
        %v3131 = vld [vmem:[%s3130] sm:$0xff]
        %v3132 = vld [vmem:[%s3130 + $0x8] sm:$0xff]
        %v3133 = vld [vmem:[%s3130 + $0x10] sm:$0xff]
        %v3134 = vld [vmem:[%s3130 + $0x18] sm:$0xff]
        %v3135 = vld [vmem:[%s3130 + $0x20] sm:$0xff]
        %v3136 = vld [vmem:[%s3130 + $0x28] sm:$0xff]
        %v3137 = vld [vmem:[%s3130 + $0x30] sm:$0xff]
        %v3138 = vld [vmem:[%s3130 + $0x38] sm:$0xff]
        %s3139 = scalar_lea.vmem %s33, 128
        %v3140 = vld [vmem:[%s3139] sm:$0xff]
        %v3141 = vld [vmem:[%s3139 + $0x8] sm:$0xff]
        %v3142 = vld [vmem:[%s3139 + $0x10] sm:$0xff]
        %v3143 = vld [vmem:[%s3139 + $0x18] sm:$0xff]
        %v3144 = vld [vmem:[%s3139 + $0x20] sm:$0xff]
        %v3145 = vld [vmem:[%s3139 + $0x28] sm:$0xff]
        %v3146 = vld [vmem:[%s3139 + $0x30] sm:$0xff]
        %v3147 = vld [vmem:[%s3139 + $0x38] sm:$0xff]
        %3148 = vmatprep.subr.mxu0 0.0
        %3149 = vmatpush1.msra.mxu0 %v3140
        %3150 = vmatprep.subr.mxu0 0.0
        %3151 = vmatpush1.msra.mxu0 %v3141
        %3152 = vmatprep.subr.mxu0 0.0
        %3153 = vmatpush1.msra.mxu0 %v3142
        %3154 = vmatprep.subr.mxu0 0.0
        %3155 = vmatpush1.msra.mxu0 %v3143
        %3156 = vmatprep.subr.mxu0 0.0
        %3157 = vmatpush1.msra.mxu0 %v3144
        %3158 = vmatprep.subr.mxu0 0.0
        %3159 = vmatpush1.msra.mxu0 %v3145
        %3160 = vmatprep.subr.mxu0 0.0
        %3161 = vmatpush1.msra.mxu0 %v3146
        %3162 = vmatprep.subr.mxu0 0.0
        %3163 = vmatpush1.msra.mxu0 %v3147
        %3164 = vmatprep.subr.mxu0 0.0
        %3165 = vmatpush1.msra.mxu0 0.0
        %3166 = vmatprep.subr.mxu0 0.0
        %3167 = vmatpush1.msra.mxu0 0.0
        %3168 = vmatprep.subr.mxu0 0.0
        %3169 = vmatpush1.msra.mxu0 0.0
        %3170 = vmatprep.subr.mxu0 0.0
        %3171 = vmatpush1.msra.mxu0 0.0
        %3172 = vmatprep.subr.mxu0 0.0
        %3173 = vmatpush1.msra.mxu0 0.0
        %3174 = vmatprep.subr.mxu0 0.0
        %3175 = vmatpush1.msra.mxu0 0.0
        %3176 = vmatprep.subr.mxu0 0.0
        %3177 = vmatpush1.msra.mxu0 0.0
        %3178 = vmatprep.subr.mxu0 0.0
        %3179 = vmatpush1.msra.mxu0 0.0
        %3180 = vmatprep.subr.mxu0 0.0
        %3181 = vmatpush1.msra.mxu0 0.0
        %3182 = vmatprep.subr.mxu0 0.0
        %3183 = vmatpush1.msra.mxu0 0.0
        %3184 = vmatprep.subr.mxu0 0.0
        %3185 = vmatpush1.msra.mxu0 0.0
        %3186 = vmatprep.subr.mxu0 0.0
        %3187 = vmatpush1.msra.mxu0 0.0
        %3188 = vmatprep.subr.mxu0 0.0
        %3189 = vmatpush1.msra.mxu0 0.0
        %3190 = vmatprep.subr.mxu0 0.0
        %3191 = vmatpush1.msra.mxu0 0.0
        %3192 = vmatprep.subr.mxu0 0.0
        %3193 = vmatpush1.msra.mxu0 0.0
        %3194 = vmatprep.subr.mxu0 0.0
        %3195 = vmatpush1.msra.mxu0 0.0
        %3196 = vmatprep.subr.mxu0 0.0
        %3197 = vmatpush1.msra.mxu0 0.0
        %3198 = vmatprep.subr.mxu0 0.0
        %3199 = vmatpush1.msra.mxu0 0.0
        %3200 = vmatprep.subr.mxu0 0.0
        %3201 = vmatpush1.msra.mxu0 0.0
        %3202 = vmatprep.subr.mxu0 0.0
        %3203 = vmatpush1.msra.mxu0 0.0
        %3204 = vmatprep.subr.mxu0 0.0
        %3205 = vmatpush1.msra.mxu0 0.0
        %3206 = vmatprep.subr.mxu0 0.0
        %3207 = vmatpush1.msra.mxu0 0.0
        %3208 = vmatprep.subr.mxu0 0.0
        %3209 = vmatpush1.msra.mxu0 0.0
        %3210 = vmatprep.subr.mxu0 0.0
        %3211 = vmatpush1.msra.mxu0 0.0
        %3212 = vmatprep.mubr.f32.mxu0 0.0
        %3213 = vmatmul.mubr.f32.gmra.mrb[0].mxu0 %v2699
        %v3214 = vpop.f32.mrb[0].mxu0
        %v3215 = vadd.f32 0.0, %v3214
        %v3216 = vpop.f32.mrb[0].mxu0
        %3217 = vmatprep.mubr.f32.mxu0 0.0
        %3218 = vmatmul.mubr.f32.gmra.mrb[0].mxu0 %v2702
        %v3219 = vpop.f32.mrb[0].mxu0
        %v3220 = vadd.f32 0.0, %v3219
        %v3221 = vpop.f32.mrb[0].mxu0
        %3222 = vdwg.mxu0
        %v3224 = vsel %vm1401, %v3131, 0
        %v3227 = vsel %vm1401, %v3132, 0
        %v3230 = vsel %vm1401, %v3133, 0
        %v3233 = vsel %vm1401, %v3134, 0
        %v3236 = vsel %vm1401, %v3135, 0
        %v3239 = vsel %vm1401, %v3136, 0
        %v3242 = vsel %vm1401, %v3137, 0
        %v3245 = vsel %vm1401, %v3138, 0
        %3247 = vmatprep.subr.mxu0 0.0
        %3248 = vmatpush1.msra.mxu0 %v3215
        %3249 = vmatprep.subr.mxu0 0.0
        %3250 = vmatpush1.msra.mxu0 %v3220
        %3251 = vmatprep.subr.mxu0 0.0
        %3252 = vmatpush1.msra.mxu0 0.0
        %3253 = vmatprep.subr.mxu0 0.0
        %3254 = vmatpush1.msra.mxu0 0.0
        %3255 = vmatprep.subr.mxu0 0.0
        %3256 = vmatpush1.msra.mxu0 0.0
        %3257 = vmatprep.subr.mxu0 0.0
        %3258 = vmatpush1.msra.mxu0 0.0
        %3259 = vmatprep.subr.mxu0 0.0
        %3260 = vmatpush1.msra.mxu0 0.0
        %3261 = vmatprep.subr.mxu0 0.0
        %3262 = vmatpush1.msra.mxu0 0.0
        %3263 = vmatprep.subr.mxu0 0.0
        %3264 = vmatpush1.msra.mxu0 0.0
        %3265 = vmatprep.subr.mxu0 0.0
        %3266 = vmatpush1.msra.mxu0 0.0
        %3267 = vmatprep.subr.mxu0 0.0
        %3268 = vmatpush1.msra.mxu0 0.0
        %3269 = vmatprep.subr.mxu0 0.0
        %3270 = vmatpush1.msra.mxu0 0.0
        %3271 = vmatprep.subr.mxu0 0.0
        %3272 = vmatpush1.msra.mxu0 0.0
        %3273 = vmatprep.subr.mxu0 0.0
        %3274 = vmatpush1.msra.mxu0 0.0
        %3275 = vmatprep.subr.mxu0 0.0
        %3276 = vmatpush1.msra.mxu0 0.0
        %3277 = vmatprep.subr.mxu0 0.0
        %3278 = vmatpush1.msra.mxu0 0.0
        %3279 = vmatprep.subr.mxu0 0.0
        %3280 = vmatpush1.msra.mxu0 0.0
        %3281 = vmatprep.subr.mxu0 0.0
        %3282 = vmatpush1.msra.mxu0 0.0
        %3283 = vmatprep.subr.mxu0 0.0
        %3284 = vmatpush1.msra.mxu0 0.0
        %3285 = vmatprep.subr.mxu0 0.0
        %3286 = vmatpush1.msra.mxu0 0.0
        %3287 = vmatprep.subr.mxu0 0.0
        %3288 = vmatpush1.msra.mxu0 0.0
        %3289 = vmatprep.subr.mxu0 0.0
        %3290 = vmatpush1.msra.mxu0 0.0
        %3291 = vmatprep.subr.mxu0 0.0
        %3292 = vmatpush1.msra.mxu0 0.0
        %3293 = vmatprep.subr.mxu0 0.0
        %3294 = vmatpush1.msra.mxu0 0.0
        %3295 = vmatprep.subr.mxu0 0.0
        %3296 = vmatpush1.msra.mxu0 0.0
        %3297 = vmatprep.subr.mxu0 0.0
        %3298 = vmatpush1.msra.mxu0 0.0
        %3299 = vmatprep.subr.mxu0 0.0
        %3300 = vmatpush1.msra.mxu0 0.0
        %3301 = vmatprep.subr.mxu0 0.0
        %3302 = vmatpush1.msra.mxu0 0.0
        %3303 = vmatprep.subr.mxu0 0.0
        %3304 = vmatpush1.msra.mxu0 0.0
        %3305 = vmatprep.subr.mxu0 0.0
        %3306 = vmatpush1.msra.mxu0 0.0
        %3307 = vmatprep.subr.mxu0 0.0
        %3308 = vmatpush1.msra.mxu0 0.0
        %3309 = vmatprep.subr.mxu0 0.0
        %3310 = vmatpush1.msra.mxu0 0.0
        %3311 = vmatprep.mubr.f32.mxu0 0.0
        %3312 = vmatmul.mubr.f32.gmra.mrb[0].mxu0 %v3224
        %v3313 = vpop.f32.mrb[0].mxu0
        %v3314 = vadd.f32 0.0, %v3313
        %v3315 = vpop.f32.mrb[0].mxu0
        %3316 = vmatprep.mubr.f32.mxu0 0.0
        %3317 = vmatmul.mubr.f32.gmra.mrb[0].mxu0 %v3227
        %v3318 = vpop.f32.mrb[0].mxu0
        %v3319 = vadd.f32 0.0, %v3318
        %v3320 = vpop.f32.mrb[0].mxu0
        %3321 = vmatprep.mubr.f32.mxu0 0.0
        %3322 = vmatmul.mubr.f32.gmra.mrb[0].mxu0 %v3230
        %v3323 = vpop.f32.mrb[0].mxu0
        %v3324 = vadd.f32 0.0, %v3323
        %v3325 = vpop.f32.mrb[0].mxu0
        %3326 = vmatprep.mubr.f32.mxu0 0.0
        %3327 = vmatmul.mubr.f32.gmra.mrb[0].mxu0 %v3233
        %v3328 = vpop.f32.mrb[0].mxu0
        %v3329 = vadd.f32 0.0, %v3328
        %v3330 = vpop.f32.mrb[0].mxu0
        %3331 = vmatprep.mubr.f32.mxu0 0.0
        %3332 = vmatmul.mubr.f32.gmra.mrb[0].mxu0 %v3236
        %v3333 = vpop.f32.mrb[0].mxu0
        %v3334 = vadd.f32 0.0, %v3333
        %v3335 = vpop.f32.mrb[0].mxu0
        %3336 = vmatprep.mubr.f32.mxu0 0.0
        %3337 = vmatmul.mubr.f32.gmra.mrb[0].mxu0 %v3239
        %v3338 = vpop.f32.mrb[0].mxu0
        %v3339 = vadd.f32 0.0, %v3338
        %v3340 = vpop.f32.mrb[0].mxu0
        %3341 = vmatprep.mubr.f32.mxu0 0.0
        %3342 = vmatmul.mubr.f32.gmra.mrb[0].mxu0 %v3242
        %v3343 = vpop.f32.mrb[0].mxu0
        %v3344 = vadd.f32 0.0, %v3343
        %v3345 = vpop.f32.mrb[0].mxu0
        %3346 = vmatprep.mubr.f32.mxu0 0.0
        %3347 = vmatmul.mubr.f32.gmra.mrb[0].mxu0 %v3245
        %v3348 = vpop.f32.mrb[0].mxu0
        %v3349 = vadd.f32 0.0, %v3348
        %v3350 = vpop.f32.mrb[0].mxu0
        %3351 = vdwg.mxu0
        %v3352 = vadd.f32 %v3092, %v3314
        %v3353 = vadd.f32 %v3097, %v3319
        %v3354 = vadd.f32 %v3102, %v3324
        %v3355 = vadd.f32 %v3107, %v3329
        %v3356 = vadd.f32 %v3112, %v3334
        %v3357 = vadd.f32 %v3117, %v3339
        %v3358 = vadd.f32 %v3122, %v3344
        %v3359 = vadd.f32 %v3127, %v3349
        %s3360 = scalar_lea.vmem %s35, 192
        %v3361 = vld [vmem:[%s3360] sm:$0xff]
        %v3362 = vld [vmem:[%s3360 + $0x8] sm:$0xff]
        %v3363 = vld [vmem:[%s3360 + $0x10] sm:$0xff]
        %v3364 = vld [vmem:[%s3360 + $0x18] sm:$0xff]
        %v3365 = vld [vmem:[%s3360 + $0x20] sm:$0xff]
        %v3366 = vld [vmem:[%s3360 + $0x28] sm:$0xff]
        %v3367 = vld [vmem:[%s3360 + $0x30] sm:$0xff]
        %v3368 = vld [vmem:[%s3360 + $0x38] sm:$0xff]
        %s3369 = scalar_lea.vmem %s33, 192
        %v3370 = vld [vmem:[%s3369] sm:$0xff]
        %v3371 = vld [vmem:[%s3369 + $0x8] sm:$0xff]
        %v3372 = vld [vmem:[%s3369 + $0x10] sm:$0xff]
        %v3373 = vld [vmem:[%s3369 + $0x18] sm:$0xff]
        %v3374 = vld [vmem:[%s3369 + $0x20] sm:$0xff]
        %v3375 = vld [vmem:[%s3369 + $0x28] sm:$0xff]
        %v3376 = vld [vmem:[%s3369 + $0x30] sm:$0xff]
        %v3377 = vld [vmem:[%s3369 + $0x38] sm:$0xff]
        %3378 = vmatprep.subr.mxu0 0.0
        %3379 = vmatpush1.msra.mxu0 %v3370
        %3380 = vmatprep.subr.mxu0 0.0
        %3381 = vmatpush1.msra.mxu0 %v3371
        %3382 = vmatprep.subr.mxu0 0.0
        %3383 = vmatpush1.msra.mxu0 %v3372
        %3384 = vmatprep.subr.mxu0 0.0
        %3385 = vmatpush1.msra.mxu0 %v3373
        %3386 = vmatprep.subr.mxu0 0.0
        %3387 = vmatpush1.msra.mxu0 %v3374
        %3388 = vmatprep.subr.mxu0 0.0
        %3389 = vmatpush1.msra.mxu0 %v3375
        %3390 = vmatprep.subr.mxu0 0.0
        %3391 = vmatpush1.msra.mxu0 %v3376
        %3392 = vmatprep.subr.mxu0 0.0
        %3393 = vmatpush1.msra.mxu0 %v3377
        %3394 = vmatprep.subr.mxu0 0.0
        %3395 = vmatpush1.msra.mxu0 0.0
        %3396 = vmatprep.subr.mxu0 0.0
        %3397 = vmatpush1.msra.mxu0 0.0
        %3398 = vmatprep.subr.mxu0 0.0
        %3399 = vmatpush1.msra.mxu0 0.0
        %3400 = vmatprep.subr.mxu0 0.0
        %3401 = vmatpush1.msra.mxu0 0.0
        %3402 = vmatprep.subr.mxu0 0.0
        %3403 = vmatpush1.msra.mxu0 0.0
        %3404 = vmatprep.subr.mxu0 0.0
        %3405 = vmatpush1.msra.mxu0 0.0
        %3406 = vmatprep.subr.mxu0 0.0
        %3407 = vmatpush1.msra.mxu0 0.0
        %3408 = vmatprep.subr.mxu0 0.0
        %3409 = vmatpush1.msra.mxu0 0.0
        %3410 = vmatprep.subr.mxu0 0.0
        %3411 = vmatpush1.msra.mxu0 0.0
        %3412 = vmatprep.subr.mxu0 0.0
        %3413 = vmatpush1.msra.mxu0 0.0
        %3414 = vmatprep.subr.mxu0 0.0
        %3415 = vmatpush1.msra.mxu0 0.0
        %3416 = vmatprep.subr.mxu0 0.0
        %3417 = vmatpush1.msra.mxu0 0.0
        %3418 = vmatprep.subr.mxu0 0.0
        %3419 = vmatpush1.msra.mxu0 0.0
        %3420 = vmatprep.subr.mxu0 0.0
        %3421 = vmatpush1.msra.mxu0 0.0
        %3422 = vmatprep.subr.mxu0 0.0
        %3423 = vmatpush1.msra.mxu0 0.0
        %3424 = vmatprep.subr.mxu0 0.0
        %3425 = vmatpush1.msra.mxu0 0.0
        %3426 = vmatprep.subr.mxu0 0.0
        %3427 = vmatpush1.msra.mxu0 0.0
        %3428 = vmatprep.subr.mxu0 0.0
        %3429 = vmatpush1.msra.mxu0 0.0
        %3430 = vmatprep.subr.mxu0 0.0
        %3431 = vmatpush1.msra.mxu0 0.0
        %3432 = vmatprep.subr.mxu0 0.0
        %3433 = vmatpush1.msra.mxu0 0.0
        %3434 = vmatprep.subr.mxu0 0.0
        %3435 = vmatpush1.msra.mxu0 0.0
        %3436 = vmatprep.subr.mxu0 0.0
        %3437 = vmatpush1.msra.mxu0 0.0
        %3438 = vmatprep.subr.mxu0 0.0
        %3439 = vmatpush1.msra.mxu0 0.0
        %3440 = vmatprep.subr.mxu0 0.0
        %3441 = vmatpush1.msra.mxu0 0.0
        %3442 = vmatprep.mubr.f32.mxu0 0.0
        %3443 = vmatmul.mubr.f32.gmra.mrb[0].mxu0 %v2699
        %v3444 = vpop.f32.mrb[0].mxu0
        %v3445 = vadd.f32 0.0, %v3444
        %v3446 = vpop.f32.mrb[0].mxu0
        %3447 = vmatprep.mubr.f32.mxu0 0.0
        %3448 = vmatmul.mubr.f32.gmra.mrb[0].mxu0 %v2702
        %v3449 = vpop.f32.mrb[0].mxu0
        %v3450 = vadd.f32 0.0, %v3449
        %v3451 = vpop.f32.mrb[0].mxu0
        %3452 = vdwg.mxu0
        %v3454 = vsel %vm1401, %v3361, 0
        %v3457 = vsel %vm1401, %v3362, 0
        %v3460 = vsel %vm1401, %v3363, 0
        %v3463 = vsel %vm1401, %v3364, 0
        %v3466 = vsel %vm1401, %v3365, 0
        %v3469 = vsel %vm1401, %v3366, 0
        %v3472 = vsel %vm1401, %v3367, 0
        %v3475 = vsel %vm1401, %v3368, 0
        %3477 = vmatprep.subr.mxu0 0.0
        %3478 = vmatpush1.msra.mxu0 %v3445
        %3479 = vmatprep.subr.mxu0 0.0
        %3480 = vmatpush1.msra.mxu0 %v3450
        %3481 = vmatprep.subr.mxu0 0.0
        %3482 = vmatpush1.msra.mxu0 0.0
        %3483 = vmatprep.subr.mxu0 0.0
        %3484 = vmatpush1.msra.mxu0 0.0
        %3485 = vmatprep.subr.mxu0 0.0
        %3486 = vmatpush1.msra.mxu0 0.0
        %3487 = vmatprep.subr.mxu0 0.0
        %3488 = vmatpush1.msra.mxu0 0.0
        %3489 = vmatprep.subr.mxu0 0.0
        %3490 = vmatpush1.msra.mxu0 0.0
        %3491 = vmatprep.subr.mxu0 0.0
        %3492 = vmatpush1.msra.mxu0 0.0
        %3493 = vmatprep.subr.mxu0 0.0
        %3494 = vmatpush1.msra.mxu0 0.0
        %3495 = vmatprep.subr.mxu0 0.0
        %3496 = vmatpush1.msra.mxu0 0.0
        %3497 = vmatprep.subr.mxu0 0.0
        %3498 = vmatpush1.msra.mxu0 0.0
        %3499 = vmatprep.subr.mxu0 0.0
        %3500 = vmatpush1.msra.mxu0 0.0
        %3501 = vmatprep.subr.mxu0 0.0
        %3502 = vmatpush1.msra.mxu0 0.0
        %3503 = vmatprep.subr.mxu0 0.0
        %3504 = vmatpush1.msra.mxu0 0.0
        %3505 = vmatprep.subr.mxu0 0.0
        %3506 = vmatpush1.msra.mxu0 0.0
        %3507 = vmatprep.subr.mxu0 0.0
        %3508 = vmatpush1.msra.mxu0 0.0
        %3509 = vmatprep.subr.mxu0 0.0
        %3510 = vmatpush1.msra.mxu0 0.0
        %3511 = vmatprep.subr.mxu0 0.0
        %3512 = vmatpush1.msra.mxu0 0.0
        %3513 = vmatprep.subr.mxu0 0.0
        %3514 = vmatpush1.msra.mxu0 0.0
        %3515 = vmatprep.subr.mxu0 0.0
        %3516 = vmatpush1.msra.mxu0 0.0
        %3517 = vmatprep.subr.mxu0 0.0
        %3518 = vmatpush1.msra.mxu0 0.0
        %3519 = vmatprep.subr.mxu0 0.0
        %3520 = vmatpush1.msra.mxu0 0.0
        %3521 = vmatprep.subr.mxu0 0.0
        %3522 = vmatpush1.msra.mxu0 0.0
        %3523 = vmatprep.subr.mxu0 0.0
        %3524 = vmatpush1.msra.mxu0 0.0
        %3525 = vmatprep.subr.mxu0 0.0
        %3526 = vmatpush1.msra.mxu0 0.0
        %3527 = vmatprep.subr.mxu0 0.0
        %3528 = vmatpush1.msra.mxu0 0.0
        %3529 = vmatprep.subr.mxu0 0.0
        %3530 = vmatpush1.msra.mxu0 0.0
        %3531 = vmatprep.subr.mxu0 0.0
        %3532 = vmatpush1.msra.mxu0 0.0
        %3533 = vmatprep.subr.mxu0 0.0
        %3534 = vmatpush1.msra.mxu0 0.0
        %3535 = vmatprep.subr.mxu0 0.0
        %3536 = vmatpush1.msra.mxu0 0.0
        %3537 = vmatprep.subr.mxu0 0.0
        %3538 = vmatpush1.msra.mxu0 0.0
        %3539 = vmatprep.subr.mxu0 0.0
        %3540 = vmatpush1.msra.mxu0 0.0
        %3541 = vmatprep.mubr.f32.mxu0 0.0
        %3542 = vmatmul.mubr.f32.gmra.mrb[0].mxu0 %v3454
        %v3543 = vpop.f32.mrb[0].mxu0
        %v3544 = vadd.f32 0.0, %v3543
        %v3545 = vpop.f32.mrb[0].mxu0
        %3546 = vmatprep.mubr.f32.mxu0 0.0
        %3547 = vmatmul.mubr.f32.gmra.mrb[0].mxu0 %v3457
        %v3548 = vpop.f32.mrb[0].mxu0
        %v3549 = vadd.f32 0.0, %v3548
        %v3550 = vpop.f32.mrb[0].mxu0
        %3551 = vmatprep.mubr.f32.mxu0 0.0
        %3552 = vmatmul.mubr.f32.gmra.mrb[0].mxu0 %v3460
        %v3553 = vpop.f32.mrb[0].mxu0
        %v3554 = vadd.f32 0.0, %v3553
        %v3555 = vpop.f32.mrb[0].mxu0
        %3556 = vmatprep.mubr.f32.mxu0 0.0
        %3557 = vmatmul.mubr.f32.gmra.mrb[0].mxu0 %v3463
        %v3558 = vpop.f32.mrb[0].mxu0
        %v3559 = vadd.f32 0.0, %v3558
        %v3560 = vpop.f32.mrb[0].mxu0
        %3561 = vmatprep.mubr.f32.mxu0 0.0
        %3562 = vmatmul.mubr.f32.gmra.mrb[0].mxu0 %v3466
        %v3563 = vpop.f32.mrb[0].mxu0
        %v3564 = vadd.f32 0.0, %v3563
        %v3565 = vpop.f32.mrb[0].mxu0
        %3566 = vmatprep.mubr.f32.mxu0 0.0
        %3567 = vmatmul.mubr.f32.gmra.mrb[0].mxu0 %v3469
        %v3568 = vpop.f32.mrb[0].mxu0
        %v3569 = vadd.f32 0.0, %v3568
        %v3570 = vpop.f32.mrb[0].mxu0
        %3571 = vmatprep.mubr.f32.mxu0 0.0
        %3572 = vmatmul.mubr.f32.gmra.mrb[0].mxu0 %v3472
        %v3573 = vpop.f32.mrb[0].mxu0
        %v3574 = vadd.f32 0.0, %v3573
        %v3575 = vpop.f32.mrb[0].mxu0
        %3576 = vmatprep.mubr.f32.mxu0 0.0
        %3577 = vmatmul.mubr.f32.gmra.mrb[0].mxu0 %v3475
        %v3578 = vpop.f32.mrb[0].mxu0
        %v3579 = vadd.f32 0.0, %v3578
        %v3580 = vpop.f32.mrb[0].mxu0
        %3581 = vdwg.mxu0
        %v3582 = vadd.f32 %v3352, %v3544
        %v3583 = vadd.f32 %v3353, %v3549
        %v3584 = vadd.f32 %v3354, %v3554
        %v3585 = vadd.f32 %v3355, %v3559
        %v3586 = vadd.f32 %v3356, %v3564
        %v3587 = vadd.f32 %v3357, %v3569
        %v3588 = vadd.f32 %v3358, %v3574
        %v3589 = vadd.f32 %v3359, %v3579
        %v3590 = vld [vmem:[%s17] sm:$0x1]
        %v3591 = vld [vmem:[%s19] sm:$0x1]
        %v3592 = vld [vmem:[%s21] sm:$0xff]
        %v3593 = vld [vmem:[%s21 + $0x8] sm:$0xff]
        %v3594 = vld [vmem:[%s23] sm:$0x1]
        %v3595 = vld [vmem:[%s25] sm:$0xff]
        %v3596 = vld [vmem:[%s25 + $0x8] sm:$0xff]
        %v3597 = vld [vmem:[%s25 + $0x10] sm:$0xff]
        %v3598 = vld [vmem:[%s25 + $0x18] sm:$0xff]
        %v3599 = vld [vmem:[%s25 + $0x20] sm:$0xff]
        %v3600 = vld [vmem:[%s25 + $0x28] sm:$0xff]
        %v3601 = vld [vmem:[%s25 + $0x30] sm:$0xff]
        %v3602 = vld [vmem:[%s25 + $0x38] sm:$0xff]
        %v3603 = vld [vmem:[%s27] sm:$0x1]
        %v3604 = vld [vmem:[%s29] sm:$0x1]
        %v3605 = vld [vmem:[%s31] sm:$0x1]
        %v3606 = vsel %vm1401, %v3582, 0.0
        %3607 = vadd.xlane.f32.xlu0 %v3606
        %v3608 = vpop.xlane.xlu0 %3607
        %v3609 = vsel %vm1401, %v3583, 0.0
        %3610 = vadd.xlane.f32.xlu0 %v3609
        %v3611 = vpop.xlane.xlu0 %3610
        %v3612 = vsel %vm1401, %v3584, 0.0
        %3613 = vadd.xlane.f32.xlu0 %v3612
        %v3614 = vpop.xlane.xlu0 %3613
        %v3615 = vsel %vm1401, %v3585, 0.0
        %3616 = vadd.xlane.f32.xlu0 %v3615
        %v3617 = vpop.xlane.xlu0 %3616
        %v3618 = vsel %vm1401, %v3586, 0.0
        %3619 = vadd.xlane.f32.xlu0 %v3618
        %v3620 = vpop.xlane.xlu0 %3619
        %v3621 = vsel %vm1401, %v3587, 0.0
        %3622 = vadd.xlane.f32.xlu0 %v3621
        %v3623 = vpop.xlane.xlu0 %3622
        %v3624 = vsel %vm1401, %v3588, 0.0
        %3625 = vadd.xlane.f32.xlu0 %v3624
        %v3626 = vpop.xlane.xlu0 %3625
        %v3627 = vsel %vm1401, %v3589, 0.0
        %3628 = vadd.xlane.f32.xlu0 %v3627
        %v3629 = vpop.xlane.xlu0 %3628
        %v3630 = vrcp.pop 16.0
        %v3631 = vmul.f32 %v3608, %v3630
        %v3632 = vmul.f32 %v3611, %v3630
        %v3633 = vmul.f32 %v3614, %v3630
        %v3634 = vmul.f32 %v3617, %v3630
        %v3635 = vmul.f32 %v3620, %v3630
        %v3636 = vmul.f32 %v3623, %v3630
        %v3637 = vmul.f32 %v3626, %v3630
        %v3638 = vmul.f32 %v3629, %v3630
        %v3639 = vsub.f32 %v3582, %v3631
        %v3640 = vsub.f32 %v3583, %v3632
        %v3641 = vsub.f32 %v3584, %v3633
        %v3642 = vsub.f32 %v3585, %v3634
        %v3643 = vsub.f32 %v3586, %v3635
        %v3644 = vsub.f32 %v3587, %v3636
        %v3645 = vsub.f32 %v3588, %v3637
        %v3646 = vsub.f32 %v3589, %v3638
        %v3647 = vmul.f32 %v3639, %v3639
        %v3648 = vmul.f32 %v3640, %v3640
        %v3649 = vmul.f32 %v3641, %v3641
        %v3650 = vmul.f32 %v3642, %v3642
        %v3651 = vmul.f32 %v3643, %v3643
        %v3652 = vmul.f32 %v3644, %v3644
        %v3653 = vmul.f32 %v3645, %v3645
        %v3654 = vmul.f32 %v3646, %v3646
        %v3655 = vsel %vm1401, %v3647, 0.0
        %3656 = vadd.xlane.f32.xlu0 %v3655
        %v3657 = vpop.xlane.xlu0 %3656
        %v3658 = vsel %vm1401, %v3648, 0.0
        %3659 = vadd.xlane.f32.xlu0 %v3658
        %v3660 = vpop.xlane.xlu0 %3659
        %v3661 = vsel %vm1401, %v3649, 0.0
        %3662 = vadd.xlane.f32.xlu0 %v3661
        %v3663 = vpop.xlane.xlu0 %3662
        %v3664 = vsel %vm1401, %v3650, 0.0
        %3665 = vadd.xlane.f32.xlu0 %v3664
        %v3666 = vpop.xlane.xlu0 %3665
        %v3667 = vsel %vm1401, %v3651, 0.0
        %3668 = vadd.xlane.f32.xlu0 %v3667
        %v3669 = vpop.xlane.xlu0 %3668
        %v3670 = vsel %vm1401, %v3652, 0.0
        %3671 = vadd.xlane.f32.xlu0 %v3670
        %v3672 = vpop.xlane.xlu0 %3671
        %v3673 = vsel %vm1401, %v3653, 0.0
        %3674 = vadd.xlane.f32.xlu0 %v3673
        %v3675 = vpop.xlane.xlu0 %3674
        %v3676 = vsel %vm1401, %v3654, 0.0
        %3677 = vadd.xlane.f32.xlu0 %v3676
        %v3678 = vpop.xlane.xlu0 %3677
        %v3679 = vmul.f32 %v3657, %v3630
        %v3680 = vmul.f32 %v3660, %v3630
        %v3681 = vmul.f32 %v3663, %v3630
        %v3682 = vmul.f32 %v3666, %v3630
        %v3683 = vmul.f32 %v3669, %v3630
        %v3684 = vmul.f32 %v3672, %v3630
        %v3685 = vmul.f32 %v3675, %v3630
        %v3686 = vmul.f32 %v3678, %v3630
        %v3687 = vadd.f32 %v3679, 1e-05
        %v3688 = vadd.f32 %v3680, 1e-05
        %v3689 = vadd.f32 %v3681, 1e-05
        %v3690 = vadd.f32 %v3682, 1e-05
        %v3691 = vadd.f32 %v3683, 1e-05
        %v3692 = vadd.f32 %v3684, 1e-05
        %v3693 = vadd.f32 %v3685, 1e-05
        %v3694 = vadd.f32 %v3686, 1e-05
        %v3695 = vrsqrt.pop %v3687
        %v3696 = vrsqrt.pop %v3688
        %v3697 = vrsqrt.pop %v3689
        %v3698 = vrsqrt.pop %v3690
        %v3699 = vrsqrt.pop %v3691
        %v3700 = vrsqrt.pop %v3692
        %v3701 = vrsqrt.pop %v3693
        %v3702 = vrsqrt.pop %v3694
        %v3703 = vmul.f32 %v3639, %v3695
        %v3704 = vmul.f32 %v3640, %v3696
        %v3705 = vmul.f32 %v3641, %v3697
        %v3706 = vmul.f32 %v3642, %v3698
        %v3707 = vmul.f32 %v3643, %v3699
        %v3708 = vmul.f32 %v3644, %v3700
        %v3709 = vmul.f32 %v3645, %v3701
        %v3710 = vmul.f32 %v3646, %v3702
        %v3712 = vlaneseq
        %v3713 = vshrl.u32 %v3712, 7
        %v3714 = vsub.s32 0, %v3713
        %v3715 = vrot.slane %v3590, %v3714
        %v3717 = vmul.f32 %v3703, %v3715
        %v3718 = vmul.f32 %v3704, %v3715
        %v3719 = vmul.f32 %v3705, %v3715
        %v3720 = vmul.f32 %v3706, %v3715
        %v3721 = vmul.f32 %v3707, %v3715
        %v3722 = vmul.f32 %v3708, %v3715
        %v3723 = vmul.f32 %v3709, %v3715
        %v3724 = vmul.f32 %v3710, %v3715
        %v3726 = vlaneseq
        %v3727 = vshrl.u32 %v3726, 7
        %v3728 = vsub.s32 0, %v3727
        %v3729 = vrot.slane %v3591, %v3728
        %v3731 = vadd.f32 %v3717, %v3729
        %v3732 = vadd.f32 %v3718, %v3729
        %v3733 = vadd.f32 %v3719, %v3729
        %v3734 = vadd.f32 %v3720, %v3729
        %v3735 = vadd.f32 %v3721, %v3729
        %v3736 = vadd.f32 %v3722, %v3729
        %v3737 = vadd.f32 %v3723, %v3729
        %v3738 = vadd.f32 %v3724, %v3729
        %v3740 = vlaneseq
        %v3741 = vshrl.u32 %v3740, 7
        %v3742 = vsub.s32 0, %v3741
        %v3743 = vrot.slane %v3594, %v3742
        %v3746 = vsel %vm1401, %v3731, 0
        %v3749 = vsel %vm1401, %v3732, 0
        %v3752 = vsel %vm1401, %v3733, 0
        %v3755 = vsel %vm1401, %v3734, 0
        %v3758 = vsel %vm1401, %v3735, 0
        %v3761 = vsel %vm1401, %v3736, 0
        %v3764 = vsel %vm1401, %v3737, 0
        %v3767 = vsel %vm1401, %v3738, 0
        %3769 = vmatprep.subr.mxu0 0.0
        %3770 = vmatpush1.msra.mxu0 %v3592
        %3771 = vmatprep.subr.mxu0 0.0
        %3772 = vmatpush1.msra.mxu0 %v3593
        %3773 = vmatprep.subr.mxu0 0.0
        %3774 = vmatpush1.msra.mxu0 0.0
        %3775 = vmatprep.subr.mxu0 0.0
        %3776 = vmatpush1.msra.mxu0 0.0
        %3777 = vmatprep.subr.mxu0 0.0
        %3778 = vmatpush1.msra.mxu0 0.0
        %3779 = vmatprep.subr.mxu0 0.0
        %3780 = vmatpush1.msra.mxu0 0.0
        %3781 = vmatprep.subr.mxu0 0.0
        %3782 = vmatpush1.msra.mxu0 0.0
        %3783 = vmatprep.subr.mxu0 0.0
        %3784 = vmatpush1.msra.mxu0 0.0
        %3785 = vmatprep.subr.mxu0 0.0
        %3786 = vmatpush1.msra.mxu0 0.0
        %3787 = vmatprep.subr.mxu0 0.0
        %3788 = vmatpush1.msra.mxu0 0.0
        %3789 = vmatprep.subr.mxu0 0.0
        %3790 = vmatpush1.msra.mxu0 0.0
        %3791 = vmatprep.subr.mxu0 0.0
        %3792 = vmatpush1.msra.mxu0 0.0
        %3793 = vmatprep.subr.mxu0 0.0
        %3794 = vmatpush1.msra.mxu0 0.0
        %3795 = vmatprep.subr.mxu0 0.0
        %3796 = vmatpush1.msra.mxu0 0.0
        %3797 = vmatprep.subr.mxu0 0.0
        %3798 = vmatpush1.msra.mxu0 0.0
        %3799 = vmatprep.subr.mxu0 0.0
        %3800 = vmatpush1.msra.mxu0 0.0
        %3801 = vmatprep.subr.mxu0 0.0
        %3802 = vmatpush1.msra.mxu0 0.0
        %3803 = vmatprep.subr.mxu0 0.0
        %3804 = vmatpush1.msra.mxu0 0.0
        %3805 = vmatprep.subr.mxu0 0.0
        %3806 = vmatpush1.msra.mxu0 0.0
        %3807 = vmatprep.subr.mxu0 0.0
        %3808 = vmatpush1.msra.mxu0 0.0
        %3809 = vmatprep.subr.mxu0 0.0
        %3810 = vmatpush1.msra.mxu0 0.0
        %3811 = vmatprep.subr.mxu0 0.0
        %3812 = vmatpush1.msra.mxu0 0.0
        %3813 = vmatprep.subr.mxu0 0.0
        %3814 = vmatpush1.msra.mxu0 0.0
        %3815 = vmatprep.subr.mxu0 0.0
        %3816 = vmatpush1.msra.mxu0 0.0
        %3817 = vmatprep.subr.mxu0 0.0
        %3818 = vmatpush1.msra.mxu0 0.0
        %3819 = vmatprep.subr.mxu0 0.0
        %3820 = vmatpush1.msra.mxu0 0.0
        %3821 = vmatprep.subr.mxu0 0.0
        %3822 = vmatpush1.msra.mxu0 0.0
        %3823 = vmatprep.subr.mxu0 0.0
        %3824 = vmatpush1.msra.mxu0 0.0
        %3825 = vmatprep.subr.mxu0 0.0
        %3826 = vmatpush1.msra.mxu0 0.0
        %3827 = vmatprep.subr.mxu0 0.0
        %3828 = vmatpush1.msra.mxu0 0.0
        %3829 = vmatprep.subr.mxu0 0.0
        %3830 = vmatpush1.msra.mxu0 0.0
        %3831 = vmatprep.subr.mxu0 0.0
        %3832 = vmatpush1.msra.mxu0 0.0
        %3833 = vmatprep.mubr.f32.mxu0 0.0
        %3834 = vmatmul.mubr.f32.gmra.mrb[0].mxu0 %v3746
        %v3835 = vpop.f32.mrb[0].mxu0
        %v3836 = vadd.f32 %v3743, %v3835
        %v3837 = vpop.f32.mrb[0].mxu0
        %3838 = vmatprep.mubr.f32.mxu0 0.0
        %3839 = vmatmul.mubr.f32.gmra.mrb[0].mxu0 %v3749
        %v3840 = vpop.f32.mrb[0].mxu0
        %v3841 = vadd.f32 %v3743, %v3840
        %v3842 = vpop.f32.mrb[0].mxu0
        %3843 = vmatprep.mubr.f32.mxu0 0.0
        %3844 = vmatmul.mubr.f32.gmra.mrb[0].mxu0 %v3752
        %v3845 = vpop.f32.mrb[0].mxu0
        %v3846 = vadd.f32 %v3743, %v3845
        %v3847 = vpop.f32.mrb[0].mxu0
        %3848 = vmatprep.mubr.f32.mxu0 0.0
        %3849 = vmatmul.mubr.f32.gmra.mrb[0].mxu0 %v3755
        %v3850 = vpop.f32.mrb[0].mxu0
        %v3851 = vadd.f32 %v3743, %v3850
        %v3852 = vpop.f32.mrb[0].mxu0
        %3853 = vmatprep.mubr.f32.mxu0 0.0
        %3854 = vmatmul.mubr.f32.gmra.mrb[0].mxu0 %v3758
        %v3855 = vpop.f32.mrb[0].mxu0
        %v3856 = vadd.f32 %v3743, %v3855
        %v3857 = vpop.f32.mrb[0].mxu0
        %3858 = vmatprep.mubr.f32.mxu0 0.0
        %3859 = vmatmul.mubr.f32.gmra.mrb[0].mxu0 %v3761
        %v3860 = vpop.f32.mrb[0].mxu0
        %v3861 = vadd.f32 %v3743, %v3860
        %v3862 = vpop.f32.mrb[0].mxu0
        %3863 = vmatprep.mubr.f32.mxu0 0.0
        %3864 = vmatmul.mubr.f32.gmra.mrb[0].mxu0 %v3764
        %v3865 = vpop.f32.mrb[0].mxu0
        %v3866 = vadd.f32 %v3743, %v3865
        %v3867 = vpop.f32.mrb[0].mxu0
        %3868 = vmatprep.mubr.f32.mxu0 0.0
        %3869 = vmatmul.mubr.f32.gmra.mrb[0].mxu0 %v3767
        %v3870 = vpop.f32.mrb[0].mxu0
        %v3871 = vadd.f32 %v3743, %v3870
        %v3872 = vpop.f32.mrb[0].mxu0
        %3873 = vdwg.mxu0
        %v3874 = vmul.f32 %v3836, 0.5
        %v3875 = vmul.f32 %v3841, 0.5
        %v3876 = vmul.f32 %v3846, 0.5
        %v3877 = vmul.f32 %v3851, 0.5
        %v3878 = vmul.f32 %v3856, 0.5
        %v3879 = vmul.f32 %v3861, 0.5
        %v3880 = vmul.f32 %v3866, 0.5
        %v3881 = vmul.f32 %v3871, 0.5
        %v3882 = vmul.f32 %v3836, 0.70710677
        %v3883 = vmul.f32 %v3841, 0.70710677
        %v3884 = vmul.f32 %v3846, 0.70710677
        %v3885 = vmul.f32 %v3851, 0.70710677
        %v3886 = vmul.f32 %v3856, 0.70710677
        %v3887 = vmul.f32 %v3861, 0.70710677
        %v3888 = vmul.f32 %v3866, 0.70710677
        %v3889 = vmul.f32 %v3871, 0.70710677
        %v3890 = vand.u32 2147483647, %v3882
        %v3891 = vand.u32 2147483647, %v3883
        %v3892 = vand.u32 2147483647, %v3884
        %v3893 = vand.u32 2147483647, %v3885
        %v3894 = vand.u32 2147483647, %v3886
        %v3895 = vand.u32 2147483647, %v3887
        %v3896 = vand.u32 2147483647, %v3888
        %v3897 = vand.u32 2147483647, %v3889
        %v3898 = vmul.f32 %v3890, 0.3275911
        %v3899 = vmul.f32 %v3891, 0.3275911
        %v3900 = vmul.f32 %v3892, 0.3275911
        %v3901 = vmul.f32 %v3893, 0.3275911
        %v3902 = vmul.f32 %v3894, 0.3275911
        %v3903 = vmul.f32 %v3895, 0.3275911
        %v3904 = vmul.f32 %v3896, 0.3275911
        %v3905 = vmul.f32 %v3897, 0.3275911
        %v3906 = vadd.f32 %v3898, 1.0
        %v3907 = vadd.f32 %v3899, 1.0
        %v3908 = vadd.f32 %v3900, 1.0
        %v3909 = vadd.f32 %v3901, 1.0
        %v3910 = vadd.f32 %v3902, 1.0
        %v3911 = vadd.f32 %v3903, 1.0
        %v3912 = vadd.f32 %v3904, 1.0
        %v3913 = vadd.f32 %v3905, 1.0
        %v3914 = vrcp.pop %v3906
        %v3915 = vmul.f32 1.0, %v3914
        %v3916 = vrcp.pop %v3907
        %v3917 = vmul.f32 1.0, %v3916
        %v3918 = vrcp.pop %v3908
        %v3919 = vmul.f32 1.0, %v3918
        %v3920 = vrcp.pop %v3909
        %v3921 = vmul.f32 1.0, %v3920
        %v3922 = vrcp.pop %v3910
        %v3923 = vmul.f32 1.0, %v3922
        %v3924 = vrcp.pop %v3911
        %v3925 = vmul.f32 1.0, %v3924
        %v3926 = vrcp.pop %v3912
        %v3927 = vmul.f32 1.0, %v3926
        %v3928 = vrcp.pop %v3913
        %v3929 = vmul.f32 1.0, %v3928
        %v3930 = vmul.f32 %v3915, 1.0614054
        %v3931 = vmul.f32 %v3917, 1.0614054
        %v3932 = vmul.f32 %v3919, 1.0614054
        %v3933 = vmul.f32 %v3921, 1.0614054
        %v3934 = vmul.f32 %v3923, 1.0614054
        %v3935 = vmul.f32 %v3925, 1.0614054
        %v3936 = vmul.f32 %v3927, 1.0614054
        %v3937 = vmul.f32 %v3929, 1.0614054
        %v3938 = vadd.f32 %v3930, -1.4531521
        %v3939 = vadd.f32 %v3931, -1.4531521
        %v3940 = vadd.f32 %v3932, -1.4531521
        %v3941 = vadd.f32 %v3933, -1.4531521
        %v3942 = vadd.f32 %v3934, -1.4531521
        %v3943 = vadd.f32 %v3935, -1.4531521
        %v3944 = vadd.f32 %v3936, -1.4531521
        %v3945 = vadd.f32 %v3937, -1.4531521
        %v3946 = vmul.f32 %v3915, %v3938
        %v3947 = vmul.f32 %v3917, %v3939
        %v3948 = vmul.f32 %v3919, %v3940
        %v3949 = vmul.f32 %v3921, %v3941
        %v3950 = vmul.f32 %v3923, %v3942
        %v3951 = vmul.f32 %v3925, %v3943
        %v3952 = vmul.f32 %v3927, %v3944
        %v3953 = vmul.f32 %v3929, %v3945
        %v3954 = vadd.f32 %v3946, 1.4214138
        %v3955 = vadd.f32 %v3947, 1.4214138
        %v3956 = vadd.f32 %v3948, 1.4214138
        %v3957 = vadd.f32 %v3949, 1.4214138
        %v3958 = vadd.f32 %v3950, 1.4214138
        %v3959 = vadd.f32 %v3951, 1.4214138
        %v3960 = vadd.f32 %v3952, 1.4214138
        %v3961 = vadd.f32 %v3953, 1.4214138
        %v3962 = vmul.f32 %v3915, %v3954
        %v3963 = vmul.f32 %v3917, %v3955
        %v3964 = vmul.f32 %v3919, %v3956
        %v3965 = vmul.f32 %v3921, %v3957
        %v3966 = vmul.f32 %v3923, %v3958
        %v3967 = vmul.f32 %v3925, %v3959
        %v3968 = vmul.f32 %v3927, %v3960
        %v3969 = vmul.f32 %v3929, %v3961
        %v3970 = vadd.f32 %v3962, -0.28449672
        %v3971 = vadd.f32 %v3963, -0.28449672
        %v3972 = vadd.f32 %v3964, -0.28449672
        %v3973 = vadd.f32 %v3965, -0.28449672
        %v3974 = vadd.f32 %v3966, -0.28449672
        %v3975 = vadd.f32 %v3967, -0.28449672
        %v3976 = vadd.f32 %v3968, -0.28449672
        %v3977 = vadd.f32 %v3969, -0.28449672
        %v3978 = vmul.f32 %v3915, %v3970
        %v3979 = vmul.f32 %v3917, %v3971
        %v3980 = vmul.f32 %v3919, %v3972
        %v3981 = vmul.f32 %v3921, %v3973
        %v3982 = vmul.f32 %v3923, %v3974
        %v3983 = vmul.f32 %v3925, %v3975
        %v3984 = vmul.f32 %v3927, %v3976
        %v3985 = vmul.f32 %v3929, %v3977
        %v3986 = vadd.f32 %v3978, 0.2548296
        %v3987 = vadd.f32 %v3979, 0.2548296
        %v3988 = vadd.f32 %v3980, 0.2548296
        %v3989 = vadd.f32 %v3981, 0.2548296
        %v3990 = vadd.f32 %v3982, 0.2548296
        %v3991 = vadd.f32 %v3983, 0.2548296
        %v3992 = vadd.f32 %v3984, 0.2548296
        %v3993 = vadd.f32 %v3985, 0.2548296
        %v3994 = vmul.f32 %v3915, %v3986
        %v3995 = vmul.f32 %v3917, %v3987
        %v3996 = vmul.f32 %v3919, %v3988
        %v3997 = vmul.f32 %v3921, %v3989
        %v3998 = vmul.f32 %v3923, %v3990
        %v3999 = vmul.f32 %v3925, %v3991
        %v4000 = vmul.f32 %v3927, %v3992
        %v4001 = vmul.f32 %v3929, %v3993
        %v4002 = vsub.f32 0.0, %v3890
        %v4003 = vsub.f32 0.0, %v3891
        %v4004 = vsub.f32 0.0, %v3892
        %v4005 = vsub.f32 0.0, %v3893
        %v4006 = vsub.f32 0.0, %v3894
        %v4007 = vsub.f32 0.0, %v3895
        %v4008 = vsub.f32 0.0, %v3896
        %v4009 = vsub.f32 0.0, %v3897
        %v4010 = vmul.f32 %v4002, %v3890
        %v4011 = vmul.f32 %v4003, %v3891
        %v4012 = vmul.f32 %v4004, %v3892
        %v4013 = vmul.f32 %v4005, %v3893
        %v4014 = vmul.f32 %v4006, %v3894
        %v4015 = vmul.f32 %v4007, %v3895
        %v4016 = vmul.f32 %v4008, %v3896
        %v4017 = vmul.f32 %v4009, %v3897
        %v4018 = vmul.f32 %v4010, 1.442695
        %v4019 = vpow.pop %v4018
        %v4020 = vmul.f32 %v4011, 1.442695
        %v4021 = vpow.pop %v4020
        %v4022 = vmul.f32 %v4012, 1.442695
        %v4023 = vpow.pop %v4022
        %v4024 = vmul.f32 %v4013, 1.442695
        %v4025 = vpow.pop %v4024
        %v4026 = vmul.f32 %v4014, 1.442695
        %v4027 = vpow.pop %v4026
        %v4028 = vmul.f32 %v4015, 1.442695
        %v4029 = vpow.pop %v4028
        %v4030 = vmul.f32 %v4016, 1.442695
        %v4031 = vpow.pop %v4030
        %v4032 = vmul.f32 %v4017, 1.442695
        %v4033 = vpow.pop %v4032
        %v4034 = vmul.f32 %v3994, %v4019
        %v4035 = vmul.f32 %v3995, %v4021
        %v4036 = vmul.f32 %v3996, %v4023
        %v4037 = vmul.f32 %v3997, %v4025
        %v4038 = vmul.f32 %v3998, %v4027
        %v4039 = vmul.f32 %v3999, %v4029
        %v4040 = vmul.f32 %v4000, %v4031
        %v4041 = vmul.f32 %v4001, %v4033
        %v4042 = vsub.f32 1.0, %v4034
        %v4043 = vsub.f32 1.0, %v4035
        %v4044 = vsub.f32 1.0, %v4036
        %v4045 = vsub.f32 1.0, %v4037
        %v4046 = vsub.f32 1.0, %v4038
        %v4047 = vsub.f32 1.0, %v4039
        %v4048 = vsub.f32 1.0, %v4040
        %v4049 = vsub.f32 1.0, %v4041
        %vm4050 = vcmp.ge.f32.partialorder %v3882, 0.0
        %vm4051 = vcmp.ge.f32.partialorder %v3883, 0.0
        %vm4052 = vcmp.ge.f32.partialorder %v3884, 0.0
        %vm4053 = vcmp.ge.f32.partialorder %v3885, 0.0
        %vm4054 = vcmp.ge.f32.partialorder %v3886, 0.0
        %vm4055 = vcmp.ge.f32.partialorder %v3887, 0.0
        %vm4056 = vcmp.ge.f32.partialorder %v3888, 0.0
        %vm4057 = vcmp.ge.f32.partialorder %v3889, 0.0
        %v4058 = vsub.f32 0.0, %v4042
        %v4059 = vsub.f32 0.0, %v4043
        %v4060 = vsub.f32 0.0, %v4044
        %v4061 = vsub.f32 0.0, %v4045
        %v4062 = vsub.f32 0.0, %v4046
        %v4063 = vsub.f32 0.0, %v4047
        %v4064 = vsub.f32 0.0, %v4048
        %v4065 = vsub.f32 0.0, %v4049
        %v4066 = vsel %vm4050, %v4042, %v4058
        %v4067 = vsel %vm4051, %v4043, %v4059
        %v4068 = vsel %vm4052, %v4044, %v4060
        %v4069 = vsel %vm4053, %v4045, %v4061
        %v4070 = vsel %vm4054, %v4046, %v4062
        %v4071 = vsel %vm4055, %v4047, %v4063
        %v4072 = vsel %vm4056, %v4048, %v4064
        %v4073 = vsel %vm4057, %v4049, %v4065
        %v4074 = vadd.f32 %v4066, 1.0
        %v4075 = vadd.f32 %v4067, 1.0
        %v4076 = vadd.f32 %v4068, 1.0
        %v4077 = vadd.f32 %v4069, 1.0
        %v4078 = vadd.f32 %v4070, 1.0
        %v4079 = vadd.f32 %v4071, 1.0
        %v4080 = vadd.f32 %v4072, 1.0
        %v4081 = vadd.f32 %v4073, 1.0
        %v4082 = vmul.f32 %v3874, %v4074
        %v4083 = vmul.f32 %v3875, %v4075
        %v4084 = vmul.f32 %v3876, %v4076
        %v4085 = vmul.f32 %v3877, %v4077
        %v4086 = vmul.f32 %v3878, %v4078
        %v4087 = vmul.f32 %v3879, %v4079
        %v4088 = vmul.f32 %v3880, %v4080
        %v4089 = vmul.f32 %v3881, %v4081
        %v4091 = vlaneseq
        %v4092 = vshrl.u32 %v4091, 7
        %v4093 = vsub.s32 0, %v4092
        %v4094 = vrot.slane %v3603, %v4093
        %v4097 = vsel %vm1717, %v4082, 0
        %v4100 = vsel %vm1717, %v4083, 0
        %v4103 = vsel %vm1717, %v4084, 0
        %v4106 = vsel %vm1717, %v4085, 0
        %v4109 = vsel %vm1717, %v4086, 0
        %v4112 = vsel %vm1717, %v4087, 0
        %v4115 = vsel %vm1717, %v4088, 0
        %v4118 = vsel %vm1717, %v4089, 0
        %4120 = vmatprep.subr.mxu0 0.0
        %4121 = vmatpush1.msra.mxu0 %v3595
        %4122 = vmatprep.subr.mxu0 0.0
        %4123 = vmatpush1.msra.mxu0 %v3596
        %4124 = vmatprep.subr.mxu0 0.0
        %4125 = vmatpush1.msra.mxu0 %v3597
        %4126 = vmatprep.subr.mxu0 0.0
        %4127 = vmatpush1.msra.mxu0 %v3598
        %4128 = vmatprep.subr.mxu0 0.0
        %4129 = vmatpush1.msra.mxu0 %v3599
        %4130 = vmatprep.subr.mxu0 0.0
        %4131 = vmatpush1.msra.mxu0 %v3600
        %4132 = vmatprep.subr.mxu0 0.0
        %4133 = vmatpush1.msra.mxu0 %v3601
        %4134 = vmatprep.subr.mxu0 0.0
        %4135 = vmatpush1.msra.mxu0 %v3602
        %4136 = vmatprep.subr.mxu0 0.0
        %4137 = vmatpush1.msra.mxu0 0.0
        %4138 = vmatprep.subr.mxu0 0.0
        %4139 = vmatpush1.msra.mxu0 0.0
        %4140 = vmatprep.subr.mxu0 0.0
        %4141 = vmatpush1.msra.mxu0 0.0
        %4142 = vmatprep.subr.mxu0 0.0
        %4143 = vmatpush1.msra.mxu0 0.0
        %4144 = vmatprep.subr.mxu0 0.0
        %4145 = vmatpush1.msra.mxu0 0.0
        %4146 = vmatprep.subr.mxu0 0.0
        %4147 = vmatpush1.msra.mxu0 0.0
        %4148 = vmatprep.subr.mxu0 0.0
        %4149 = vmatpush1.msra.mxu0 0.0
        %4150 = vmatprep.subr.mxu0 0.0
        %4151 = vmatpush1.msra.mxu0 0.0
        %4152 = vmatprep.subr.mxu0 0.0
        %4153 = vmatpush1.msra.mxu0 0.0
        %4154 = vmatprep.subr.mxu0 0.0
        %4155 = vmatpush1.msra.mxu0 0.0
        %4156 = vmatprep.subr.mxu0 0.0
        %4157 = vmatpush1.msra.mxu0 0.0
        %4158 = vmatprep.subr.mxu0 0.0
        %4159 = vmatpush1.msra.mxu0 0.0
        %4160 = vmatprep.subr.mxu0 0.0
        %4161 = vmatpush1.msra.mxu0 0.0
        %4162 = vmatprep.subr.mxu0 0.0
        %4163 = vmatpush1.msra.mxu0 0.0
        %4164 = vmatprep.subr.mxu0 0.0
        %4165 = vmatpush1.msra.mxu0 0.0
        %4166 = vmatprep.subr.mxu0 0.0
        %4167 = vmatpush1.msra.mxu0 0.0
        %4168 = vmatprep.subr.mxu0 0.0
        %4169 = vmatpush1.msra.mxu0 0.0
        %4170 = vmatprep.subr.mxu0 0.0
        %4171 = vmatpush1.msra.mxu0 0.0
        %4172 = vmatprep.subr.mxu0 0.0
        %4173 = vmatpush1.msra.mxu0 0.0
        %4174 = vmatprep.subr.mxu0 0.0
        %4175 = vmatpush1.msra.mxu0 0.0
        %4176 = vmatprep.subr.mxu0 0.0
        %4177 = vmatpush1.msra.mxu0 0.0
        %4178 = vmatprep.subr.mxu0 0.0
        %4179 = vmatpush1.msra.mxu0 0.0
        %4180 = vmatprep.subr.mxu0 0.0
        %4181 = vmatpush1.msra.mxu0 0.0
        %4182 = vmatprep.subr.mxu0 0.0
        %4183 = vmatpush1.msra.mxu0 0.0
        %4184 = vmatprep.mubr.f32.mxu0 0.0
        %4185 = vmatmul.mubr.f32.gmra.mrb[0].mxu0 %v4097
        %v4186 = vpop.f32.mrb[0].mxu0
        %v4187 = vadd.f32 %v4094, %v4186
        %v4188 = vpop.f32.mrb[0].mxu0
        %4189 = vmatprep.mubr.f32.mxu0 0.0
        %4190 = vmatmul.mubr.f32.gmra.mrb[0].mxu0 %v4100
        %v4191 = vpop.f32.mrb[0].mxu0
        %v4192 = vadd.f32 %v4094, %v4191
        %v4193 = vpop.f32.mrb[0].mxu0
        %4194 = vmatprep.mubr.f32.mxu0 0.0
        %4195 = vmatmul.mubr.f32.gmra.mrb[0].mxu0 %v4103
        %v4196 = vpop.f32.mrb[0].mxu0
        %v4197 = vadd.f32 %v4094, %v4196
        %v4198 = vpop.f32.mrb[0].mxu0
        %4199 = vmatprep.mubr.f32.mxu0 0.0
        %4200 = vmatmul.mubr.f32.gmra.mrb[0].mxu0 %v4106
        %v4201 = vpop.f32.mrb[0].mxu0
        %v4202 = vadd.f32 %v4094, %v4201
        %v4203 = vpop.f32.mrb[0].mxu0
        %4204 = vmatprep.mubr.f32.mxu0 0.0
        %4205 = vmatmul.mubr.f32.gmra.mrb[0].mxu0 %v4109
        %v4206 = vpop.f32.mrb[0].mxu0
        %v4207 = vadd.f32 %v4094, %v4206
        %v4208 = vpop.f32.mrb[0].mxu0
        %4209 = vmatprep.mubr.f32.mxu0 0.0
        %4210 = vmatmul.mubr.f32.gmra.mrb[0].mxu0 %v4112
        %v4211 = vpop.f32.mrb[0].mxu0
        %v4212 = vadd.f32 %v4094, %v4211
        %v4213 = vpop.f32.mrb[0].mxu0
        %4214 = vmatprep.mubr.f32.mxu0 0.0
        %4215 = vmatmul.mubr.f32.gmra.mrb[0].mxu0 %v4115
        %v4216 = vpop.f32.mrb[0].mxu0
        %v4217 = vadd.f32 %v4094, %v4216
        %v4218 = vpop.f32.mrb[0].mxu0
        %4219 = vmatprep.mubr.f32.mxu0 0.0
        %4220 = vmatmul.mubr.f32.gmra.mrb[0].mxu0 %v4118
        %v4221 = vpop.f32.mrb[0].mxu0
        %v4222 = vadd.f32 %v4094, %v4221
        %v4223 = vpop.f32.mrb[0].mxu0
        %4224 = vdwg.mxu0
        %v4225 = vsel %vm1401, %v4187, 0.0
        %4226 = vadd.xlane.f32.xlu0 %v4225
        %v4227 = vpop.xlane.xlu0 %4226
        %v4228 = vsel %vm1401, %v4192, 0.0
        %4229 = vadd.xlane.f32.xlu0 %v4228
        %v4230 = vpop.xlane.xlu0 %4229
        %v4231 = vsel %vm1401, %v4197, 0.0
        %4232 = vadd.xlane.f32.xlu0 %v4231
        %v4233 = vpop.xlane.xlu0 %4232
        %v4234 = vsel %vm1401, %v4202, 0.0
        %4235 = vadd.xlane.f32.xlu0 %v4234
        %v4236 = vpop.xlane.xlu0 %4235
        %v4237 = vsel %vm1401, %v4207, 0.0
        %4238 = vadd.xlane.f32.xlu0 %v4237
        %v4239 = vpop.xlane.xlu0 %4238
        %v4240 = vsel %vm1401, %v4212, 0.0
        %4241 = vadd.xlane.f32.xlu0 %v4240
        %v4242 = vpop.xlane.xlu0 %4241
        %v4243 = vsel %vm1401, %v4217, 0.0
        %4244 = vadd.xlane.f32.xlu0 %v4243
        %v4245 = vpop.xlane.xlu0 %4244
        %v4246 = vsel %vm1401, %v4222, 0.0
        %4247 = vadd.xlane.f32.xlu0 %v4246
        %v4248 = vpop.xlane.xlu0 %4247
        %v4249 = vmul.f32 %v4227, %v3630
        %v4250 = vmul.f32 %v4230, %v3630
        %v4251 = vmul.f32 %v4233, %v3630
        %v4252 = vmul.f32 %v4236, %v3630
        %v4253 = vmul.f32 %v4239, %v3630
        %v4254 = vmul.f32 %v4242, %v3630
        %v4255 = vmul.f32 %v4245, %v3630
        %v4256 = vmul.f32 %v4248, %v3630
        %v4257 = vsub.f32 %v4187, %v4249
        %v4258 = vsub.f32 %v4192, %v4250
        %v4259 = vsub.f32 %v4197, %v4251
        %v4260 = vsub.f32 %v4202, %v4252
        %v4261 = vsub.f32 %v4207, %v4253
        %v4262 = vsub.f32 %v4212, %v4254
        %v4263 = vsub.f32 %v4217, %v4255
        %v4264 = vsub.f32 %v4222, %v4256
        %v4265 = vmul.f32 %v4257, %v4257
        %v4266 = vmul.f32 %v4258, %v4258
        %v4267 = vmul.f32 %v4259, %v4259
        %v4268 = vmul.f32 %v4260, %v4260
        %v4269 = vmul.f32 %v4261, %v4261
        %v4270 = vmul.f32 %v4262, %v4262
        %v4271 = vmul.f32 %v4263, %v4263
        %v4272 = vmul.f32 %v4264, %v4264
        %v4273 = vsel %vm1401, %v4265, 0.0
        %4274 = vadd.xlane.f32.xlu0 %v4273
        %v4275 = vpop.xlane.xlu0 %4274
        %v4276 = vsel %vm1401, %v4266, 0.0
        %4277 = vadd.xlane.f32.xlu0 %v4276
        %v4278 = vpop.xlane.xlu0 %4277
        %v4279 = vsel %vm1401, %v4267, 0.0
        %4280 = vadd.xlane.f32.xlu0 %v4279
        %v4281 = vpop.xlane.xlu0 %4280
        %v4282 = vsel %vm1401, %v4268, 0.0
        %4283 = vadd.xlane.f32.xlu0 %v4282
        %v4284 = vpop.xlane.xlu0 %4283
        %v4285 = vsel %vm1401, %v4269, 0.0
        %4286 = vadd.xlane.f32.xlu0 %v4285
        %v4287 = vpop.xlane.xlu0 %4286
        %v4288 = vsel %vm1401, %v4270, 0.0
        %4289 = vadd.xlane.f32.xlu0 %v4288
        %v4290 = vpop.xlane.xlu0 %4289
        %v4291 = vsel %vm1401, %v4271, 0.0
        %4292 = vadd.xlane.f32.xlu0 %v4291
        %v4293 = vpop.xlane.xlu0 %4292
        %v4294 = vsel %vm1401, %v4272, 0.0
        %4295 = vadd.xlane.f32.xlu0 %v4294
        %v4296 = vpop.xlane.xlu0 %4295
        %v4297 = vmul.f32 %v4275, %v3630
        %v4298 = vmul.f32 %v4278, %v3630
        %v4299 = vmul.f32 %v4281, %v3630
        %v4300 = vmul.f32 %v4284, %v3630
        %v4301 = vmul.f32 %v4287, %v3630
        %v4302 = vmul.f32 %v4290, %v3630
        %v4303 = vmul.f32 %v4293, %v3630
        %v4304 = vmul.f32 %v4296, %v3630
        %v4305 = vadd.f32 %v4297, 1e-05
        %v4306 = vadd.f32 %v4298, 1e-05
        %v4307 = vadd.f32 %v4299, 1e-05
        %v4308 = vadd.f32 %v4300, 1e-05
        %v4309 = vadd.f32 %v4301, 1e-05
        %v4310 = vadd.f32 %v4302, 1e-05
        %v4311 = vadd.f32 %v4303, 1e-05
        %v4312 = vadd.f32 %v4304, 1e-05
        %v4313 = vrsqrt.pop %v4305
        %v4314 = vrsqrt.pop %v4306
        %v4315 = vrsqrt.pop %v4307
        %v4316 = vrsqrt.pop %v4308
        %v4317 = vrsqrt.pop %v4309
        %v4318 = vrsqrt.pop %v4310
        %v4319 = vrsqrt.pop %v4311
        %v4320 = vrsqrt.pop %v4312
        %v4321 = vmul.f32 %v4257, %v4313
        %v4322 = vmul.f32 %v4258, %v4314
        %v4323 = vmul.f32 %v4259, %v4315
        %v4324 = vmul.f32 %v4260, %v4316
        %v4325 = vmul.f32 %v4261, %v4317
        %v4326 = vmul.f32 %v4262, %v4318
        %v4327 = vmul.f32 %v4263, %v4319
        %v4328 = vmul.f32 %v4264, %v4320
        %v4330 = vlaneseq
        %v4331 = vshrl.u32 %v4330, 7
        %v4332 = vsub.s32 0, %v4331
        %v4333 = vrot.slane %v3604, %v4332
        %v4335 = vmul.f32 %v4321, %v4333
        %v4336 = vmul.f32 %v4322, %v4333
        %v4337 = vmul.f32 %v4323, %v4333
        %v4338 = vmul.f32 %v4324, %v4333
        %v4339 = vmul.f32 %v4325, %v4333
        %v4340 = vmul.f32 %v4326, %v4333
        %v4341 = vmul.f32 %v4327, %v4333
        %v4342 = vmul.f32 %v4328, %v4333
        %v4344 = vlaneseq
        %v4345 = vshrl.u32 %v4344, 7
        %v4346 = vsub.s32 0, %v4345
        %v4347 = vrot.slane %v3605, %v4346
        %v4349 = vadd.f32 %v4335, %v4347
        %v4350 = vadd.f32 %v4336, %v4347
        %v4351 = vadd.f32 %v4337, %v4347
        %v4352 = vadd.f32 %v4338, %v4347
        %v4353 = vadd.f32 %v4339, %v4347
        %v4354 = vadd.f32 %v4340, %v4347
        %v4355 = vadd.f32 %v4341, %v4347
        %v4356 = vadd.f32 %v4342, %v4347
        %4357 = vxpose.xlu0.b32.start [1/16] %v4349, 128
        %4358 = vxpose.xlu0.b32.cont [2/16] %v4350, 128
        %4359 = vxpose.xlu0.b32.cont [3/16] %v4351, 128
        %4360 = vxpose.xlu0.b32.cont [4/16] %v4352, 128
        %4361 = vxpose.xlu0.b32.cont [5/16] %v4353, 128
        %4362 = vxpose.xlu0.b32.cont [6/16] %v4354, 128
        %4363 = vxpose.xlu0.b32.cont [7/16] %v4355, 128
        %4364 = vxpose.xlu0.b32.cont [8/16] %v4356, 128
        %4365 = vxpose.xlu0.b32.cont [9/16] 0.0, 128
        %4366 = vxpose.xlu0.b32.cont [10/16] 0.0, 128
        %4367 = vxpose.xlu0.b32.cont [11/16] 0.0, 128
        %4368 = vxpose.xlu0.b32.cont [12/16] 0.0, 128
        %4369 = vxpose.xlu0.b32.cont [13/16] 0.0, 128
        %4370 = vxpose.xlu0.b32.cont [14/16] 0.0, 128
        %4371 = vxpose.xlu0.b32.cont [15/16] 0.0, 128
        %4372 = vxpose.xlu0.b32.end [16/16] 0.0, 128
        %v4373 = vpop.trf.xlu0
        %v4374 = vpop.trf.xlu0
        %v4375 = vpop.trf.xlu0
        %v4376 = vpop.trf.xlu0
        %v4377 = vpop.trf.xlu0
        %v4378 = vpop.trf.xlu0
        %v4379 = vpop.trf.xlu0
        %v4380 = vpop.trf.xlu0
        %v4381 = vpop.trf.xlu0
        %v4382 = vpop.trf.xlu0
        %v4383 = vpop.trf.xlu0
        %v4384 = vpop.trf.xlu0
        %v4385 = vpop.trf.xlu0
        %v4386 = vpop.trf.xlu0
        %v4387 = vpop.trf.xlu0
        %v4388 = vpop.trf.xlu0
        %v4390 = vsel %vm1717, %v4373, 0
        %v4393 = vsel %vm1717, %v4374, 0
        %4395 = vmatprep.subr.mxu0 0.0
        %4396 = vmatpush1.msra.mxu0 %v2682
        %4397 = vmatprep.subr.mxu0 0.0
        %4398 = vmatpush1.msra.mxu0 %v2683
        %4399 = vmatprep.subr.mxu0 0.0
        %4400 = vmatpush1.msra.mxu0 %v2684
        %4401 = vmatprep.subr.mxu0 0.0
        %4402 = vmatpush1.msra.mxu0 %v2685
        %4403 = vmatprep.subr.mxu0 0.0
        %4404 = vmatpush1.msra.mxu0 %v2686
        %4405 = vmatprep.subr.mxu0 0.0
        %4406 = vmatpush1.msra.mxu0 %v2687
        %4407 = vmatprep.subr.mxu0 0.0
        %4408 = vmatpush1.msra.mxu0 %v2688
        %4409 = vmatprep.subr.mxu0 0.0
        %4410 = vmatpush1.msra.mxu0 %v2689
        %4411 = vmatprep.subr.mxu0 0.0
        %4412 = vmatpush1.msra.mxu0 0.0
        %4413 = vmatprep.subr.mxu0 0.0
        %4414 = vmatpush1.msra.mxu0 0.0
        %4415 = vmatprep.subr.mxu0 0.0
        %4416 = vmatpush1.msra.mxu0 0.0
        %4417 = vmatprep.subr.mxu0 0.0
        %4418 = vmatpush1.msra.mxu0 0.0
        %4419 = vmatprep.subr.mxu0 0.0
        %4420 = vmatpush1.msra.mxu0 0.0
        %4421 = vmatprep.subr.mxu0 0.0
        %4422 = vmatpush1.msra.mxu0 0.0
        %4423 = vmatprep.subr.mxu0 0.0
        %4424 = vmatpush1.msra.mxu0 0.0
        %4425 = vmatprep.subr.mxu0 0.0
        %4426 = vmatpush1.msra.mxu0 0.0
        %4427 = vmatprep.subr.mxu0 0.0
        %4428 = vmatpush1.msra.mxu0 0.0
        %4429 = vmatprep.subr.mxu0 0.0
        %4430 = vmatpush1.msra.mxu0 0.0
        %4431 = vmatprep.subr.mxu0 0.0
        %4432 = vmatpush1.msra.mxu0 0.0
        %4433 = vmatprep.subr.mxu0 0.0
        %4434 = vmatpush1.msra.mxu0 0.0
        %4435 = vmatprep.subr.mxu0 0.0
        %4436 = vmatpush1.msra.mxu0 0.0
        %4437 = vmatprep.subr.mxu0 0.0
        %4438 = vmatpush1.msra.mxu0 0.0
        %4439 = vmatprep.subr.mxu0 0.0
        %4440 = vmatpush1.msra.mxu0 0.0
        %4441 = vmatprep.subr.mxu0 0.0
        %4442 = vmatpush1.msra.mxu0 0.0
        %4443 = vmatprep.subr.mxu0 0.0
        %4444 = vmatpush1.msra.mxu0 0.0
        %4445 = vmatprep.subr.mxu0 0.0
        %4446 = vmatpush1.msra.mxu0 0.0
        %4447 = vmatprep.subr.mxu0 0.0
        %4448 = vmatpush1.msra.mxu0 0.0
        %4449 = vmatprep.subr.mxu0 0.0
        %4450 = vmatpush1.msra.mxu0 0.0
        %4451 = vmatprep.subr.mxu0 0.0
        %4452 = vmatpush1.msra.mxu0 0.0
        %4453 = vmatprep.subr.mxu0 0.0
        %4454 = vmatpush1.msra.mxu0 0.0
        %4455 = vmatprep.subr.mxu0 0.0
        %4456 = vmatpush1.msra.mxu0 0.0
        %4457 = vmatprep.subr.mxu0 0.0
        %4458 = vmatpush1.msra.mxu0 0.0
        %4459 = vmatprep.mubr.f32.mxu0 0.0
        %4460 = vmatmul.mubr.f32.gmra.mrb[0].mxu0 %v4390
        %v4461 = vpop.f32.mrb[0].mxu0
        %v4462 = vadd.f32 0.0, %v4461
        %v4463 = vpop.f32.mrb[0].mxu0
        %4464 = vmatprep.mubr.f32.mxu0 0.0
        %4465 = vmatmul.mubr.f32.gmra.mrb[0].mxu0 %v4393
        %v4466 = vpop.f32.mrb[0].mxu0
        %v4467 = vadd.f32 0.0, %v4466
        %v4468 = vpop.f32.mrb[0].mxu0
        %4469 = vdwg.mxu0
        %4470 = vmatprep.subr.mxu0 0.0
        %4471 = vmatpush1.msra.mxu0 %v2780
        %4472 = vmatprep.subr.mxu0 0.0
        %4473 = vmatpush1.msra.mxu0 %v2781
        %4474 = vmatprep.subr.mxu0 0.0
        %4475 = vmatpush1.msra.mxu0 %v2782
        %4476 = vmatprep.subr.mxu0 0.0
        %4477 = vmatpush1.msra.mxu0 %v2783
        %4478 = vmatprep.subr.mxu0 0.0
        %4479 = vmatpush1.msra.mxu0 %v2784
        %4480 = vmatprep.subr.mxu0 0.0
        %4481 = vmatpush1.msra.mxu0 %v2785
        %4482 = vmatprep.subr.mxu0 0.0
        %4483 = vmatpush1.msra.mxu0 %v2786
        %4484 = vmatprep.subr.mxu0 0.0
        %4485 = vmatpush1.msra.mxu0 %v2787
        %4486 = vmatprep.subr.mxu0 0.0
        %4487 = vmatpush1.msra.mxu0 0.0
        %4488 = vmatprep.subr.mxu0 0.0
        %4489 = vmatpush1.msra.mxu0 0.0
        %4490 = vmatprep.subr.mxu0 0.0
        %4491 = vmatpush1.msra.mxu0 0.0
        %4492 = vmatprep.subr.mxu0 0.0
        %4493 = vmatpush1.msra.mxu0 0.0
        %4494 = vmatprep.subr.mxu0 0.0
        %4495 = vmatpush1.msra.mxu0 0.0
        %4496 = vmatprep.subr.mxu0 0.0
        %4497 = vmatpush1.msra.mxu0 0.0
        %4498 = vmatprep.subr.mxu0 0.0
        %4499 = vmatpush1.msra.mxu0 0.0
        %4500 = vmatprep.subr.mxu0 0.0
        %4501 = vmatpush1.msra.mxu0 0.0
        %4502 = vmatprep.subr.mxu0 0.0
        %4503 = vmatpush1.msra.mxu0 0.0
        %4504 = vmatprep.subr.mxu0 0.0
        %4505 = vmatpush1.msra.mxu0 0.0
        %4506 = vmatprep.subr.mxu0 0.0
        %4507 = vmatpush1.msra.mxu0 0.0
        %4508 = vmatprep.subr.mxu0 0.0
        %4509 = vmatpush1.msra.mxu0 0.0
        %4510 = vmatprep.subr.mxu0 0.0
        %4511 = vmatpush1.msra.mxu0 0.0
        %4512 = vmatprep.subr.mxu0 0.0
        %4513 = vmatpush1.msra.mxu0 0.0
        %4514 = vmatprep.subr.mxu0 0.0
        %4515 = vmatpush1.msra.mxu0 0.0
        %4516 = vmatprep.subr.mxu0 0.0
        %4517 = vmatpush1.msra.mxu0 0.0
        %4518 = vmatprep.subr.mxu0 0.0
        %4519 = vmatpush1.msra.mxu0 0.0
        %4520 = vmatprep.subr.mxu0 0.0
        %4521 = vmatpush1.msra.mxu0 0.0
        %4522 = vmatprep.subr.mxu0 0.0
        %4523 = vmatpush1.msra.mxu0 0.0
        %4524 = vmatprep.subr.mxu0 0.0
        %4525 = vmatpush1.msra.mxu0 0.0
        %4526 = vmatprep.subr.mxu0 0.0
        %4527 = vmatpush1.msra.mxu0 0.0
        %4528 = vmatprep.subr.mxu0 0.0
        %4529 = vmatpush1.msra.mxu0 0.0
        %4530 = vmatprep.subr.mxu0 0.0
        %4531 = vmatpush1.msra.mxu0 0.0
        %4532 = vmatprep.subr.mxu0 0.0
        %4533 = vmatpush1.msra.mxu0 0.0
        %4534 = vmatprep.mubr.f32.mxu0 0.0
        %4535 = vmatmul.mubr.f32.gmra.mrb[0].mxu0 %v4390
        %v4536 = vpop.f32.mrb[0].mxu0
        %v4537 = vadd.f32 0.0, %v4536
        %v4538 = vpop.f32.mrb[0].mxu0
        %4539 = vmatprep.mubr.f32.mxu0 0.0
        %4540 = vmatmul.mubr.f32.gmra.mrb[0].mxu0 %v4393
        %v4541 = vpop.f32.mrb[0].mxu0
        %v4542 = vadd.f32 0.0, %v4541
        %v4543 = vpop.f32.mrb[0].mxu0
        %4544 = vdwg.mxu0
        %v4546 = vsel %vm1401, %v2789, 0
        %v4549 = vsel %vm1401, %v2790, 0
        %v4552 = vsel %vm1401, %v2791, 0
        %v4555 = vsel %vm1401, %v2792, 0
        %v4558 = vsel %vm1401, %v2793, 0
        %v4561 = vsel %vm1401, %v2794, 0
        %v4564 = vsel %vm1401, %v2795, 0
        %v4567 = vsel %vm1401, %v2796, 0
        %4569 = vmatprep.subr.mxu0 0.0
        %4570 = vmatpush1.msra.mxu0 %v4537
        %4571 = vmatprep.subr.mxu0 0.0
        %4572 = vmatpush1.msra.mxu0 %v4542
        %4573 = vmatprep.subr.mxu0 0.0
        %4574 = vmatpush1.msra.mxu0 0.0
        %4575 = vmatprep.subr.mxu0 0.0
        %4576 = vmatpush1.msra.mxu0 0.0
        %4577 = vmatprep.subr.mxu0 0.0
        %4578 = vmatpush1.msra.mxu0 0.0
        %4579 = vmatprep.subr.mxu0 0.0
        %4580 = vmatpush1.msra.mxu0 0.0
        %4581 = vmatprep.subr.mxu0 0.0
        %4582 = vmatpush1.msra.mxu0 0.0
        %4583 = vmatprep.subr.mxu0 0.0
        %4584 = vmatpush1.msra.mxu0 0.0
        %4585 = vmatprep.subr.mxu0 0.0
        %4586 = vmatpush1.msra.mxu0 0.0
        %4587 = vmatprep.subr.mxu0 0.0
        %4588 = vmatpush1.msra.mxu0 0.0
        %4589 = vmatprep.subr.mxu0 0.0
        %4590 = vmatpush1.msra.mxu0 0.0
        %4591 = vmatprep.subr.mxu0 0.0
        %4592 = vmatpush1.msra.mxu0 0.0
        %4593 = vmatprep.subr.mxu0 0.0
        %4594 = vmatpush1.msra.mxu0 0.0
        %4595 = vmatprep.subr.mxu0 0.0
        %4596 = vmatpush1.msra.mxu0 0.0
        %4597 = vmatprep.subr.mxu0 0.0
        %4598 = vmatpush1.msra.mxu0 0.0
        %4599 = vmatprep.subr.mxu0 0.0
        %4600 = vmatpush1.msra.mxu0 0.0
        %4601 = vmatprep.subr.mxu0 0.0
        %4602 = vmatpush1.msra.mxu0 0.0
        %4603 = vmatprep.subr.mxu0 0.0
        %4604 = vmatpush1.msra.mxu0 0.0
        %4605 = vmatprep.subr.mxu0 0.0
        %4606 = vmatpush1.msra.mxu0 0.0
        %4607 = vmatprep.subr.mxu0 0.0
        %4608 = vmatpush1.msra.mxu0 0.0
        %4609 = vmatprep.subr.mxu0 0.0
        %4610 = vmatpush1.msra.mxu0 0.0
        %4611 = vmatprep.subr.mxu0 0.0
        %4612 = vmatpush1.msra.mxu0 0.0
        %4613 = vmatprep.subr.mxu0 0.0
        %4614 = vmatpush1.msra.mxu0 0.0
        %4615 = vmatprep.subr.mxu0 0.0
        %4616 = vmatpush1.msra.mxu0 0.0
        %4617 = vmatprep.subr.mxu0 0.0
        %4618 = vmatpush1.msra.mxu0 0.0
        %4619 = vmatprep.subr.mxu0 0.0
        %4620 = vmatpush1.msra.mxu0 0.0
        %4621 = vmatprep.subr.mxu0 0.0
        %4622 = vmatpush1.msra.mxu0 0.0
        %4623 = vmatprep.subr.mxu0 0.0
        %4624 = vmatpush1.msra.mxu0 0.0
        %4625 = vmatprep.subr.mxu0 0.0
        %4626 = vmatpush1.msra.mxu0 0.0
        %4627 = vmatprep.subr.mxu0 0.0
        %4628 = vmatpush1.msra.mxu0 0.0
        %4629 = vmatprep.subr.mxu0 0.0
        %4630 = vmatpush1.msra.mxu0 0.0
        %4631 = vmatprep.subr.mxu0 0.0
        %4632 = vmatpush1.msra.mxu0 0.0
        %4633 = vmatprep.mubr.f32.mxu0 0.0
        %4634 = vmatmul.mubr.f32.gmra.mrb[0].mxu0 %v4546
        %v4635 = vpop.f32.mrb[0].mxu0
        %v4636 = vadd.f32 0.0, %v4635
        %v4637 = vpop.f32.mrb[0].mxu0
        %4638 = vmatprep.mubr.f32.mxu0 0.0
        %4639 = vmatmul.mubr.f32.gmra.mrb[0].mxu0 %v4549
        %v4640 = vpop.f32.mrb[0].mxu0
        %v4641 = vadd.f32 0.0, %v4640
        %v4642 = vpop.f32.mrb[0].mxu0
        %4643 = vmatprep.mubr.f32.mxu0 0.0
        %4644 = vmatmul.mubr.f32.gmra.mrb[0].mxu0 %v4552
        %v4645 = vpop.f32.mrb[0].mxu0
        %v4646 = vadd.f32 0.0, %v4645
        %v4647 = vpop.f32.mrb[0].mxu0
        %4648 = vmatprep.mubr.f32.mxu0 0.0
        %4649 = vmatmul.mubr.f32.gmra.mrb[0].mxu0 %v4555
        %v4650 = vpop.f32.mrb[0].mxu0
        %v4651 = vadd.f32 0.0, %v4650
        %v4652 = vpop.f32.mrb[0].mxu0
        %4653 = vmatprep.mubr.f32.mxu0 0.0
        %4654 = vmatmul.mubr.f32.gmra.mrb[0].mxu0 %v4558
        %v4655 = vpop.f32.mrb[0].mxu0
        %v4656 = vadd.f32 0.0, %v4655
        %v4657 = vpop.f32.mrb[0].mxu0
        %4658 = vmatprep.mubr.f32.mxu0 0.0
        %4659 = vmatmul.mubr.f32.gmra.mrb[0].mxu0 %v4561
        %v4660 = vpop.f32.mrb[0].mxu0
        %v4661 = vadd.f32 0.0, %v4660
        %v4662 = vpop.f32.mrb[0].mxu0
        %4663 = vmatprep.mubr.f32.mxu0 0.0
        %4664 = vmatmul.mubr.f32.gmra.mrb[0].mxu0 %v4564
        %v4665 = vpop.f32.mrb[0].mxu0
        %v4666 = vadd.f32 0.0, %v4665
        %v4667 = vpop.f32.mrb[0].mxu0
        %4668 = vmatprep.mubr.f32.mxu0 0.0
        %4669 = vmatmul.mubr.f32.gmra.mrb[0].mxu0 %v4567
        %v4670 = vpop.f32.mrb[0].mxu0
        %v4671 = vadd.f32 0.0, %v4670
        %v4672 = vpop.f32.mrb[0].mxu0
        %4673 = vdwg.mxu0
        %v4675 = vsel %vm1401, %v2690, 0
        %v4678 = vsel %vm1401, %v2691, 0
        %v4681 = vsel %vm1401, %v2692, 0
        %v4684 = vsel %vm1401, %v2693, 0
        %v4687 = vsel %vm1401, %v2694, 0
        %v4690 = vsel %vm1401, %v2695, 0
        %v4693 = vsel %vm1401, %v2696, 0
        %v4696 = vsel %vm1401, %v2697, 0
        %4698 = vmatprep.subr.mxu0 0.0
        %4699 = vmatpush1.msra.mxu0 %v4462
        %4700 = vmatprep.subr.mxu0 0.0
        %4701 = vmatpush1.msra.mxu0 %v4467
        %4702 = vmatprep.subr.mxu0 0.0
        %4703 = vmatpush1.msra.mxu0 0.0
        %4704 = vmatprep.subr.mxu0 0.0
        %4705 = vmatpush1.msra.mxu0 0.0
        %4706 = vmatprep.subr.mxu0 0.0
        %4707 = vmatpush1.msra.mxu0 0.0
        %4708 = vmatprep.subr.mxu0 0.0
        %4709 = vmatpush1.msra.mxu0 0.0
        %4710 = vmatprep.subr.mxu0 0.0
        %4711 = vmatpush1.msra.mxu0 0.0
        %4712 = vmatprep.subr.mxu0 0.0
        %4713 = vmatpush1.msra.mxu0 0.0
        %4714 = vmatprep.subr.mxu0 0.0
        %4715 = vmatpush1.msra.mxu0 0.0
        %4716 = vmatprep.subr.mxu0 0.0
        %4717 = vmatpush1.msra.mxu0 0.0
        %4718 = vmatprep.subr.mxu0 0.0
        %4719 = vmatpush1.msra.mxu0 0.0
        %4720 = vmatprep.subr.mxu0 0.0
        %4721 = vmatpush1.msra.mxu0 0.0
        %4722 = vmatprep.subr.mxu0 0.0
        %4723 = vmatpush1.msra.mxu0 0.0
        %4724 = vmatprep.subr.mxu0 0.0
        %4725 = vmatpush1.msra.mxu0 0.0
        %4726 = vmatprep.subr.mxu0 0.0
        %4727 = vmatpush1.msra.mxu0 0.0
        %4728 = vmatprep.subr.mxu0 0.0
        %4729 = vmatpush1.msra.mxu0 0.0
        %4730 = vmatprep.subr.mxu0 0.0
        %4731 = vmatpush1.msra.mxu0 0.0
        %4732 = vmatprep.subr.mxu0 0.0
        %4733 = vmatpush1.msra.mxu0 0.0
        %4734 = vmatprep.subr.mxu0 0.0
        %4735 = vmatpush1.msra.mxu0 0.0
        %4736 = vmatprep.subr.mxu0 0.0
        %4737 = vmatpush1.msra.mxu0 0.0
        %4738 = vmatprep.subr.mxu0 0.0
        %4739 = vmatpush1.msra.mxu0 0.0
        %4740 = vmatprep.subr.mxu0 0.0
        %4741 = vmatpush1.msra.mxu0 0.0
        %4742 = vmatprep.subr.mxu0 0.0
        %4743 = vmatpush1.msra.mxu0 0.0
        %4744 = vmatprep.subr.mxu0 0.0
        %4745 = vmatpush1.msra.mxu0 0.0
        %4746 = vmatprep.subr.mxu0 0.0
        %4747 = vmatpush1.msra.mxu0 0.0
        %4748 = vmatprep.subr.mxu0 0.0
        %4749 = vmatpush1.msra.mxu0 0.0
        %4750 = vmatprep.subr.mxu0 0.0
        %4751 = vmatpush1.msra.mxu0 0.0
        %4752 = vmatprep.subr.mxu0 0.0
        %4753 = vmatpush1.msra.mxu0 0.0
        %4754 = vmatprep.subr.mxu0 0.0
        %4755 = vmatpush1.msra.mxu0 0.0
        %4756 = vmatprep.subr.mxu0 0.0
        %4757 = vmatpush1.msra.mxu0 0.0
        %4758 = vmatprep.subr.mxu0 0.0
        %4759 = vmatpush1.msra.mxu0 0.0
        %4760 = vmatprep.subr.mxu0 0.0
        %4761 = vmatpush1.msra.mxu0 0.0
        %4762 = vmatprep.mubr.f32.mxu0 0.0
        %4763 = vmatmul.mubr.f32.gmra.mrb[0].mxu0 %v4675
        %v4764 = vpop.f32.mrb[0].mxu0
        %v4765 = vadd.f32 %v4636, %v4764
        %v4766 = vpop.f32.mrb[0].mxu0
        %4767 = vmatprep.mubr.f32.mxu0 0.0
        %4768 = vmatmul.mubr.f32.gmra.mrb[0].mxu0 %v4678
        %v4769 = vpop.f32.mrb[0].mxu0
        %v4770 = vadd.f32 %v4641, %v4769
        %v4771 = vpop.f32.mrb[0].mxu0
        %4772 = vmatprep.mubr.f32.mxu0 0.0
        %4773 = vmatmul.mubr.f32.gmra.mrb[0].mxu0 %v4681
        %v4774 = vpop.f32.mrb[0].mxu0
        %v4775 = vadd.f32 %v4646, %v4774
        %v4776 = vpop.f32.mrb[0].mxu0
        %4777 = vmatprep.mubr.f32.mxu0 0.0
        %4778 = vmatmul.mubr.f32.gmra.mrb[0].mxu0 %v4684
        %v4779 = vpop.f32.mrb[0].mxu0
        %v4780 = vadd.f32 %v4651, %v4779
        %v4781 = vpop.f32.mrb[0].mxu0
        %4782 = vmatprep.mubr.f32.mxu0 0.0
        %4783 = vmatmul.mubr.f32.gmra.mrb[0].mxu0 %v4687
        %v4784 = vpop.f32.mrb[0].mxu0
        %v4785 = vadd.f32 %v4656, %v4784
        %v4786 = vpop.f32.mrb[0].mxu0
        %4787 = vmatprep.mubr.f32.mxu0 0.0
        %4788 = vmatmul.mubr.f32.gmra.mrb[0].mxu0 %v4690
        %v4789 = vpop.f32.mrb[0].mxu0
        %v4790 = vadd.f32 %v4661, %v4789
        %v4791 = vpop.f32.mrb[0].mxu0
        %4792 = vmatprep.mubr.f32.mxu0 0.0
        %4793 = vmatmul.mubr.f32.gmra.mrb[0].mxu0 %v4693
        %v4794 = vpop.f32.mrb[0].mxu0
        %v4795 = vadd.f32 %v4666, %v4794
        %v4796 = vpop.f32.mrb[0].mxu0
        %4797 = vmatprep.mubr.f32.mxu0 0.0
        %4798 = vmatmul.mubr.f32.gmra.mrb[0].mxu0 %v4696
        %v4799 = vpop.f32.mrb[0].mxu0
        %v4800 = vadd.f32 %v4671, %v4799
        %v4801 = vpop.f32.mrb[0].mxu0
        %4802 = vdwg.mxu0
        %4803 = vmatprep.subr.mxu0 0.0
        %4804 = vmatpush1.msra.mxu0 %v3131
        %4805 = vmatprep.subr.mxu0 0.0
        %4806 = vmatpush1.msra.mxu0 %v3132
        %4807 = vmatprep.subr.mxu0 0.0
        %4808 = vmatpush1.msra.mxu0 %v3133
        %4809 = vmatprep.subr.mxu0 0.0
        %4810 = vmatpush1.msra.mxu0 %v3134
        %4811 = vmatprep.subr.mxu0 0.0
        %4812 = vmatpush1.msra.mxu0 %v3135
        %4813 = vmatprep.subr.mxu0 0.0
        %4814 = vmatpush1.msra.mxu0 %v3136
        %4815 = vmatprep.subr.mxu0 0.0
        %4816 = vmatpush1.msra.mxu0 %v3137
        %4817 = vmatprep.subr.mxu0 0.0
        %4818 = vmatpush1.msra.mxu0 %v3138
        %4819 = vmatprep.subr.mxu0 0.0
        %4820 = vmatpush1.msra.mxu0 0.0
        %4821 = vmatprep.subr.mxu0 0.0
        %4822 = vmatpush1.msra.mxu0 0.0
        %4823 = vmatprep.subr.mxu0 0.0
        %4824 = vmatpush1.msra.mxu0 0.0
        %4825 = vmatprep.subr.mxu0 0.0
        %4826 = vmatpush1.msra.mxu0 0.0
        %4827 = vmatprep.subr.mxu0 0.0
        %4828 = vmatpush1.msra.mxu0 0.0
        %4829 = vmatprep.subr.mxu0 0.0
        %4830 = vmatpush1.msra.mxu0 0.0
        %4831 = vmatprep.subr.mxu0 0.0
        %4832 = vmatpush1.msra.mxu0 0.0
        %4833 = vmatprep.subr.mxu0 0.0
        %4834 = vmatpush1.msra.mxu0 0.0
        %4835 = vmatprep.subr.mxu0 0.0
        %4836 = vmatpush1.msra.mxu0 0.0
        %4837 = vmatprep.subr.mxu0 0.0
        %4838 = vmatpush1.msra.mxu0 0.0
        %4839 = vmatprep.subr.mxu0 0.0
        %4840 = vmatpush1.msra.mxu0 0.0
        %4841 = vmatprep.subr.mxu0 0.0
        %4842 = vmatpush1.msra.mxu0 0.0
        %4843 = vmatprep.subr.mxu0 0.0
        %4844 = vmatpush1.msra.mxu0 0.0
        %4845 = vmatprep.subr.mxu0 0.0
        %4846 = vmatpush1.msra.mxu0 0.0
        %4847 = vmatprep.subr.mxu0 0.0
        %4848 = vmatpush1.msra.mxu0 0.0
        %4849 = vmatprep.subr.mxu0 0.0
        %4850 = vmatpush1.msra.mxu0 0.0
        %4851 = vmatprep.subr.mxu0 0.0
        %4852 = vmatpush1.msra.mxu0 0.0
        %4853 = vmatprep.subr.mxu0 0.0
        %4854 = vmatpush1.msra.mxu0 0.0
        %4855 = vmatprep.subr.mxu0 0.0
        %4856 = vmatpush1.msra.mxu0 0.0
        %4857 = vmatprep.subr.mxu0 0.0
        %4858 = vmatpush1.msra.mxu0 0.0
        %4859 = vmatprep.subr.mxu0 0.0
        %4860 = vmatpush1.msra.mxu0 0.0
        %4861 = vmatprep.subr.mxu0 0.0
        %4862 = vmatpush1.msra.mxu0 0.0
        %4863 = vmatprep.subr.mxu0 0.0
        %4864 = vmatpush1.msra.mxu0 0.0
        %4865 = vmatprep.subr.mxu0 0.0
        %4866 = vmatpush1.msra.mxu0 0.0
        %4867 = vmatprep.mubr.f32.mxu0 0.0
        %4868 = vmatmul.mubr.f32.gmra.mrb[0].mxu0 %v4390
        %v4869 = vpop.f32.mrb[0].mxu0
        %v4870 = vadd.f32 0.0, %v4869
        %v4871 = vpop.f32.mrb[0].mxu0
        %4872 = vmatprep.mubr.f32.mxu0 0.0
        %4873 = vmatmul.mubr.f32.gmra.mrb[0].mxu0 %v4393
        %v4874 = vpop.f32.mrb[0].mxu0
        %v4875 = vadd.f32 0.0, %v4874
        %v4876 = vpop.f32.mrb[0].mxu0
        %4877 = vdwg.mxu0
        %v4879 = vsel %vm1401, %v3140, 0
        %v4882 = vsel %vm1401, %v3141, 0
        %v4885 = vsel %vm1401, %v3142, 0
        %v4888 = vsel %vm1401, %v3143, 0
        %v4891 = vsel %vm1401, %v3144, 0
        %v4894 = vsel %vm1401, %v3145, 0
        %v4897 = vsel %vm1401, %v3146, 0
        %v4900 = vsel %vm1401, %v3147, 0
        %4902 = vmatprep.subr.mxu0 0.0
        %4903 = vmatpush1.msra.mxu0 %v4870
        %4904 = vmatprep.subr.mxu0 0.0
        %4905 = vmatpush1.msra.mxu0 %v4875
        %4906 = vmatprep.subr.mxu0 0.0
        %4907 = vmatpush1.msra.mxu0 0.0
        %4908 = vmatprep.subr.mxu0 0.0
        %4909 = vmatpush1.msra.mxu0 0.0
        %4910 = vmatprep.subr.mxu0 0.0
        %4911 = vmatpush1.msra.mxu0 0.0
        %4912 = vmatprep.subr.mxu0 0.0
        %4913 = vmatpush1.msra.mxu0 0.0
        %4914 = vmatprep.subr.mxu0 0.0
        %4915 = vmatpush1.msra.mxu0 0.0
        %4916 = vmatprep.subr.mxu0 0.0
        %4917 = vmatpush1.msra.mxu0 0.0
        %4918 = vmatprep.subr.mxu0 0.0
        %4919 = vmatpush1.msra.mxu0 0.0
        %4920 = vmatprep.subr.mxu0 0.0
        %4921 = vmatpush1.msra.mxu0 0.0
        %4922 = vmatprep.subr.mxu0 0.0
        %4923 = vmatpush1.msra.mxu0 0.0
        %4924 = vmatprep.subr.mxu0 0.0
        %4925 = vmatpush1.msra.mxu0 0.0
        %4926 = vmatprep.subr.mxu0 0.0
        %4927 = vmatpush1.msra.mxu0 0.0
        %4928 = vmatprep.subr.mxu0 0.0
        %4929 = vmatpush1.msra.mxu0 0.0
        %4930 = vmatprep.subr.mxu0 0.0
        %4931 = vmatpush1.msra.mxu0 0.0
        %4932 = vmatprep.subr.mxu0 0.0
        %4933 = vmatpush1.msra.mxu0 0.0
        %4934 = vmatprep.subr.mxu0 0.0
        %4935 = vmatpush1.msra.mxu0 0.0
        %4936 = vmatprep.subr.mxu0 0.0
        %4937 = vmatpush1.msra.mxu0 0.0
        %4938 = vmatprep.subr.mxu0 0.0
        %4939 = vmatpush1.msra.mxu0 0.0
        %4940 = vmatprep.subr.mxu0 0.0
        %4941 = vmatpush1.msra.mxu0 0.0
        %4942 = vmatprep.subr.mxu0 0.0
        %4943 = vmatpush1.msra.mxu0 0.0
        %4944 = vmatprep.subr.mxu0 0.0
        %4945 = vmatpush1.msra.mxu0 0.0
        %4946 = vmatprep.subr.mxu0 0.0
        %4947 = vmatpush1.msra.mxu0 0.0
        %4948 = vmatprep.subr.mxu0 0.0
        %4949 = vmatpush1.msra.mxu0 0.0
        %4950 = vmatprep.subr.mxu0 0.0
        %4951 = vmatpush1.msra.mxu0 0.0
        %4952 = vmatprep.subr.mxu0 0.0
        %4953 = vmatpush1.msra.mxu0 0.0
        %4954 = vmatprep.subr.mxu0 0.0
        %4955 = vmatpush1.msra.mxu0 0.0
        %4956 = vmatprep.subr.mxu0 0.0
        %4957 = vmatpush1.msra.mxu0 0.0
        %4958 = vmatprep.subr.mxu0 0.0
        %4959 = vmatpush1.msra.mxu0 0.0
        %4960 = vmatprep.subr.mxu0 0.0
        %4961 = vmatpush1.msra.mxu0 0.0
        %4962 = vmatprep.subr.mxu0 0.0
        %4963 = vmatpush1.msra.mxu0 0.0
        %4964 = vmatprep.subr.mxu0 0.0
        %4965 = vmatpush1.msra.mxu0 0.0
        %4966 = vmatprep.mubr.f32.mxu0 0.0
        %4967 = vmatmul.mubr.f32.gmra.mrb[0].mxu0 %v4879
        %v4968 = vpop.f32.mrb[0].mxu0
        %v4969 = vadd.f32 0.0, %v4968
        %v4970 = vpop.f32.mrb[0].mxu0
        %4971 = vmatprep.mubr.f32.mxu0 0.0
        %4972 = vmatmul.mubr.f32.gmra.mrb[0].mxu0 %v4882
        %v4973 = vpop.f32.mrb[0].mxu0
        %v4974 = vadd.f32 0.0, %v4973
        %v4975 = vpop.f32.mrb[0].mxu0
        %4976 = vmatprep.mubr.f32.mxu0 0.0
        %4977 = vmatmul.mubr.f32.gmra.mrb[0].mxu0 %v4885
        %v4978 = vpop.f32.mrb[0].mxu0
        %v4979 = vadd.f32 0.0, %v4978
        %v4980 = vpop.f32.mrb[0].mxu0
        %4981 = vmatprep.mubr.f32.mxu0 0.0
        %4982 = vmatmul.mubr.f32.gmra.mrb[0].mxu0 %v4888
        %v4983 = vpop.f32.mrb[0].mxu0
        %v4984 = vadd.f32 0.0, %v4983
        %v4985 = vpop.f32.mrb[0].mxu0
        %4986 = vmatprep.mubr.f32.mxu0 0.0
        %4987 = vmatmul.mubr.f32.gmra.mrb[0].mxu0 %v4891
        %v4988 = vpop.f32.mrb[0].mxu0
        %v4989 = vadd.f32 0.0, %v4988
        %v4990 = vpop.f32.mrb[0].mxu0
        %4991 = vmatprep.mubr.f32.mxu0 0.0
        %4992 = vmatmul.mubr.f32.gmra.mrb[0].mxu0 %v4894
        %v4993 = vpop.f32.mrb[0].mxu0
        %v4994 = vadd.f32 0.0, %v4993
        %v4995 = vpop.f32.mrb[0].mxu0
        %4996 = vmatprep.mubr.f32.mxu0 0.0
        %4997 = vmatmul.mubr.f32.gmra.mrb[0].mxu0 %v4897
        %v4998 = vpop.f32.mrb[0].mxu0
        %v4999 = vadd.f32 0.0, %v4998
        %v5000 = vpop.f32.mrb[0].mxu0
        %5001 = vmatprep.mubr.f32.mxu0 0.0
        %5002 = vmatmul.mubr.f32.gmra.mrb[0].mxu0 %v4900
        %v5003 = vpop.f32.mrb[0].mxu0
        %v5004 = vadd.f32 0.0, %v5003
        %v5005 = vpop.f32.mrb[0].mxu0
        %5006 = vdwg.mxu0
        %v5007 = vadd.f32 %v4765, %v4969
        %v5008 = vadd.f32 %v4770, %v4974
        %v5009 = vadd.f32 %v4775, %v4979
        %v5010 = vadd.f32 %v4780, %v4984
        %v5011 = vadd.f32 %v4785, %v4989
        %v5012 = vadd.f32 %v4790, %v4994
        %v5013 = vadd.f32 %v4795, %v4999
        %v5014 = vadd.f32 %v4800, %v5004
        %5015 = vmatprep.subr.mxu0 0.0
        %5016 = vmatpush1.msra.mxu0 %v3361
        %5017 = vmatprep.subr.mxu0 0.0
        %5018 = vmatpush1.msra.mxu0 %v3362
        %5019 = vmatprep.subr.mxu0 0.0
        %5020 = vmatpush1.msra.mxu0 %v3363
        %5021 = vmatprep.subr.mxu0 0.0
        %5022 = vmatpush1.msra.mxu0 %v3364
        %5023 = vmatprep.subr.mxu0 0.0
        %5024 = vmatpush1.msra.mxu0 %v3365
        %5025 = vmatprep.subr.mxu0 0.0
        %5026 = vmatpush1.msra.mxu0 %v3366
        %5027 = vmatprep.subr.mxu0 0.0
        %5028 = vmatpush1.msra.mxu0 %v3367
        %5029 = vmatprep.subr.mxu0 0.0
        %5030 = vmatpush1.msra.mxu0 %v3368
        %5031 = vmatprep.subr.mxu0 0.0
        %5032 = vmatpush1.msra.mxu0 0.0
        %5033 = vmatprep.subr.mxu0 0.0
        %5034 = vmatpush1.msra.mxu0 0.0
        %5035 = vmatprep.subr.mxu0 0.0
        %5036 = vmatpush1.msra.mxu0 0.0
        %5037 = vmatprep.subr.mxu0 0.0
        %5038 = vmatpush1.msra.mxu0 0.0
        %5039 = vmatprep.subr.mxu0 0.0
        %5040 = vmatpush1.msra.mxu0 0.0
        %5041 = vmatprep.subr.mxu0 0.0
        %5042 = vmatpush1.msra.mxu0 0.0
        %5043 = vmatprep.subr.mxu0 0.0
        %5044 = vmatpush1.msra.mxu0 0.0
        %5045 = vmatprep.subr.mxu0 0.0
        %5046 = vmatpush1.msra.mxu0 0.0
        %5047 = vmatprep.subr.mxu0 0.0
        %5048 = vmatpush1.msra.mxu0 0.0
        %5049 = vmatprep.subr.mxu0 0.0
        %5050 = vmatpush1.msra.mxu0 0.0
        %5051 = vmatprep.subr.mxu0 0.0
        %5052 = vmatpush1.msra.mxu0 0.0
        %5053 = vmatprep.subr.mxu0 0.0
        %5054 = vmatpush1.msra.mxu0 0.0
        %5055 = vmatprep.subr.mxu0 0.0
        %5056 = vmatpush1.msra.mxu0 0.0
        %5057 = vmatprep.subr.mxu0 0.0
        %5058 = vmatpush1.msra.mxu0 0.0
        %5059 = vmatprep.subr.mxu0 0.0
        %5060 = vmatpush1.msra.mxu0 0.0
        %5061 = vmatprep.subr.mxu0 0.0
        %5062 = vmatpush1.msra.mxu0 0.0
        %5063 = vmatprep.subr.mxu0 0.0
        %5064 = vmatpush1.msra.mxu0 0.0
        %5065 = vmatprep.subr.mxu0 0.0
        %5066 = vmatpush1.msra.mxu0 0.0
        %5067 = vmatprep.subr.mxu0 0.0
        %5068 = vmatpush1.msra.mxu0 0.0
        %5069 = vmatprep.subr.mxu0 0.0
        %5070 = vmatpush1.msra.mxu0 0.0
        %5071 = vmatprep.subr.mxu0 0.0
        %5072 = vmatpush1.msra.mxu0 0.0
        %5073 = vmatprep.subr.mxu0 0.0
        %5074 = vmatpush1.msra.mxu0 0.0
        %5075 = vmatprep.subr.mxu0 0.0
        %5076 = vmatpush1.msra.mxu0 0.0
        %5077 = vmatprep.subr.mxu0 0.0
        %5078 = vmatpush1.msra.mxu0 0.0
        %5079 = vmatprep.mubr.f32.mxu0 0.0
        %5080 = vmatmul.mubr.f32.gmra.mrb[0].mxu0 %v4390
        %v5081 = vpop.f32.mrb[0].mxu0
        %v5082 = vadd.f32 0.0, %v5081
        %v5083 = vpop.f32.mrb[0].mxu0
        %5084 = vmatprep.mubr.f32.mxu0 0.0
        %5085 = vmatmul.mubr.f32.gmra.mrb[0].mxu0 %v4393
        %v5086 = vpop.f32.mrb[0].mxu0
        %v5087 = vadd.f32 0.0, %v5086
        %v5088 = vpop.f32.mrb[0].mxu0
        %5089 = vdwg.mxu0
        %v5091 = vsel %vm1401, %v3370, 0
        %v5094 = vsel %vm1401, %v3371, 0
        %v5097 = vsel %vm1401, %v3372, 0
        %v5100 = vsel %vm1401, %v3373, 0
        %v5103 = vsel %vm1401, %v3374, 0
        %v5106 = vsel %vm1401, %v3375, 0
        %v5109 = vsel %vm1401, %v3376, 0
        %v5112 = vsel %vm1401, %v3377, 0
        %5114 = vmatprep.subr.mxu0 0.0
        %5115 = vmatpush1.msra.mxu0 %v5082
        %5116 = vmatprep.subr.mxu0 0.0
        %5117 = vmatpush1.msra.mxu0 %v5087
        %5118 = vmatprep.subr.mxu0 0.0
        %5119 = vmatpush1.msra.mxu0 0.0
        %5120 = vmatprep.subr.mxu0 0.0
        %5121 = vmatpush1.msra.mxu0 0.0
        %5122 = vmatprep.subr.mxu0 0.0
        %5123 = vmatpush1.msra.mxu0 0.0
        %5124 = vmatprep.subr.mxu0 0.0
        %5125 = vmatpush1.msra.mxu0 0.0
        %5126 = vmatprep.subr.mxu0 0.0
        %5127 = vmatpush1.msra.mxu0 0.0
        %5128 = vmatprep.subr.mxu0 0.0
        %5129 = vmatpush1.msra.mxu0 0.0
        %5130 = vmatprep.subr.mxu0 0.0
        %5131 = vmatpush1.msra.mxu0 0.0
        %5132 = vmatprep.subr.mxu0 0.0
        %5133 = vmatpush1.msra.mxu0 0.0
        %5134 = vmatprep.subr.mxu0 0.0
        %5135 = vmatpush1.msra.mxu0 0.0
        %5136 = vmatprep.subr.mxu0 0.0
        %5137 = vmatpush1.msra.mxu0 0.0
        %5138 = vmatprep.subr.mxu0 0.0
        %5139 = vmatpush1.msra.mxu0 0.0
        %5140 = vmatprep.subr.mxu0 0.0
        %5141 = vmatpush1.msra.mxu0 0.0
        %5142 = vmatprep.subr.mxu0 0.0
        %5143 = vmatpush1.msra.mxu0 0.0
        %5144 = vmatprep.subr.mxu0 0.0
        %5145 = vmatpush1.msra.mxu0 0.0
        %5146 = vmatprep.subr.mxu0 0.0
        %5147 = vmatpush1.msra.mxu0 0.0
        %5148 = vmatprep.subr.mxu0 0.0
        %5149 = vmatpush1.msra.mxu0 0.0
        %5150 = vmatprep.subr.mxu0 0.0
        %5151 = vmatpush1.msra.mxu0 0.0
        %5152 = vmatprep.subr.mxu0 0.0
        %5153 = vmatpush1.msra.mxu0 0.0
        %5154 = vmatprep.subr.mxu0 0.0
        %5155 = vmatpush1.msra.mxu0 0.0
        %5156 = vmatprep.subr.mxu0 0.0
        %5157 = vmatpush1.msra.mxu0 0.0
        %5158 = vmatprep.subr.mxu0 0.0
        %5159 = vmatpush1.msra.mxu0 0.0
        %5160 = vmatprep.subr.mxu0 0.0
        %5161 = vmatpush1.msra.mxu0 0.0
        %5162 = vmatprep.subr.mxu0 0.0
        %5163 = vmatpush1.msra.mxu0 0.0
        %5164 = vmatprep.subr.mxu0 0.0
        %5165 = vmatpush1.msra.mxu0 0.0
        %5166 = vmatprep.subr.mxu0 0.0
        %5167 = vmatpush1.msra.mxu0 0.0
        %5168 = vmatprep.subr.mxu0 0.0
        %5169 = vmatpush1.msra.mxu0 0.0
        %5170 = vmatprep.subr.mxu0 0.0
        %5171 = vmatpush1.msra.mxu0 0.0
        %5172 = vmatprep.subr.mxu0 0.0
        %5173 = vmatpush1.msra.mxu0 0.0
        %5174 = vmatprep.subr.mxu0 0.0
        %5175 = vmatpush1.msra.mxu0 0.0
        %5176 = vmatprep.subr.mxu0 0.0
        %5177 = vmatpush1.msra.mxu0 0.0
        %5178 = vmatprep.mubr.f32.mxu0 0.0
        %5179 = vmatmul.mubr.f32.gmra.mrb[0].mxu0 %v5091
        %v5180 = vpop.f32.mrb[0].mxu0
        %v5181 = vadd.f32 0.0, %v5180
        %v5182 = vpop.f32.mrb[0].mxu0
        %5183 = vmatprep.mubr.f32.mxu0 0.0
        %5184 = vmatmul.mubr.f32.gmra.mrb[0].mxu0 %v5094
        %v5185 = vpop.f32.mrb[0].mxu0
        %v5186 = vadd.f32 0.0, %v5185
        %v5187 = vpop.f32.mrb[0].mxu0
        %5188 = vmatprep.mubr.f32.mxu0 0.0
        %5189 = vmatmul.mubr.f32.gmra.mrb[0].mxu0 %v5097
        %v5190 = vpop.f32.mrb[0].mxu0
        %v5191 = vadd.f32 0.0, %v5190
        %v5192 = vpop.f32.mrb[0].mxu0
        %5193 = vmatprep.mubr.f32.mxu0 0.0
        %5194 = vmatmul.mubr.f32.gmra.mrb[0].mxu0 %v5100
        %v5195 = vpop.f32.mrb[0].mxu0
        %v5196 = vadd.f32 0.0, %v5195
        %v5197 = vpop.f32.mrb[0].mxu0
        %5198 = vmatprep.mubr.f32.mxu0 0.0
        %5199 = vmatmul.mubr.f32.gmra.mrb[0].mxu0 %v5103
        %v5200 = vpop.f32.mrb[0].mxu0
        %v5201 = vadd.f32 0.0, %v5200
        %v5202 = vpop.f32.mrb[0].mxu0
        %5203 = vmatprep.mubr.f32.mxu0 0.0
        %5204 = vmatmul.mubr.f32.gmra.mrb[0].mxu0 %v5106
        %v5205 = vpop.f32.mrb[0].mxu0
        %v5206 = vadd.f32 0.0, %v5205
        %v5207 = vpop.f32.mrb[0].mxu0
        %5208 = vmatprep.mubr.f32.mxu0 0.0
        %5209 = vmatmul.mubr.f32.gmra.mrb[0].mxu0 %v5109
        %v5210 = vpop.f32.mrb[0].mxu0
        %v5211 = vadd.f32 0.0, %v5210
        %v5212 = vpop.f32.mrb[0].mxu0
        %5213 = vmatprep.mubr.f32.mxu0 0.0
        %5214 = vmatmul.mubr.f32.gmra.mrb[0].mxu0 %v5112
        %v5215 = vpop.f32.mrb[0].mxu0
        %v5216 = vadd.f32 0.0, %v5215
        %v5217 = vpop.f32.mrb[0].mxu0
        %5218 = vdwg.mxu0
        %v5219 = vadd.f32 %v5007, %v5181
        %v5220 = vadd.f32 %v5008, %v5186
        %v5221 = vadd.f32 %v5009, %v5191
        %v5222 = vadd.f32 %v5010, %v5196
        %v5223 = vadd.f32 %v5011, %v5201
        %v5224 = vadd.f32 %v5012, %v5206
        %v5225 = vadd.f32 %v5013, %v5211
        %v5226 = vadd.f32 %v5014, %v5216
        %v5227 = vld [vmem:[%s39] sm:$0x1]
        %v5228 = vld [vmem:[%s41] sm:$0x1]
        %v5229 = vld [vmem:[%s43] sm:$0xff]
        %v5230 = vld [vmem:[%s43 + $0x8] sm:$0xff]
        %v5231 = vld [vmem:[%s43 + $0x10] sm:$0xff]
        %v5232 = vld [vmem:[%s43 + $0x18] sm:$0xff]
        %v5233 = vld [vmem:[%s43 + $0x20] sm:$0xff]
        %v5234 = vld [vmem:[%s43 + $0x28] sm:$0xff]
        %v5235 = vld [vmem:[%s43 + $0x30] sm:$0xff]
        %v5236 = vld [vmem:[%s43 + $0x38] sm:$0xff]
        %v5237 = vld [vmem:[%s37] sm:$0xff]
        %v5238 = vld [vmem:[%s37 + $0x8] sm:$0xff]
        %v5240 = vsel %vm1717, %v5237, 0
        %v5243 = vsel %vm1717, %v5238, 0
        %5245 = vmatprep.subr.mxu0 0.0
        %5246 = vmatpush1.msra.mxu0 %v5219
        %5247 = vmatprep.subr.mxu0 0.0
        %5248 = vmatpush1.msra.mxu0 %v5220
        %5249 = vmatprep.subr.mxu0 0.0
        %5250 = vmatpush1.msra.mxu0 %v5221
        %5251 = vmatprep.subr.mxu0 0.0
        %5252 = vmatpush1.msra.mxu0 %v5222
        %5253 = vmatprep.subr.mxu0 0.0
        %5254 = vmatpush1.msra.mxu0 %v5223
        %5255 = vmatprep.subr.mxu0 0.0
        %5256 = vmatpush1.msra.mxu0 %v5224
        %5257 = vmatprep.subr.mxu0 0.0
        %5258 = vmatpush1.msra.mxu0 %v5225
        %5259 = vmatprep.subr.mxu0 0.0
        %5260 = vmatpush1.msra.mxu0 %v5226
        %5261 = vmatprep.subr.mxu0 0.0
        %5262 = vmatpush1.msra.mxu0 0.0
        %5263 = vmatprep.subr.mxu0 0.0
        %5264 = vmatpush1.msra.mxu0 0.0
        %5265 = vmatprep.subr.mxu0 0.0
        %5266 = vmatpush1.msra.mxu0 0.0
        %5267 = vmatprep.subr.mxu0 0.0
        %5268 = vmatpush1.msra.mxu0 0.0
        %5269 = vmatprep.subr.mxu0 0.0
        %5270 = vmatpush1.msra.mxu0 0.0
        %5271 = vmatprep.subr.mxu0 0.0
        %5272 = vmatpush1.msra.mxu0 0.0
        %5273 = vmatprep.subr.mxu0 0.0
        %5274 = vmatpush1.msra.mxu0 0.0
        %5275 = vmatprep.subr.mxu0 0.0
        %5276 = vmatpush1.msra.mxu0 0.0
        %5277 = vmatprep.subr.mxu0 0.0
        %5278 = vmatpush1.msra.mxu0 0.0
        %5279 = vmatprep.subr.mxu0 0.0
        %5280 = vmatpush1.msra.mxu0 0.0
        %5281 = vmatprep.subr.mxu0 0.0
        %5282 = vmatpush1.msra.mxu0 0.0
        %5283 = vmatprep.subr.mxu0 0.0
        %5284 = vmatpush1.msra.mxu0 0.0
        %5285 = vmatprep.subr.mxu0 0.0
        %5286 = vmatpush1.msra.mxu0 0.0
        %5287 = vmatprep.subr.mxu0 0.0
        %5288 = vmatpush1.msra.mxu0 0.0
        %5289 = vmatprep.subr.mxu0 0.0
        %5290 = vmatpush1.msra.mxu0 0.0
        %5291 = vmatprep.subr.mxu0 0.0
        %5292 = vmatpush1.msra.mxu0 0.0
        %5293 = vmatprep.subr.mxu0 0.0
        %5294 = vmatpush1.msra.mxu0 0.0
        %5295 = vmatprep.subr.mxu0 0.0
        %5296 = vmatpush1.msra.mxu0 0.0
        %5297 = vmatprep.subr.mxu0 0.0
        %5298 = vmatpush1.msra.mxu0 0.0
        %5299 = vmatprep.subr.mxu0 0.0
        %5300 = vmatpush1.msra.mxu0 0.0
        %5301 = vmatprep.subr.mxu0 0.0
        %5302 = vmatpush1.msra.mxu0 0.0
        %5303 = vmatprep.subr.mxu0 0.0
        %5304 = vmatpush1.msra.mxu0 0.0
        %5305 = vmatprep.subr.mxu0 0.0
        %5306 = vmatpush1.msra.mxu0 0.0
        %5307 = vmatprep.subr.mxu0 0.0
        %5308 = vmatpush1.msra.mxu0 0.0
        %5309 = vmatprep.mubr.f32.mxu0 0.0
        %5310 = vmatmul.mubr.f32.gmra.mrb[0].mxu0 %v5240
        %v5311 = vpop.f32.mrb[0].mxu0
        %v5312 = vadd.f32 0.0, %v5311
        %v5313 = vpop.f32.mrb[0].mxu0
        %5314 = vmatprep.mubr.f32.mxu0 0.0
        %5315 = vmatmul.mubr.f32.gmra.mrb[0].mxu0 %v5243
        %v5316 = vpop.f32.mrb[0].mxu0
        %v5317 = vadd.f32 0.0, %v5316
        %v5318 = vpop.f32.mrb[0].mxu0
        %5319 = vdwg.mxu0
        %s5320 = scalar_lea.vmem %s37, 16
        %v5321 = vld [vmem:[%s5320] sm:$0xff]
        %v5322 = vld [vmem:[%s5320 + $0x8] sm:$0xff]
        %v5324 = vsel %vm1717, %v5321, 0
        %v5327 = vsel %vm1717, %v5322, 0
        %5329 = vmatprep.subr.mxu0 0.0
        %5330 = vmatpush1.msra.mxu0 %v5219
        %5331 = vmatprep.subr.mxu0 0.0
        %5332 = vmatpush1.msra.mxu0 %v5220
        %5333 = vmatprep.subr.mxu0 0.0
        %5334 = vmatpush1.msra.mxu0 %v5221
        %5335 = vmatprep.subr.mxu0 0.0
        %5336 = vmatpush1.msra.mxu0 %v5222
        %5337 = vmatprep.subr.mxu0 0.0
        %5338 = vmatpush1.msra.mxu0 %v5223
        %5339 = vmatprep.subr.mxu0 0.0
        %5340 = vmatpush1.msra.mxu0 %v5224
        %5341 = vmatprep.subr.mxu0 0.0
        %5342 = vmatpush1.msra.mxu0 %v5225
        %5343 = vmatprep.subr.mxu0 0.0
        %5344 = vmatpush1.msra.mxu0 %v5226
        %5345 = vmatprep.subr.mxu0 0.0
        %5346 = vmatpush1.msra.mxu0 0.0
        %5347 = vmatprep.subr.mxu0 0.0
        %5348 = vmatpush1.msra.mxu0 0.0
        %5349 = vmatprep.subr.mxu0 0.0
        %5350 = vmatpush1.msra.mxu0 0.0
        %5351 = vmatprep.subr.mxu0 0.0
        %5352 = vmatpush1.msra.mxu0 0.0
        %5353 = vmatprep.subr.mxu0 0.0
        %5354 = vmatpush1.msra.mxu0 0.0
        %5355 = vmatprep.subr.mxu0 0.0
        %5356 = vmatpush1.msra.mxu0 0.0
        %5357 = vmatprep.subr.mxu0 0.0
        %5358 = vmatpush1.msra.mxu0 0.0
        %5359 = vmatprep.subr.mxu0 0.0
        %5360 = vmatpush1.msra.mxu0 0.0
        %5361 = vmatprep.subr.mxu0 0.0
        %5362 = vmatpush1.msra.mxu0 0.0
        %5363 = vmatprep.subr.mxu0 0.0
        %5364 = vmatpush1.msra.mxu0 0.0
        %5365 = vmatprep.subr.mxu0 0.0
        %5366 = vmatpush1.msra.mxu0 0.0
        %5367 = vmatprep.subr.mxu0 0.0
        %5368 = vmatpush1.msra.mxu0 0.0
        %5369 = vmatprep.subr.mxu0 0.0
        %5370 = vmatpush1.msra.mxu0 0.0
        %5371 = vmatprep.subr.mxu0 0.0
        %5372 = vmatpush1.msra.mxu0 0.0
        %5373 = vmatprep.subr.mxu0 0.0
        %5374 = vmatpush1.msra.mxu0 0.0
        %5375 = vmatprep.subr.mxu0 0.0
        %5376 = vmatpush1.msra.mxu0 0.0
        %5377 = vmatprep.subr.mxu0 0.0
        %5378 = vmatpush1.msra.mxu0 0.0
        %5379 = vmatprep.subr.mxu0 0.0
        %5380 = vmatpush1.msra.mxu0 0.0
        %5381 = vmatprep.subr.mxu0 0.0
        %5382 = vmatpush1.msra.mxu0 0.0
        %5383 = vmatprep.subr.mxu0 0.0
        %5384 = vmatpush1.msra.mxu0 0.0
        %5385 = vmatprep.subr.mxu0 0.0
        %5386 = vmatpush1.msra.mxu0 0.0
        %5387 = vmatprep.subr.mxu0 0.0
        %5388 = vmatpush1.msra.mxu0 0.0
        %5389 = vmatprep.subr.mxu0 0.0
        %5390 = vmatpush1.msra.mxu0 0.0
        %5391 = vmatprep.subr.mxu0 0.0
        %5392 = vmatpush1.msra.mxu0 0.0
        %5393 = vmatprep.mubr.f32.mxu0 0.0
        %5394 = vmatmul.mubr.f32.gmra.mrb[0].mxu0 %v5324
        %v5395 = vpop.f32.mrb[0].mxu0
        %v5396 = vadd.f32 0.0, %v5395
        %v5397 = vpop.f32.mrb[0].mxu0
        %5398 = vmatprep.mubr.f32.mxu0 0.0
        %5399 = vmatmul.mubr.f32.gmra.mrb[0].mxu0 %v5327
        %v5400 = vpop.f32.mrb[0].mxu0
        %v5401 = vadd.f32 0.0, %v5400
        %v5402 = vpop.f32.mrb[0].mxu0
        %5403 = vdwg.mxu0
        %s5404 = scalar_lea.vmem %s37, 32
        %v5405 = vld [vmem:[%s5404] sm:$0xff]
        %v5406 = vld [vmem:[%s5404 + $0x8] sm:$0xff]
        %v5408 = vsel %vm1717, %v5405, 0
        %v5411 = vsel %vm1717, %v5406, 0
        %5413 = vmatprep.subr.mxu0 0.0
        %5414 = vmatpush1.msra.mxu0 %v5219
        %5415 = vmatprep.subr.mxu0 0.0
        %5416 = vmatpush1.msra.mxu0 %v5220
        %5417 = vmatprep.subr.mxu0 0.0
        %5418 = vmatpush1.msra.mxu0 %v5221
        %5419 = vmatprep.subr.mxu0 0.0
        %5420 = vmatpush1.msra.mxu0 %v5222
        %5421 = vmatprep.subr.mxu0 0.0
        %5422 = vmatpush1.msra.mxu0 %v5223
        %5423 = vmatprep.subr.mxu0 0.0
        %5424 = vmatpush1.msra.mxu0 %v5224
        %5425 = vmatprep.subr.mxu0 0.0
        %5426 = vmatpush1.msra.mxu0 %v5225
        %5427 = vmatprep.subr.mxu0 0.0
        %5428 = vmatpush1.msra.mxu0 %v5226
        %5429 = vmatprep.subr.mxu0 0.0
        %5430 = vmatpush1.msra.mxu0 0.0
        %5431 = vmatprep.subr.mxu0 0.0
        %5432 = vmatpush1.msra.mxu0 0.0
        %5433 = vmatprep.subr.mxu0 0.0
        %5434 = vmatpush1.msra.mxu0 0.0
        %5435 = vmatprep.subr.mxu0 0.0
        %5436 = vmatpush1.msra.mxu0 0.0
        %5437 = vmatprep.subr.mxu0 0.0
        %5438 = vmatpush1.msra.mxu0 0.0
        %5439 = vmatprep.subr.mxu0 0.0
        %5440 = vmatpush1.msra.mxu0 0.0
        %5441 = vmatprep.subr.mxu0 0.0
        %5442 = vmatpush1.msra.mxu0 0.0
        %5443 = vmatprep.subr.mxu0 0.0
        %5444 = vmatpush1.msra.mxu0 0.0
        %5445 = vmatprep.subr.mxu0 0.0
        %5446 = vmatpush1.msra.mxu0 0.0
        %5447 = vmatprep.subr.mxu0 0.0
        %5448 = vmatpush1.msra.mxu0 0.0
        %5449 = vmatprep.subr.mxu0 0.0
        %5450 = vmatpush1.msra.mxu0 0.0
        %5451 = vmatprep.subr.mxu0 0.0
        %5452 = vmatpush1.msra.mxu0 0.0
        %5453 = vmatprep.subr.mxu0 0.0
        %5454 = vmatpush1.msra.mxu0 0.0
        %5455 = vmatprep.subr.mxu0 0.0
        %5456 = vmatpush1.msra.mxu0 0.0
        %5457 = vmatprep.subr.mxu0 0.0
        %5458 = vmatpush1.msra.mxu0 0.0
        %5459 = vmatprep.subr.mxu0 0.0
        %5460 = vmatpush1.msra.mxu0 0.0
        %5461 = vmatprep.subr.mxu0 0.0
        %5462 = vmatpush1.msra.mxu0 0.0
        %5463 = vmatprep.subr.mxu0 0.0
        %5464 = vmatpush1.msra.mxu0 0.0
        %5465 = vmatprep.subr.mxu0 0.0
        %5466 = vmatpush1.msra.mxu0 0.0
        %5467 = vmatprep.subr.mxu0 0.0
        %5468 = vmatpush1.msra.mxu0 0.0
        %5469 = vmatprep.subr.mxu0 0.0
        %5470 = vmatpush1.msra.mxu0 0.0
        %5471 = vmatprep.subr.mxu0 0.0
        %5472 = vmatpush1.msra.mxu0 0.0
        %5473 = vmatprep.subr.mxu0 0.0
        %5474 = vmatpush1.msra.mxu0 0.0
        %5475 = vmatprep.subr.mxu0 0.0
        %5476 = vmatpush1.msra.mxu0 0.0
        %5477 = vmatprep.mubr.f32.mxu0 0.0
        %5478 = vmatmul.mubr.f32.gmra.mrb[0].mxu0 %v5408
        %v5479 = vpop.f32.mrb[0].mxu0
        %v5480 = vadd.f32 0.0, %v5479
        %v5481 = vpop.f32.mrb[0].mxu0
        %5482 = vmatprep.mubr.f32.mxu0 0.0
        %5483 = vmatmul.mubr.f32.gmra.mrb[0].mxu0 %v5411
        %v5484 = vpop.f32.mrb[0].mxu0
        %v5485 = vadd.f32 0.0, %v5484
        %v5486 = vpop.f32.mrb[0].mxu0
        %5487 = vdwg.mxu0
        %s5488 = scalar_lea.vmem %s37, 48
        %v5489 = vld [vmem:[%s5488] sm:$0xff]
        %v5490 = vld [vmem:[%s5488 + $0x8] sm:$0xff]
        %v5492 = vsel %vm1717, %v5489, 0
        %v5495 = vsel %vm1717, %v5490, 0
        %5497 = vmatprep.subr.mxu0 0.0
        %5498 = vmatpush1.msra.mxu0 %v5219
        %5499 = vmatprep.subr.mxu0 0.0
        %5500 = vmatpush1.msra.mxu0 %v5220
        %5501 = vmatprep.subr.mxu0 0.0
        %5502 = vmatpush1.msra.mxu0 %v5221
        %5503 = vmatprep.subr.mxu0 0.0
        %5504 = vmatpush1.msra.mxu0 %v5222
        %5505 = vmatprep.subr.mxu0 0.0
        %5506 = vmatpush1.msra.mxu0 %v5223
        %5507 = vmatprep.subr.mxu0 0.0
        %5508 = vmatpush1.msra.mxu0 %v5224
        %5509 = vmatprep.subr.mxu0 0.0
        %5510 = vmatpush1.msra.mxu0 %v5225
        %5511 = vmatprep.subr.mxu0 0.0
        %5512 = vmatpush1.msra.mxu0 %v5226
        %5513 = vmatprep.subr.mxu0 0.0
        %5514 = vmatpush1.msra.mxu0 0.0
        %5515 = vmatprep.subr.mxu0 0.0
        %5516 = vmatpush1.msra.mxu0 0.0
        %5517 = vmatprep.subr.mxu0 0.0
        %5518 = vmatpush1.msra.mxu0 0.0
        %5519 = vmatprep.subr.mxu0 0.0
        %5520 = vmatpush1.msra.mxu0 0.0
        %5521 = vmatprep.subr.mxu0 0.0
        %5522 = vmatpush1.msra.mxu0 0.0
        %5523 = vmatprep.subr.mxu0 0.0
        %5524 = vmatpush1.msra.mxu0 0.0
        %5525 = vmatprep.subr.mxu0 0.0
        %5526 = vmatpush1.msra.mxu0 0.0
        %5527 = vmatprep.subr.mxu0 0.0
        %5528 = vmatpush1.msra.mxu0 0.0
        %5529 = vmatprep.subr.mxu0 0.0
        %5530 = vmatpush1.msra.mxu0 0.0
        %5531 = vmatprep.subr.mxu0 0.0
        %5532 = vmatpush1.msra.mxu0 0.0
        %5533 = vmatprep.subr.mxu0 0.0
        %5534 = vmatpush1.msra.mxu0 0.0
        %5535 = vmatprep.subr.mxu0 0.0
        %5536 = vmatpush1.msra.mxu0 0.0
        %5537 = vmatprep.subr.mxu0 0.0
        %5538 = vmatpush1.msra.mxu0 0.0
        %5539 = vmatprep.subr.mxu0 0.0
        %5540 = vmatpush1.msra.mxu0 0.0
        %5541 = vmatprep.subr.mxu0 0.0
        %5542 = vmatpush1.msra.mxu0 0.0
        %5543 = vmatprep.subr.mxu0 0.0
        %5544 = vmatpush1.msra.mxu0 0.0
        %5545 = vmatprep.subr.mxu0 0.0
        %5546 = vmatpush1.msra.mxu0 0.0
        %5547 = vmatprep.subr.mxu0 0.0
        %5548 = vmatpush1.msra.mxu0 0.0
        %5549 = vmatprep.subr.mxu0 0.0
        %5550 = vmatpush1.msra.mxu0 0.0
        %5551 = vmatprep.subr.mxu0 0.0
        %5552 = vmatpush1.msra.mxu0 0.0
        %5553 = vmatprep.subr.mxu0 0.0
        %5554 = vmatpush1.msra.mxu0 0.0
        %5555 = vmatprep.subr.mxu0 0.0
        %5556 = vmatpush1.msra.mxu0 0.0
        %5557 = vmatprep.subr.mxu0 0.0
        %5558 = vmatpush1.msra.mxu0 0.0
        %5559 = vmatprep.subr.mxu0 0.0
        %5560 = vmatpush1.msra.mxu0 0.0
        %5561 = vmatprep.mubr.f32.mxu0 0.0
        %5562 = vmatmul.mubr.f32.gmra.mrb[0].mxu0 %v5492
        %v5563 = vpop.f32.mrb[0].mxu0
        %v5564 = vadd.f32 0.0, %v5563
        %v5565 = vpop.f32.mrb[0].mxu0
        %5566 = vmatprep.mubr.f32.mxu0 0.0
        %5567 = vmatmul.mubr.f32.gmra.mrb[0].mxu0 %v5495
        %v5568 = vpop.f32.mrb[0].mxu0
        %v5569 = vadd.f32 0.0, %v5568
        %v5570 = vpop.f32.mrb[0].mxu0
        %5571 = vdwg.mxu0
        %v5572 = vsel %vm1401, %v5312, 0.0
        %5573 = vadd.xlane.f32.xlu0 %v5572
        %v5574 = vpop.xlane.xlu0 %5573
        %v5575 = vsel %vm1401, %v5317, 0.0
        %5576 = vadd.xlane.f32.xlu0 %v5575
        %v5577 = vpop.xlane.xlu0 %5576
        %v5578 = vmul.f32 %v5312, %v5312
        %v5579 = vmul.f32 %v5317, %v5317
        %v5580 = vsel %vm1401, %v5578, 0.0
        %5581 = vadd.xlane.f32.xlu0 %v5580
        %v5582 = vpop.xlane.xlu0 %5581
        %v5583 = vsel %vm1401, %v5579, 0.0
        %5584 = vadd.xlane.f32.xlu0 %v5583
        %v5585 = vpop.xlane.xlu0 %5584
        %v5586 = vsel %vm1401, %v5396, 0.0
        %5587 = vadd.xlane.f32.xlu0 %v5586
        %v5588 = vpop.xlane.xlu0 %5587
        %v5589 = vsel %vm1401, %v5401, 0.0
        %5590 = vadd.xlane.f32.xlu0 %v5589
        %v5591 = vpop.xlane.xlu0 %5590
        %v5592 = vmul.f32 %v5396, %v5396
        %v5593 = vmul.f32 %v5401, %v5401
        %v5594 = vsel %vm1401, %v5592, 0.0
        %5595 = vadd.xlane.f32.xlu0 %v5594
        %v5596 = vpop.xlane.xlu0 %5595
        %v5597 = vsel %vm1401, %v5593, 0.0
        %5598 = vadd.xlane.f32.xlu0 %v5597
        %v5599 = vpop.xlane.xlu0 %5598
        %v5600 = vadd.f32 %v5574, %v5588
        %v5601 = vadd.f32 %v5577, %v5591
        %v5602 = vadd.f32 %v5582, %v5596
        %v5603 = vadd.f32 %v5585, %v5599
        %v5604 = vsel %vm1401, %v5480, 0.0
        %5605 = vadd.xlane.f32.xlu0 %v5604
        %v5606 = vpop.xlane.xlu0 %5605
        %v5607 = vsel %vm1401, %v5485, 0.0
        %5608 = vadd.xlane.f32.xlu0 %v5607
        %v5609 = vpop.xlane.xlu0 %5608
        %v5610 = vmul.f32 %v5480, %v5480
        %v5611 = vmul.f32 %v5485, %v5485
        %v5612 = vsel %vm1401, %v5610, 0.0
        %5613 = vadd.xlane.f32.xlu0 %v5612
        %v5614 = vpop.xlane.xlu0 %5613
        %v5615 = vsel %vm1401, %v5611, 0.0
        %5616 = vadd.xlane.f32.xlu0 %v5615
        %v5617 = vpop.xlane.xlu0 %5616
        %v5618 = vadd.f32 %v5600, %v5606
        %v5619 = vadd.f32 %v5601, %v5609
        %v5620 = vadd.f32 %v5602, %v5614
        %v5621 = vadd.f32 %v5603, %v5617
        %v5622 = vsel %vm1401, %v5564, 0.0
        %5623 = vadd.xlane.f32.xlu0 %v5622
        %v5624 = vpop.xlane.xlu0 %5623
        %v5625 = vsel %vm1401, %v5569, 0.0
        %5626 = vadd.xlane.f32.xlu0 %v5625
        %v5627 = vpop.xlane.xlu0 %5626
        %v5628 = vmul.f32 %v5564, %v5564
        %v5629 = vmul.f32 %v5569, %v5569
        %v5630 = vsel %vm1401, %v5628, 0.0
        %5631 = vadd.xlane.f32.xlu0 %v5630
        %v5632 = vpop.xlane.xlu0 %5631
        %v5633 = vsel %vm1401, %v5629, 0.0
        %5634 = vadd.xlane.f32.xlu0 %v5633
        %v5635 = vpop.xlane.xlu0 %5634
        %v5636 = vadd.f32 %v5618, %v5624
        %v5637 = vadd.f32 %v5619, %v5627
        %v5638 = vadd.f32 %v5620, %v5632
        %v5639 = vadd.f32 %v5621, %v5635
        %v5640 = vmul.f32 %v5636, 0.015625
        %v5641 = vmul.f32 %v5637, 0.015625
        %v5642 = vmul.f32 %v5638, 0.015625
        %v5643 = vmul.f32 %v5639, 0.015625
        %v5644 = vmul.f32 %v5640, %v5640
        %v5645 = vmul.f32 %v5641, %v5641
        %v5646 = vsub.f32 %v5642, %v5644
        %v5647 = vsub.f32 %v5643, %v5645
        %v5648 = vadd.f32 %v5646, 1e-05
        %v5649 = vadd.f32 %v5647, 1e-05
        %v5650 = vrsqrt.pop %v5648
        %v5651 = vrsqrt.pop %v5649
        %v5652 = vsub.f32 %v5312, %v5640
        %v5653 = vsub.f32 %v5317, %v5641
        %v5654 = vmul.f32 %v5652, %v5650
        %v5655 = vmul.f32 %v5653, %v5651
        %v5657 = vlaneseq
        %v5658 = vshrl.u32 %v5657, 7
        %v5659 = vsub.s32 0, %v5658
        %v5660 = vrot.slane %v5227, %v5659
        %v5662 = vmul.f32 %v5654, %v5660
        %v5663 = vmul.f32 %v5655, %v5660
        %v5665 = vlaneseq
        %v5666 = vshrl.u32 %v5665, 7
        %v5667 = vsub.s32 0, %v5666
        %v5668 = vrot.slane %v5228, %v5667
        %v5670 = vadd.f32 %v5662, %v5668
        %v5671 = vadd.f32 %v5663, %v5668
        %v5672 = vsub.f32 %v5396, %v5640
        %v5673 = vsub.f32 %v5401, %v5641
        %v5674 = vmul.f32 %v5672, %v5650
        %v5675 = vmul.f32 %v5673, %v5651
        %5676 = vrot.lane.b32.xlu0 %v5660, 112
        %v5677 = vpop.permute.xlu0 %5676
        %v5679 = vmul.f32 %v5674, %v5677
        %v5680 = vmul.f32 %v5675, %v5677
        %5681 = vrot.lane.b32.xlu0 %v5668, 112
        %v5682 = vpop.permute.xlu0 %5681
        %v5684 = vadd.f32 %v5679, %v5682
        %v5685 = vadd.f32 %v5680, %v5682
        %v5687 = vsel %vm1401, %v5684, 0
        %v5690 = vsel %vm1401, %v5685, 0
        %5692 = vmatprep.subr.mxu0 0.0
        %5693 = vmatpush1.msra.mxu0 %v5231
        %5694 = vmatprep.subr.mxu0 0.0
        %5695 = vmatpush1.msra.mxu0 %v5232
        %5696 = vmatprep.subr.mxu0 0.0
        %5697 = vmatpush1.msra.mxu0 0.0
        %5698 = vmatprep.subr.mxu0 0.0
        %5699 = vmatpush1.msra.mxu0 0.0
        %5700 = vmatprep.subr.mxu0 0.0
        %5701 = vmatpush1.msra.mxu0 0.0
        %5702 = vmatprep.subr.mxu0 0.0
        %5703 = vmatpush1.msra.mxu0 0.0
        %5704 = vmatprep.subr.mxu0 0.0
        %5705 = vmatpush1.msra.mxu0 0.0
        %5706 = vmatprep.subr.mxu0 0.0
        %5707 = vmatpush1.msra.mxu0 0.0
        %5708 = vmatprep.subr.mxu0 0.0
        %5709 = vmatpush1.msra.mxu0 0.0
        %5710 = vmatprep.subr.mxu0 0.0
        %5711 = vmatpush1.msra.mxu0 0.0
        %5712 = vmatprep.subr.mxu0 0.0
        %5713 = vmatpush1.msra.mxu0 0.0
        %5714 = vmatprep.subr.mxu0 0.0
        %5715 = vmatpush1.msra.mxu0 0.0
        %5716 = vmatprep.subr.mxu0 0.0
        %5717 = vmatpush1.msra.mxu0 0.0
        %5718 = vmatprep.subr.mxu0 0.0
        %5719 = vmatpush1.msra.mxu0 0.0
        %5720 = vmatprep.subr.mxu0 0.0
        %5721 = vmatpush1.msra.mxu0 0.0
        %5722 = vmatprep.subr.mxu0 0.0
        %5723 = vmatpush1.msra.mxu0 0.0
        %5724 = vmatprep.subr.mxu0 0.0
        %5725 = vmatpush1.msra.mxu0 0.0
        %5726 = vmatprep.subr.mxu0 0.0
        %5727 = vmatpush1.msra.mxu0 0.0
        %5728 = vmatprep.subr.mxu0 0.0
        %5729 = vmatpush1.msra.mxu0 0.0
        %5730 = vmatprep.subr.mxu0 0.0
        %5731 = vmatpush1.msra.mxu0 0.0
        %5732 = vmatprep.subr.mxu0 0.0
        %5733 = vmatpush1.msra.mxu0 0.0
        %5734 = vmatprep.subr.mxu0 0.0
        %5735 = vmatpush1.msra.mxu0 0.0
        %5736 = vmatprep.subr.mxu0 0.0
        %5737 = vmatpush1.msra.mxu0 0.0
        %5738 = vmatprep.subr.mxu0 0.0
        %5739 = vmatpush1.msra.mxu0 0.0
        %5740 = vmatprep.subr.mxu0 0.0
        %5741 = vmatpush1.msra.mxu0 0.0
        %5742 = vmatprep.subr.mxu0 0.0
        %5743 = vmatpush1.msra.mxu0 0.0
        %5744 = vmatprep.subr.mxu0 0.0
        %5745 = vmatpush1.msra.mxu0 0.0
        %5746 = vmatprep.subr.mxu0 0.0
        %5747 = vmatpush1.msra.mxu0 0.0
        %5748 = vmatprep.subr.mxu0 0.0
        %5749 = vmatpush1.msra.mxu0 0.0
        %5750 = vmatprep.subr.mxu0 0.0
        %5751 = vmatpush1.msra.mxu0 0.0
        %5752 = vmatprep.subr.mxu0 0.0
        %5753 = vmatpush1.msra.mxu0 0.0
        %5754 = vmatprep.subr.mxu0 0.0
        %5755 = vmatpush1.msra.mxu0 0.0
        %5756 = vmatprep.mubr.f32.mxu0 0.0
        %5757 = vmatmul.mubr.f32.gmra.mrb[0].mxu0 %v5687
        %v5758 = vpop.f32.mrb[0].mxu0
        %v5759 = vadd.f32 0.0, %v5758
        %v5760 = vpop.f32.mrb[0].mxu0
        %5761 = vmatprep.mubr.f32.mxu0 0.0
        %5762 = vmatmul.mubr.f32.gmra.mrb[0].mxu0 %v5690
        %v5763 = vpop.f32.mrb[0].mxu0
        %v5764 = vadd.f32 0.0, %v5763
        %v5765 = vpop.f32.mrb[0].mxu0
        %5766 = vdwg.mxu0
        %v5768 = vsel %vm1401, %v5670, 0
        %v5771 = vsel %vm1401, %v5671, 0
        %5773 = vmatprep.subr.mxu0 0.0
        %5774 = vmatpush1.msra.mxu0 %v5229
        %5775 = vmatprep.subr.mxu0 0.0
        %5776 = vmatpush1.msra.mxu0 %v5230
        %5777 = vmatprep.subr.mxu0 0.0
        %5778 = vmatpush1.msra.mxu0 0.0
        %5779 = vmatprep.subr.mxu0 0.0
        %5780 = vmatpush1.msra.mxu0 0.0
        %5781 = vmatprep.subr.mxu0 0.0
        %5782 = vmatpush1.msra.mxu0 0.0
        %5783 = vmatprep.subr.mxu0 0.0
        %5784 = vmatpush1.msra.mxu0 0.0
        %5785 = vmatprep.subr.mxu0 0.0
        %5786 = vmatpush1.msra.mxu0 0.0
        %5787 = vmatprep.subr.mxu0 0.0
        %5788 = vmatpush1.msra.mxu0 0.0
        %5789 = vmatprep.subr.mxu0 0.0
        %5790 = vmatpush1.msra.mxu0 0.0
        %5791 = vmatprep.subr.mxu0 0.0
        %5792 = vmatpush1.msra.mxu0 0.0
        %5793 = vmatprep.subr.mxu0 0.0
        %5794 = vmatpush1.msra.mxu0 0.0
        %5795 = vmatprep.subr.mxu0 0.0
        %5796 = vmatpush1.msra.mxu0 0.0
        %5797 = vmatprep.subr.mxu0 0.0
        %5798 = vmatpush1.msra.mxu0 0.0
        %5799 = vmatprep.subr.mxu0 0.0
        %5800 = vmatpush1.msra.mxu0 0.0
        %5801 = vmatprep.subr.mxu0 0.0
        %5802 = vmatpush1.msra.mxu0 0.0
        %5803 = vmatprep.subr.mxu0 0.0
        %5804 = vmatpush1.msra.mxu0 0.0
        %5805 = vmatprep.subr.mxu0 0.0
        %5806 = vmatpush1.msra.mxu0 0.0
        %5807 = vmatprep.subr.mxu0 0.0
        %5808 = vmatpush1.msra.mxu0 0.0
        %5809 = vmatprep.subr.mxu0 0.0
        %5810 = vmatpush1.msra.mxu0 0.0
        %5811 = vmatprep.subr.mxu0 0.0
        %5812 = vmatpush1.msra.mxu0 0.0
        %5813 = vmatprep.subr.mxu0 0.0
        %5814 = vmatpush1.msra.mxu0 0.0
        %5815 = vmatprep.subr.mxu0 0.0
        %5816 = vmatpush1.msra.mxu0 0.0
        %5817 = vmatprep.subr.mxu0 0.0
        %5818 = vmatpush1.msra.mxu0 0.0
        %5819 = vmatprep.subr.mxu0 0.0
        %5820 = vmatpush1.msra.mxu0 0.0
        %5821 = vmatprep.subr.mxu0 0.0
        %5822 = vmatpush1.msra.mxu0 0.0
        %5823 = vmatprep.subr.mxu0 0.0
        %5824 = vmatpush1.msra.mxu0 0.0
        %5825 = vmatprep.subr.mxu0 0.0
        %5826 = vmatpush1.msra.mxu0 0.0
        %5827 = vmatprep.subr.mxu0 0.0
        %5828 = vmatpush1.msra.mxu0 0.0
        %5829 = vmatprep.subr.mxu0 0.0
        %5830 = vmatpush1.msra.mxu0 0.0
        %5831 = vmatprep.subr.mxu0 0.0
        %5832 = vmatpush1.msra.mxu0 0.0
        %5833 = vmatprep.subr.mxu0 0.0
        %5834 = vmatpush1.msra.mxu0 0.0
        %5835 = vmatprep.subr.mxu0 0.0
        %5836 = vmatpush1.msra.mxu0 0.0
        %5837 = vmatprep.mubr.f32.mxu0 0.0
        %5838 = vmatmul.mubr.f32.gmra.mrb[0].mxu0 %v5768
        %v5839 = vpop.f32.mrb[0].mxu0
        %v5840 = vadd.f32 %v5759, %v5839
        %v5841 = vpop.f32.mrb[0].mxu0
        %5842 = vmatprep.mubr.f32.mxu0 0.0
        %5843 = vmatmul.mubr.f32.gmra.mrb[0].mxu0 %v5771
        %v5844 = vpop.f32.mrb[0].mxu0
        %v5845 = vadd.f32 %v5764, %v5844
        %v5846 = vpop.f32.mrb[0].mxu0
        %5847 = vdwg.mxu0
        %v5848 = vsub.f32 %v5480, %v5640
        %v5849 = vsub.f32 %v5485, %v5641
        %v5850 = vmul.f32 %v5848, %v5650
        %v5851 = vmul.f32 %v5849, %v5651
        %5852 = vrot.lane.b32.xlu0 %v5660, 96
        %v5853 = vpop.permute.xlu0 %5852
        %v5855 = vmul.f32 %v5850, %v5853
        %v5856 = vmul.f32 %v5851, %v5853
        %5857 = vrot.lane.b32.xlu0 %v5668, 96
        %v5858 = vpop.permute.xlu0 %5857
        %v5860 = vadd.f32 %v5855, %v5858
        %v5861 = vadd.f32 %v5856, %v5858
        %v5863 = vsel %vm1401, %v5860, 0
        %v5866 = vsel %vm1401, %v5861, 0
        %5868 = vmatprep.subr.mxu0 0.0
        %5869 = vmatpush1.msra.mxu0 %v5233
        %5870 = vmatprep.subr.mxu0 0.0
        %5871 = vmatpush1.msra.mxu0 %v5234
        %5872 = vmatprep.subr.mxu0 0.0
        %5873 = vmatpush1.msra.mxu0 0.0
        %5874 = vmatprep.subr.mxu0 0.0
        %5875 = vmatpush1.msra.mxu0 0.0
        %5876 = vmatprep.subr.mxu0 0.0
        %5877 = vmatpush1.msra.mxu0 0.0
        %5878 = vmatprep.subr.mxu0 0.0
        %5879 = vmatpush1.msra.mxu0 0.0
        %5880 = vmatprep.subr.mxu0 0.0
        %5881 = vmatpush1.msra.mxu0 0.0
        %5882 = vmatprep.subr.mxu0 0.0
        %5883 = vmatpush1.msra.mxu0 0.0
        %5884 = vmatprep.subr.mxu0 0.0
        %5885 = vmatpush1.msra.mxu0 0.0
        %5886 = vmatprep.subr.mxu0 0.0
        %5887 = vmatpush1.msra.mxu0 0.0
        %5888 = vmatprep.subr.mxu0 0.0
        %5889 = vmatpush1.msra.mxu0 0.0
        %5890 = vmatprep.subr.mxu0 0.0
        %5891 = vmatpush1.msra.mxu0 0.0
        %5892 = vmatprep.subr.mxu0 0.0
        %5893 = vmatpush1.msra.mxu0 0.0
        %5894 = vmatprep.subr.mxu0 0.0
        %5895 = vmatpush1.msra.mxu0 0.0
        %5896 = vmatprep.subr.mxu0 0.0
        %5897 = vmatpush1.msra.mxu0 0.0
        %5898 = vmatprep.subr.mxu0 0.0
        %5899 = vmatpush1.msra.mxu0 0.0
        %5900 = vmatprep.subr.mxu0 0.0
        %5901 = vmatpush1.msra.mxu0 0.0
        %5902 = vmatprep.subr.mxu0 0.0
        %5903 = vmatpush1.msra.mxu0 0.0
        %5904 = vmatprep.subr.mxu0 0.0
        %5905 = vmatpush1.msra.mxu0 0.0
        %5906 = vmatprep.subr.mxu0 0.0
        %5907 = vmatpush1.msra.mxu0 0.0
        %5908 = vmatprep.subr.mxu0 0.0
        %5909 = vmatpush1.msra.mxu0 0.0
        %5910 = vmatprep.subr.mxu0 0.0
        %5911 = vmatpush1.msra.mxu0 0.0
        %5912 = vmatprep.subr.mxu0 0.0
        %5913 = vmatpush1.msra.mxu0 0.0
        %5914 = vmatprep.subr.mxu0 0.0
        %5915 = vmatpush1.msra.mxu0 0.0
        %5916 = vmatprep.subr.mxu0 0.0
        %5917 = vmatpush1.msra.mxu0 0.0
        %5918 = vmatprep.subr.mxu0 0.0
        %5919 = vmatpush1.msra.mxu0 0.0
        %5920 = vmatprep.subr.mxu0 0.0
        %5921 = vmatpush1.msra.mxu0 0.0
        %5922 = vmatprep.subr.mxu0 0.0
        %5923 = vmatpush1.msra.mxu0 0.0
        %5924 = vmatprep.subr.mxu0 0.0
        %5925 = vmatpush1.msra.mxu0 0.0
        %5926 = vmatprep.subr.mxu0 0.0
        %5927 = vmatpush1.msra.mxu0 0.0
        %5928 = vmatprep.subr.mxu0 0.0
        %5929 = vmatpush1.msra.mxu0 0.0
        %5930 = vmatprep.subr.mxu0 0.0
        %5931 = vmatpush1.msra.mxu0 0.0
        %5932 = vmatprep.mubr.f32.mxu0 0.0
        %5933 = vmatmul.mubr.f32.gmra.mrb[0].mxu0 %v5863
        %v5934 = vpop.f32.mrb[0].mxu0
        %v5935 = vadd.f32 0.0, %v5934
        %v5936 = vpop.f32.mrb[0].mxu0
        %5937 = vmatprep.mubr.f32.mxu0 0.0
        %5938 = vmatmul.mubr.f32.gmra.mrb[0].mxu0 %v5866
        %v5939 = vpop.f32.mrb[0].mxu0
        %v5940 = vadd.f32 0.0, %v5939
        %v5941 = vpop.f32.mrb[0].mxu0
        %5942 = vdwg.mxu0
        %v5943 = vadd.f32 %v5840, %v5935
        %v5944 = vadd.f32 %v5845, %v5940
        %v5945 = vsub.f32 %v5564, %v5640
        %v5946 = vsub.f32 %v5569, %v5641
        %v5947 = vmul.f32 %v5945, %v5650
        %v5948 = vmul.f32 %v5946, %v5651
        %5949 = vrot.lane.b32.xlu0 %v5660, 80
        %v5950 = vpop.permute.xlu0 %5949
        %v5952 = vmul.f32 %v5947, %v5950
        %v5953 = vmul.f32 %v5948, %v5950
        %5954 = vrot.lane.b32.xlu0 %v5668, 80
        %v5955 = vpop.permute.xlu0 %5954
        %v5957 = vadd.f32 %v5952, %v5955
        %v5958 = vadd.f32 %v5953, %v5955
        %v5960 = vsel %vm1401, %v5957, 0
        %v5963 = vsel %vm1401, %v5958, 0
        %5965 = vmatprep.subr.mxu0 0.0
        %5966 = vmatpush1.msra.mxu0 %v5235
        %5967 = vmatprep.subr.mxu0 0.0
        %5968 = vmatpush1.msra.mxu0 %v5236
        %5969 = vmatprep.subr.mxu0 0.0
        %5970 = vmatpush1.msra.mxu0 0.0
        %5971 = vmatprep.subr.mxu0 0.0
        %5972 = vmatpush1.msra.mxu0 0.0
        %5973 = vmatprep.subr.mxu0 0.0
        %5974 = vmatpush1.msra.mxu0 0.0
        %5975 = vmatprep.subr.mxu0 0.0
        %5976 = vmatpush1.msra.mxu0 0.0
        %5977 = vmatprep.subr.mxu0 0.0
        %5978 = vmatpush1.msra.mxu0 0.0
        %5979 = vmatprep.subr.mxu0 0.0
        %5980 = vmatpush1.msra.mxu0 0.0
        %5981 = vmatprep.subr.mxu0 0.0
        %5982 = vmatpush1.msra.mxu0 0.0
        %5983 = vmatprep.subr.mxu0 0.0
        %5984 = vmatpush1.msra.mxu0 0.0
        %5985 = vmatprep.subr.mxu0 0.0
        %5986 = vmatpush1.msra.mxu0 0.0
        %5987 = vmatprep.subr.mxu0 0.0
        %5988 = vmatpush1.msra.mxu0 0.0
        %5989 = vmatprep.subr.mxu0 0.0
        %5990 = vmatpush1.msra.mxu0 0.0
        %5991 = vmatprep.subr.mxu0 0.0
        %5992 = vmatpush1.msra.mxu0 0.0
        %5993 = vmatprep.subr.mxu0 0.0
        %5994 = vmatpush1.msra.mxu0 0.0
        %5995 = vmatprep.subr.mxu0 0.0
        %5996 = vmatpush1.msra.mxu0 0.0
        %5997 = vmatprep.subr.mxu0 0.0
        %5998 = vmatpush1.msra.mxu0 0.0
        %5999 = vmatprep.subr.mxu0 0.0
        %6000 = vmatpush1.msra.mxu0 0.0
        %6001 = vmatprep.subr.mxu0 0.0
        %6002 = vmatpush1.msra.mxu0 0.0
        %6003 = vmatprep.subr.mxu0 0.0
        %6004 = vmatpush1.msra.mxu0 0.0
        %6005 = vmatprep.subr.mxu0 0.0
        %6006 = vmatpush1.msra.mxu0 0.0
        %6007 = vmatprep.subr.mxu0 0.0
        %6008 = vmatpush1.msra.mxu0 0.0
        %6009 = vmatprep.subr.mxu0 0.0
        %6010 = vmatpush1.msra.mxu0 0.0
        %6011 = vmatprep.subr.mxu0 0.0
        %6012 = vmatpush1.msra.mxu0 0.0
        %6013 = vmatprep.subr.mxu0 0.0
        %6014 = vmatpush1.msra.mxu0 0.0
        %6015 = vmatprep.subr.mxu0 0.0
        %6016 = vmatpush1.msra.mxu0 0.0
        %6017 = vmatprep.subr.mxu0 0.0
        %6018 = vmatpush1.msra.mxu0 0.0
        %6019 = vmatprep.subr.mxu0 0.0
        %6020 = vmatpush1.msra.mxu0 0.0
        %6021 = vmatprep.subr.mxu0 0.0
        %6022 = vmatpush1.msra.mxu0 0.0
        %6023 = vmatprep.subr.mxu0 0.0
        %6024 = vmatpush1.msra.mxu0 0.0
        %6025 = vmatprep.subr.mxu0 0.0
        %6026 = vmatpush1.msra.mxu0 0.0
        %6027 = vmatprep.subr.mxu0 0.0
        %6028 = vmatpush1.msra.mxu0 0.0
        %6029 = vmatprep.mubr.f32.mxu0 0.0
        %6030 = vmatmul.mubr.f32.gmra.mrb[0].mxu0 %v5960
        %v6031 = vpop.f32.mrb[0].mxu0
        %v6032 = vadd.f32 0.0, %v6031
        %v6033 = vpop.f32.mrb[0].mxu0
        %6034 = vmatprep.mubr.f32.mxu0 0.0
        %6035 = vmatmul.mubr.f32.gmra.mrb[0].mxu0 %v5963
        %v6036 = vpop.f32.mrb[0].mxu0
        %v6037 = vadd.f32 0.0, %v6036
        %v6038 = vpop.f32.mrb[0].mxu0
        %6039 = vdwg.mxu0
        %v6040 = vadd.f32 %v5943, %v6032
        %v6041 = vadd.f32 %v5944, %v6037
        %v6042 = vld [vmem:[%s45] sm:$0xff]
        %v6043 = vld [vmem:[%s45 + $0x8] sm:$0xff]
        %v6044 = vld [vmem:[%s45 + $0x10] sm:$0xff]
        %v6045 = vld [vmem:[%s45 + $0x18] sm:$0xff]
        %v6046 = vld [vmem:[%s47] sm:$0x1]
        %v6047 = vld [vmem:[%s51] sm:$0xff]
        %v6048 = vld [vmem:[%s51 + $0x8] sm:$0xff]
        %v6049 = vld [vmem:[%s51 + $0x10] sm:$0xff]
        %v6050 = vld [vmem:[%s51 + $0x18] sm:$0xff]
        %v6051 = vld [vmem:[%s53] sm:$0x1]
        %v6053 = vlaneseq
        %v6054 = vshrl.u32 %v6053, 7
        %v6055 = vsub.s32 0, %v6054
        %v6056 = vrot.slane %v6046, %v6055
        %vm6058 = vcmask 261120
        %v6060 = vsel %vm6058, %v6040, 0
        %v6063 = vsel %vm6058, %v6041, 0
        %6065 = vmatprep.subr.mxu0 0.0
        %6066 = vmatpush1.msra.mxu0 %v6042
        %6067 = vmatprep.subr.mxu0 0.0
        %6068 = vmatpush1.msra.mxu0 %v6043
        %6069 = vmatprep.subr.mxu0 0.0
        %6070 = vmatpush1.msra.mxu0 %v6044
        %6071 = vmatprep.subr.mxu0 0.0
        %6072 = vmatpush1.msra.mxu0 %v6045
        %6073 = vmatprep.subr.mxu0 0.0
        %6074 = vmatpush1.msra.mxu0 0.0
        %6075 = vmatprep.subr.mxu0 0.0
        %6076 = vmatpush1.msra.mxu0 0.0
        %6077 = vmatprep.subr.mxu0 0.0
        %6078 = vmatpush1.msra.mxu0 0.0
        %6079 = vmatprep.subr.mxu0 0.0
        %6080 = vmatpush1.msra.mxu0 0.0
        %6081 = vmatprep.subr.mxu0 0.0
        %6082 = vmatpush1.msra.mxu0 0.0
        %6083 = vmatprep.subr.mxu0 0.0
        %6084 = vmatpush1.msra.mxu0 0.0
        %6085 = vmatprep.subr.mxu0 0.0
        %6086 = vmatpush1.msra.mxu0 0.0
        %6087 = vmatprep.subr.mxu0 0.0
        %6088 = vmatpush1.msra.mxu0 0.0
        %6089 = vmatprep.subr.mxu0 0.0
        %6090 = vmatpush1.msra.mxu0 0.0
        %6091 = vmatprep.subr.mxu0 0.0
        %6092 = vmatpush1.msra.mxu0 0.0
        %6093 = vmatprep.subr.mxu0 0.0
        %6094 = vmatpush1.msra.mxu0 0.0
        %6095 = vmatprep.subr.mxu0 0.0
        %6096 = vmatpush1.msra.mxu0 0.0
        %6097 = vmatprep.subr.mxu0 0.0
        %6098 = vmatpush1.msra.mxu0 0.0
        %6099 = vmatprep.subr.mxu0 0.0
        %6100 = vmatpush1.msra.mxu0 0.0
        %6101 = vmatprep.subr.mxu0 0.0
        %6102 = vmatpush1.msra.mxu0 0.0
        %6103 = vmatprep.subr.mxu0 0.0
        %6104 = vmatpush1.msra.mxu0 0.0
        %6105 = vmatprep.subr.mxu0 0.0
        %6106 = vmatpush1.msra.mxu0 0.0
        %6107 = vmatprep.subr.mxu0 0.0
        %6108 = vmatpush1.msra.mxu0 0.0
        %6109 = vmatprep.subr.mxu0 0.0
        %6110 = vmatpush1.msra.mxu0 0.0
        %6111 = vmatprep.subr.mxu0 0.0
        %6112 = vmatpush1.msra.mxu0 0.0
        %6113 = vmatprep.subr.mxu0 0.0
        %6114 = vmatpush1.msra.mxu0 0.0
        %6115 = vmatprep.subr.mxu0 0.0
        %6116 = vmatpush1.msra.mxu0 0.0
        %6117 = vmatprep.subr.mxu0 0.0
        %6118 = vmatpush1.msra.mxu0 0.0
        %6119 = vmatprep.subr.mxu0 0.0
        %6120 = vmatpush1.msra.mxu0 0.0
        %6121 = vmatprep.subr.mxu0 0.0
        %6122 = vmatpush1.msra.mxu0 0.0
        %6123 = vmatprep.subr.mxu0 0.0
        %6124 = vmatpush1.msra.mxu0 0.0
        %6125 = vmatprep.subr.mxu0 0.0
        %6126 = vmatpush1.msra.mxu0 0.0
        %6127 = vmatprep.subr.mxu0 0.0
        %6128 = vmatpush1.msra.mxu0 0.0
        %6129 = vmatprep.mubr.f32.mxu0 0.0
        %6130 = vmatmul.mubr.f32.gmra.mrb[0].mxu0 %v6060
        %v6131 = vpop.f32.mrb[0].mxu0
        %v6132 = vadd.f32 %v6056, %v6131
        %v6133 = vpop.f32.mrb[0].mxu0
        %6134 = vmatprep.mubr.f32.mxu0 0.0
        %6135 = vmatmul.mubr.f32.gmra.mrb[0].mxu0 %v6063
        %v6136 = vpop.f32.mrb[0].mxu0
        %v6137 = vadd.f32 %v6056, %v6136
        %v6138 = vpop.f32.mrb[0].mxu0
        %6139 = vdwg.mxu0
        %v6140 = vmul.f32 %v6132, 0.35355338
        %v6141 = vmul.f32 %v6137, 0.35355338
        %v6142 = vld [vmem:[%s49] sm:$0xff]
        %v6143 = vld [vmem:[%s49 + $0x8] sm:$0xff]
        %6146 = vrot.lane.b32.xlu0 %v6132, 96
        %v6147 = vpop.permute.xlu0 %6146
        %6148 = vrot.lane.b32.xlu0 %v6137, 96
        %v6149 = vpop.permute.xlu0 %6148
        %v6151 = vsel %vm1571, %v6140, 0
        %v6154 = vsel %vm1571, %v6141, 0
        %v6156 = vsel %vm1571, %v6147, 0
        %v6158 = vsel %vm1571, %v6149, 0
        %6160 = vmatprep.subr.mxu0 0.0
        %6161 = vmatpush1.xpose.msra.mxu0 %v6156
        %6162 = vmatprep.subr.mxu0 0.0
        %6163 = vmatpush1.xpose.msra.mxu0 %v6158
        %6164 = vmatprep.subr.mxu0 0.0
        %6165 = vmatpush1.xpose.msra.mxu0 0.0
        %6166 = vmatprep.subr.mxu0 0.0
        %6167 = vmatpush1.xpose.msra.mxu0 0.0
        %6168 = vmatprep.subr.mxu0 0.0
        %6169 = vmatpush1.xpose.msra.mxu0 0.0
        %6170 = vmatprep.subr.mxu0 0.0
        %6171 = vmatpush1.xpose.msra.mxu0 0.0
        %6172 = vmatprep.subr.mxu0 0.0
        %6173 = vmatpush1.xpose.msra.mxu0 0.0
        %6174 = vmatprep.subr.mxu0 0.0
        %6175 = vmatpush1.xpose.msra.mxu0 0.0
        %6176 = vmatprep.subr.mxu0 0.0
        %6177 = vmatpush1.xpose.msra.mxu0 0.0
        %6178 = vmatprep.subr.mxu0 0.0
        %6179 = vmatpush1.xpose.msra.mxu0 0.0
        %6180 = vmatprep.subr.mxu0 0.0
        %6181 = vmatpush1.xpose.msra.mxu0 0.0
        %6182 = vmatprep.subr.mxu0 0.0
        %6183 = vmatpush1.xpose.msra.mxu0 0.0
        %6184 = vmatprep.subr.mxu0 0.0
        %6185 = vmatpush1.xpose.msra.mxu0 0.0
        %6186 = vmatprep.subr.mxu0 0.0
        %6187 = vmatpush1.xpose.msra.mxu0 0.0
        %6188 = vmatprep.subr.mxu0 0.0
        %6189 = vmatpush1.xpose.msra.mxu0 0.0
        %6190 = vmatprep.subr.mxu0 0.0
        %6191 = vmatpush1.xpose.msra.mxu0 0.0
        %6192 = vmatprep.subr.mxu0 0.0
        %6193 = vmatpush1.xpose.msra.mxu0 0.0
        %6194 = vmatprep.subr.mxu0 0.0
        %6195 = vmatpush1.xpose.msra.mxu0 0.0
        %6196 = vmatprep.subr.mxu0 0.0
        %6197 = vmatpush1.xpose.msra.mxu0 0.0
        %6198 = vmatprep.subr.mxu0 0.0
        %6199 = vmatpush1.xpose.msra.mxu0 0.0
        %6200 = vmatprep.subr.mxu0 0.0
        %6201 = vmatpush1.xpose.msra.mxu0 0.0
        %6202 = vmatprep.subr.mxu0 0.0
        %6203 = vmatpush1.xpose.msra.mxu0 0.0
        %6204 = vmatprep.subr.mxu0 0.0
        %6205 = vmatpush1.xpose.msra.mxu0 0.0
        %6206 = vmatprep.subr.mxu0 0.0
        %6207 = vmatpush1.xpose.msra.mxu0 0.0
        %6208 = vmatprep.subr.mxu0 0.0
        %6209 = vmatpush1.xpose.msra.mxu0 0.0
        %6210 = vmatprep.subr.mxu0 0.0
        %6211 = vmatpush1.xpose.msra.mxu0 0.0
        %6212 = vmatprep.subr.mxu0 0.0
        %6213 = vmatpush1.xpose.msra.mxu0 0.0
        %6214 = vmatprep.subr.mxu0 0.0
        %6215 = vmatpush1.xpose.msra.mxu0 0.0
        %6216 = vmatprep.subr.mxu0 0.0
        %6217 = vmatpush1.xpose.msra.mxu0 0.0
        %6218 = vmatprep.subr.mxu0 0.0
        %6219 = vmatpush1.xpose.msra.mxu0 0.0
        %6220 = vmatprep.subr.mxu0 0.0
        %6221 = vmatpush1.xpose.msra.mxu0 0.0
        %6222 = vmatprep.subr.mxu0 0.0
        %6223 = vmatpush1.xpose.msra.mxu0 0.0
        %6224 = vmatprep.mubr.f32.mxu0 0.0
        %6225 = vmatmul.mubr.f32.gmra.mrb[0].mxu0 %v6151
        %v6226 = vpop.f32.mrb[0].mxu0
        %v6227 = vadd.f32 %v6142, %v6226
        %v6228 = vpop.f32.mrb[0].mxu0
        %6229 = vmatprep.mubr.f32.mxu0 0.0
        %6230 = vmatmul.mubr.f32.gmra.mrb[0].mxu0 %v6154
        %v6231 = vpop.f32.mrb[0].mxu0
        %v6232 = vadd.f32 %v6143, %v6231
        %v6233 = vpop.f32.mrb[0].mxu0
        %6234 = vdwg.mxu0
        %v6235 = vsel %vm1401, %v6227, -inf
        %6236 = vmax.xlane.f32.xlu0 %v6235
        %v6237 = vpop.xlane.xlu0 %6236
        %v6238 = vsel %vm1401, %v6232, -inf
        %6239 = vmax.xlane.f32.xlu0 %v6238
        %v6240 = vpop.xlane.xlu0 %6239
        %v6241 = vsub.f32 %v6227, %v6237
        %v6242 = vsub.f32 %v6232, %v6240
        %v6243 = vmul.f32 %v6241, 1.442695
        %v6244 = vpow.pop %v6243
        %v6245 = vmul.f32 %v6242, 1.442695
        %v6246 = vpow.pop %v6245
        %v6247 = vsel %vm1401, %v6244, 0.0
        %6248 = vadd.xlane.f32.xlu0 %v6247
        %v6249 = vpop.xlane.xlu0 %6248
        %v6250 = vsel %vm1401, %v6246, 0.0
        %6251 = vadd.xlane.f32.xlu0 %v6250
        %v6252 = vpop.xlane.xlu0 %6251
        %v6253 = vrcp.pop %v6249
        %v6254 = vmul.f32 %v6244, %v6253
        %v6255 = vrcp.pop %v6252
        %v6256 = vmul.f32 %v6246, %v6255
        %6257 = vrot.lane.b32.xlu0 %v6132, 64
        %v6258 = vpop.permute.xlu0 %6257
        %6259 = vrot.lane.b32.xlu0 %v6137, 64
        %v6260 = vpop.permute.xlu0 %6259
        %v6264 = vsel %vm1401, %v6254, 0
        %v6267 = vsel %vm1401, %v6256, 0
        %6269 = vmatprep.subr.mxu0 0.0
        %6270 = vmatpush1.msra.mxu0 %v6258
        %6271 = vmatprep.subr.mxu0 0.0
        %6272 = vmatpush1.msra.mxu0 %v6260
        %6273 = vmatprep.subr.mxu0 0.0
        %6274 = vmatpush1.msra.mxu0 0.0
        %6275 = vmatprep.subr.mxu0 0.0
        %6276 = vmatpush1.msra.mxu0 0.0
        %6277 = vmatprep.subr.mxu0 0.0
        %6278 = vmatpush1.msra.mxu0 0.0
        %6279 = vmatprep.subr.mxu0 0.0
        %6280 = vmatpush1.msra.mxu0 0.0
        %6281 = vmatprep.subr.mxu0 0.0
        %6282 = vmatpush1.msra.mxu0 0.0
        %6283 = vmatprep.subr.mxu0 0.0
        %6284 = vmatpush1.msra.mxu0 0.0
        %6285 = vmatprep.subr.mxu0 0.0
        %6286 = vmatpush1.msra.mxu0 0.0
        %6287 = vmatprep.subr.mxu0 0.0
        %6288 = vmatpush1.msra.mxu0 0.0
        %6289 = vmatprep.subr.mxu0 0.0
        %6290 = vmatpush1.msra.mxu0 0.0
        %6291 = vmatprep.subr.mxu0 0.0
        %6292 = vmatpush1.msra.mxu0 0.0
        %6293 = vmatprep.subr.mxu0 0.0
        %6294 = vmatpush1.msra.mxu0 0.0
        %6295 = vmatprep.subr.mxu0 0.0
        %6296 = vmatpush1.msra.mxu0 0.0
        %6297 = vmatprep.subr.mxu0 0.0
        %6298 = vmatpush1.msra.mxu0 0.0
        %6299 = vmatprep.subr.mxu0 0.0
        %6300 = vmatpush1.msra.mxu0 0.0
        %6301 = vmatprep.subr.mxu0 0.0
        %6302 = vmatpush1.msra.mxu0 0.0
        %6303 = vmatprep.subr.mxu0 0.0
        %6304 = vmatpush1.msra.mxu0 0.0
        %6305 = vmatprep.subr.mxu0 0.0
        %6306 = vmatpush1.msra.mxu0 0.0
        %6307 = vmatprep.subr.mxu0 0.0
        %6308 = vmatpush1.msra.mxu0 0.0
        %6309 = vmatprep.subr.mxu0 0.0
        %6310 = vmatpush1.msra.mxu0 0.0
        %6311 = vmatprep.subr.mxu0 0.0
        %6312 = vmatpush1.msra.mxu0 0.0
        %6313 = vmatprep.subr.mxu0 0.0
        %6314 = vmatpush1.msra.mxu0 0.0
        %6315 = vmatprep.subr.mxu0 0.0
        %6316 = vmatpush1.msra.mxu0 0.0
        %6317 = vmatprep.subr.mxu0 0.0
        %6318 = vmatpush1.msra.mxu0 0.0
        %6319 = vmatprep.subr.mxu0 0.0
        %6320 = vmatpush1.msra.mxu0 0.0
        %6321 = vmatprep.subr.mxu0 0.0
        %6322 = vmatpush1.msra.mxu0 0.0
        %6323 = vmatprep.subr.mxu0 0.0
        %6324 = vmatpush1.msra.mxu0 0.0
        %6325 = vmatprep.subr.mxu0 0.0
        %6326 = vmatpush1.msra.mxu0 0.0
        %6327 = vmatprep.subr.mxu0 0.0
        %6328 = vmatpush1.msra.mxu0 0.0
        %6329 = vmatprep.subr.mxu0 0.0
        %6330 = vmatpush1.msra.mxu0 0.0
        %6331 = vmatprep.subr.mxu0 0.0
        %6332 = vmatpush1.msra.mxu0 0.0
        %6333 = vmatprep.mubr.f32.mxu0 0.0
        %6334 = vmatmul.mubr.f32.gmra.mrb[0].mxu0 %v6264
        %v6335 = vpop.f32.mrb[0].mxu0
        %v6336 = vadd.f32 0.0, %v6335
        %v6337 = vpop.f32.mrb[0].mxu0
        %6338 = vmatprep.mubr.f32.mxu0 0.0
        %6339 = vmatmul.mubr.f32.gmra.mrb[0].mxu0 %v6267
        %v6340 = vpop.f32.mrb[0].mxu0
        %v6341 = vadd.f32 0.0, %v6340
        %v6342 = vpop.f32.mrb[0].mxu0
        %6343 = vdwg.mxu0
        %s6344 = scalar_lea.vmem %s49, 16
        %v6345 = vld [vmem:[%s6344] sm:$0xff]
        %v6346 = vld [vmem:[%s6344 + $0x8] sm:$0xff]
        %6347 = vrot.lane.b32.xlu0 %v6140, 120
        %v6348 = vpop.permute.xlu0 %6347
        %6349 = vrot.lane.b32.xlu0 %v6141, 120
        %v6350 = vpop.permute.xlu0 %6349
        %6351 = vrot.lane.b32.xlu0 %v6132, 88
        %v6352 = vpop.permute.xlu0 %6351
        %6353 = vrot.lane.b32.xlu0 %v6137, 88
        %v6354 = vpop.permute.xlu0 %6353
        %v6355 = vsel %vm1571, %v6348, 0
        %v6357 = vsel %vm1571, %v6350, 0
        %v6359 = vsel %vm1571, %v6352, 0
        %v6361 = vsel %vm1571, %v6354, 0
        %6363 = vmatprep.subr.mxu0 0.0
        %6364 = vmatpush1.xpose.msra.mxu0 %v6359
        %6365 = vmatprep.subr.mxu0 0.0
        %6366 = vmatpush1.xpose.msra.mxu0 %v6361
        %6367 = vmatprep.subr.mxu0 0.0
        %6368 = vmatpush1.xpose.msra.mxu0 0.0
        %6369 = vmatprep.subr.mxu0 0.0
        %6370 = vmatpush1.xpose.msra.mxu0 0.0
        %6371 = vmatprep.subr.mxu0 0.0
        %6372 = vmatpush1.xpose.msra.mxu0 0.0
        %6373 = vmatprep.subr.mxu0 0.0
        %6374 = vmatpush1.xpose.msra.mxu0 0.0
        %6375 = vmatprep.subr.mxu0 0.0
        %6376 = vmatpush1.xpose.msra.mxu0 0.0
        %6377 = vmatprep.subr.mxu0 0.0
        %6378 = vmatpush1.xpose.msra.mxu0 0.0
        %6379 = vmatprep.subr.mxu0 0.0
        %6380 = vmatpush1.xpose.msra.mxu0 0.0
        %6381 = vmatprep.subr.mxu0 0.0
        %6382 = vmatpush1.xpose.msra.mxu0 0.0
        %6383 = vmatprep.subr.mxu0 0.0
        %6384 = vmatpush1.xpose.msra.mxu0 0.0
        %6385 = vmatprep.subr.mxu0 0.0
        %6386 = vmatpush1.xpose.msra.mxu0 0.0
        %6387 = vmatprep.subr.mxu0 0.0
        %6388 = vmatpush1.xpose.msra.mxu0 0.0
        %6389 = vmatprep.subr.mxu0 0.0
        %6390 = vmatpush1.xpose.msra.mxu0 0.0
        %6391 = vmatprep.subr.mxu0 0.0
        %6392 = vmatpush1.xpose.msra.mxu0 0.0
        %6393 = vmatprep.subr.mxu0 0.0
        %6394 = vmatpush1.xpose.msra.mxu0 0.0
        %6395 = vmatprep.subr.mxu0 0.0
        %6396 = vmatpush1.xpose.msra.mxu0 0.0
        %6397 = vmatprep.subr.mxu0 0.0
        %6398 = vmatpush1.xpose.msra.mxu0 0.0
        %6399 = vmatprep.subr.mxu0 0.0
        %6400 = vmatpush1.xpose.msra.mxu0 0.0
        %6401 = vmatprep.subr.mxu0 0.0
        %6402 = vmatpush1.xpose.msra.mxu0 0.0
        %6403 = vmatprep.subr.mxu0 0.0
        %6404 = vmatpush1.xpose.msra.mxu0 0.0
        %6405 = vmatprep.subr.mxu0 0.0
        %6406 = vmatpush1.xpose.msra.mxu0 0.0
        %6407 = vmatprep.subr.mxu0 0.0
        %6408 = vmatpush1.xpose.msra.mxu0 0.0
        %6409 = vmatprep.subr.mxu0 0.0
        %6410 = vmatpush1.xpose.msra.mxu0 0.0
        %6411 = vmatprep.subr.mxu0 0.0
        %6412 = vmatpush1.xpose.msra.mxu0 0.0
        %6413 = vmatprep.subr.mxu0 0.0
        %6414 = vmatpush1.xpose.msra.mxu0 0.0
        %6415 = vmatprep.subr.mxu0 0.0
        %6416 = vmatpush1.xpose.msra.mxu0 0.0
        %6417 = vmatprep.subr.mxu0 0.0
        %6418 = vmatpush1.xpose.msra.mxu0 0.0
        %6419 = vmatprep.subr.mxu0 0.0
        %6420 = vmatpush1.xpose.msra.mxu0 0.0
        %6421 = vmatprep.subr.mxu0 0.0
        %6422 = vmatpush1.xpose.msra.mxu0 0.0
        %6423 = vmatprep.subr.mxu0 0.0
        %6424 = vmatpush1.xpose.msra.mxu0 0.0
        %6425 = vmatprep.subr.mxu0 0.0
        %6426 = vmatpush1.xpose.msra.mxu0 0.0
        %6427 = vmatprep.mubr.f32.mxu0 0.0
        %6428 = vmatmul.mubr.f32.gmra.mrb[0].mxu0 %v6355
        %v6429 = vpop.f32.mrb[0].mxu0
        %v6430 = vadd.f32 %v6345, %v6429
        %v6431 = vpop.f32.mrb[0].mxu0
        %6432 = vmatprep.mubr.f32.mxu0 0.0
        %6433 = vmatmul.mubr.f32.gmra.mrb[0].mxu0 %v6357
        %v6434 = vpop.f32.mrb[0].mxu0
        %v6435 = vadd.f32 %v6346, %v6434
        %v6436 = vpop.f32.mrb[0].mxu0
        %6437 = vdwg.mxu0
        %v6438 = vsel %vm1401, %v6430, -inf
        %6439 = vmax.xlane.f32.xlu0 %v6438
        %v6440 = vpop.xlane.xlu0 %6439
        %v6441 = vsel %vm1401, %v6435, -inf
        %6442 = vmax.xlane.f32.xlu0 %v6441
        %v6443 = vpop.xlane.xlu0 %6442
        %v6444 = vsub.f32 %v6430, %v6440
        %v6445 = vsub.f32 %v6435, %v6443
        %v6446 = vmul.f32 %v6444, 1.442695
        %v6447 = vpow.pop %v6446
        %v6448 = vmul.f32 %v6445, 1.442695
        %v6449 = vpow.pop %v6448
        %v6450 = vsel %vm1401, %v6447, 0.0
        %6451 = vadd.xlane.f32.xlu0 %v6450
        %v6452 = vpop.xlane.xlu0 %6451
        %v6453 = vsel %vm1401, %v6449, 0.0
        %6454 = vadd.xlane.f32.xlu0 %v6453
        %v6455 = vpop.xlane.xlu0 %6454
        %v6456 = vrcp.pop %v6452
        %v6457 = vmul.f32 %v6447, %v6456
        %v6458 = vrcp.pop %v6455
        %v6459 = vmul.f32 %v6449, %v6458
        %6460 = vrot.lane.b32.xlu0 %v6132, 56
        %v6461 = vpop.permute.xlu0 %6460
        %6462 = vrot.lane.b32.xlu0 %v6137, 56
        %v6463 = vpop.permute.xlu0 %6462
        %v6467 = vsel %vm1401, %v6457, 0
        %v6470 = vsel %vm1401, %v6459, 0
        %6472 = vmatprep.subr.mxu0 0.0
        %6473 = vmatpush1.msra.mxu0 %v6461
        %6474 = vmatprep.subr.mxu0 0.0
        %6475 = vmatpush1.msra.mxu0 %v6463
        %6476 = vmatprep.subr.mxu0 0.0
        %6477 = vmatpush1.msra.mxu0 0.0
        %6478 = vmatprep.subr.mxu0 0.0
        %6479 = vmatpush1.msra.mxu0 0.0
        %6480 = vmatprep.subr.mxu0 0.0
        %6481 = vmatpush1.msra.mxu0 0.0
        %6482 = vmatprep.subr.mxu0 0.0
        %6483 = vmatpush1.msra.mxu0 0.0
        %6484 = vmatprep.subr.mxu0 0.0
        %6485 = vmatpush1.msra.mxu0 0.0
        %6486 = vmatprep.subr.mxu0 0.0
        %6487 = vmatpush1.msra.mxu0 0.0
        %6488 = vmatprep.subr.mxu0 0.0
        %6489 = vmatpush1.msra.mxu0 0.0
        %6490 = vmatprep.subr.mxu0 0.0
        %6491 = vmatpush1.msra.mxu0 0.0
        %6492 = vmatprep.subr.mxu0 0.0
        %6493 = vmatpush1.msra.mxu0 0.0
        %6494 = vmatprep.subr.mxu0 0.0
        %6495 = vmatpush1.msra.mxu0 0.0
        %6496 = vmatprep.subr.mxu0 0.0
        %6497 = vmatpush1.msra.mxu0 0.0
        %6498 = vmatprep.subr.mxu0 0.0
        %6499 = vmatpush1.msra.mxu0 0.0
        %6500 = vmatprep.subr.mxu0 0.0
        %6501 = vmatpush1.msra.mxu0 0.0
        %6502 = vmatprep.subr.mxu0 0.0
        %6503 = vmatpush1.msra.mxu0 0.0
        %6504 = vmatprep.subr.mxu0 0.0
        %6505 = vmatpush1.msra.mxu0 0.0
        %6506 = vmatprep.subr.mxu0 0.0
        %6507 = vmatpush1.msra.mxu0 0.0
        %6508 = vmatprep.subr.mxu0 0.0
        %6509 = vmatpush1.msra.mxu0 0.0
        %6510 = vmatprep.subr.mxu0 0.0
        %6511 = vmatpush1.msra.mxu0 0.0
        %6512 = vmatprep.subr.mxu0 0.0
        %6513 = vmatpush1.msra.mxu0 0.0
        %6514 = vmatprep.subr.mxu0 0.0
        %6515 = vmatpush1.msra.mxu0 0.0
        %6516 = vmatprep.subr.mxu0 0.0
        %6517 = vmatpush1.msra.mxu0 0.0
        %6518 = vmatprep.subr.mxu0 0.0
        %6519 = vmatpush1.msra.mxu0 0.0
        %6520 = vmatprep.subr.mxu0 0.0
        %6521 = vmatpush1.msra.mxu0 0.0
        %6522 = vmatprep.subr.mxu0 0.0
        %6523 = vmatpush1.msra.mxu0 0.0
        %6524 = vmatprep.subr.mxu0 0.0
        %6525 = vmatpush1.msra.mxu0 0.0
        %6526 = vmatprep.subr.mxu0 0.0
        %6527 = vmatpush1.msra.mxu0 0.0
        %6528 = vmatprep.subr.mxu0 0.0
        %6529 = vmatpush1.msra.mxu0 0.0
        %6530 = vmatprep.subr.mxu0 0.0
        %6531 = vmatpush1.msra.mxu0 0.0
        %6532 = vmatprep.subr.mxu0 0.0
        %6533 = vmatpush1.msra.mxu0 0.0
        %6534 = vmatprep.subr.mxu0 0.0
        %6535 = vmatpush1.msra.mxu0 0.0
        %6536 = vmatprep.mubr.f32.mxu0 0.0
        %6537 = vmatmul.mubr.f32.gmra.mrb[0].mxu0 %v6467
        %v6538 = vpop.f32.mrb[0].mxu0
        %v6539 = vadd.f32 0.0, %v6538
        %v6540 = vpop.f32.mrb[0].mxu0
        %6541 = vmatprep.mubr.f32.mxu0 0.0
        %6542 = vmatmul.mubr.f32.gmra.mrb[0].mxu0 %v6470
        %v6543 = vpop.f32.mrb[0].mxu0
        %v6544 = vadd.f32 0.0, %v6543
        %v6545 = vpop.f32.mrb[0].mxu0
        %6546 = vdwg.mxu0
        %v6548 = vsel %vm1571, %v6539, 0
        %v6551 = vsel %vm1571, %v6544, 0
        %6553 = vmatprep.subr.mxu0 0.0
        %6554 = vmatpush1.msra.mxu0 %v6048
        %6555 = vmatprep.subr.mxu0 0.0
        %6556 = vmatpush1.msra.mxu0 0.0
        %6557 = vmatprep.subr.mxu0 0.0
        %6558 = vmatpush1.msra.mxu0 0.0
        %6559 = vmatprep.subr.mxu0 0.0
        %6560 = vmatpush1.msra.mxu0 0.0
        %6561 = vmatprep.subr.mxu0 0.0
        %6562 = vmatpush1.msra.mxu0 0.0
        %6563 = vmatprep.subr.mxu0 0.0
        %6564 = vmatpush1.msra.mxu0 0.0
        %6565 = vmatprep.subr.mxu0 0.0
        %6566 = vmatpush1.msra.mxu0 0.0
        %6567 = vmatprep.subr.mxu0 0.0
        %6568 = vmatpush1.msra.mxu0 0.0
        %6569 = vmatprep.subr.mxu0 0.0
        %6570 = vmatpush1.msra.mxu0 0.0
        %6571 = vmatprep.subr.mxu0 0.0
        %6572 = vmatpush1.msra.mxu0 0.0
        %6573 = vmatprep.subr.mxu0 0.0
        %6574 = vmatpush1.msra.mxu0 0.0
        %6575 = vmatprep.subr.mxu0 0.0
        %6576 = vmatpush1.msra.mxu0 0.0
        %6577 = vmatprep.subr.mxu0 0.0
        %6578 = vmatpush1.msra.mxu0 0.0
        %6579 = vmatprep.subr.mxu0 0.0
        %6580 = vmatpush1.msra.mxu0 0.0
        %6581 = vmatprep.subr.mxu0 0.0
        %6582 = vmatpush1.msra.mxu0 0.0
        %6583 = vmatprep.subr.mxu0 0.0
        %6584 = vmatpush1.msra.mxu0 0.0
        %6585 = vmatprep.subr.mxu0 0.0
        %6586 = vmatpush1.msra.mxu0 0.0
        %6587 = vmatprep.subr.mxu0 0.0
        %6588 = vmatpush1.msra.mxu0 0.0
        %6589 = vmatprep.subr.mxu0 0.0
        %6590 = vmatpush1.msra.mxu0 0.0
        %6591 = vmatprep.subr.mxu0 0.0
        %6592 = vmatpush1.msra.mxu0 0.0
        %6593 = vmatprep.subr.mxu0 0.0
        %6594 = vmatpush1.msra.mxu0 0.0
        %6595 = vmatprep.subr.mxu0 0.0
        %6596 = vmatpush1.msra.mxu0 0.0
        %6597 = vmatprep.subr.mxu0 0.0
        %6598 = vmatpush1.msra.mxu0 0.0
        %6599 = vmatprep.subr.mxu0 0.0
        %6600 = vmatpush1.msra.mxu0 0.0
        %6601 = vmatprep.subr.mxu0 0.0
        %6602 = vmatpush1.msra.mxu0 0.0
        %6603 = vmatprep.subr.mxu0 0.0
        %6604 = vmatpush1.msra.mxu0 0.0
        %6605 = vmatprep.subr.mxu0 0.0
        %6606 = vmatpush1.msra.mxu0 0.0
        %6607 = vmatprep.subr.mxu0 0.0
        %6608 = vmatpush1.msra.mxu0 0.0
        %6609 = vmatprep.subr.mxu0 0.0
        %6610 = vmatpush1.msra.mxu0 0.0
        %6611 = vmatprep.subr.mxu0 0.0
        %6612 = vmatpush1.msra.mxu0 0.0
        %6613 = vmatprep.subr.mxu0 0.0
        %6614 = vmatpush1.msra.mxu0 0.0
        %6615 = vmatprep.subr.mxu0 0.0
        %6616 = vmatpush1.msra.mxu0 0.0
        %6617 = vmatprep.mubr.f32.mxu0 0.0
        %6618 = vmatmul.mubr.f32.gmra.mrb[0].mxu0 %v6548
        %v6619 = vpop.f32.mrb[0].mxu0
        %v6620 = vadd.f32 0.0, %v6619
        %v6621 = vpop.f32.mrb[0].mxu0
        %6622 = vmatprep.mubr.f32.mxu0 0.0
        %6623 = vmatmul.mubr.f32.gmra.mrb[0].mxu0 %v6551
        %v6624 = vpop.f32.mrb[0].mxu0
        %v6625 = vadd.f32 0.0, %v6624
        %v6626 = vpop.f32.mrb[0].mxu0
        %6627 = vdwg.mxu0
        %v6629 = vsel %vm1571, %v6336, 0
        %v6632 = vsel %vm1571, %v6341, 0
        %6634 = vmatprep.subr.mxu0 0.0
        %6635 = vmatpush1.msra.mxu0 %v6047
        %6636 = vmatprep.subr.mxu0 0.0
        %6637 = vmatpush1.msra.mxu0 0.0
        %6638 = vmatprep.subr.mxu0 0.0
        %6639 = vmatpush1.msra.mxu0 0.0
        %6640 = vmatprep.subr.mxu0 0.0
        %6641 = vmatpush1.msra.mxu0 0.0
        %6642 = vmatprep.subr.mxu0 0.0
        %6643 = vmatpush1.msra.mxu0 0.0
        %6644 = vmatprep.subr.mxu0 0.0
        %6645 = vmatpush1.msra.mxu0 0.0
        %6646 = vmatprep.subr.mxu0 0.0
        %6647 = vmatpush1.msra.mxu0 0.0
        %6648 = vmatprep.subr.mxu0 0.0
        %6649 = vmatpush1.msra.mxu0 0.0
        %6650 = vmatprep.subr.mxu0 0.0
        %6651 = vmatpush1.msra.mxu0 0.0
        %6652 = vmatprep.subr.mxu0 0.0
        %6653 = vmatpush1.msra.mxu0 0.0
        %6654 = vmatprep.subr.mxu0 0.0
        %6655 = vmatpush1.msra.mxu0 0.0
        %6656 = vmatprep.subr.mxu0 0.0
        %6657 = vmatpush1.msra.mxu0 0.0
        %6658 = vmatprep.subr.mxu0 0.0
        %6659 = vmatpush1.msra.mxu0 0.0
        %6660 = vmatprep.subr.mxu0 0.0
        %6661 = vmatpush1.msra.mxu0 0.0
        %6662 = vmatprep.subr.mxu0 0.0
        %6663 = vmatpush1.msra.mxu0 0.0
        %6664 = vmatprep.subr.mxu0 0.0
        %6665 = vmatpush1.msra.mxu0 0.0
        %6666 = vmatprep.subr.mxu0 0.0
        %6667 = vmatpush1.msra.mxu0 0.0
        %6668 = vmatprep.subr.mxu0 0.0
        %6669 = vmatpush1.msra.mxu0 0.0
        %6670 = vmatprep.subr.mxu0 0.0
        %6671 = vmatpush1.msra.mxu0 0.0
        %6672 = vmatprep.subr.mxu0 0.0
        %6673 = vmatpush1.msra.mxu0 0.0
        %6674 = vmatprep.subr.mxu0 0.0
        %6675 = vmatpush1.msra.mxu0 0.0
        %6676 = vmatprep.subr.mxu0 0.0
        %6677 = vmatpush1.msra.mxu0 0.0
        %6678 = vmatprep.subr.mxu0 0.0
        %6679 = vmatpush1.msra.mxu0 0.0
        %6680 = vmatprep.subr.mxu0 0.0
        %6681 = vmatpush1.msra.mxu0 0.0
        %6682 = vmatprep.subr.mxu0 0.0
        %6683 = vmatpush1.msra.mxu0 0.0
        %6684 = vmatprep.subr.mxu0 0.0
        %6685 = vmatpush1.msra.mxu0 0.0
        %6686 = vmatprep.subr.mxu0 0.0
        %6687 = vmatpush1.msra.mxu0 0.0
        %6688 = vmatprep.subr.mxu0 0.0
        %6689 = vmatpush1.msra.mxu0 0.0
        %6690 = vmatprep.subr.mxu0 0.0
        %6691 = vmatpush1.msra.mxu0 0.0
        %6692 = vmatprep.subr.mxu0 0.0
        %6693 = vmatpush1.msra.mxu0 0.0
        %6694 = vmatprep.subr.mxu0 0.0
        %6695 = vmatpush1.msra.mxu0 0.0
        %6696 = vmatprep.subr.mxu0 0.0
        %6697 = vmatpush1.msra.mxu0 0.0
        %6698 = vmatprep.mubr.f32.mxu0 0.0
        %6699 = vmatmul.mubr.f32.gmra.mrb[0].mxu0 %v6629
        %v6700 = vpop.f32.mrb[0].mxu0
        %v6701 = vadd.f32 %v6620, %v6700
        %v6702 = vpop.f32.mrb[0].mxu0
        %6703 = vmatprep.mubr.f32.mxu0 0.0
        %6704 = vmatmul.mubr.f32.gmra.mrb[0].mxu0 %v6632
        %v6705 = vpop.f32.mrb[0].mxu0
        %v6706 = vadd.f32 %v6625, %v6705
        %v6707 = vpop.f32.mrb[0].mxu0
        %6708 = vdwg.mxu0
        %s6709 = scalar_lea.vmem %s49, 32
        %v6710 = vld [vmem:[%s6709] sm:$0xff]
        %v6711 = vld [vmem:[%s6709 + $0x8] sm:$0xff]
        %6712 = vrot.lane.b32.xlu0 %v6140, 112
        %v6713 = vpop.permute.xlu0 %6712
        %6714 = vrot.lane.b32.xlu0 %v6141, 112
        %v6715 = vpop.permute.xlu0 %6714
        %6716 = vrot.lane.b32.xlu0 %v6132, 80
        %v6717 = vpop.permute.xlu0 %6716
        %6718 = vrot.lane.b32.xlu0 %v6137, 80
        %v6719 = vpop.permute.xlu0 %6718
        %v6720 = vsel %vm1571, %v6713, 0
        %v6722 = vsel %vm1571, %v6715, 0
        %v6724 = vsel %vm1571, %v6717, 0
        %v6726 = vsel %vm1571, %v6719, 0
        %6728 = vmatprep.subr.mxu0 0.0
        %6729 = vmatpush1.xpose.msra.mxu0 %v6724
        %6730 = vmatprep.subr.mxu0 0.0
        %6731 = vmatpush1.xpose.msra.mxu0 %v6726
        %6732 = vmatprep.subr.mxu0 0.0
        %6733 = vmatpush1.xpose.msra.mxu0 0.0
        %6734 = vmatprep.subr.mxu0 0.0
        %6735 = vmatpush1.xpose.msra.mxu0 0.0
        %6736 = vmatprep.subr.mxu0 0.0
        %6737 = vmatpush1.xpose.msra.mxu0 0.0
        %6738 = vmatprep.subr.mxu0 0.0
        %6739 = vmatpush1.xpose.msra.mxu0 0.0
        %6740 = vmatprep.subr.mxu0 0.0
        %6741 = vmatpush1.xpose.msra.mxu0 0.0
        %6742 = vmatprep.subr.mxu0 0.0
        %6743 = vmatpush1.xpose.msra.mxu0 0.0
        %6744 = vmatprep.subr.mxu0 0.0
        %6745 = vmatpush1.xpose.msra.mxu0 0.0
        %6746 = vmatprep.subr.mxu0 0.0
        %6747 = vmatpush1.xpose.msra.mxu0 0.0
        %6748 = vmatprep.subr.mxu0 0.0
        %6749 = vmatpush1.xpose.msra.mxu0 0.0
        %6750 = vmatprep.subr.mxu0 0.0
        %6751 = vmatpush1.xpose.msra.mxu0 0.0
        %6752 = vmatprep.subr.mxu0 0.0
        %6753 = vmatpush1.xpose.msra.mxu0 0.0
        %6754 = vmatprep.subr.mxu0 0.0
        %6755 = vmatpush1.xpose.msra.mxu0 0.0
        %6756 = vmatprep.subr.mxu0 0.0
        %6757 = vmatpush1.xpose.msra.mxu0 0.0
        %6758 = vmatprep.subr.mxu0 0.0
        %6759 = vmatpush1.xpose.msra.mxu0 0.0
        %6760 = vmatprep.subr.mxu0 0.0
        %6761 = vmatpush1.xpose.msra.mxu0 0.0
        %6762 = vmatprep.subr.mxu0 0.0
        %6763 = vmatpush1.xpose.msra.mxu0 0.0
        %6764 = vmatprep.subr.mxu0 0.0
        %6765 = vmatpush1.xpose.msra.mxu0 0.0
        %6766 = vmatprep.subr.mxu0 0.0
        %6767 = vmatpush1.xpose.msra.mxu0 0.0
        %6768 = vmatprep.subr.mxu0 0.0
        %6769 = vmatpush1.xpose.msra.mxu0 0.0
        %6770 = vmatprep.subr.mxu0 0.0
        %6771 = vmatpush1.xpose.msra.mxu0 0.0
        %6772 = vmatprep.subr.mxu0 0.0
        %6773 = vmatpush1.xpose.msra.mxu0 0.0
        %6774 = vmatprep.subr.mxu0 0.0
        %6775 = vmatpush1.xpose.msra.mxu0 0.0
        %6776 = vmatprep.subr.mxu0 0.0
        %6777 = vmatpush1.xpose.msra.mxu0 0.0
        %6778 = vmatprep.subr.mxu0 0.0
        %6779 = vmatpush1.xpose.msra.mxu0 0.0
        %6780 = vmatprep.subr.mxu0 0.0
        %6781 = vmatpush1.xpose.msra.mxu0 0.0
        %6782 = vmatprep.subr.mxu0 0.0
        %6783 = vmatpush1.xpose.msra.mxu0 0.0
        %6784 = vmatprep.subr.mxu0 0.0
        %6785 = vmatpush1.xpose.msra.mxu0 0.0
        %6786 = vmatprep.subr.mxu0 0.0
        %6787 = vmatpush1.xpose.msra.mxu0 0.0
        %6788 = vmatprep.subr.mxu0 0.0
        %6789 = vmatpush1.xpose.msra.mxu0 0.0
        %6790 = vmatprep.subr.mxu0 0.0
        %6791 = vmatpush1.xpose.msra.mxu0 0.0
        %6792 = vmatprep.mubr.f32.mxu0 0.0
        %6793 = vmatmul.mubr.f32.gmra.mrb[0].mxu0 %v6720
        %v6794 = vpop.f32.mrb[0].mxu0
        %v6795 = vadd.f32 %v6710, %v6794
        %v6796 = vpop.f32.mrb[0].mxu0
        %6797 = vmatprep.mubr.f32.mxu0 0.0
        %6798 = vmatmul.mubr.f32.gmra.mrb[0].mxu0 %v6722
        %v6799 = vpop.f32.mrb[0].mxu0
        %v6800 = vadd.f32 %v6711, %v6799
        %v6801 = vpop.f32.mrb[0].mxu0
        %6802 = vdwg.mxu0
        %v6803 = vsel %vm1401, %v6795, -inf
        %6804 = vmax.xlane.f32.xlu0 %v6803
        %v6805 = vpop.xlane.xlu0 %6804
        %v6806 = vsel %vm1401, %v6800, -inf
        %6807 = vmax.xlane.f32.xlu0 %v6806
        %v6808 = vpop.xlane.xlu0 %6807
        %v6809 = vsub.f32 %v6795, %v6805
        %v6810 = vsub.f32 %v6800, %v6808
        %v6811 = vmul.f32 %v6809, 1.442695
        %v6812 = vpow.pop %v6811
        %v6813 = vmul.f32 %v6810, 1.442695
        %v6814 = vpow.pop %v6813
        %v6815 = vsel %vm1401, %v6812, 0.0
        %6816 = vadd.xlane.f32.xlu0 %v6815
        %v6817 = vpop.xlane.xlu0 %6816
        %v6818 = vsel %vm1401, %v6814, 0.0
        %6819 = vadd.xlane.f32.xlu0 %v6818
        %v6820 = vpop.xlane.xlu0 %6819
        %v6821 = vrcp.pop %v6817
        %v6822 = vmul.f32 %v6812, %v6821
        %v6823 = vrcp.pop %v6820
        %v6824 = vmul.f32 %v6814, %v6823
        %6825 = vrot.lane.b32.xlu0 %v6132, 48
        %v6826 = vpop.permute.xlu0 %6825
        %6827 = vrot.lane.b32.xlu0 %v6137, 48
        %v6828 = vpop.permute.xlu0 %6827
        %v6832 = vsel %vm1401, %v6822, 0
        %v6835 = vsel %vm1401, %v6824, 0
        %6837 = vmatprep.subr.mxu0 0.0
        %6838 = vmatpush1.msra.mxu0 %v6826
        %6839 = vmatprep.subr.mxu0 0.0
        %6840 = vmatpush1.msra.mxu0 %v6828
        %6841 = vmatprep.subr.mxu0 0.0
        %6842 = vmatpush1.msra.mxu0 0.0
        %6843 = vmatprep.subr.mxu0 0.0
        %6844 = vmatpush1.msra.mxu0 0.0
        %6845 = vmatprep.subr.mxu0 0.0
        %6846 = vmatpush1.msra.mxu0 0.0
        %6847 = vmatprep.subr.mxu0 0.0
        %6848 = vmatpush1.msra.mxu0 0.0
        %6849 = vmatprep.subr.mxu0 0.0
        %6850 = vmatpush1.msra.mxu0 0.0
        %6851 = vmatprep.subr.mxu0 0.0
        %6852 = vmatpush1.msra.mxu0 0.0
        %6853 = vmatprep.subr.mxu0 0.0
        %6854 = vmatpush1.msra.mxu0 0.0
        %6855 = vmatprep.subr.mxu0 0.0
        %6856 = vmatpush1.msra.mxu0 0.0
        %6857 = vmatprep.subr.mxu0 0.0
        %6858 = vmatpush1.msra.mxu0 0.0
        %6859 = vmatprep.subr.mxu0 0.0
        %6860 = vmatpush1.msra.mxu0 0.0
        %6861 = vmatprep.subr.mxu0 0.0
        %6862 = vmatpush1.msra.mxu0 0.0
        %6863 = vmatprep.subr.mxu0 0.0
        %6864 = vmatpush1.msra.mxu0 0.0
        %6865 = vmatprep.subr.mxu0 0.0
        %6866 = vmatpush1.msra.mxu0 0.0
        %6867 = vmatprep.subr.mxu0 0.0
        %6868 = vmatpush1.msra.mxu0 0.0
        %6869 = vmatprep.subr.mxu0 0.0
        %6870 = vmatpush1.msra.mxu0 0.0
        %6871 = vmatprep.subr.mxu0 0.0
        %6872 = vmatpush1.msra.mxu0 0.0
        %6873 = vmatprep.subr.mxu0 0.0
        %6874 = vmatpush1.msra.mxu0 0.0
        %6875 = vmatprep.subr.mxu0 0.0
        %6876 = vmatpush1.msra.mxu0 0.0
        %6877 = vmatprep.subr.mxu0 0.0
        %6878 = vmatpush1.msra.mxu0 0.0
        %6879 = vmatprep.subr.mxu0 0.0
        %6880 = vmatpush1.msra.mxu0 0.0
        %6881 = vmatprep.subr.mxu0 0.0
        %6882 = vmatpush1.msra.mxu0 0.0
        %6883 = vmatprep.subr.mxu0 0.0
        %6884 = vmatpush1.msra.mxu0 0.0
        %6885 = vmatprep.subr.mxu0 0.0
        %6886 = vmatpush1.msra.mxu0 0.0
        %6887 = vmatprep.subr.mxu0 0.0
        %6888 = vmatpush1.msra.mxu0 0.0
        %6889 = vmatprep.subr.mxu0 0.0
        %6890 = vmatpush1.msra.mxu0 0.0
        %6891 = vmatprep.subr.mxu0 0.0
        %6892 = vmatpush1.msra.mxu0 0.0
        %6893 = vmatprep.subr.mxu0 0.0
        %6894 = vmatpush1.msra.mxu0 0.0
        %6895 = vmatprep.subr.mxu0 0.0
        %6896 = vmatpush1.msra.mxu0 0.0
        %6897 = vmatprep.subr.mxu0 0.0
        %6898 = vmatpush1.msra.mxu0 0.0
        %6899 = vmatprep.subr.mxu0 0.0
        %6900 = vmatpush1.msra.mxu0 0.0
        %6901 = vmatprep.mubr.f32.mxu0 0.0
        %6902 = vmatmul.mubr.f32.gmra.mrb[0].mxu0 %v6832
        %v6903 = vpop.f32.mrb[0].mxu0
        %v6904 = vadd.f32 0.0, %v6903
        %v6905 = vpop.f32.mrb[0].mxu0
        %6906 = vmatprep.mubr.f32.mxu0 0.0
        %6907 = vmatmul.mubr.f32.gmra.mrb[0].mxu0 %v6835
        %v6908 = vpop.f32.mrb[0].mxu0
        %v6909 = vadd.f32 0.0, %v6908
        %v6910 = vpop.f32.mrb[0].mxu0
        %6911 = vdwg.mxu0
        %v6913 = vsel %vm1571, %v6904, 0
        %v6916 = vsel %vm1571, %v6909, 0
        %6918 = vmatprep.subr.mxu0 0.0
        %6919 = vmatpush1.msra.mxu0 %v6049
        %6920 = vmatprep.subr.mxu0 0.0
        %6921 = vmatpush1.msra.mxu0 0.0
        %6922 = vmatprep.subr.mxu0 0.0
        %6923 = vmatpush1.msra.mxu0 0.0
        %6924 = vmatprep.subr.mxu0 0.0
        %6925 = vmatpush1.msra.mxu0 0.0
        %6926 = vmatprep.subr.mxu0 0.0
        %6927 = vmatpush1.msra.mxu0 0.0
        %6928 = vmatprep.subr.mxu0 0.0
        %6929 = vmatpush1.msra.mxu0 0.0
        %6930 = vmatprep.subr.mxu0 0.0
        %6931 = vmatpush1.msra.mxu0 0.0
        %6932 = vmatprep.subr.mxu0 0.0
        %6933 = vmatpush1.msra.mxu0 0.0
        %6934 = vmatprep.subr.mxu0 0.0
        %6935 = vmatpush1.msra.mxu0 0.0
        %6936 = vmatprep.subr.mxu0 0.0
        %6937 = vmatpush1.msra.mxu0 0.0
        %6938 = vmatprep.subr.mxu0 0.0
        %6939 = vmatpush1.msra.mxu0 0.0
        %6940 = vmatprep.subr.mxu0 0.0
        %6941 = vmatpush1.msra.mxu0 0.0
        %6942 = vmatprep.subr.mxu0 0.0
        %6943 = vmatpush1.msra.mxu0 0.0
        %6944 = vmatprep.subr.mxu0 0.0
        %6945 = vmatpush1.msra.mxu0 0.0
        %6946 = vmatprep.subr.mxu0 0.0
        %6947 = vmatpush1.msra.mxu0 0.0
        %6948 = vmatprep.subr.mxu0 0.0
        %6949 = vmatpush1.msra.mxu0 0.0
        %6950 = vmatprep.subr.mxu0 0.0
        %6951 = vmatpush1.msra.mxu0 0.0
        %6952 = vmatprep.subr.mxu0 0.0
        %6953 = vmatpush1.msra.mxu0 0.0
        %6954 = vmatprep.subr.mxu0 0.0
        %6955 = vmatpush1.msra.mxu0 0.0
        %6956 = vmatprep.subr.mxu0 0.0
        %6957 = vmatpush1.msra.mxu0 0.0
        %6958 = vmatprep.subr.mxu0 0.0
        %6959 = vmatpush1.msra.mxu0 0.0
        %6960 = vmatprep.subr.mxu0 0.0
        %6961 = vmatpush1.msra.mxu0 0.0
        %6962 = vmatprep.subr.mxu0 0.0
        %6963 = vmatpush1.msra.mxu0 0.0
        %6964 = vmatprep.subr.mxu0 0.0
        %6965 = vmatpush1.msra.mxu0 0.0
        %6966 = vmatprep.subr.mxu0 0.0
        %6967 = vmatpush1.msra.mxu0 0.0
        %6968 = vmatprep.subr.mxu0 0.0
        %6969 = vmatpush1.msra.mxu0 0.0
        %6970 = vmatprep.subr.mxu0 0.0
        %6971 = vmatpush1.msra.mxu0 0.0
        %6972 = vmatprep.subr.mxu0 0.0
        %6973 = vmatpush1.msra.mxu0 0.0
        %6974 = vmatprep.subr.mxu0 0.0
        %6975 = vmatpush1.msra.mxu0 0.0
        %6976 = vmatprep.subr.mxu0 0.0
        %6977 = vmatpush1.msra.mxu0 0.0
        %6978 = vmatprep.subr.mxu0 0.0
        %6979 = vmatpush1.msra.mxu0 0.0
        %6980 = vmatprep.subr.mxu0 0.0
        %6981 = vmatpush1.msra.mxu0 0.0
        %6982 = vmatprep.mubr.f32.mxu0 0.0
        %6983 = vmatmul.mubr.f32.gmra.mrb[0].mxu0 %v6913
        %v6984 = vpop.f32.mrb[0].mxu0
        %v6985 = vadd.f32 0.0, %v6984
        %v6986 = vpop.f32.mrb[0].mxu0
        %6987 = vmatprep.mubr.f32.mxu0 0.0
        %6988 = vmatmul.mubr.f32.gmra.mrb[0].mxu0 %v6916
        %v6989 = vpop.f32.mrb[0].mxu0
        %v6990 = vadd.f32 0.0, %v6989
        %v6991 = vpop.f32.mrb[0].mxu0
        %6992 = vdwg.mxu0
        %v6993 = vadd.f32 %v6701, %v6985
        %v6994 = vadd.f32 %v6706, %v6990
        %s6995 = scalar_lea.vmem %s49, 48
        %v6996 = vld [vmem:[%s6995] sm:$0xff]
        %v6997 = vld [vmem:[%s6995 + $0x8] sm:$0xff]
        %6998 = vrot.lane.b32.xlu0 %v6140, 104
        %v6999 = vpop.permute.xlu0 %6998
        %7000 = vrot.lane.b32.xlu0 %v6141, 104
        %v7001 = vpop.permute.xlu0 %7000
        %7002 = vrot.lane.b32.xlu0 %v6132, 72
        %v7003 = vpop.permute.xlu0 %7002
        %7004 = vrot.lane.b32.xlu0 %v6137, 72
        %v7005 = vpop.permute.xlu0 %7004
        %v7006 = vsel %vm1571, %v6999, 0
        %v7008 = vsel %vm1571, %v7001, 0
        %v7010 = vsel %vm1571, %v7003, 0
        %v7012 = vsel %vm1571, %v7005, 0
        %7014 = vmatprep.subr.mxu0 0.0
        %7015 = vmatpush1.xpose.msra.mxu0 %v7010
        %7016 = vmatprep.subr.mxu0 0.0
        %7017 = vmatpush1.xpose.msra.mxu0 %v7012
        %7018 = vmatprep.subr.mxu0 0.0
        %7019 = vmatpush1.xpose.msra.mxu0 0.0
        %7020 = vmatprep.subr.mxu0 0.0
        %7021 = vmatpush1.xpose.msra.mxu0 0.0
        %7022 = vmatprep.subr.mxu0 0.0
        %7023 = vmatpush1.xpose.msra.mxu0 0.0
        %7024 = vmatprep.subr.mxu0 0.0
        %7025 = vmatpush1.xpose.msra.mxu0 0.0
        %7026 = vmatprep.subr.mxu0 0.0
        %7027 = vmatpush1.xpose.msra.mxu0 0.0
        %7028 = vmatprep.subr.mxu0 0.0
        %7029 = vmatpush1.xpose.msra.mxu0 0.0
        %7030 = vmatprep.subr.mxu0 0.0
        %7031 = vmatpush1.xpose.msra.mxu0 0.0
        %7032 = vmatprep.subr.mxu0 0.0
        %7033 = vmatpush1.xpose.msra.mxu0 0.0
        %7034 = vmatprep.subr.mxu0 0.0
        %7035 = vmatpush1.xpose.msra.mxu0 0.0
        %7036 = vmatprep.subr.mxu0 0.0
        %7037 = vmatpush1.xpose.msra.mxu0 0.0
        %7038 = vmatprep.subr.mxu0 0.0
        %7039 = vmatpush1.xpose.msra.mxu0 0.0
        %7040 = vmatprep.subr.mxu0 0.0
        %7041 = vmatpush1.xpose.msra.mxu0 0.0
        %7042 = vmatprep.subr.mxu0 0.0
        %7043 = vmatpush1.xpose.msra.mxu0 0.0
        %7044 = vmatprep.subr.mxu0 0.0
        %7045 = vmatpush1.xpose.msra.mxu0 0.0
        %7046 = vmatprep.subr.mxu0 0.0
        %7047 = vmatpush1.xpose.msra.mxu0 0.0
        %7048 = vmatprep.subr.mxu0 0.0
        %7049 = vmatpush1.xpose.msra.mxu0 0.0
        %7050 = vmatprep.subr.mxu0 0.0
        %7051 = vmatpush1.xpose.msra.mxu0 0.0
        %7052 = vmatprep.subr.mxu0 0.0
        %7053 = vmatpush1.xpose.msra.mxu0 0.0
        %7054 = vmatprep.subr.mxu0 0.0
        %7055 = vmatpush1.xpose.msra.mxu0 0.0
        %7056 = vmatprep.subr.mxu0 0.0
        %7057 = vmatpush1.xpose.msra.mxu0 0.0
        %7058 = vmatprep.subr.mxu0 0.0
        %7059 = vmatpush1.xpose.msra.mxu0 0.0
        %7060 = vmatprep.subr.mxu0 0.0
        %7061 = vmatpush1.xpose.msra.mxu0 0.0
        %7062 = vmatprep.subr.mxu0 0.0
        %7063 = vmatpush1.xpose.msra.mxu0 0.0
        %7064 = vmatprep.subr.mxu0 0.0
        %7065 = vmatpush1.xpose.msra.mxu0 0.0
        %7066 = vmatprep.subr.mxu0 0.0
        %7067 = vmatpush1.xpose.msra.mxu0 0.0
        %7068 = vmatprep.subr.mxu0 0.0
        %7069 = vmatpush1.xpose.msra.mxu0 0.0
        %7070 = vmatprep.subr.mxu0 0.0
        %7071 = vmatpush1.xpose.msra.mxu0 0.0
        %7072 = vmatprep.subr.mxu0 0.0
        %7073 = vmatpush1.xpose.msra.mxu0 0.0
        %7074 = vmatprep.subr.mxu0 0.0
        %7075 = vmatpush1.xpose.msra.mxu0 0.0
        %7076 = vmatprep.subr.mxu0 0.0
        %7077 = vmatpush1.xpose.msra.mxu0 0.0
        %7078 = vmatprep.mubr.f32.mxu0 0.0
        %7079 = vmatmul.mubr.f32.gmra.mrb[0].mxu0 %v7006
        %v7080 = vpop.f32.mrb[0].mxu0
        %v7081 = vadd.f32 %v6996, %v7080
        %v7082 = vpop.f32.mrb[0].mxu0
        %7083 = vmatprep.mubr.f32.mxu0 0.0
        %7084 = vmatmul.mubr.f32.gmra.mrb[0].mxu0 %v7008
        %v7085 = vpop.f32.mrb[0].mxu0
        %v7086 = vadd.f32 %v6997, %v7085
        %v7087 = vpop.f32.mrb[0].mxu0
        %7088 = vdwg.mxu0
        %v7089 = vsel %vm1401, %v7081, -inf
        %7090 = vmax.xlane.f32.xlu0 %v7089
        %v7091 = vpop.xlane.xlu0 %7090
        %v7092 = vsel %vm1401, %v7086, -inf
        %7093 = vmax.xlane.f32.xlu0 %v7092
        %v7094 = vpop.xlane.xlu0 %7093
        %v7095 = vsub.f32 %v7081, %v7091
        %v7096 = vsub.f32 %v7086, %v7094
        %v7097 = vmul.f32 %v7095, 1.442695
        %v7098 = vpow.pop %v7097
        %v7099 = vmul.f32 %v7096, 1.442695
        %v7100 = vpow.pop %v7099
        %v7101 = vsel %vm1401, %v7098, 0.0
        %7102 = vadd.xlane.f32.xlu0 %v7101
        %v7103 = vpop.xlane.xlu0 %7102
        %v7104 = vsel %vm1401, %v7100, 0.0
        %7105 = vadd.xlane.f32.xlu0 %v7104
        %v7106 = vpop.xlane.xlu0 %7105
        %v7107 = vrcp.pop %v7103
        %v7108 = vmul.f32 %v7098, %v7107
        %v7109 = vrcp.pop %v7106
        %v7110 = vmul.f32 %v7100, %v7109
        %7111 = vrot.lane.b32.xlu0 %v6132, 40
        %v7112 = vpop.permute.xlu0 %7111
        %7113 = vrot.lane.b32.xlu0 %v6137, 40
        %v7114 = vpop.permute.xlu0 %7113
        %v7118 = vsel %vm1401, %v7108, 0
        %v7121 = vsel %vm1401, %v7110, 0
        %7123 = vmatprep.subr.mxu0 0.0
        %7124 = vmatpush1.msra.mxu0 %v7112
        %7125 = vmatprep.subr.mxu0 0.0
        %7126 = vmatpush1.msra.mxu0 %v7114
        %7127 = vmatprep.subr.mxu0 0.0
        %7128 = vmatpush1.msra.mxu0 0.0
        %7129 = vmatprep.subr.mxu0 0.0
        %7130 = vmatpush1.msra.mxu0 0.0
        %7131 = vmatprep.subr.mxu0 0.0
        %7132 = vmatpush1.msra.mxu0 0.0
        %7133 = vmatprep.subr.mxu0 0.0
        %7134 = vmatpush1.msra.mxu0 0.0
        %7135 = vmatprep.subr.mxu0 0.0
        %7136 = vmatpush1.msra.mxu0 0.0
        %7137 = vmatprep.subr.mxu0 0.0
        %7138 = vmatpush1.msra.mxu0 0.0
        %7139 = vmatprep.subr.mxu0 0.0
        %7140 = vmatpush1.msra.mxu0 0.0
        %7141 = vmatprep.subr.mxu0 0.0
        %7142 = vmatpush1.msra.mxu0 0.0
        %7143 = vmatprep.subr.mxu0 0.0
        %7144 = vmatpush1.msra.mxu0 0.0
        %7145 = vmatprep.subr.mxu0 0.0
        %7146 = vmatpush1.msra.mxu0 0.0
        %7147 = vmatprep.subr.mxu0 0.0
        %7148 = vmatpush1.msra.mxu0 0.0
        %7149 = vmatprep.subr.mxu0 0.0
        %7150 = vmatpush1.msra.mxu0 0.0
        %7151 = vmatprep.subr.mxu0 0.0
        %7152 = vmatpush1.msra.mxu0 0.0
        %7153 = vmatprep.subr.mxu0 0.0
        %7154 = vmatpush1.msra.mxu0 0.0
        %7155 = vmatprep.subr.mxu0 0.0
        %7156 = vmatpush1.msra.mxu0 0.0
        %7157 = vmatprep.subr.mxu0 0.0
        %7158 = vmatpush1.msra.mxu0 0.0
        %7159 = vmatprep.subr.mxu0 0.0
        %7160 = vmatpush1.msra.mxu0 0.0
        %7161 = vmatprep.subr.mxu0 0.0
        %7162 = vmatpush1.msra.mxu0 0.0
        %7163 = vmatprep.subr.mxu0 0.0
        %7164 = vmatpush1.msra.mxu0 0.0
        %7165 = vmatprep.subr.mxu0 0.0
        %7166 = vmatpush1.msra.mxu0 0.0
        %7167 = vmatprep.subr.mxu0 0.0
        %7168 = vmatpush1.msra.mxu0 0.0
        %7169 = vmatprep.subr.mxu0 0.0
        %7170 = vmatpush1.msra.mxu0 0.0
        %7171 = vmatprep.subr.mxu0 0.0
        %7172 = vmatpush1.msra.mxu0 0.0
        %7173 = vmatprep.subr.mxu0 0.0
        %7174 = vmatpush1.msra.mxu0 0.0
        %7175 = vmatprep.subr.mxu0 0.0
        %7176 = vmatpush1.msra.mxu0 0.0
        %7177 = vmatprep.subr.mxu0 0.0
        %7178 = vmatpush1.msra.mxu0 0.0
        %7179 = vmatprep.subr.mxu0 0.0
        %7180 = vmatpush1.msra.mxu0 0.0
        %7181 = vmatprep.subr.mxu0 0.0
        %7182 = vmatpush1.msra.mxu0 0.0
        %7183 = vmatprep.subr.mxu0 0.0
        %7184 = vmatpush1.msra.mxu0 0.0
        %7185 = vmatprep.subr.mxu0 0.0
        %7186 = vmatpush1.msra.mxu0 0.0
        %7187 = vmatprep.mubr.f32.mxu0 0.0
        %7188 = vmatmul.mubr.f32.gmra.mrb[0].mxu0 %v7118
        %v7189 = vpop.f32.mrb[0].mxu0
        %v7190 = vadd.f32 0.0, %v7189
        %v7191 = vpop.f32.mrb[0].mxu0
        %7192 = vmatprep.mubr.f32.mxu0 0.0
        %7193 = vmatmul.mubr.f32.gmra.mrb[0].mxu0 %v7121
        %v7194 = vpop.f32.mrb[0].mxu0
        %v7195 = vadd.f32 0.0, %v7194
        %v7196 = vpop.f32.mrb[0].mxu0
        %7197 = vdwg.mxu0
        %v7199 = vsel %vm1571, %v7190, 0
        %v7202 = vsel %vm1571, %v7195, 0
        %7204 = vmatprep.subr.mxu0 0.0
        %7205 = vmatpush1.msra.mxu0 %v6050
        %7206 = vmatprep.subr.mxu0 0.0
        %7207 = vmatpush1.msra.mxu0 0.0
        %7208 = vmatprep.subr.mxu0 0.0
        %7209 = vmatpush1.msra.mxu0 0.0
        %7210 = vmatprep.subr.mxu0 0.0
        %7211 = vmatpush1.msra.mxu0 0.0
        %7212 = vmatprep.subr.mxu0 0.0
        %7213 = vmatpush1.msra.mxu0 0.0
        %7214 = vmatprep.subr.mxu0 0.0
        %7215 = vmatpush1.msra.mxu0 0.0
        %7216 = vmatprep.subr.mxu0 0.0
        %7217 = vmatpush1.msra.mxu0 0.0
        %7218 = vmatprep.subr.mxu0 0.0
        %7219 = vmatpush1.msra.mxu0 0.0
        %7220 = vmatprep.subr.mxu0 0.0
        %7221 = vmatpush1.msra.mxu0 0.0
        %7222 = vmatprep.subr.mxu0 0.0
        %7223 = vmatpush1.msra.mxu0 0.0
        %7224 = vmatprep.subr.mxu0 0.0
        %7225 = vmatpush1.msra.mxu0 0.0
        %7226 = vmatprep.subr.mxu0 0.0
        %7227 = vmatpush1.msra.mxu0 0.0
        %7228 = vmatprep.subr.mxu0 0.0
        %7229 = vmatpush1.msra.mxu0 0.0
        %7230 = vmatprep.subr.mxu0 0.0
        %7231 = vmatpush1.msra.mxu0 0.0
        %7232 = vmatprep.subr.mxu0 0.0
        %7233 = vmatpush1.msra.mxu0 0.0
        %7234 = vmatprep.subr.mxu0 0.0
        %7235 = vmatpush1.msra.mxu0 0.0
        %7236 = vmatprep.subr.mxu0 0.0
        %7237 = vmatpush1.msra.mxu0 0.0
        %7238 = vmatprep.subr.mxu0 0.0
        %7239 = vmatpush1.msra.mxu0 0.0
        %7240 = vmatprep.subr.mxu0 0.0
        %7241 = vmatpush1.msra.mxu0 0.0
        %7242 = vmatprep.subr.mxu0 0.0
        %7243 = vmatpush1.msra.mxu0 0.0
        %7244 = vmatprep.subr.mxu0 0.0
        %7245 = vmatpush1.msra.mxu0 0.0
        %7246 = vmatprep.subr.mxu0 0.0
        %7247 = vmatpush1.msra.mxu0 0.0
        %7248 = vmatprep.subr.mxu0 0.0
        %7249 = vmatpush1.msra.mxu0 0.0
        %7250 = vmatprep.subr.mxu0 0.0
        %7251 = vmatpush1.msra.mxu0 0.0
        %7252 = vmatprep.subr.mxu0 0.0
        %7253 = vmatpush1.msra.mxu0 0.0
        %7254 = vmatprep.subr.mxu0 0.0
        %7255 = vmatpush1.msra.mxu0 0.0
        %7256 = vmatprep.subr.mxu0 0.0
        %7257 = vmatpush1.msra.mxu0 0.0
        %7258 = vmatprep.subr.mxu0 0.0
        %7259 = vmatpush1.msra.mxu0 0.0
        %7260 = vmatprep.subr.mxu0 0.0
        %7261 = vmatpush1.msra.mxu0 0.0
        %7262 = vmatprep.subr.mxu0 0.0
        %7263 = vmatpush1.msra.mxu0 0.0
        %7264 = vmatprep.subr.mxu0 0.0
        %7265 = vmatpush1.msra.mxu0 0.0
        %7266 = vmatprep.subr.mxu0 0.0
        %7267 = vmatpush1.msra.mxu0 0.0
        %7268 = vmatprep.mubr.f32.mxu0 0.0
        %7269 = vmatmul.mubr.f32.gmra.mrb[0].mxu0 %v7199
        %v7270 = vpop.f32.mrb[0].mxu0
        %v7271 = vadd.f32 0.0, %v7270
        %v7272 = vpop.f32.mrb[0].mxu0
        %7273 = vmatprep.mubr.f32.mxu0 0.0
        %7274 = vmatmul.mubr.f32.gmra.mrb[0].mxu0 %v7202
        %v7275 = vpop.f32.mrb[0].mxu0
        %v7276 = vadd.f32 0.0, %v7275
        %v7277 = vpop.f32.mrb[0].mxu0
        %7278 = vdwg.mxu0
        %v7279 = vadd.f32 %v6993, %v7271
        %v7280 = vadd.f32 %v6994, %v7276
        %v7282 = vlaneseq
        %v7283 = vshrl.u32 %v7282, 7
        %v7284 = vsub.s32 0, %v7283
        %v7285 = vrot.slane %v6051, %v7284
        %v7287 = vadd.f32 %v7279, %v7285
        %v7288 = vadd.f32 %v7280, %v7285
        %7289 = vxpose.xlu0.b32.start [1/16] %v7287, 128
        %7290 = vxpose.xlu0.b32.cont [2/16] %v7288, 128
        %7291 = vxpose.xlu0.b32.cont [3/16] 0.0, 128
        %7292 = vxpose.xlu0.b32.cont [4/16] 0.0, 128
        %7293 = vxpose.xlu0.b32.cont [5/16] 0.0, 128
        %7294 = vxpose.xlu0.b32.cont [6/16] 0.0, 128
        %7295 = vxpose.xlu0.b32.cont [7/16] 0.0, 128
        %7296 = vxpose.xlu0.b32.cont [8/16] 0.0, 128
        %7297 = vxpose.xlu0.b32.cont [9/16] 0.0, 128
        %7298 = vxpose.xlu0.b32.cont [10/16] 0.0, 128
        %7299 = vxpose.xlu0.b32.cont [11/16] 0.0, 128
        %7300 = vxpose.xlu0.b32.cont [12/16] 0.0, 128
        %7301 = vxpose.xlu0.b32.cont [13/16] 0.0, 128
        %7302 = vxpose.xlu0.b32.cont [14/16] 0.0, 128
        %7303 = vxpose.xlu0.b32.cont [15/16] 0.0, 128
        %7304 = vxpose.xlu0.b32.end [16/16] 0.0, 128
        %v7305 = vpop.trf.xlu0
        %v7306 = vpop.trf.xlu0
        %v7307 = vpop.trf.xlu0
        %v7308 = vpop.trf.xlu0
        %v7309 = vpop.trf.xlu0
        %v7310 = vpop.trf.xlu0
        %v7311 = vpop.trf.xlu0
        %v7312 = vpop.trf.xlu0
        %v7313 = vpop.trf.xlu0
        %v7314 = vpop.trf.xlu0
        %v7315 = vpop.trf.xlu0
        %v7316 = vpop.trf.xlu0
        %v7317 = vpop.trf.xlu0
        %v7318 = vpop.trf.xlu0
        %v7319 = vpop.trf.xlu0
        %v7320 = vpop.trf.xlu0
        %v7321 = vld [vmem:[%s73] sm:$0xff]
        %v7322 = vld [vmem:[%s73 + $0x8] sm:$0xff]
        %v7323 = vld [vmem:[%s71] sm:$0xff]
        %v7324 = vld [vmem:[%s71 + $0x8] sm:$0xff]
        %v7326 = vsel %vm1401, %v7305, 0
        %v7329 = vsel %vm1401, %v7306, 0
        %v7332 = vsel %vm1401, %v7307, 0
        %v7335 = vsel %vm1401, %v7308, 0
        %7337 = vmatprep.subr.mxu0 0.0
        %7338 = vmatpush1.msra.mxu0 %v7323
        %7339 = vmatprep.subr.mxu0 0.0
        %7340 = vmatpush1.msra.mxu0 %v7324
        %7341 = vmatprep.subr.mxu0 0.0
        %7342 = vmatpush1.msra.mxu0 0.0
        %7343 = vmatprep.subr.mxu0 0.0
        %7344 = vmatpush1.msra.mxu0 0.0
        %7345 = vmatprep.subr.mxu0 0.0
        %7346 = vmatpush1.msra.mxu0 0.0
        %7347 = vmatprep.subr.mxu0 0.0
        %7348 = vmatpush1.msra.mxu0 0.0
        %7349 = vmatprep.subr.mxu0 0.0
        %7350 = vmatpush1.msra.mxu0 0.0
        %7351 = vmatprep.subr.mxu0 0.0
        %7352 = vmatpush1.msra.mxu0 0.0
        %7353 = vmatprep.subr.mxu0 0.0
        %7354 = vmatpush1.msra.mxu0 0.0
        %7355 = vmatprep.subr.mxu0 0.0
        %7356 = vmatpush1.msra.mxu0 0.0
        %7357 = vmatprep.subr.mxu0 0.0
        %7358 = vmatpush1.msra.mxu0 0.0
        %7359 = vmatprep.subr.mxu0 0.0
        %7360 = vmatpush1.msra.mxu0 0.0
        %7361 = vmatprep.subr.mxu0 0.0
        %7362 = vmatpush1.msra.mxu0 0.0
        %7363 = vmatprep.subr.mxu0 0.0
        %7364 = vmatpush1.msra.mxu0 0.0
        %7365 = vmatprep.subr.mxu0 0.0
        %7366 = vmatpush1.msra.mxu0 0.0
        %7367 = vmatprep.subr.mxu0 0.0
        %7368 = vmatpush1.msra.mxu0 0.0
        %7369 = vmatprep.subr.mxu0 0.0
        %7370 = vmatpush1.msra.mxu0 0.0
        %7371 = vmatprep.subr.mxu0 0.0
        %7372 = vmatpush1.msra.mxu0 0.0
        %7373 = vmatprep.subr.mxu0 0.0
        %7374 = vmatpush1.msra.mxu0 0.0
        %7375 = vmatprep.subr.mxu0 0.0
        %7376 = vmatpush1.msra.mxu0 0.0
        %7377 = vmatprep.subr.mxu0 0.0
        %7378 = vmatpush1.msra.mxu0 0.0
        %7379 = vmatprep.subr.mxu0 0.0
        %7380 = vmatpush1.msra.mxu0 0.0
        %7381 = vmatprep.subr.mxu0 0.0
        %7382 = vmatpush1.msra.mxu0 0.0
        %7383 = vmatprep.subr.mxu0 0.0
        %7384 = vmatpush1.msra.mxu0 0.0
        %7385 = vmatprep.subr.mxu0 0.0
        %7386 = vmatpush1.msra.mxu0 0.0
        %7387 = vmatprep.subr.mxu0 0.0
        %7388 = vmatpush1.msra.mxu0 0.0
        %7389 = vmatprep.subr.mxu0 0.0
        %7390 = vmatpush1.msra.mxu0 0.0
        %7391 = vmatprep.subr.mxu0 0.0
        %7392 = vmatpush1.msra.mxu0 0.0
        %7393 = vmatprep.subr.mxu0 0.0
        %7394 = vmatpush1.msra.mxu0 0.0
        %7395 = vmatprep.subr.mxu0 0.0
        %7396 = vmatpush1.msra.mxu0 0.0
        %7397 = vmatprep.subr.mxu0 0.0
        %7398 = vmatpush1.msra.mxu0 0.0
        %7399 = vmatprep.subr.mxu0 0.0
        %7400 = vmatpush1.msra.mxu0 0.0
        %7401 = vmatprep.mubr.f32.mxu0 0.0
        %7402 = vmatmul.mubr.f32.gmra.mrb[0].mxu0 %v7326
        %v7403 = vpop.f32.mrb[0].mxu0
        %v7404 = vadd.f32 0.0, %v7403
        %v7405 = vpop.f32.mrb[0].mxu0
        %7406 = vmatprep.mubr.f32.mxu0 0.0
        %7407 = vmatmul.mubr.f32.gmra.mrb[0].mxu0 %v7329
        %v7408 = vpop.f32.mrb[0].mxu0
        %v7409 = vadd.f32 0.0, %v7408
        %v7410 = vpop.f32.mrb[0].mxu0
        %7411 = vmatprep.mubr.f32.mxu0 0.0
        %7412 = vmatmul.mubr.f32.gmra.mrb[0].mxu0 %v7332
        %v7413 = vpop.f32.mrb[0].mxu0
        %v7414 = vadd.f32 0.0, %v7413
        %v7415 = vpop.f32.mrb[0].mxu0
        %7416 = vmatprep.mubr.f32.mxu0 0.0
        %7417 = vmatmul.mubr.f32.gmra.mrb[0].mxu0 %v7335
        %v7418 = vpop.f32.mrb[0].mxu0
        %v7419 = vadd.f32 0.0, %v7418
        %v7420 = vpop.f32.mrb[0].mxu0
        %7421 = vdwg.mxu0
        %s7422 = scalar_lea.vmem %s73, 16
        %v7423 = vld [vmem:[%s7422] sm:$0xff]
        %v7424 = vld [vmem:[%s7422 + $0x8] sm:$0xff]
        %s7425 = scalar_lea.vmem %s71, 16
        %v7426 = vld [vmem:[%s7425] sm:$0xff]
        %v7427 = vld [vmem:[%s7425 + $0x8] sm:$0xff]
        %7428 = vmatprep.subr.mxu0 0.0
        %7429 = vmatpush1.msra.mxu0 %v7426
        %7430 = vmatprep.subr.mxu0 0.0
        %7431 = vmatpush1.msra.mxu0 %v7427
        %7432 = vmatprep.subr.mxu0 0.0
        %7433 = vmatpush1.msra.mxu0 0.0
        %7434 = vmatprep.subr.mxu0 0.0
        %7435 = vmatpush1.msra.mxu0 0.0
        %7436 = vmatprep.subr.mxu0 0.0
        %7437 = vmatpush1.msra.mxu0 0.0
        %7438 = vmatprep.subr.mxu0 0.0
        %7439 = vmatpush1.msra.mxu0 0.0
        %7440 = vmatprep.subr.mxu0 0.0
        %7441 = vmatpush1.msra.mxu0 0.0
        %7442 = vmatprep.subr.mxu0 0.0
        %7443 = vmatpush1.msra.mxu0 0.0
        %7444 = vmatprep.subr.mxu0 0.0
        %7445 = vmatpush1.msra.mxu0 0.0
        %7446 = vmatprep.subr.mxu0 0.0
        %7447 = vmatpush1.msra.mxu0 0.0
        %7448 = vmatprep.subr.mxu0 0.0
        %7449 = vmatpush1.msra.mxu0 0.0
        %7450 = vmatprep.subr.mxu0 0.0
        %7451 = vmatpush1.msra.mxu0 0.0
        %7452 = vmatprep.subr.mxu0 0.0
        %7453 = vmatpush1.msra.mxu0 0.0
        %7454 = vmatprep.subr.mxu0 0.0
        %7455 = vmatpush1.msra.mxu0 0.0
        %7456 = vmatprep.subr.mxu0 0.0
        %7457 = vmatpush1.msra.mxu0 0.0
        %7458 = vmatprep.subr.mxu0 0.0
        %7459 = vmatpush1.msra.mxu0 0.0
        %7460 = vmatprep.subr.mxu0 0.0
        %7461 = vmatpush1.msra.mxu0 0.0
        %7462 = vmatprep.subr.mxu0 0.0
        %7463 = vmatpush1.msra.mxu0 0.0
        %7464 = vmatprep.subr.mxu0 0.0
        %7465 = vmatpush1.msra.mxu0 0.0
        %7466 = vmatprep.subr.mxu0 0.0
        %7467 = vmatpush1.msra.mxu0 0.0
        %7468 = vmatprep.subr.mxu0 0.0
        %7469 = vmatpush1.msra.mxu0 0.0
        %7470 = vmatprep.subr.mxu0 0.0
        %7471 = vmatpush1.msra.mxu0 0.0
        %7472 = vmatprep.subr.mxu0 0.0
        %7473 = vmatpush1.msra.mxu0 0.0
        %7474 = vmatprep.subr.mxu0 0.0
        %7475 = vmatpush1.msra.mxu0 0.0
        %7476 = vmatprep.subr.mxu0 0.0
        %7477 = vmatpush1.msra.mxu0 0.0
        %7478 = vmatprep.subr.mxu0 0.0
        %7479 = vmatpush1.msra.mxu0 0.0
        %7480 = vmatprep.subr.mxu0 0.0
        %7481 = vmatpush1.msra.mxu0 0.0
        %7482 = vmatprep.subr.mxu0 0.0
        %7483 = vmatpush1.msra.mxu0 0.0
        %7484 = vmatprep.subr.mxu0 0.0
        %7485 = vmatpush1.msra.mxu0 0.0
        %7486 = vmatprep.subr.mxu0 0.0
        %7487 = vmatpush1.msra.mxu0 0.0
        %7488 = vmatprep.subr.mxu0 0.0
        %7489 = vmatpush1.msra.mxu0 0.0
        %7490 = vmatprep.subr.mxu0 0.0
        %7491 = vmatpush1.msra.mxu0 0.0
        %7492 = vmatprep.mubr.f32.mxu0 0.0
        %7493 = vmatmul.mubr.f32.gmra.mrb[0].mxu0 %v7326
        %v7494 = vpop.f32.mrb[0].mxu0
        %v7495 = vadd.f32 0.0, %v7494
        %v7496 = vpop.f32.mrb[0].mxu0
        %7497 = vmatprep.mubr.f32.mxu0 0.0
        %7498 = vmatmul.mubr.f32.gmra.mrb[0].mxu0 %v7329
        %v7499 = vpop.f32.mrb[0].mxu0
        %v7500 = vadd.f32 0.0, %v7499
        %v7501 = vpop.f32.mrb[0].mxu0
        %7502 = vmatprep.mubr.f32.mxu0 0.0
        %7503 = vmatmul.mubr.f32.gmra.mrb[0].mxu0 %v7332
        %v7504 = vpop.f32.mrb[0].mxu0
        %v7505 = vadd.f32 0.0, %v7504
        %v7506 = vpop.f32.mrb[0].mxu0
        %7507 = vmatprep.mubr.f32.mxu0 0.0
        %7508 = vmatmul.mubr.f32.gmra.mrb[0].mxu0 %v7335
        %v7509 = vpop.f32.mrb[0].mxu0
        %v7510 = vadd.f32 0.0, %v7509
        %v7511 = vpop.f32.mrb[0].mxu0
        %7512 = vdwg.mxu0
        %v7514 = vsel %vm6058, %v7423, 0
        %v7517 = vsel %vm6058, %v7424, 0
        %7519 = vmatprep.subr.mxu0 0.0
        %7520 = vmatpush1.msra.mxu0 %v7495
        %7521 = vmatprep.subr.mxu0 0.0
        %7522 = vmatpush1.msra.mxu0 %v7500
        %7523 = vmatprep.subr.mxu0 0.0
        %7524 = vmatpush1.msra.mxu0 %v7505
        %7525 = vmatprep.subr.mxu0 0.0
        %7526 = vmatpush1.msra.mxu0 %v7510
        %7527 = vmatprep.subr.mxu0 0.0
        %7528 = vmatpush1.msra.mxu0 0.0
        %7529 = vmatprep.subr.mxu0 0.0
        %7530 = vmatpush1.msra.mxu0 0.0
        %7531 = vmatprep.subr.mxu0 0.0
        %7532 = vmatpush1.msra.mxu0 0.0
        %7533 = vmatprep.subr.mxu0 0.0
        %7534 = vmatpush1.msra.mxu0 0.0
        %7535 = vmatprep.subr.mxu0 0.0
        %7536 = vmatpush1.msra.mxu0 0.0
        %7537 = vmatprep.subr.mxu0 0.0
        %7538 = vmatpush1.msra.mxu0 0.0
        %7539 = vmatprep.subr.mxu0 0.0
        %7540 = vmatpush1.msra.mxu0 0.0
        %7541 = vmatprep.subr.mxu0 0.0
        %7542 = vmatpush1.msra.mxu0 0.0
        %7543 = vmatprep.subr.mxu0 0.0
        %7544 = vmatpush1.msra.mxu0 0.0
        %7545 = vmatprep.subr.mxu0 0.0
        %7546 = vmatpush1.msra.mxu0 0.0
        %7547 = vmatprep.subr.mxu0 0.0
        %7548 = vmatpush1.msra.mxu0 0.0
        %7549 = vmatprep.subr.mxu0 0.0
        %7550 = vmatpush1.msra.mxu0 0.0
        %7551 = vmatprep.subr.mxu0 0.0
        %7552 = vmatpush1.msra.mxu0 0.0
        %7553 = vmatprep.subr.mxu0 0.0
        %7554 = vmatpush1.msra.mxu0 0.0
        %7555 = vmatprep.subr.mxu0 0.0
        %7556 = vmatpush1.msra.mxu0 0.0
        %7557 = vmatprep.subr.mxu0 0.0
        %7558 = vmatpush1.msra.mxu0 0.0
        %7559 = vmatprep.subr.mxu0 0.0
        %7560 = vmatpush1.msra.mxu0 0.0
        %7561 = vmatprep.subr.mxu0 0.0
        %7562 = vmatpush1.msra.mxu0 0.0
        %7563 = vmatprep.subr.mxu0 0.0
        %7564 = vmatpush1.msra.mxu0 0.0
        %7565 = vmatprep.subr.mxu0 0.0
        %7566 = vmatpush1.msra.mxu0 0.0
        %7567 = vmatprep.subr.mxu0 0.0
        %7568 = vmatpush1.msra.mxu0 0.0
        %7569 = vmatprep.subr.mxu0 0.0
        %7570 = vmatpush1.msra.mxu0 0.0
        %7571 = vmatprep.subr.mxu0 0.0
        %7572 = vmatpush1.msra.mxu0 0.0
        %7573 = vmatprep.subr.mxu0 0.0
        %7574 = vmatpush1.msra.mxu0 0.0
        %7575 = vmatprep.subr.mxu0 0.0
        %7576 = vmatpush1.msra.mxu0 0.0
        %7577 = vmatprep.subr.mxu0 0.0
        %7578 = vmatpush1.msra.mxu0 0.0
        %7579 = vmatprep.subr.mxu0 0.0
        %7580 = vmatpush1.msra.mxu0 0.0
        %7581 = vmatprep.subr.mxu0 0.0
        %7582 = vmatpush1.msra.mxu0 0.0
        %7583 = vmatprep.mubr.f32.mxu0 0.0
        %7584 = vmatmul.mubr.f32.gmra.mrb[0].mxu0 %v7514
        %v7585 = vpop.f32.mrb[0].mxu0
        %v7586 = vadd.f32 0.0, %v7585
        %v7587 = vpop.f32.mrb[0].mxu0
        %7588 = vmatprep.mubr.f32.mxu0 0.0
        %7589 = vmatmul.mubr.f32.gmra.mrb[0].mxu0 %v7517
        %v7590 = vpop.f32.mrb[0].mxu0
        %v7591 = vadd.f32 0.0, %v7590
        %v7592 = vpop.f32.mrb[0].mxu0
        %7593 = vdwg.mxu0
        %v7595 = vsel %vm6058, %v7321, 0
        %v7598 = vsel %vm6058, %v7322, 0
        %7600 = vmatprep.subr.mxu0 0.0
        %7601 = vmatpush1.msra.mxu0 %v7404
        %7602 = vmatprep.subr.mxu0 0.0
        %7603 = vmatpush1.msra.mxu0 %v7409
        %7604 = vmatprep.subr.mxu0 0.0
        %7605 = vmatpush1.msra.mxu0 %v7414
        %7606 = vmatprep.subr.mxu0 0.0
        %7607 = vmatpush1.msra.mxu0 %v7419
        %7608 = vmatprep.subr.mxu0 0.0
        %7609 = vmatpush1.msra.mxu0 0.0
        %7610 = vmatprep.subr.mxu0 0.0
        %7611 = vmatpush1.msra.mxu0 0.0
        %7612 = vmatprep.subr.mxu0 0.0
        %7613 = vmatpush1.msra.mxu0 0.0
        %7614 = vmatprep.subr.mxu0 0.0
        %7615 = vmatpush1.msra.mxu0 0.0
        %7616 = vmatprep.subr.mxu0 0.0
        %7617 = vmatpush1.msra.mxu0 0.0
        %7618 = vmatprep.subr.mxu0 0.0
        %7619 = vmatpush1.msra.mxu0 0.0
        %7620 = vmatprep.subr.mxu0 0.0
        %7621 = vmatpush1.msra.mxu0 0.0
        %7622 = vmatprep.subr.mxu0 0.0
        %7623 = vmatpush1.msra.mxu0 0.0
        %7624 = vmatprep.subr.mxu0 0.0
        %7625 = vmatpush1.msra.mxu0 0.0
        %7626 = vmatprep.subr.mxu0 0.0
        %7627 = vmatpush1.msra.mxu0 0.0
        %7628 = vmatprep.subr.mxu0 0.0
        %7629 = vmatpush1.msra.mxu0 0.0
        %7630 = vmatprep.subr.mxu0 0.0
        %7631 = vmatpush1.msra.mxu0 0.0
        %7632 = vmatprep.subr.mxu0 0.0
        %7633 = vmatpush1.msra.mxu0 0.0
        %7634 = vmatprep.subr.mxu0 0.0
        %7635 = vmatpush1.msra.mxu0 0.0
        %7636 = vmatprep.subr.mxu0 0.0
        %7637 = vmatpush1.msra.mxu0 0.0
        %7638 = vmatprep.subr.mxu0 0.0
        %7639 = vmatpush1.msra.mxu0 0.0
        %7640 = vmatprep.subr.mxu0 0.0
        %7641 = vmatpush1.msra.mxu0 0.0
        %7642 = vmatprep.subr.mxu0 0.0
        %7643 = vmatpush1.msra.mxu0 0.0
        %7644 = vmatprep.subr.mxu0 0.0
        %7645 = vmatpush1.msra.mxu0 0.0
        %7646 = vmatprep.subr.mxu0 0.0
        %7647 = vmatpush1.msra.mxu0 0.0
        %7648 = vmatprep.subr.mxu0 0.0
        %7649 = vmatpush1.msra.mxu0 0.0
        %7650 = vmatprep.subr.mxu0 0.0
        %7651 = vmatpush1.msra.mxu0 0.0
        %7652 = vmatprep.subr.mxu0 0.0
        %7653 = vmatpush1.msra.mxu0 0.0
        %7654 = vmatprep.subr.mxu0 0.0
        %7655 = vmatpush1.msra.mxu0 0.0
        %7656 = vmatprep.subr.mxu0 0.0
        %7657 = vmatpush1.msra.mxu0 0.0
        %7658 = vmatprep.subr.mxu0 0.0
        %7659 = vmatpush1.msra.mxu0 0.0
        %7660 = vmatprep.subr.mxu0 0.0
        %7661 = vmatpush1.msra.mxu0 0.0
        %7662 = vmatprep.subr.mxu0 0.0
        %7663 = vmatpush1.msra.mxu0 0.0
        %7664 = vmatprep.mubr.f32.mxu0 0.0
        %7665 = vmatmul.mubr.f32.gmra.mrb[0].mxu0 %v7595
        %v7666 = vpop.f32.mrb[0].mxu0
        %v7667 = vadd.f32 %v7586, %v7666
        %v7668 = vpop.f32.mrb[0].mxu0
        %7669 = vmatprep.mubr.f32.mxu0 0.0
        %7670 = vmatmul.mubr.f32.gmra.mrb[0].mxu0 %v7598
        %v7671 = vpop.f32.mrb[0].mxu0
        %v7672 = vadd.f32 %v7591, %v7671
        %v7673 = vpop.f32.mrb[0].mxu0
        %7674 = vdwg.mxu0
        %v7675 = vld [vmem:[%s55] sm:$0x1]
        %v7676 = vld [vmem:[%s57] sm:$0x1]
        %v7677 = vld [vmem:[%s59] sm:$0xff]
        %v7678 = vld [vmem:[%s59 + $0x8] sm:$0xff]
        %v7679 = vld [vmem:[%s59 + $0x10] sm:$0xff]
        %v7680 = vld [vmem:[%s59 + $0x18] sm:$0xff]
        %v7681 = vld [vmem:[%s61] sm:$0x1]
        %v7682 = vld [vmem:[%s63] sm:$0xff]
        %v7683 = vld [vmem:[%s63 + $0x8] sm:$0xff]
        %v7684 = vld [vmem:[%s63 + $0x10] sm:$0xff]
        %v7685 = vld [vmem:[%s63 + $0x18] sm:$0xff]
        %v7686 = vld [vmem:[%s63 + $0x20] sm:$0xff]
        %v7687 = vld [vmem:[%s63 + $0x28] sm:$0xff]
        %v7688 = vld [vmem:[%s63 + $0x30] sm:$0xff]
        %v7689 = vld [vmem:[%s63 + $0x38] sm:$0xff]
        %v7690 = vld [vmem:[%s63 + $0x40] sm:$0xff]
        %v7691 = vld [vmem:[%s63 + $0x48] sm:$0xff]
        %v7692 = vld [vmem:[%s63 + $0x50] sm:$0xff]
        %v7693 = vld [vmem:[%s63 + $0x58] sm:$0xff]
        %v7694 = vld [vmem:[%s63 + $0x60] sm:$0xff]
        %v7695 = vld [vmem:[%s63 + $0x68] sm:$0xff]
        %v7696 = vld [vmem:[%s63 + $0x70] sm:$0xff]
        %v7697 = vld [vmem:[%s63 + $0x78] sm:$0xff]
        %v7698 = vld [vmem:[%s65] sm:$0x1]
        %v7699 = vld [vmem:[%s67] sm:$0x1]
        %v7700 = vld [vmem:[%s69] sm:$0x1]
        %v7701 = vsel %vm6058, %v7667, 0.0
        %7702 = vadd.xlane.f32.xlu0 %v7701
        %v7703 = vpop.xlane.xlu0 %7702
        %v7704 = vsel %vm6058, %v7672, 0.0
        %7705 = vadd.xlane.f32.xlu0 %v7704
        %v7706 = vpop.xlane.xlu0 %7705
        %v7707 = vrcp.pop 32.0
        %v7708 = vmul.f32 %v7703, %v7707
        %v7709 = vmul.f32 %v7706, %v7707
        %v7710 = vsub.f32 %v7667, %v7708
        %v7711 = vsub.f32 %v7672, %v7709
        %v7712 = vmul.f32 %v7710, %v7710
        %v7713 = vmul.f32 %v7711, %v7711
        %v7714 = vsel %vm6058, %v7712, 0.0
        %7715 = vadd.xlane.f32.xlu0 %v7714
        %v7716 = vpop.xlane.xlu0 %7715
        %v7717 = vsel %vm6058, %v7713, 0.0
        %7718 = vadd.xlane.f32.xlu0 %v7717
        %v7719 = vpop.xlane.xlu0 %7718
        %v7720 = vmul.f32 %v7716, %v7707
        %v7721 = vmul.f32 %v7719, %v7707
        %v7722 = vadd.f32 %v7720, 1e-05
        %v7723 = vadd.f32 %v7721, 1e-05
        %v7724 = vrsqrt.pop %v7722
        %v7725 = vrsqrt.pop %v7723
        %v7726 = vmul.f32 %v7710, %v7724
        %v7727 = vmul.f32 %v7711, %v7725
        %v7729 = vlaneseq
        %v7730 = vshrl.u32 %v7729, 7
        %v7731 = vsub.s32 0, %v7730
        %v7732 = vrot.slane %v7675, %v7731
        %v7734 = vmul.f32 %v7726, %v7732
        %v7735 = vmul.f32 %v7727, %v7732
        %v7737 = vlaneseq
        %v7738 = vshrl.u32 %v7737, 7
        %v7739 = vsub.s32 0, %v7738
        %v7740 = vrot.slane %v7676, %v7739
        %v7742 = vadd.f32 %v7734, %v7740
        %v7743 = vadd.f32 %v7735, %v7740
        %v7745 = vlaneseq
        %v7746 = vshrl.u32 %v7745, 7
        %v7747 = vsub.s32 0, %v7746
        %v7748 = vrot.slane %v7681, %v7747
        %v7751 = vsel %vm6058, %v7742, 0
        %v7754 = vsel %vm6058, %v7743, 0
        %7756 = vmatprep.subr.mxu0 0.0
        %7757 = vmatpush1.msra.mxu0 %v7677
        %7758 = vmatprep.subr.mxu0 0.0
        %7759 = vmatpush1.msra.mxu0 %v7678
        %7760 = vmatprep.subr.mxu0 0.0
        %7761 = vmatpush1.msra.mxu0 %v7679
        %7762 = vmatprep.subr.mxu0 0.0
        %7763 = vmatpush1.msra.mxu0 %v7680
        %7764 = vmatprep.subr.mxu0 0.0
        %7765 = vmatpush1.msra.mxu0 0.0
        %7766 = vmatprep.subr.mxu0 0.0
        %7767 = vmatpush1.msra.mxu0 0.0
        %7768 = vmatprep.subr.mxu0 0.0
        %7769 = vmatpush1.msra.mxu0 0.0
        %7770 = vmatprep.subr.mxu0 0.0
        %7771 = vmatpush1.msra.mxu0 0.0
        %7772 = vmatprep.subr.mxu0 0.0
        %7773 = vmatpush1.msra.mxu0 0.0
        %7774 = vmatprep.subr.mxu0 0.0
        %7775 = vmatpush1.msra.mxu0 0.0
        %7776 = vmatprep.subr.mxu0 0.0
        %7777 = vmatpush1.msra.mxu0 0.0
        %7778 = vmatprep.subr.mxu0 0.0
        %7779 = vmatpush1.msra.mxu0 0.0
        %7780 = vmatprep.subr.mxu0 0.0
        %7781 = vmatpush1.msra.mxu0 0.0
        %7782 = vmatprep.subr.mxu0 0.0
        %7783 = vmatpush1.msra.mxu0 0.0
        %7784 = vmatprep.subr.mxu0 0.0
        %7785 = vmatpush1.msra.mxu0 0.0
        %7786 = vmatprep.subr.mxu0 0.0
        %7787 = vmatpush1.msra.mxu0 0.0
        %7788 = vmatprep.subr.mxu0 0.0
        %7789 = vmatpush1.msra.mxu0 0.0
        %7790 = vmatprep.subr.mxu0 0.0
        %7791 = vmatpush1.msra.mxu0 0.0
        %7792 = vmatprep.subr.mxu0 0.0
        %7793 = vmatpush1.msra.mxu0 0.0
        %7794 = vmatprep.subr.mxu0 0.0
        %7795 = vmatpush1.msra.mxu0 0.0
        %7796 = vmatprep.subr.mxu0 0.0
        %7797 = vmatpush1.msra.mxu0 0.0
        %7798 = vmatprep.subr.mxu0 0.0
        %7799 = vmatpush1.msra.mxu0 0.0
        %7800 = vmatprep.subr.mxu0 0.0
        %7801 = vmatpush1.msra.mxu0 0.0
        %7802 = vmatprep.subr.mxu0 0.0
        %7803 = vmatpush1.msra.mxu0 0.0
        %7804 = vmatprep.subr.mxu0 0.0
        %7805 = vmatpush1.msra.mxu0 0.0
        %7806 = vmatprep.subr.mxu0 0.0
        %7807 = vmatpush1.msra.mxu0 0.0
        %7808 = vmatprep.subr.mxu0 0.0
        %7809 = vmatpush1.msra.mxu0 0.0
        %7810 = vmatprep.subr.mxu0 0.0
        %7811 = vmatpush1.msra.mxu0 0.0
        %7812 = vmatprep.subr.mxu0 0.0
        %7813 = vmatpush1.msra.mxu0 0.0
        %7814 = vmatprep.subr.mxu0 0.0
        %7815 = vmatpush1.msra.mxu0 0.0
        %7816 = vmatprep.subr.mxu0 0.0
        %7817 = vmatpush1.msra.mxu0 0.0
        %7818 = vmatprep.subr.mxu0 0.0
        %7819 = vmatpush1.msra.mxu0 0.0
        %7820 = vmatprep.mubr.f32.mxu0 0.0
        %7821 = vmatmul.mubr.f32.gmra.mrb[0].mxu0 %v7751
        %v7822 = vpop.f32.mrb[0].mxu0
        %v7823 = vadd.f32 %v7748, %v7822
        %v7824 = vpop.f32.mrb[0].mxu0
        %7825 = vmatprep.mubr.f32.mxu0 0.0
        %7826 = vmatmul.mubr.f32.gmra.mrb[0].mxu0 %v7754
        %v7827 = vpop.f32.mrb[0].mxu0
        %v7828 = vadd.f32 %v7748, %v7827
        %v7829 = vpop.f32.mrb[0].mxu0
        %7830 = vdwg.mxu0
        %v7831 = vmul.f32 %v7823, 0.5
        %v7832 = vmul.f32 %v7828, 0.5
        %v7833 = vmul.f32 %v7823, 0.70710677
        %v7834 = vmul.f32 %v7828, 0.70710677
        %v7835 = vand.u32 2147483647, %v7833
        %v7836 = vand.u32 2147483647, %v7834
        %v7837 = vmul.f32 %v7835, 0.3275911
        %v7838 = vmul.f32 %v7836, 0.3275911
        %v7839 = vadd.f32 %v7837, 1.0
        %v7840 = vadd.f32 %v7838, 1.0
        %v7841 = vrcp.pop %v7839
        %v7842 = vmul.f32 1.0, %v7841
        %v7843 = vrcp.pop %v7840
        %v7844 = vmul.f32 1.0, %v7843
        %v7845 = vmul.f32 %v7842, 1.0614054
        %v7846 = vmul.f32 %v7844, 1.0614054
        %v7847 = vadd.f32 %v7845, -1.4531521
        %v7848 = vadd.f32 %v7846, -1.4531521
        %v7849 = vmul.f32 %v7842, %v7847
        %v7850 = vmul.f32 %v7844, %v7848
        %v7851 = vadd.f32 %v7849, 1.4214138
        %v7852 = vadd.f32 %v7850, 1.4214138
        %v7853 = vmul.f32 %v7842, %v7851
        %v7854 = vmul.f32 %v7844, %v7852
        %v7855 = vadd.f32 %v7853, -0.28449672
        %v7856 = vadd.f32 %v7854, -0.28449672
        %v7857 = vmul.f32 %v7842, %v7855
        %v7858 = vmul.f32 %v7844, %v7856
        %v7859 = vadd.f32 %v7857, 0.2548296
        %v7860 = vadd.f32 %v7858, 0.2548296
        %v7861 = vmul.f32 %v7842, %v7859
        %v7862 = vmul.f32 %v7844, %v7860
        %v7863 = vsub.f32 0.0, %v7835
        %v7864 = vsub.f32 0.0, %v7836
        %v7865 = vmul.f32 %v7863, %v7835
        %v7866 = vmul.f32 %v7864, %v7836
        %v7867 = vmul.f32 %v7865, 1.442695
        %v7868 = vpow.pop %v7867
        %v7869 = vmul.f32 %v7866, 1.442695
        %v7870 = vpow.pop %v7869
        %v7871 = vmul.f32 %v7861, %v7868
        %v7872 = vmul.f32 %v7862, %v7870
        %v7873 = vsub.f32 1.0, %v7871
        %v7874 = vsub.f32 1.0, %v7872
        %vm7875 = vcmp.ge.f32.partialorder %v7833, 0.0
        %vm7876 = vcmp.ge.f32.partialorder %v7834, 0.0
        %v7877 = vsub.f32 0.0, %v7873
        %v7878 = vsub.f32 0.0, %v7874
        %v7879 = vsel %vm7875, %v7873, %v7877
        %v7880 = vsel %vm7876, %v7874, %v7878
        %v7881 = vadd.f32 %v7879, 1.0
        %v7882 = vadd.f32 %v7880, 1.0
        %v7883 = vmul.f32 %v7831, %v7881
        %v7884 = vmul.f32 %v7832, %v7882
        %v7886 = vlaneseq
        %v7887 = vshrl.u32 %v7886, 7
        %v7888 = vsub.s32 0, %v7887
        %v7889 = vrot.slane %v7698, %v7888
        %7891 = vmatprep.subr.mxu0 0.0
        %7892 = vmatpush1.msra.mxu0 %v7682
        %7893 = vmatprep.subr.mxu0 0.0
        %7894 = vmatpush1.msra.mxu0 %v7683
        %7895 = vmatprep.subr.mxu0 0.0
        %7896 = vmatpush1.msra.mxu0 %v7684
        %7897 = vmatprep.subr.mxu0 0.0
        %7898 = vmatpush1.msra.mxu0 %v7685
        %7899 = vmatprep.subr.mxu0 0.0
        %7900 = vmatpush1.msra.mxu0 %v7686
        %7901 = vmatprep.subr.mxu0 0.0
        %7902 = vmatpush1.msra.mxu0 %v7687
        %7903 = vmatprep.subr.mxu0 0.0
        %7904 = vmatpush1.msra.mxu0 %v7688
        %7905 = vmatprep.subr.mxu0 0.0
        %7906 = vmatpush1.msra.mxu0 %v7689
        %7907 = vmatprep.subr.mxu0 0.0
        %7908 = vmatpush1.msra.mxu0 %v7690
        %7909 = vmatprep.subr.mxu0 0.0
        %7910 = vmatpush1.msra.mxu0 %v7691
        %7911 = vmatprep.subr.mxu0 0.0
        %7912 = vmatpush1.msra.mxu0 %v7692
        %7913 = vmatprep.subr.mxu0 0.0
        %7914 = vmatpush1.msra.mxu0 %v7693
        %7915 = vmatprep.subr.mxu0 0.0
        %7916 = vmatpush1.msra.mxu0 %v7694
        %7917 = vmatprep.subr.mxu0 0.0
        %7918 = vmatpush1.msra.mxu0 %v7695
        %7919 = vmatprep.subr.mxu0 0.0
        %7920 = vmatpush1.msra.mxu0 %v7696
        %7921 = vmatprep.subr.mxu0 0.0
        %7922 = vmatpush1.msra.mxu0 %v7697
        %7923 = vmatprep.subr.mxu0 0.0
        %7924 = vmatpush1.msra.mxu0 0.0
        %7925 = vmatprep.subr.mxu0 0.0
        %7926 = vmatpush1.msra.mxu0 0.0
        %7927 = vmatprep.subr.mxu0 0.0
        %7928 = vmatpush1.msra.mxu0 0.0
        %7929 = vmatprep.subr.mxu0 0.0
        %7930 = vmatpush1.msra.mxu0 0.0
        %7931 = vmatprep.subr.mxu0 0.0
        %7932 = vmatpush1.msra.mxu0 0.0
        %7933 = vmatprep.subr.mxu0 0.0
        %7934 = vmatpush1.msra.mxu0 0.0
        %7935 = vmatprep.subr.mxu0 0.0
        %7936 = vmatpush1.msra.mxu0 0.0
        %7937 = vmatprep.subr.mxu0 0.0
        %7938 = vmatpush1.msra.mxu0 0.0
        %7939 = vmatprep.subr.mxu0 0.0
        %7940 = vmatpush1.msra.mxu0 0.0
        %7941 = vmatprep.subr.mxu0 0.0
        %7942 = vmatpush1.msra.mxu0 0.0
        %7943 = vmatprep.subr.mxu0 0.0
        %7944 = vmatpush1.msra.mxu0 0.0
        %7945 = vmatprep.subr.mxu0 0.0
        %7946 = vmatpush1.msra.mxu0 0.0
        %7947 = vmatprep.subr.mxu0 0.0
        %7948 = vmatpush1.msra.mxu0 0.0
        %7949 = vmatprep.subr.mxu0 0.0
        %7950 = vmatpush1.msra.mxu0 0.0
        %7951 = vmatprep.subr.mxu0 0.0
        %7952 = vmatpush1.msra.mxu0 0.0
        %7953 = vmatprep.subr.mxu0 0.0
        %7954 = vmatpush1.msra.mxu0 0.0
        %7955 = vmatprep.mubr.f32.mxu0 0.0
        %7956 = vmatmul.mubr.f32.gmra.mrb[0].mxu0 %v7883
        %v7957 = vpop.f32.mrb[0].mxu0
        %v7958 = vadd.f32 %v7889, %v7957
        %v7959 = vpop.f32.mrb[0].mxu0
        %7960 = vmatprep.mubr.f32.mxu0 0.0
        %7961 = vmatmul.mubr.f32.gmra.mrb[0].mxu0 %v7884
        %v7962 = vpop.f32.mrb[0].mxu0
        %v7963 = vadd.f32 %v7889, %v7962
        %v7964 = vpop.f32.mrb[0].mxu0
        %7965 = vdwg.mxu0
        %v7966 = vsel %vm6058, %v7958, 0.0
        %7967 = vadd.xlane.f32.xlu0 %v7966
        %v7968 = vpop.xlane.xlu0 %7967
        %v7969 = vsel %vm6058, %v7963, 0.0
        %7970 = vadd.xlane.f32.xlu0 %v7969
        %v7971 = vpop.xlane.xlu0 %7970
        %v7972 = vmul.f32 %v7968, %v7707
        %v7973 = vmul.f32 %v7971, %v7707
        %v7974 = vsub.f32 %v7958, %v7972
        %v7975 = vsub.f32 %v7963, %v7973
        %v7976 = vmul.f32 %v7974, %v7974
        %v7977 = vmul.f32 %v7975, %v7975
        %v7978 = vsel %vm6058, %v7976, 0.0
        %7979 = vadd.xlane.f32.xlu0 %v7978
        %v7980 = vpop.xlane.xlu0 %7979
        %v7981 = vsel %vm6058, %v7977, 0.0
        %7982 = vadd.xlane.f32.xlu0 %v7981
        %v7983 = vpop.xlane.xlu0 %7982
        %v7984 = vmul.f32 %v7980, %v7707
        %v7985 = vmul.f32 %v7983, %v7707
        %v7986 = vadd.f32 %v7984, 1e-05
        %v7987 = vadd.f32 %v7985, 1e-05
        %v7988 = vrsqrt.pop %v7986
        %v7989 = vrsqrt.pop %v7987
        %v7990 = vmul.f32 %v7974, %v7988
        %v7991 = vmul.f32 %v7975, %v7989
        %v7993 = vlaneseq
        %v7994 = vshrl.u32 %v7993, 7
        %v7995 = vsub.s32 0, %v7994
        %v7996 = vrot.slane %v7699, %v7995
        %v7998 = vmul.f32 %v7990, %v7996
        %v7999 = vmul.f32 %v7991, %v7996
        %v8001 = vlaneseq
        %v8002 = vshrl.u32 %v8001, 7
        %v8003 = vsub.s32 0, %v8002
        %v8004 = vrot.slane %v7700, %v8003
        %v8006 = vadd.f32 %v7998, %v8004
        %v8007 = vadd.f32 %v7999, %v8004
        %8008 = vxpose.xlu0.b32.start [1/16] %v8006, 128
        %8009 = vxpose.xlu0.b32.cont [2/16] %v8007, 128
        %8010 = vxpose.xlu0.b32.cont [3/16] 0.0, 128
        %8011 = vxpose.xlu0.b32.cont [4/16] 0.0, 128
        %8012 = vxpose.xlu0.b32.cont [5/16] 0.0, 128
        %8013 = vxpose.xlu0.b32.cont [6/16] 0.0, 128
        %8014 = vxpose.xlu0.b32.cont [7/16] 0.0, 128
        %8015 = vxpose.xlu0.b32.cont [8/16] 0.0, 128
        %8016 = vxpose.xlu0.b32.cont [9/16] 0.0, 128
        %8017 = vxpose.xlu0.b32.cont [10/16] 0.0, 128
        %8018 = vxpose.xlu0.b32.cont [11/16] 0.0, 128
        %8019 = vxpose.xlu0.b32.cont [12/16] 0.0, 128
        %8020 = vxpose.xlu0.b32.cont [13/16] 0.0, 128
        %8021 = vxpose.xlu0.b32.cont [14/16] 0.0, 128
        %8022 = vxpose.xlu0.b32.cont [15/16] 0.0, 128
        %8023 = vxpose.xlu0.b32.end [16/16] 0.0, 128
        %v8024 = vpop.trf.xlu0
        %v8025 = vpop.trf.xlu0
        %v8026 = vpop.trf.xlu0
        %v8027 = vpop.trf.xlu0
        %v8028 = vpop.trf.xlu0
        %v8029 = vpop.trf.xlu0
        %v8030 = vpop.trf.xlu0
        %v8031 = vpop.trf.xlu0
        %v8032 = vpop.trf.xlu0
        %v8033 = vpop.trf.xlu0
        %v8034 = vpop.trf.xlu0
        %v8035 = vpop.trf.xlu0
        %v8036 = vpop.trf.xlu0
        %v8037 = vpop.trf.xlu0
        %v8038 = vpop.trf.xlu0
        %v8039 = vpop.trf.xlu0
        %v8041 = vsel %vm1401, %v8024, 0
        %v8044 = vsel %vm1401, %v8025, 0
        %v8047 = vsel %vm1401, %v8026, 0
        %v8050 = vsel %vm1401, %v8027, 0
        %8052 = vmatprep.subr.mxu0 0.0
        %8053 = vmatpush1.msra.mxu0 %v7321
        %8054 = vmatprep.subr.mxu0 0.0
        %8055 = vmatpush1.msra.mxu0 %v7322
        %8056 = vmatprep.subr.mxu0 0.0
        %8057 = vmatpush1.msra.mxu0 0.0
        %8058 = vmatprep.subr.mxu0 0.0
        %8059 = vmatpush1.msra.mxu0 0.0
        %8060 = vmatprep.subr.mxu0 0.0
        %8061 = vmatpush1.msra.mxu0 0.0
        %8062 = vmatprep.subr.mxu0 0.0
        %8063 = vmatpush1.msra.mxu0 0.0
        %8064 = vmatprep.subr.mxu0 0.0
        %8065 = vmatpush1.msra.mxu0 0.0
        %8066 = vmatprep.subr.mxu0 0.0
        %8067 = vmatpush1.msra.mxu0 0.0
        %8068 = vmatprep.subr.mxu0 0.0
        %8069 = vmatpush1.msra.mxu0 0.0
        %8070 = vmatprep.subr.mxu0 0.0
        %8071 = vmatpush1.msra.mxu0 0.0
        %8072 = vmatprep.subr.mxu0 0.0
        %8073 = vmatpush1.msra.mxu0 0.0
        %8074 = vmatprep.subr.mxu0 0.0
        %8075 = vmatpush1.msra.mxu0 0.0
        %8076 = vmatprep.subr.mxu0 0.0
        %8077 = vmatpush1.msra.mxu0 0.0
        %8078 = vmatprep.subr.mxu0 0.0
        %8079 = vmatpush1.msra.mxu0 0.0
        %8080 = vmatprep.subr.mxu0 0.0
        %8081 = vmatpush1.msra.mxu0 0.0
        %8082 = vmatprep.subr.mxu0 0.0
        %8083 = vmatpush1.msra.mxu0 0.0
        %8084 = vmatprep.subr.mxu0 0.0
        %8085 = vmatpush1.msra.mxu0 0.0
        %8086 = vmatprep.subr.mxu0 0.0
        %8087 = vmatpush1.msra.mxu0 0.0
        %8088 = vmatprep.subr.mxu0 0.0
        %8089 = vmatpush1.msra.mxu0 0.0
        %8090 = vmatprep.subr.mxu0 0.0
        %8091 = vmatpush1.msra.mxu0 0.0
        %8092 = vmatprep.subr.mxu0 0.0
        %8093 = vmatpush1.msra.mxu0 0.0
        %8094 = vmatprep.subr.mxu0 0.0
        %8095 = vmatpush1.msra.mxu0 0.0
        %8096 = vmatprep.subr.mxu0 0.0
        %8097 = vmatpush1.msra.mxu0 0.0
        %8098 = vmatprep.subr.mxu0 0.0
        %8099 = vmatpush1.msra.mxu0 0.0
        %8100 = vmatprep.subr.mxu0 0.0
        %8101 = vmatpush1.msra.mxu0 0.0
        %8102 = vmatprep.subr.mxu0 0.0
        %8103 = vmatpush1.msra.mxu0 0.0
        %8104 = vmatprep.subr.mxu0 0.0
        %8105 = vmatpush1.msra.mxu0 0.0
        %8106 = vmatprep.subr.mxu0 0.0
        %8107 = vmatpush1.msra.mxu0 0.0
        %8108 = vmatprep.subr.mxu0 0.0
        %8109 = vmatpush1.msra.mxu0 0.0
        %8110 = vmatprep.subr.mxu0 0.0
        %8111 = vmatpush1.msra.mxu0 0.0
        %8112 = vmatprep.subr.mxu0 0.0
        %8113 = vmatpush1.msra.mxu0 0.0
        %8114 = vmatprep.subr.mxu0 0.0
        %8115 = vmatpush1.msra.mxu0 0.0
        %8116 = vmatprep.mubr.f32.mxu0 0.0
        %8117 = vmatmul.mubr.f32.gmra.mrb[0].mxu0 %v8041
        %v8118 = vpop.f32.mrb[0].mxu0
        %v8119 = vadd.f32 0.0, %v8118
        %v8120 = vpop.f32.mrb[0].mxu0
        %8121 = vmatprep.mubr.f32.mxu0 0.0
        %8122 = vmatmul.mubr.f32.gmra.mrb[0].mxu0 %v8044
        %v8123 = vpop.f32.mrb[0].mxu0
        %v8124 = vadd.f32 0.0, %v8123
        %v8125 = vpop.f32.mrb[0].mxu0
        %8126 = vmatprep.mubr.f32.mxu0 0.0
        %8127 = vmatmul.mubr.f32.gmra.mrb[0].mxu0 %v8047
        %v8128 = vpop.f32.mrb[0].mxu0
        %v8129 = vadd.f32 0.0, %v8128
        %v8130 = vpop.f32.mrb[0].mxu0
        %8131 = vmatprep.mubr.f32.mxu0 0.0
        %8132 = vmatmul.mubr.f32.gmra.mrb[0].mxu0 %v8050
        %v8133 = vpop.f32.mrb[0].mxu0
        %v8134 = vadd.f32 0.0, %v8133
        %v8135 = vpop.f32.mrb[0].mxu0
        %8136 = vdwg.mxu0
        %8137 = vmatprep.subr.mxu0 0.0
        %8138 = vmatpush1.msra.mxu0 %v7423
        %8139 = vmatprep.subr.mxu0 0.0
        %8140 = vmatpush1.msra.mxu0 %v7424
        %8141 = vmatprep.subr.mxu0 0.0
        %8142 = vmatpush1.msra.mxu0 0.0
        %8143 = vmatprep.subr.mxu0 0.0
        %8144 = vmatpush1.msra.mxu0 0.0
        %8145 = vmatprep.subr.mxu0 0.0
        %8146 = vmatpush1.msra.mxu0 0.0
        %8147 = vmatprep.subr.mxu0 0.0
        %8148 = vmatpush1.msra.mxu0 0.0
        %8149 = vmatprep.subr.mxu0 0.0
        %8150 = vmatpush1.msra.mxu0 0.0
        %8151 = vmatprep.subr.mxu0 0.0
        %8152 = vmatpush1.msra.mxu0 0.0
        %8153 = vmatprep.subr.mxu0 0.0
        %8154 = vmatpush1.msra.mxu0 0.0
        %8155 = vmatprep.subr.mxu0 0.0
        %8156 = vmatpush1.msra.mxu0 0.0
        %8157 = vmatprep.subr.mxu0 0.0
        %8158 = vmatpush1.msra.mxu0 0.0
        %8159 = vmatprep.subr.mxu0 0.0
        %8160 = vmatpush1.msra.mxu0 0.0
        %8161 = vmatprep.subr.mxu0 0.0
        %8162 = vmatpush1.msra.mxu0 0.0
        %8163 = vmatprep.subr.mxu0 0.0
        %8164 = vmatpush1.msra.mxu0 0.0
        %8165 = vmatprep.subr.mxu0 0.0
        %8166 = vmatpush1.msra.mxu0 0.0
        %8167 = vmatprep.subr.mxu0 0.0
        %8168 = vmatpush1.msra.mxu0 0.0
        %8169 = vmatprep.subr.mxu0 0.0
        %8170 = vmatpush1.msra.mxu0 0.0
        %8171 = vmatprep.subr.mxu0 0.0
        %8172 = vmatpush1.msra.mxu0 0.0
        %8173 = vmatprep.subr.mxu0 0.0
        %8174 = vmatpush1.msra.mxu0 0.0
        %8175 = vmatprep.subr.mxu0 0.0
        %8176 = vmatpush1.msra.mxu0 0.0
        %8177 = vmatprep.subr.mxu0 0.0
        %8178 = vmatpush1.msra.mxu0 0.0
        %8179 = vmatprep.subr.mxu0 0.0
        %8180 = vmatpush1.msra.mxu0 0.0
        %8181 = vmatprep.subr.mxu0 0.0
        %8182 = vmatpush1.msra.mxu0 0.0
        %8183 = vmatprep.subr.mxu0 0.0
        %8184 = vmatpush1.msra.mxu0 0.0
        %8185 = vmatprep.subr.mxu0 0.0
        %8186 = vmatpush1.msra.mxu0 0.0
        %8187 = vmatprep.subr.mxu0 0.0
        %8188 = vmatpush1.msra.mxu0 0.0
        %8189 = vmatprep.subr.mxu0 0.0
        %8190 = vmatpush1.msra.mxu0 0.0
        %8191 = vmatprep.subr.mxu0 0.0
        %8192 = vmatpush1.msra.mxu0 0.0
        %8193 = vmatprep.subr.mxu0 0.0
        %8194 = vmatpush1.msra.mxu0 0.0
        %8195 = vmatprep.subr.mxu0 0.0
        %8196 = vmatpush1.msra.mxu0 0.0
        %8197 = vmatprep.subr.mxu0 0.0
        %8198 = vmatpush1.msra.mxu0 0.0
        %8199 = vmatprep.subr.mxu0 0.0
        %8200 = vmatpush1.msra.mxu0 0.0
        %8201 = vmatprep.mubr.f32.mxu0 0.0
        %8202 = vmatmul.mubr.f32.gmra.mrb[0].mxu0 %v8041
        %v8203 = vpop.f32.mrb[0].mxu0
        %v8204 = vadd.f32 0.0, %v8203
        %v8205 = vpop.f32.mrb[0].mxu0
        %8206 = vmatprep.mubr.f32.mxu0 0.0
        %8207 = vmatmul.mubr.f32.gmra.mrb[0].mxu0 %v8044
        %v8208 = vpop.f32.mrb[0].mxu0
        %v8209 = vadd.f32 0.0, %v8208
        %v8210 = vpop.f32.mrb[0].mxu0
        %8211 = vmatprep.mubr.f32.mxu0 0.0
        %8212 = vmatmul.mubr.f32.gmra.mrb[0].mxu0 %v8047
        %v8213 = vpop.f32.mrb[0].mxu0
        %v8214 = vadd.f32 0.0, %v8213
        %v8215 = vpop.f32.mrb[0].mxu0
        %8216 = vmatprep.mubr.f32.mxu0 0.0
        %8217 = vmatmul.mubr.f32.gmra.mrb[0].mxu0 %v8050
        %v8218 = vpop.f32.mrb[0].mxu0
        %v8219 = vadd.f32 0.0, %v8218
        %v8220 = vpop.f32.mrb[0].mxu0
        %8221 = vdwg.mxu0
        %v8223 = vsel %vm6058, %v7426, 0
        %v8226 = vsel %vm6058, %v7427, 0
        %8228 = vmatprep.subr.mxu0 0.0
        %8229 = vmatpush1.msra.mxu0 %v8204
        %8230 = vmatprep.subr.mxu0 0.0
        %8231 = vmatpush1.msra.mxu0 %v8209
        %8232 = vmatprep.subr.mxu0 0.0
        %8233 = vmatpush1.msra.mxu0 %v8214
        %8234 = vmatprep.subr.mxu0 0.0
        %8235 = vmatpush1.msra.mxu0 %v8219
        %8236 = vmatprep.subr.mxu0 0.0
        %8237 = vmatpush1.msra.mxu0 0.0
        %8238 = vmatprep.subr.mxu0 0.0
        %8239 = vmatpush1.msra.mxu0 0.0
        %8240 = vmatprep.subr.mxu0 0.0
        %8241 = vmatpush1.msra.mxu0 0.0
        %8242 = vmatprep.subr.mxu0 0.0
        %8243 = vmatpush1.msra.mxu0 0.0
        %8244 = vmatprep.subr.mxu0 0.0
        %8245 = vmatpush1.msra.mxu0 0.0
        %8246 = vmatprep.subr.mxu0 0.0
        %8247 = vmatpush1.msra.mxu0 0.0
        %8248 = vmatprep.subr.mxu0 0.0
        %8249 = vmatpush1.msra.mxu0 0.0
        %8250 = vmatprep.subr.mxu0 0.0
        %8251 = vmatpush1.msra.mxu0 0.0
        %8252 = vmatprep.subr.mxu0 0.0
        %8253 = vmatpush1.msra.mxu0 0.0
        %8254 = vmatprep.subr.mxu0 0.0
        %8255 = vmatpush1.msra.mxu0 0.0
        %8256 = vmatprep.subr.mxu0 0.0
        %8257 = vmatpush1.msra.mxu0 0.0
        %8258 = vmatprep.subr.mxu0 0.0
        %8259 = vmatpush1.msra.mxu0 0.0
        %8260 = vmatprep.subr.mxu0 0.0
        %8261 = vmatpush1.msra.mxu0 0.0
        %8262 = vmatprep.subr.mxu0 0.0
        %8263 = vmatpush1.msra.mxu0 0.0
        %8264 = vmatprep.subr.mxu0 0.0
        %8265 = vmatpush1.msra.mxu0 0.0
        %8266 = vmatprep.subr.mxu0 0.0
        %8267 = vmatpush1.msra.mxu0 0.0
        %8268 = vmatprep.subr.mxu0 0.0
        %8269 = vmatpush1.msra.mxu0 0.0
        %8270 = vmatprep.subr.mxu0 0.0
        %8271 = vmatpush1.msra.mxu0 0.0
        %8272 = vmatprep.subr.mxu0 0.0
        %8273 = vmatpush1.msra.mxu0 0.0
        %8274 = vmatprep.subr.mxu0 0.0
        %8275 = vmatpush1.msra.mxu0 0.0
        %8276 = vmatprep.subr.mxu0 0.0
        %8277 = vmatpush1.msra.mxu0 0.0
        %8278 = vmatprep.subr.mxu0 0.0
        %8279 = vmatpush1.msra.mxu0 0.0
        %8280 = vmatprep.subr.mxu0 0.0
        %8281 = vmatpush1.msra.mxu0 0.0
        %8282 = vmatprep.subr.mxu0 0.0
        %8283 = vmatpush1.msra.mxu0 0.0
        %8284 = vmatprep.subr.mxu0 0.0
        %8285 = vmatpush1.msra.mxu0 0.0
        %8286 = vmatprep.subr.mxu0 0.0
        %8287 = vmatpush1.msra.mxu0 0.0
        %8288 = vmatprep.subr.mxu0 0.0
        %8289 = vmatpush1.msra.mxu0 0.0
        %8290 = vmatprep.subr.mxu0 0.0
        %8291 = vmatpush1.msra.mxu0 0.0
        %8292 = vmatprep.mubr.f32.mxu0 0.0
        %8293 = vmatmul.mubr.f32.gmra.mrb[0].mxu0 %v8223
        %v8294 = vpop.f32.mrb[0].mxu0
        %v8295 = vadd.f32 0.0, %v8294
        %v8296 = vpop.f32.mrb[0].mxu0
        %8297 = vmatprep.mubr.f32.mxu0 0.0
        %8298 = vmatmul.mubr.f32.gmra.mrb[0].mxu0 %v8226
        %v8299 = vpop.f32.mrb[0].mxu0
        %v8300 = vadd.f32 0.0, %v8299
        %v8301 = vpop.f32.mrb[0].mxu0
        %8302 = vdwg.mxu0
        %v8304 = vsel %vm6058, %v7323, 0
        %v8307 = vsel %vm6058, %v7324, 0
        %8309 = vmatprep.subr.mxu0 0.0
        %8310 = vmatpush1.msra.mxu0 %v8119
        %8311 = vmatprep.subr.mxu0 0.0
        %8312 = vmatpush1.msra.mxu0 %v8124
        %8313 = vmatprep.subr.mxu0 0.0
        %8314 = vmatpush1.msra.mxu0 %v8129
        %8315 = vmatprep.subr.mxu0 0.0
        %8316 = vmatpush1.msra.mxu0 %v8134
        %8317 = vmatprep.subr.mxu0 0.0
        %8318 = vmatpush1.msra.mxu0 0.0
        %8319 = vmatprep.subr.mxu0 0.0
        %8320 = vmatpush1.msra.mxu0 0.0
        %8321 = vmatprep.subr.mxu0 0.0
        %8322 = vmatpush1.msra.mxu0 0.0
        %8323 = vmatprep.subr.mxu0 0.0
        %8324 = vmatpush1.msra.mxu0 0.0
        %8325 = vmatprep.subr.mxu0 0.0
        %8326 = vmatpush1.msra.mxu0 0.0
        %8327 = vmatprep.subr.mxu0 0.0
        %8328 = vmatpush1.msra.mxu0 0.0
        %8329 = vmatprep.subr.mxu0 0.0
        %8330 = vmatpush1.msra.mxu0 0.0
        %8331 = vmatprep.subr.mxu0 0.0
        %8332 = vmatpush1.msra.mxu0 0.0
        %8333 = vmatprep.subr.mxu0 0.0
        %8334 = vmatpush1.msra.mxu0 0.0
        %8335 = vmatprep.subr.mxu0 0.0
        %8336 = vmatpush1.msra.mxu0 0.0
        %8337 = vmatprep.subr.mxu0 0.0
        %8338 = vmatpush1.msra.mxu0 0.0
        %8339 = vmatprep.subr.mxu0 0.0
        %8340 = vmatpush1.msra.mxu0 0.0
        %8341 = vmatprep.subr.mxu0 0.0
        %8342 = vmatpush1.msra.mxu0 0.0
        %8343 = vmatprep.subr.mxu0 0.0
        %8344 = vmatpush1.msra.mxu0 0.0
        %8345 = vmatprep.subr.mxu0 0.0
        %8346 = vmatpush1.msra.mxu0 0.0
        %8347 = vmatprep.subr.mxu0 0.0
        %8348 = vmatpush1.msra.mxu0 0.0
        %8349 = vmatprep.subr.mxu0 0.0
        %8350 = vmatpush1.msra.mxu0 0.0
        %8351 = vmatprep.subr.mxu0 0.0
        %8352 = vmatpush1.msra.mxu0 0.0
        %8353 = vmatprep.subr.mxu0 0.0
        %8354 = vmatpush1.msra.mxu0 0.0
        %8355 = vmatprep.subr.mxu0 0.0
        %8356 = vmatpush1.msra.mxu0 0.0
        %8357 = vmatprep.subr.mxu0 0.0
        %8358 = vmatpush1.msra.mxu0 0.0
        %8359 = vmatprep.subr.mxu0 0.0
        %8360 = vmatpush1.msra.mxu0 0.0
        %8361 = vmatprep.subr.mxu0 0.0
        %8362 = vmatpush1.msra.mxu0 0.0
        %8363 = vmatprep.subr.mxu0 0.0
        %8364 = vmatpush1.msra.mxu0 0.0
        %8365 = vmatprep.subr.mxu0 0.0
        %8366 = vmatpush1.msra.mxu0 0.0
        %8367 = vmatprep.subr.mxu0 0.0
        %8368 = vmatpush1.msra.mxu0 0.0
        %8369 = vmatprep.subr.mxu0 0.0
        %8370 = vmatpush1.msra.mxu0 0.0
        %8371 = vmatprep.subr.mxu0 0.0
        %8372 = vmatpush1.msra.mxu0 0.0
        %8373 = vmatprep.mubr.f32.mxu0 0.0
        %8374 = vmatmul.mubr.f32.gmra.mrb[0].mxu0 %v8304
        %v8375 = vpop.f32.mrb[0].mxu0
        %v8376 = vadd.f32 %v8295, %v8375
        %v8377 = vpop.f32.mrb[0].mxu0
        %8378 = vmatprep.mubr.f32.mxu0 0.0
        %8379 = vmatmul.mubr.f32.gmra.mrb[0].mxu0 %v8307
        %v8380 = vpop.f32.mrb[0].mxu0
        %v8381 = vadd.f32 %v8300, %v8380
        %v8382 = vpop.f32.mrb[0].mxu0
        %8383 = vdwg.mxu0
        %v8384 = vld [vmem:[%s75] sm:$0x1]
        %v8385 = vld [vmem:[%s77] sm:$0x1]
        %v8386 = vsel %vm6058, %v8376, 0.0
        %8387 = vadd.xlane.f32.xlu0 %v8386
        %v8388 = vpop.xlane.xlu0 %8387
        %v8389 = vsel %vm6058, %v8381, 0.0
        %8390 = vadd.xlane.f32.xlu0 %v8389
        %v8391 = vpop.xlane.xlu0 %8390
        %v8392 = vmul.f32 %v8388, %v7707
        %v8393 = vmul.f32 %v8391, %v7707
        %v8394 = vsub.f32 %v8376, %v8392
        %v8395 = vsub.f32 %v8381, %v8393
        %v8396 = vmul.f32 %v8394, %v8394
        %v8397 = vmul.f32 %v8395, %v8395
        %v8398 = vsel %vm6058, %v8396, 0.0
        %8399 = vadd.xlane.f32.xlu0 %v8398
        %v8400 = vpop.xlane.xlu0 %8399
        %v8401 = vsel %vm6058, %v8397, 0.0
        %8402 = vadd.xlane.f32.xlu0 %v8401
        %v8403 = vpop.xlane.xlu0 %8402
        %v8404 = vmul.f32 %v8400, %v7707
        %v8405 = vmul.f32 %v8403, %v7707
        %v8406 = vadd.f32 %v8404, 1e-05
        %v8407 = vadd.f32 %v8405, 1e-05
        %v8408 = vrsqrt.pop %v8406
        %v8409 = vrsqrt.pop %v8407
        %v8410 = vmul.f32 %v8394, %v8408
        %v8411 = vmul.f32 %v8395, %v8409
        %v8413 = vlaneseq
        %v8414 = vshrl.u32 %v8413, 7
        %v8415 = vsub.s32 0, %v8414
        %v8416 = vrot.slane %v8384, %v8415
        %v8418 = vmul.f32 %v8410, %v8416
        %v8419 = vmul.f32 %v8411, %v8416
        %v8421 = vlaneseq
        %v8422 = vshrl.u32 %v8421, 7
        %v8423 = vsub.s32 0, %v8422
        %v8424 = vrot.slane %v8385, %v8423
        %v8426 = vadd.f32 %v8418, %v8424
        %v8427 = vadd.f32 %v8419, %v8424
        %v8429 = vsel %vm1401, 0.0625, 0
        %8431 = vmatprep.subr.mxu0 0.0
        %8432 = vmatpush1.msra.mxu0 %v8426
        %8433 = vmatprep.subr.mxu0 0.0
        %8434 = vmatpush1.msra.mxu0 %v8427
        %8435 = vmatprep.subr.mxu0 0.0
        %8436 = vmatpush1.msra.mxu0 0.0
        %8437 = vmatprep.subr.mxu0 0.0
        %8438 = vmatpush1.msra.mxu0 0.0
        %8439 = vmatprep.subr.mxu0 0.0
        %8440 = vmatpush1.msra.mxu0 0.0
        %8441 = vmatprep.subr.mxu0 0.0
        %8442 = vmatpush1.msra.mxu0 0.0
        %8443 = vmatprep.subr.mxu0 0.0
        %8444 = vmatpush1.msra.mxu0 0.0
        %8445 = vmatprep.subr.mxu0 0.0
        %8446 = vmatpush1.msra.mxu0 0.0
        %8447 = vmatprep.subr.mxu0 0.0
        %8448 = vmatpush1.msra.mxu0 0.0
        %8449 = vmatprep.subr.mxu0 0.0
        %8450 = vmatpush1.msra.mxu0 0.0
        %8451 = vmatprep.subr.mxu0 0.0
        %8452 = vmatpush1.msra.mxu0 0.0
        %8453 = vmatprep.subr.mxu0 0.0
        %8454 = vmatpush1.msra.mxu0 0.0
        %8455 = vmatprep.subr.mxu0 0.0
        %8456 = vmatpush1.msra.mxu0 0.0
        %8457 = vmatprep.subr.mxu0 0.0
        %8458 = vmatpush1.msra.mxu0 0.0
        %8459 = vmatprep.subr.mxu0 0.0
        %8460 = vmatpush1.msra.mxu0 0.0
        %8461 = vmatprep.subr.mxu0 0.0
        %8462 = vmatpush1.msra.mxu0 0.0
        %8463 = vmatprep.subr.mxu0 0.0
        %8464 = vmatpush1.msra.mxu0 0.0
        %8465 = vmatprep.subr.mxu0 0.0
        %8466 = vmatpush1.msra.mxu0 0.0
        %8467 = vmatprep.subr.mxu0 0.0
        %8468 = vmatpush1.msra.mxu0 0.0
        %8469 = vmatprep.subr.mxu0 0.0
        %8470 = vmatpush1.msra.mxu0 0.0
        %8471 = vmatprep.subr.mxu0 0.0
        %8472 = vmatpush1.msra.mxu0 0.0
        %8473 = vmatprep.subr.mxu0 0.0
        %8474 = vmatpush1.msra.mxu0 0.0
        %8475 = vmatprep.subr.mxu0 0.0
        %8476 = vmatpush1.msra.mxu0 0.0
        %8477 = vmatprep.subr.mxu0 0.0
        %8478 = vmatpush1.msra.mxu0 0.0
        %8479 = vmatprep.subr.mxu0 0.0
        %8480 = vmatpush1.msra.mxu0 0.0
        %8481 = vmatprep.subr.mxu0 0.0
        %8482 = vmatpush1.msra.mxu0 0.0
        %8483 = vmatprep.subr.mxu0 0.0
        %8484 = vmatpush1.msra.mxu0 0.0
        %8485 = vmatprep.subr.mxu0 0.0
        %8486 = vmatpush1.msra.mxu0 0.0
        %8487 = vmatprep.subr.mxu0 0.0
        %8488 = vmatpush1.msra.mxu0 0.0
        %8489 = vmatprep.subr.mxu0 0.0
        %8490 = vmatpush1.msra.mxu0 0.0
        %8491 = vmatprep.subr.mxu0 0.0
        %8492 = vmatpush1.msra.mxu0 0.0
        %8493 = vmatprep.subr.mxu0 0.0
        %8494 = vmatpush1.msra.mxu0 0.0
        %8495 = vmatprep.mubr.f32.mxu0 0.0
        %8496 = vmatmul.mubr.f32.gmra.mrb[0].mxu0 %v8429
        %v8497 = vpop.f32.mrb[0].mxu0
        %v8498 = vadd.f32 0.0, %v8497
        %v8499 = vpop.f32.mrb[0].mxu0
        %8500 = vdwg.mxu0
        %v8501 = vld [vmem:[%s79] sm:$0xff]
        %v8502 = vld [vmem:[%s79 + $0x8] sm:$0xff]
        %v8503 = vld [vmem:[%s79 + $0x10] sm:$0xff]
        %v8504 = vld [vmem:[%s79 + $0x18] sm:$0xff]
        %v8505 = vld [vmem:[%s81] sm:$0x1]
        %v8507 = vsel %vm6058, %v8498, 0
        %8509 = vmatprep.subr.mxu0 0.0
        %8510 = vmatpush1.msra.mxu0 %v8501
        %8511 = vmatprep.subr.mxu0 0.0
        %8512 = vmatpush1.msra.mxu0 %v8502
        %8513 = vmatprep.subr.mxu0 0.0
        %8514 = vmatpush1.msra.mxu0 %v8503
        %8515 = vmatprep.subr.mxu0 0.0
        %8516 = vmatpush1.msra.mxu0 %v8504
        %8517 = vmatprep.subr.mxu0 0.0
        %8518 = vmatpush1.msra.mxu0 0.0
        %8519 = vmatprep.subr.mxu0 0.0
        %8520 = vmatpush1.msra.mxu0 0.0
        %8521 = vmatprep.subr.mxu0 0.0
        %8522 = vmatpush1.msra.mxu0 0.0
        %8523 = vmatprep.subr.mxu0 0.0
        %8524 = vmatpush1.msra.mxu0 0.0
        %8525 = vmatprep.subr.mxu0 0.0
        %8526 = vmatpush1.msra.mxu0 0.0
        %8527 = vmatprep.subr.mxu0 0.0
        %8528 = vmatpush1.msra.mxu0 0.0
        %8529 = vmatprep.subr.mxu0 0.0
        %8530 = vmatpush1.msra.mxu0 0.0
        %8531 = vmatprep.subr.mxu0 0.0
        %8532 = vmatpush1.msra.mxu0 0.0
        %8533 = vmatprep.subr.mxu0 0.0
        %8534 = vmatpush1.msra.mxu0 0.0
        %8535 = vmatprep.subr.mxu0 0.0
        %8536 = vmatpush1.msra.mxu0 0.0
        %8537 = vmatprep.subr.mxu0 0.0
        %8538 = vmatpush1.msra.mxu0 0.0
        %8539 = vmatprep.subr.mxu0 0.0
        %8540 = vmatpush1.msra.mxu0 0.0
        %8541 = vmatprep.subr.mxu0 0.0
        %8542 = vmatpush1.msra.mxu0 0.0
        %8543 = vmatprep.subr.mxu0 0.0
        %8544 = vmatpush1.msra.mxu0 0.0
        %8545 = vmatprep.subr.mxu0 0.0
        %8546 = vmatpush1.msra.mxu0 0.0
        %8547 = vmatprep.subr.mxu0 0.0
        %8548 = vmatpush1.msra.mxu0 0.0
        %8549 = vmatprep.subr.mxu0 0.0
        %8550 = vmatpush1.msra.mxu0 0.0
        %8551 = vmatprep.subr.mxu0 0.0
        %8552 = vmatpush1.msra.mxu0 0.0
        %8553 = vmatprep.subr.mxu0 0.0
        %8554 = vmatpush1.msra.mxu0 0.0
        %8555 = vmatprep.subr.mxu0 0.0
        %8556 = vmatpush1.msra.mxu0 0.0
        %8557 = vmatprep.subr.mxu0 0.0
        %8558 = vmatpush1.msra.mxu0 0.0
        %8559 = vmatprep.subr.mxu0 0.0
        %8560 = vmatpush1.msra.mxu0 0.0
        %8561 = vmatprep.subr.mxu0 0.0
        %8562 = vmatpush1.msra.mxu0 0.0
        %8563 = vmatprep.subr.mxu0 0.0
        %8564 = vmatpush1.msra.mxu0 0.0
        %8565 = vmatprep.subr.mxu0 0.0
        %8566 = vmatpush1.msra.mxu0 0.0
        %8567 = vmatprep.subr.mxu0 0.0
        %8568 = vmatpush1.msra.mxu0 0.0
        %8569 = vmatprep.subr.mxu0 0.0
        %8570 = vmatpush1.msra.mxu0 0.0
        %8571 = vmatprep.subr.mxu0 0.0
        %8572 = vmatpush1.msra.mxu0 0.0
        %8573 = vmatprep.mubr.f32.mxu0 0.0
        %8574 = vmatmul.mubr.f32.gmra.mrb[0].mxu0 %v8507
        %v8575 = vpop.f32.mrb[0].mxu0
        %v8576 = vadd.f32 %v8505, %v8575
        %v8577 = vpop.f32.mrb[0].mxu0
        %8578 = vdwg.mxu0
        %vm8579 = vcmask 73728
        %8580 = vst.msk [vmem:[%s1231] sm:$0x1] %vm8579, %v8576
        %s8581 = sand.u32 %s971, 1
        %s8582 = scalar_lea.sflag [#allocation3], %s8581
        %s8583 = sand.u32 %s971, 1
        %s8584 = scalar_lea.vmem [#allocation2], %s8583
        // Predicated region
        $region185: #{swin_forward.1} parent=183 // pred_check
          %p8585 = pneg %p981
        $region186: #{swin_forward.1} parent=183 // pred_check_branch
          %8587 = sbr.rel (%p8585) target = $region188
        $region187: #{swin_forward.1} parent=183 // pred_region
          %s8589 = ssub.s32 16, 16
          %8590 = vsyncadd %s8582, %s8589
          %s8591 = smul.addr %s97, 16
          %s8592 = scalar_lea.hbm %s83, %s8591
          %s8594 = sshll.u32 %s8584, 4
          %s8595 = int_to_ptr.vmem [resolvable:$true] %s8594
          %8597 = dma.vmem_to_hbm [thread:$0]  %s8595, 16, %s8592, %s8582
        $region188: #{swin_forward.1} parent=183 // pred_fallthru
          _
      $region184: #{swin_forward.1} parent=5 // pred_fallthru
        _
      %p8598 = scmp.le.s32.totalorder 2, %s92
      // Predicated region
      $region189: #{swin_forward.1} parent=5 // pred_check
        %p8599 = pneg %p8598
      $region190: #{swin_forward.1} parent=5 // pred_check_branch
        %8601 = sbr.rel (%p8599) target = $region192
      $region191: #{swin_forward.1} parent=5 // pred_region
        %s8602 = ssub.s32 %s92, 2
        // Predicated region
        $region193: #{swin_forward.1} parent=191 // pred_check
          %p8603 = pneg %p987
        $region194: #{swin_forward.1} parent=191 // pred_check_branch
          %8605 = sbr.rel (%p8603) target = $region196
        $region195: #{swin_forward.1} parent=191 // pred_region
          %s8606 = sand.u32 %s972, 1
          %s8607 = scalar_lea.sflag [#allocation3], %s8606
          %s8608 = sand.u32 %s972, 1
          %s8609 = scalar_lea.vmem [#allocation2], %s8608
          %8610 = dma.done %s8607, 16
        $region196: #{swin_forward.1} parent=191 // pred_fallthru
          _
      $region192: #{swin_forward.1} parent=5 // pred_fallthru
        _
    $region6: #{swin_forward.1} parent=1 // loop_footer
      %s96 = sadd.s32 1, %s92
    $region7: #{swin_forward.1} parent=1 // loop_footer_branch
      %91 = sbr.rel target = $region3
    $region8: #{swin_forward.1} parent=1 // loop_exit
      _
    %8611 = vsyncpa [#allocation3], 1
    %s8612 = scalar_lea.sflag [#allocation3], 1
    %8613 = vsyncpa %s8612, 1

</llo_original>
